<compile_context>
chip_gen: v7x
topology: tpu7x:2x2x1
jax: 0.10.0
libtpu: 0.0.40
codegen_flags: <defaults>
</compile_context>

<pallas_src>
import functools

import jax
import jax.numpy as jnp
from jax import lax
from jax.experimental import pallas as pl
from jax.experimental.pallas import tpu as pltpu

EPS = 1e-5  # ContBatchNorm2d default eps
_HIGHEST = lax.Precision.HIGHEST


# --------------------------------------------------------------------------- kernel
def _down_transition_kernel(*refs, n, h, w, cout, pool):
    """Fused DownTransition forward.

    pool=True refs:
      x(n,h,w*cin), band1(3,w*cin,w*cout), gamma1(1,w*cout), beta1(1,w*cout),
      band2(3,w*cout,w*cout), gamma2, beta2, gmat(w*cout,w*cout),
      selA(w*cout,(w//2)*cout), selB, rowA(n*h//2,n*h), rowB,
      out(n,h,w*cout), pooled(n,h//2,(w//2)*cout),
      xpad scratch(n,h+2,w*cin), hpad scratch(n,h+2,w*cout)
    """
    if pool:
        (x_ref, band1_ref, g1_ref, be1_ref, band2_ref, g2_ref, be2_ref,
         gmat_ref, sela_ref, selb_ref, rowa_ref, rowb_ref,
         out_ref, pool_ref, xpad_ref, hpad_ref) = refs
    else:
        (x_ref, band1_ref, g1_ref, be1_ref, band2_ref, g2_ref, be2_ref,
         gmat_ref, out_ref, xpad_ref, hpad_ref) = refs

    inv_m = 1.0 / float(n * h * w)

    def conv_bn_relu(pad_ref, band_ref, gamma_ref, beta_ref):
        # pad_ref : (n, h+2, w*cl)  H-zero-padded, lane-dense layer input
        # band_ref: (3, w*cl, w*cout) banded weights, one per row tap dh;
        #           the band implements SAME zero padding along W.
        xp = pad_ref[...]
        wk = xp.shape[-1]
        acc = jnp.zeros((n * h, w * cout), jnp.float32)
        for dh in range(3):
            rows = xp[:, dh:dh + h, :].reshape(n * h, wk)
            acc = acc + jnp.dot(rows, band_ref[dh],
                                preferred_element_type=jnp.float32,
                                precision=_HIGHEST)

        # ContBatchNorm2d: always uses *current batch* statistics (biased var
        # over N*H*W per channel).  Conv bias is omitted: a per-channel
        # constant is cancelled exactly by the mean subtraction below.
        colsum = jnp.sum(acc, axis=0, keepdims=True)              # (1, w*cout)
        colsq = jnp.sum(acc * acc, axis=0, keepdims=True)         # (1, w*cout)
        # Fold the W groups per channel with a 0/1 matmul -> per-channel stats
        # replicated across the lane dim.
        mean = jnp.dot(colsum, gmat_ref[...],
                       preferred_element_type=jnp.float32,
                       precision=_HIGHEST) * inv_m
        ex2 = jnp.dot(colsq, gmat_ref[...],
                      preferred_element_type=jnp.float32,
                      precision=_HIGHEST) * inv_m
        var = ex2 - mean * mean
        scale = gamma_ref[...] * lax.rsqrt(var + EPS)             # folded scale
        shift = beta_ref[...] - mean * scale                      # folded shift
        return jnp.maximum(acc * scale + shift, 0.0)              # (n*h, w*cout)

    # ---- layer 1: write the H halo (zeros) + interior into VMEM scratch ----
    cin_lanes = x_ref.shape[-1]
    zx = jnp.zeros((n, 1, cin_lanes), jnp.float32)
    xpad_ref[:, 0:1, :] = zx
    xpad_ref[:, h + 1:h + 2, :] = zx
    xpad_ref[:, 1:h + 1, :] = x_ref[...]

    h1 = conv_bn_relu(xpad_ref, band1_ref, g1_ref, be1_ref)       # (n*h, w*cout)

    # ---- layer 2 ----
    zh = jnp.zeros((n, 1, w * cout), jnp.float32)
    hpad_ref[:, 0:1, :] = zh
    hpad_ref[:, h + 1:h + 2, :] = zh
    hpad_ref[:, 1:h + 1, :] = h1.reshape(n, h, w * cout)

    h2 = conv_bn_relu(hpad_ref, band2_ref, g2_ref, be2_ref)       # (n*h, w*cout)

    # lane-dense output store (w*cout lanes -> unmasked vst)
    out_ref[...] = h2.reshape(n, h, w * cout)

    if pool:
        # 2x2 max pool, stride 2, done with 0/1 selection matmuls so the data
        # stays lane-dense and no strided sublane slicing is needed.
        wpool = jnp.maximum(
            jnp.dot(h2, sela_ref[...], preferred_element_type=jnp.float32,
                    precision=_HIGHEST),
            jnp.dot(h2, selb_ref[...], preferred_element_type=jnp.float32,
                    precision=_HIGHEST))                          # (n*h, (w//2)*cout)
        pooled = jnp.maximum(
            jnp.dot(rowa_ref[...], wpool, preferred_element_type=jnp.float32,
                    precision=_HIGHEST),
            jnp.dot(rowb_ref[...], wpool, preferred_element_type=jnp.float32,
                    precision=_HIGHEST))                          # (n*h//2, (w//2)*cout)
        pool_ref[...] = pooled.reshape(n, h // 2, (w // 2) * cout)


# --------------------------------------------------------------------------- wrapper helpers
def _banded_conv_weights(w_hwio, width):
    """(3,3,Cin,Cout) HWIO weights -> (3, width*Cin, width*Cout) banded
    (Toeplitz-along-W) matrices.  The band implements SAME zero padding in W.
    band[dh, p*Cin+ci, j*Cout+co] = w[dh, p-j+1, ci, co] if 0 <= p-j+1 < 3."""
    kh, kw, cin, cout = w_hwio.shape
    jp = jnp.arange(width)[None, :, None]
    j = jnp.arange(width)[None, None, :]
    d = jnp.arange(kw)[:, None, None]
    sel = (jp - j + 1 == d).astype(w_hwio.dtype)                  # (kw, W, W)
    band = jnp.einsum('dpj,hdio->hpijo', sel, w_hwio,
                      precision=_HIGHEST)                         # (kh,W,cin,W,cout)
    return band.reshape(kh, width * cin, width * cout)


def _channel_sum_matrix(width, cout, dtype=jnp.float32):
    """(W*C, W*C) 0/1 matrix: colsum @ G = per-channel sums replicated over W."""
    ch = jnp.arange(width * cout) % cout
    return (ch[:, None] == ch[None, :]).astype(dtype)


def _pool_matrices(n, h, w, cout, dtype=jnp.float32):
    """0/1 selection matrices for the 2x2 max pool done as matmuls."""
    cols_in = jnp.arange(w * cout)
    cols_out = jnp.arange((w // 2) * cout)
    bi, ci = cols_in // cout, cols_in % cout
    bo, co = cols_out // cout, cols_out % cout
    same_c = ci[:, None] == co[None, :]
    sel_a = ((bi[:, None] == 2 * bo[None, :]) & same_c).astype(dtype)
    sel_b = ((bi[:, None] == 2 * bo[None, :] + 1) & same_c).astype(dtype)

    rows_out = jnp.arange(n * (h // 2))
    rows_in = jnp.arange(n * h)
    src_even = (rows_out // (h // 2)) * h + 2 * (rows_out % (h // 2))
    row_a = (rows_in[None, :] == src_even[:, None]).astype(dtype)
    row_b = (rows_in[None, :] == (src_even + 1)[:, None]).astype(dtype)
    return sel_a, sel_b, row_a, row_b


# --------------------------------------------------------------------------- forward
def down_transition_forward(x_nchw, params, pol=True):
    """DownTransition.forward: returns (out, out_before_pool), both NCHW."""
    w1, _b1, g1, be1 = params["layer1"]   # conv bias unused: cancelled by BN
    w2, _b2, g2, be2 = params["layer2"]
    N, Cin, H, W = x_nchw.shape
    Cout = w1.shape[-1]
    if pol:
        # TODO(synk): odd H/W would need PyTorch MaxPool2d floor semantics.
        assert H % 2 == 0 and W % 2 == 0

    # NCHW -> lane-dense (N, H, W*Cin); XLA fuses this with the transpose.
    x = jnp.transpose(x_nchw, (0, 2, 3, 1)).reshape(N, H, W * Cin)

    band1 = _banded_conv_weights(w1, W)                 # (3, W*Cin,  W*Cout)
    band2 = _banded_conv_weights(w2, W)                 # (3, W*Cout, W*Cout)
    g1w = jnp.tile(g1.reshape(1, Cout), (1, W))         # (1, W*Cout)
    be1w = jnp.tile(be1.reshape(1, Cout), (1, W))
    g2w = jnp.tile(g2.reshape(1, Cout), (1, W))
    be2w = jnp.tile(be2.reshape(1, Cout), (1, W))
    gmat = _channel_sum_matrix(W, Cout)                 # (W*Cout, W*Cout)

    kernel = functools.partial(_down_transition_kernel,
                               n=N, h=H, w=W, cout=Cout, pool=pol)
    scratch = [pltpu.VMEM((N, H + 2, W * Cin), jnp.float32),
               pltpu.VMEM((N, H + 2, W * Cout), jnp.float32)]

    if pol:
        sel_a, sel_b, row_a, row_b = _pool_matrices(N, H, W, Cout)
        out_flat, pool_flat = pl.pallas_call(
            kernel,
            out_shape=(
                jax.ShapeDtypeStruct((N, H, W * Cout), jnp.float32),
                jax.ShapeDtypeStruct((N, H // 2, (W // 2) * Cout), jnp.float32),
            ),
            scratch_shapes=scratch,
        )(x, band1, g1w, be1w, band2, g2w, be2w, gmat,
          sel_a, sel_b, row_a, row_b)
        before = jnp.transpose(out_flat.reshape(N, H, W, Cout), (0, 3, 1, 2))
        out = jnp.transpose(pool_flat.reshape(N, H // 2, W // 2, Cout),
                            (0, 3, 1, 2))
        return out, before
    else:
        out_flat = pl.pallas_call(
            kernel,
            out_shape=jax.ShapeDtypeStruct((N, H, W * Cout), jnp.float32),
            scratch_shapes=scratch,
        )(x, band1, g1w, be1w, band2, g2w, be2w, gmat)
        before = jnp.transpose(out_flat.reshape(N, H, W, Cout), (0, 3, 1, 2))
        return before, before


# --------------------------------------------------------------------------- params
def _init_luconv_params(key, cin, cout):
    kw_, kb = jax.random.split(key)
    fan_in = cin * 9
    bound = 1.0 / jnp.sqrt(fan_in)
    w = jax.random.uniform(kw_, (3, 3, cin, cout), jnp.float32, -bound, bound)
    b = jax.random.uniform(kb, (1, cout), jnp.float32, -bound, bound)
    gamma = jnp.ones((1, cout), jnp.float32)
    beta = jnp.zeros((1, cout), jnp.float32)
    return (w, b, gamma, beta)


def init_params(key, in_channel, depth):
    k1, k2 = jax.random.split(key)
    return {
        "layer1": _init_luconv_params(k1, in_channel, depth),
        "layer2": _init_luconv_params(k2, depth, depth),
    }


# --------------------------------------------------------------------------- pure-JAX reference
def _reference_luconv(x, w, b, gamma, beta):
    y = lax.conv_general_dilated(
        x, w, window_strides=(1, 1), padding="SAME",
        dimension_numbers=("NHWC", "HWIO", "NHWC"),
        precision=_HIGHEST)
    y = y + b.reshape(1, 1, 1, -1)  # bias kept here: cancelled by BN below
    mean = jnp.mean(y, axis=(0, 1, 2), keepdims=True)
    var = jnp.mean(jnp.square(y - mean), axis=(0, 1, 2), keepdims=True)
    y = (y - mean) * lax.rsqrt(var + EPS)
    y = y * gamma.reshape(1, 1, 1, -1) + beta.reshape(1, 1, 1, -1)
    return jnp.maximum(y, 0.0)


def reference_forward(x_nchw, params, pol=True):
    x = jnp.transpose(x_nchw, (0, 2, 3, 1))
    h1 = _reference_luconv(x, *params["layer1"])
    h2 = _reference_luconv(h1, *params["layer2"])
    before = jnp.transpose(h2, (0, 3, 1, 2))
    if pol:
        N, H, W, C = h2.shape
        pooled = h2.reshape(N, H // 2, 2, W // 2, 2, C).max(axis=(2, 4))
        out = jnp.transpose(pooled, (0, 3, 1, 2))
    else:
        out = before
    return out, before


# --------------------------------------------------------------------------- main
if __name__ == "__main__":
    N, Cin, H, W = 2, 4, 16, 16     # PyTorch NCHW input shape
    depth = 8

    key = jax.random.PRNGKey(0)
    kx, kp = jax.random.split(key)
    x_nchw = jax.random.normal(kx, (N, Cin, H, W), jnp.float32)
    params = init_params(kp, Cin, depth)

    # pol=True path (DownTransition with max pool)
    fwd = jax.jit(functools.partial(down_transition_forward, pol=True))
    out, out_before_pool = fwd(x_nchw, params)
    jax.block_until_ready((out, out_before_pool))

    assert out.shape == (N, depth, H // 2, W // 2)
    assert out_before_pool.shape == (N, depth, H, W)

    ref_out, ref_before = reference_forward(x_nchw, params, pol=True)
    assert jnp.allclose(out_before_pool, ref_before, atol=1e-2, rtol=1e-2), (
        float(jnp.max(jnp.abs(out_before_pool - ref_before))))
    assert jnp.allclose(out, ref_out, atol=1e-2, rtol=1e-2), (
        float(jnp.max(jnp.abs(out - ref_out))))

    # pol=False path (as used by down_trf in the model)
    fwd_np = jax.jit(functools.partial(down_transition_forward, pol=False))
    out2, before2 = fwd_np(x_nchw, params)
    jax.block_until_ready((out2, before2))
    ref_out2, ref_before2 = reference_forward(x_nchw, params, pol=False)
    assert jnp.allclose(before2, ref_before2, atol=1e-2, rtol=1e-2)
    assert jnp.allclose(out2, ref_out2, atol=1e-2, rtol=1e-2)

    print("KERNEL_OK")
</pallas_src>

<mosaic_0001>
module attributes {stable_mosaic.version = 11 : i64} {
  func.func @_down_transition_kernel(%arg0: memref<2x16x64xf32, #tpu.memory_space<vmem>>, %arg1: memref<3x64x128xf32, #tpu.memory_space<vmem>>, %arg2: memref<1x128xf32, #tpu.memory_space<vmem>>, %arg3: memref<1x128xf32, #tpu.memory_space<vmem>>, %arg4: memref<3x128x128xf32, #tpu.memory_space<vmem>>, %arg5: memref<1x128xf32, #tpu.memory_space<vmem>>, %arg6: memref<1x128xf32, #tpu.memory_space<vmem>>, %arg7: memref<128x128xf32, #tpu.memory_space<vmem>>, %arg8: memref<128x64xf32, #tpu.memory_space<vmem>>, %arg9: memref<128x64xf32, #tpu.memory_space<vmem>>, %arg10: memref<16x32xf32, #tpu.memory_space<vmem>>, %arg11: memref<16x32xf32, #tpu.memory_space<vmem>>, %arg12: memref<2x16x128xf32, #tpu.memory_space<vmem>>, %arg13: memref<2x8x64xf32, #tpu.memory_space<vmem>>, %arg14: memref<2x18x64xf32, #tpu.memory_space<vmem>>, %arg15: memref<2x18x128xf32, #tpu.memory_space<vmem>>) attributes {dimension_semantics = [], scalar_prefetch = 0 : i64, scratch_operands = 2 : i64, tpu.core_type = #tpu.core_type<tc>} {
    %cst = arith.constant 0.000000e+00 : f32
    %0 = vector.broadcast %cst : f32 to vector<2x1x64xf32>
    %c0 = arith.constant 0 : index
    %c0_0 = arith.constant 0 : index
    %c0_1 = arith.constant 0 : index
    %1 = vector.load %arg14[%c0, %c0_0, %c0_1] : memref<2x18x64xf32, #tpu.memory_space<vmem>>, vector<2x1x64xf32>
    tpu.vector_store %arg14[%c0, %c0_0, %c0_1], %0 {strides = array<i32>} : memref<2x18x64xf32, #tpu.memory_space<vmem>>, vector<2x1x64xf32>,
    %c0_2 = arith.constant 0 : index
    %c17 = arith.constant 17 : index
    %c0_3 = arith.constant 0 : index
    %2 = vector.load %arg14[%c0_2, %c17, %c0_3] : memref<2x18x64xf32, #tpu.memory_space<vmem>>, vector<2x1x64xf32>
    tpu.vector_store %arg14[%c0_2, %c17, %c0_3], %0 {strides = array<i32>} : memref<2x18x64xf32, #tpu.memory_space<vmem>>, vector<2x1x64xf32>,
    %c0_4 = arith.constant 0 : index
    %c0_5 = arith.constant 0 : index
    %c0_6 = arith.constant 0 : index
    %3 = vector.load %arg0[%c0_4, %c0_5, %c0_6] : memref<2x16x64xf32, #tpu.memory_space<vmem>>, vector<2x16x64xf32>
    %c0_7 = arith.constant 0 : index
    %c1 = arith.constant 1 : index
    %c0_8 = arith.constant 0 : index
    %4 = vector.load %arg14[%c0_7, %c1, %c0_8] : memref<2x18x64xf32, #tpu.memory_space<vmem>>, vector<2x16x64xf32>
    tpu.vector_store %arg14[%c0_7, %c1, %c0_8], %3 {strides = array<i32>} : memref<2x18x64xf32, #tpu.memory_space<vmem>>, vector<2x16x64xf32>,
    %c0_9 = arith.constant 0 : index
    %c0_10 = arith.constant 0 : index
    %c0_11 = arith.constant 0 : index
    %5 = vector.load %arg14[%c0_9, %c0_10, %c0_11] : memref<2x18x64xf32, #tpu.memory_space<vmem>>, vector<2x18x64xf32>
    %cst_12 = arith.constant 0.000000e+00 : f32
    %6 = vector.broadcast %cst_12 : f32 to vector<32x128xf32>
    %7 = vector.extract_strided_slice %5 {offsets = [0, 0, 0], sizes = [2, 16, 64], strides = [1, 1, 1]} : vector<2x18x64xf32> to vector<2x16x64xf32>
    %8 = vector.shape_cast %7 : vector<2x16x64xf32> to vector<32x64xf32>
    %c0_13 = arith.constant 0 : index
    %c0_14 = arith.constant 0 : index
    %c0_15 = arith.constant 0 : index
    %9 = vector.load %arg1[%c0_13, %c0_14, %c0_15] : memref<3x64x128xf32, #tpu.memory_space<vmem>>, vector<1x64x128xf32>
    %10 = vector.shape_cast %9 : vector<1x64x128xf32> to vector<64x128xf32>
    %cst_16 = arith.constant dense<0.000000e+00> : vector<32x128xf32>
    %11 = tpu.matmul %8, %10, %cst_16 {dimension_numbers = #tpu.dot_dimension_numbers<[1], [0], [0], [1], [0, 0, 1, 1], [], []>, precision = #tpu.contract_precision<fp32>} : vector<32x64xf32>, vector<64x128xf32>, vector<32x128xf32> -> vector<32x128xf32>
    %12 = arith.addf %6, %11 : vector<32x128xf32>
    %13 = vector.extract_strided_slice %5 {offsets = [0, 1, 0], sizes = [2, 16, 64], strides = [1, 1, 1]} : vector<2x18x64xf32> to vector<2x16x64xf32>
    %14 = vector.shape_cast %13 : vector<2x16x64xf32> to vector<32x64xf32>
    %c1_17 = arith.constant 1 : index
    %c0_18 = arith.constant 0 : index
    %c0_19 = arith.constant 0 : index
    %15 = vector.load %arg1[%c1_17, %c0_18, %c0_19] : memref<3x64x128xf32, #tpu.memory_space<vmem>>, vector<1x64x128xf32>
    %16 = vector.shape_cast %15 : vector<1x64x128xf32> to vector<64x128xf32>
    %cst_20 = arith.constant dense<0.000000e+00> : vector<32x128xf32>
    %17 = tpu.matmul %14, %16, %cst_20 {dimension_numbers = #tpu.dot_dimension_numbers<[1], [0], [0], [1], [0, 0, 1, 1], [], []>, precision = #tpu.contract_precision<fp32>} : vector<32x64xf32>, vector<64x128xf32>, vector<32x128xf32> -> vector<32x128xf32>
    %18 = arith.addf %12, %17 : vector<32x128xf32>
    %19 = vector.extract_strided_slice %5 {offsets = [0, 2, 0], sizes = [2, 16, 64], strides = [1, 1, 1]} : vector<2x18x64xf32> to vector<2x16x64xf32>
    %20 = vector.shape_cast %19 : vector<2x16x64xf32> to vector<32x64xf32>
    %c2 = arith.constant 2 : index
    %c0_21 = arith.constant 0 : index
    %c0_22 = arith.constant 0 : index
    %21 = vector.load %arg1[%c2, %c0_21, %c0_22] : memref<3x64x128xf32, #tpu.memory_space<vmem>>, vector<1x64x128xf32>
    %22 = vector.shape_cast %21 : vector<1x64x128xf32> to vector<64x128xf32>
    %cst_23 = arith.constant dense<0.000000e+00> : vector<32x128xf32>
    %23 = tpu.matmul %20, %22, %cst_23 {dimension_numbers = #tpu.dot_dimension_numbers<[1], [0], [0], [1], [0, 0, 1, 1], [], []>, precision = #tpu.contract_precision<fp32>} : vector<32x64xf32>, vector<64x128xf32>, vector<32x128xf32> -> vector<32x128xf32>
    %24 = arith.addf %18, %23 : vector<32x128xf32>
    %cst_24 = arith.constant dense<0.000000e+00> : vector<128xf32>
    %25 = vector.multi_reduction <add>, %24, %cst_24 [0] : vector<32x128xf32> to vector<128xf32>
    %26 = vector.shape_cast %25 : vector<128xf32> to vector<1x128xf32>
    %27 = arith.mulf %24, %24 : vector<32x128xf32>
    %cst_25 = arith.constant dense<0.000000e+00> : vector<128xf32>
    %28 = vector.multi_reduction <add>, %27, %cst_25 [0] : vector<32x128xf32> to vector<128xf32>
    %29 = vector.shape_cast %28 : vector<128xf32> to vector<1x128xf32>
    %c0_26 = arith.constant 0 : index
    %c0_27 = arith.constant 0 : index
    %30 = vector.load %arg7[%c0_26, %c0_27] : memref<128x128xf32, #tpu.memory_space<vmem>>, vector<128x128xf32>
    %cst_28 = arith.constant dense<0.000000e+00> : vector<1x128xf32>
    %31 = tpu.matmul %26, %30, %cst_28 {dimension_numbers = #tpu.dot_dimension_numbers<[1], [0], [0], [1], [0, 0, 1, 1], [], []>, precision = #tpu.contract_precision<fp32>} : vector<1x128xf32>, vector<128x128xf32>, vector<1x128xf32> -> vector<1x128xf32>
    %cst_29 = arith.constant 0.001953125 : f32
    %32 = vector.broadcast %cst_29 : f32 to vector<1x128xf32>
    %33 = arith.mulf %31, %32 : vector<1x128xf32>
    %c0_30 = arith.constant 0 : index
    %c0_31 = arith.constant 0 : index
    %34 = vector.load %arg7[%c0_30, %c0_31] : memref<128x128xf32, #tpu.memory_space<vmem>>, vector<128x128xf32>
    %cst_32 = arith.constant dense<0.000000e+00> : vector<1x128xf32>
    %35 = tpu.matmul %29, %34, %cst_32 {dimension_numbers = #tpu.dot_dimension_numbers<[1], [0], [0], [1], [0, 0, 1, 1], [], []>, precision = #tpu.contract_precision<fp32>} : vector<1x128xf32>, vector<128x128xf32>, vector<1x128xf32> -> vector<1x128xf32>
    %cst_33 = arith.constant 0.001953125 : f32
    %36 = vector.broadcast %cst_33 : f32 to vector<1x128xf32>
    %37 = arith.mulf %35, %36 : vector<1x128xf32>
    %38 = arith.mulf %33, %33 : vector<1x128xf32>
    %39 = arith.subf %37, %38 : vector<1x128xf32>
    %c0_34 = arith.constant 0 : index
    %c0_35 = arith.constant 0 : index
    %40 = vector.load %arg2[%c0_34, %c0_35] : memref<1x128xf32, #tpu.memory_space<vmem>>, vector<1x128xf32>
    %cst_36 = arith.constant 9.99999974E-6 : f32
    %41 = vector.broadcast %cst_36 : f32 to vector<1x128xf32>
    %42 = arith.addf %39, %41 : vector<1x128xf32>
    %43 = math.rsqrt %42 : vector<1x128xf32>
    %44 = arith.mulf %40, %43 : vector<1x128xf32>
    %c0_37 = arith.constant 0 : index
    %c0_38 = arith.constant 0 : index
    %45 = vector.load %arg3[%c0_37, %c0_38] : memref<1x128xf32, #tpu.memory_space<vmem>>, vector<1x128xf32>
    %46 = arith.mulf %33, %44 : vector<1x128xf32>
    %47 = arith.subf %45, %46 : vector<1x128xf32>
    %48 = vector.broadcast %44 : vector<1x128xf32> to vector<32x128xf32>
    %49 = arith.mulf %24, %48 : vector<32x128xf32>
    %50 = vector.broadcast %47 : vector<1x128xf32> to vector<32x128xf32>
    %51 = arith.addf %49, %50 : vector<32x128xf32>
    %cst_39 = arith.constant 0.000000e+00 : f32
    %52 = vector.broadcast %cst_39 : f32 to vector<32x128xf32>
    %53 = arith.maximumf %51, %52 : vector<32x128xf32>
    %cst_40 = arith.constant 0.000000e+00 : f32
    %54 = vector.broadcast %cst_40 : f32 to vector<2x1x128xf32>
    %c0_41 = arith.constant 0 : index
    %c0_42 = arith.constant 0 : index
    %c0_43 = arith.constant 0 : index
    %55 = vector.load %arg15[%c0_41, %c0_42, %c0_43] : memref<2x18x128xf32, #tpu.memory_space<vmem>>, vector<2x1x128xf32>
    tpu.vector_store %arg15[%c0_41, %c0_42, %c0_43], %54 {strides = array<i32>} : memref<2x18x128xf32, #tpu.memory_space<vmem>>, vector<2x1x128xf32>,
    %c0_44 = arith.constant 0 : index
    %c17_45 = arith.constant 17 : index
    %c0_46 = arith.constant 0 : index
    %56 = vector.load %arg15[%c0_44, %c17_45, %c0_46] : memref<2x18x128xf32, #tpu.memory_space<vmem>>, vector<2x1x128xf32>
    tpu.vector_store %arg15[%c0_44, %c17_45, %c0_46], %54 {strides = array<i32>} : memref<2x18x128xf32, #tpu.memory_space<vmem>>, vector<2x1x128xf32>,
    %57 = vector.shape_cast %53 : vector<32x128xf32> to vector<2x16x128xf32>
    %c0_47 = arith.constant 0 : index
    %c1_48 = arith.constant 1 : index
    %c0_49 = arith.constant 0 : index
    %58 = vector.load %arg15[%c0_47, %c1_48, %c0_49] : memref<2x18x128xf32, #tpu.memory_space<vmem>>, vector<2x16x128xf32>
    tpu.vector_store %arg15[%c0_47, %c1_48, %c0_49], %57 {strides = array<i32>} : memref<2x18x128xf32, #tpu.memory_space<vmem>>, vector<2x16x128xf32>,
    %c0_50 = arith.constant 0 : index
    %c0_51 = arith.constant 0 : index
    %c0_52 = arith.constant 0 : index
    %59 = vector.load %arg15[%c0_50, %c0_51, %c0_52] : memref<2x18x128xf32, #tpu.memory_space<vmem>>, vector<2x18x128xf32>
    %cst_53 = arith.constant 0.000000e+00 : f32
    %60 = vector.broadcast %cst_53 : f32 to vector<32x128xf32>
    %61 = vector.extract_strided_slice %59 {offsets = [0, 0, 0], sizes = [2, 16, 128], strides = [1, 1, 1]} : vector<2x18x128xf32> to vector<2x16x128xf32>
    %62 = vector.shape_cast %61 : vector<2x16x128xf32> to vector<32x128xf32>
    %c0_54 = arith.constant 0 : index
    %c0_55 = arith.constant 0 : index
    %c0_56 = arith.constant 0 : index
    %63 = vector.load %arg4[%c0_54, %c0_55, %c0_56] : memref<3x128x128xf32, #tpu.memory_space<vmem>>, vector<1x128x128xf32>
    %64 = vector.shape_cast %63 : vector<1x128x128xf32> to vector<128x128xf32>
    %cst_57 = arith.constant dense<0.000000e+00> : vector<32x128xf32>
    %65 = tpu.matmul %62, %64, %cst_57 {dimension_numbers = #tpu.dot_dimension_numbers<[1], [0], [0], [1], [0, 0, 1, 1], [], []>, precision = #tpu.contract_precision<fp32>} : vector<32x128xf32>, vector<128x128xf32>, vector<32x128xf32> -> vector<32x128xf32>
    %66 = arith.addf %60, %65 : vector<32x128xf32>
    %67 = vector.extract_strided_slice %59 {offsets = [0, 1, 0], sizes = [2, 16, 128], strides = [1, 1, 1]} : vector<2x18x128xf32> to vector<2x16x128xf32>
    %68 = vector.shape_cast %67 : vector<2x16x128xf32> to vector<32x128xf32>
    %c1_58 = arith.constant 1 : index
    %c0_59 = arith.constant 0 : index
    %c0_60 = arith.constant 0 : index
    %69 = vector.load %arg4[%c1_58, %c0_59, %c0_60] : memref<3x128x128xf32, #tpu.memory_space<vmem>>, vector<1x128x128xf32>
    %70 = vector.shape_cast %69 : vector<1x128x128xf32> to vector<128x128xf32>
    %cst_61 = arith.constant dense<0.000000e+00> : vector<32x128xf32>
    %71 = tpu.matmul %68, %70, %cst_61 {dimension_numbers = #tpu.dot_dimension_numbers<[1], [0], [0], [1], [0, 0, 1, 1], [], []>, precision = #tpu.contract_precision<fp32>} : vector<32x128xf32>, vector<128x128xf32>, vector<32x128xf32> -> vector<32x128xf32>
    %72 = arith.addf %66, %71 : vector<32x128xf32>
    %73 = vector.extract_strided_slice %59 {offsets = [0, 2, 0], sizes = [2, 16, 128], strides = [1, 1, 1]} : vector<2x18x128xf32> to vector<2x16x128xf32>
    %74 = vector.shape_cast %73 : vector<2x16x128xf32> to vector<32x128xf32>
    %c2_62 = arith.constant 2 : index
    %c0_63 = arith.constant 0 : index
    %c0_64 = arith.constant 0 : index
    %75 = vector.load %arg4[%c2_62, %c0_63, %c0_64] : memref<3x128x128xf32, #tpu.memory_space<vmem>>, vector<1x128x128xf32>
    %76 = vector.shape_cast %75 : vector<1x128x128xf32> to vector<128x128xf32>
    %cst_65 = arith.constant dense<0.000000e+00> : vector<32x128xf32>
    %77 = tpu.matmul %74, %76, %cst_65 {dimension_numbers = #tpu.dot_dimension_numbers<[1], [0], [0], [1], [0, 0, 1, 1], [], []>, precision = #tpu.contract_precision<fp32>} : vector<32x128xf32>, vector<128x128xf32>, vector<32x128xf32> -> vector<32x128xf32>
    %78 = arith.addf %72, %77 : vector<32x128xf32>
    %cst_66 = arith.constant dense<0.000000e+00> : vector<128xf32>
    %79 = vector.multi_reduction <add>, %78, %cst_66 [0] : vector<32x128xf32> to vector<128xf32>
    %80 = vector.shape_cast %79 : vector<128xf32> to vector<1x128xf32>
    %81 = arith.mulf %78, %78 : vector<32x128xf32>
    %cst_67 = arith.constant dense<0.000000e+00> : vector<128xf32>
    %82 = vector.multi_reduction <add>, %81, %cst_67 [0] : vector<32x128xf32> to vector<128xf32>
    %83 = vector.shape_cast %82 : vector<128xf32> to vector<1x128xf32>
    %c0_68 = arith.constant 0 : index
    %c0_69 = arith.constant 0 : index
    %84 = vector.load %arg7[%c0_68, %c0_69] : memref<128x128xf32, #tpu.memory_space<vmem>>, vector<128x128xf32>
    %cst_70 = arith.constant dense<0.000000e+00> : vector<1x128xf32>
    %85 = tpu.matmul %80, %84, %cst_70 {dimension_numbers = #tpu.dot_dimension_numbers<[1], [0], [0], [1], [0, 0, 1, 1], [], []>, precision = #tpu.contract_precision<fp32>} : vector<1x128xf32>, vector<128x128xf32>, vector<1x128xf32> -> vector<1x128xf32>
    %cst_71 = arith.constant 0.001953125 : f32
    %86 = vector.broadcast %cst_71 : f32 to vector<1x128xf32>
    %87 = arith.mulf %85, %86 : vector<1x128xf32>
    %c0_72 = arith.constant 0 : index
    %c0_73 = arith.constant 0 : index
    %88 = vector.load %arg7[%c0_72, %c0_73] : memref<128x128xf32, #tpu.memory_space<vmem>>, vector<128x128xf32>
    %cst_74 = arith.constant dense<0.000000e+00> : vector<1x128xf32>
    %89 = tpu.matmul %83, %88, %cst_74 {dimension_numbers = #tpu.dot_dimension_numbers<[1], [0], [0], [1], [0, 0, 1, 1], [], []>, precision = #tpu.contract_precision<fp32>} : vector<1x128xf32>, vector<128x128xf32>, vector<1x128xf32> -> vector<1x128xf32>
    %cst_75 = arith.constant 0.001953125 : f32
    %90 = vector.broadcast %cst_75 : f32 to vector<1x128xf32>
    %91 = arith.mulf %89, %90 : vector<1x128xf32>
    %92 = arith.mulf %87, %87 : vector<1x128xf32>
    %93 = arith.subf %91, %92 : vector<1x128xf32>
    %c0_76 = arith.constant 0 : index
    %c0_77 = arith.constant 0 : index
    %94 = vector.load %arg5[%c0_76, %c0_77] : memref<1x128xf32, #tpu.memory_space<vmem>>, vector<1x128xf32>
    %cst_78 = arith.constant 9.99999974E-6 : f32
    %95 = vector.broadcast %cst_78 : f32 to vector<1x128xf32>
    %96 = arith.addf %93, %95 : vector<1x128xf32>
    %97 = math.rsqrt %96 : vector<1x128xf32>
    %98 = arith.mulf %94, %97 : vector<1x128xf32>
    %c0_79 = arith.constant 0 : index
    %c0_80 = arith.constant 0 : index
    %99 = vector.load %arg6[%c0_79, %c0_80] : memref<1x128xf32, #tpu.memory_space<vmem>>, vector<1x128xf32>
    %100 = arith.mulf %87, %98 : vector<1x128xf32>
    %101 = arith.subf %99, %100 : vector<1x128xf32>
    %102 = vector.broadcast %98 : vector<1x128xf32> to vector<32x128xf32>
    %103 = arith.mulf %78, %102 : vector<32x128xf32>
    %104 = vector.broadcast %101 : vector<1x128xf32> to vector<32x128xf32>
    %105 = arith.addf %103, %104 : vector<32x128xf32>
    %cst_81 = arith.constant 0.000000e+00 : f32
    %106 = vector.broadcast %cst_81 : f32 to vector<32x128xf32>
    %107 = arith.maximumf %105, %106 : vector<32x128xf32>
    %108 = vector.shape_cast %107 : vector<32x128xf32> to vector<2x16x128xf32>
    %c0_82 = arith.constant 0 : index
    %c0_83 = arith.constant 0 : index
    %c0_84 = arith.constant 0 : index
    %109 = vector.load %arg12[%c0_82, %c0_83, %c0_84] : memref<2x16x128xf32, #tpu.memory_space<vmem>>, vector<2x16x128xf32>
    tpu.vector_store %arg12[%c0_82, %c0_83, %c0_84], %108 {strides = array<i32>} : memref<2x16x128xf32, #tpu.memory_space<vmem>>, vector<2x16x128xf32>,
    %c0_85 = arith.constant 0 : index
    %c0_86 = arith.constant 0 : index
    %110 = vector.load %arg8[%c0_85, %c0_86] : memref<128x64xf32, #tpu.memory_space<vmem>>, vector<128x64xf32>
    %cst_87 = arith.constant dense<0.000000e+00> : vector<32x64xf32>
    %111 = tpu.matmul %107, %110, %cst_87 {dimension_numbers = #tpu.dot_dimension_numbers<[1], [0], [0], [1], [0, 0, 1, 1], [], []>, precision = #tpu.contract_precision<fp32>} : vector<32x128xf32>, vector<128x64xf32>, vector<32x64xf32> -> vector<32x64xf32>
    %c0_88 = arith.constant 0 : index
    %c0_89 = arith.constant 0 : index
    %112 = vector.load %arg9[%c0_88, %c0_89] : memref<128x64xf32, #tpu.memory_space<vmem>>, vector<128x64xf32>
    %cst_90 = arith.constant dense<0.000000e+00> : vector<32x64xf32>
    %113 = tpu.matmul %107, %112, %cst_90 {dimension_numbers = #tpu.dot_dimension_numbers<[1], [0], [0], [1], [0, 0, 1, 1], [], []>, precision = #tpu.contract_precision<fp32>} : vector<32x128xf32>, vector<128x64xf32>, vector<32x64xf32> -> vector<32x64xf32>
    %114 = arith.maximumf %111, %113 : vector<32x64xf32>
    %c0_91 = arith.constant 0 : index
    %c0_92 = arith.constant 0 : index
    %115 = vector.load %arg10[%c0_91, %c0_92] : memref<16x32xf32, #tpu.memory_space<vmem>>, vector<16x32xf32>
    %cst_93 = arith.constant dense<0.000000e+00> : vector<16x64xf32>
    %116 = tpu.matmul %115, %114, %cst_93 {dimension_numbers = #tpu.dot_dimension_numbers<[1], [0], [0], [1], [0, 0, 1, 1], [], []>, precision = #tpu.contract_precision<fp32>} : vector<16x32xf32>, vector<32x64xf32>, vector<16x64xf32> -> vector<16x64xf32>
    %c0_94 = arith.constant 0 : index
    %c0_95 = arith.constant 0 : index
    %117 = vector.load %arg11[%c0_94, %c0_95] : memref<16x32xf32, #tpu.memory_space<vmem>>, vector<16x32xf32>
    %cst_96 = arith.constant dense<0.000000e+00> : vector<16x64xf32>
    %118 = tpu.matmul %117, %114, %cst_96 {dimension_numbers = #tpu.dot_dimension_numbers<[1], [0], [0], [1], [0, 0, 1, 1], [], []>, precision = #tpu.contract_precision<fp32>} : vector<16x32xf32>, vector<32x64xf32>, vector<16x64xf32> -> vector<16x64xf32>
    %119 = arith.maximumf %116, %118 : vector<16x64xf32>
    %120 = vector.shape_cast %119 : vector<16x64xf32> to vector<2x8x64xf32>
    %c0_97 = arith.constant 0 : index
    %c0_98 = arith.constant 0 : index
    %c0_99 = arith.constant 0 : index
    %121 = vector.load %arg13[%c0_97, %c0_98, %c0_99] : memref<2x8x64xf32, #tpu.memory_space<vmem>>, vector<2x8x64xf32>
    tpu.vector_store %arg13[%c0_97, %c0_98, %c0_99], %120 {strides = array<i32>} : memref<2x8x64xf32, #tpu.memory_space<vmem>>, vector<2x8x64xf32>,
    return
  }
}

</mosaic_0001>

<llo_original>
// kernel: down_transition_forward.1
$region0: #{down_transition_forward.1}
  #allocation0 [shape = 'u32[]', space=smem, size = 0x4, offset = 0x4, fixed_abs, tag = 'smem constant byte address 0x4 - core index']
  #allocation1 [shape = 'u32[144,128]{1,0:T(1,128)}', space=vmem, size = 0x12000, scoped, tag = 'internal scratch']
  #allocation2 [shape = 'f32[2,18,64]{2,1,0:T(8,128)}', space=vmem, size = 0x6000, scoped, tag = 'scratch operand']
  #allocation3 [shape = 'f32[2,18,128]{2,1,0:T(8,128)}', space=vmem, size = 0x6000, scoped, tag = 'scratch operand']
  %s0 = inlined_call_operand.vmem [shape: f32[2,16,64], index: 0, kind: input, shape index: {}]
  %s1 = inlined_call_operand.vmem [shape: f32[3,64,128], index: 1, kind: input, shape index: {}]
  %s2 = inlined_call_operand.vmem [shape: f32[1,128], index: 2, kind: input, shape index: {}]
  %s3 = inlined_call_operand.vmem [shape: f32[1,128], index: 3, kind: input, shape index: {}]
  %s4 = inlined_call_operand.vmem [shape: f32[3,128,128], index: 4, kind: input, shape index: {}]
  %s5 = inlined_call_operand.vmem [shape: f32[1,128], index: 5, kind: input, shape index: {}]
  %s6 = inlined_call_operand.vmem [shape: f32[1,128], index: 6, kind: input, shape index: {}]
  %s7 = inlined_call_operand.vmem [shape: f32[128,128], index: 7, kind: input, shape index: {}]
  %s8 = inlined_call_operand.vmem [shape: f32[128,64], index: 8, kind: input, shape index: {}]
  %s9 = inlined_call_operand.vmem [shape: f32[128,64], index: 9, kind: input, shape index: {}]
  %s10 = inlined_call_operand.vmem [shape: f32[16,32], index: 10, kind: input, shape index: {}]
  %s11 = inlined_call_operand.vmem [shape: f32[16,32], index: 11, kind: input, shape index: {}]
  %s12 = inlined_call_operand.vmem [shape: f32[2,16,128], index: 12, kind: output, shape index: {0}]
  %s13 = inlined_call_operand.vmem [shape: f32[2,8,64], index: 13, kind: output, shape index: {1}]
  %14 = xla_tuple %s12, %s13
  %s15 = sld [smem:[#allocation0]]
  $region66: #{down_transition_forward.1} parent=0
    _
  %s17 = ssub.s32 1, %s15
  %s18 = scalar_select 0, %s17, %s15
  // Predicated region
  $region2: #{down_transition_forward.1} parent=0 // pred_check
    _
  $region3: #{down_transition_forward.1} parent=0 // pred_check_branch
    %20 = sbr.rel (0) target = $region5
  $region4: #{down_transition_forward.1} parent=0 // pred_region
    _
  $region5: #{down_transition_forward.1} parent=0 // pred_fallthru
    _
  // Predicated region
  $region6: #{down_transition_forward.1} parent=0 // pred_check
    _
  $region7: #{down_transition_forward.1} parent=0 // pred_check_branch
    %22 = sbr.rel (0) target = $region9
  $region8: #{down_transition_forward.1} parent=0 // pred_region
    _
  $region9: #{down_transition_forward.1} parent=0 // pred_fallthru
    _
  // Predicated region
  $region10: #{down_transition_forward.1} parent=0 // pred_check
    _
  $region11: #{down_transition_forward.1} parent=0 // pred_check_branch
    %24 = sbr.rel (0) target = $region13
  $region12: #{down_transition_forward.1} parent=0 // pred_region
    _
  $region13: #{down_transition_forward.1} parent=0 // pred_fallthru
    _
  // Predicated region
  $region14: #{down_transition_forward.1} parent=0 // pred_check
    _
  $region15: #{down_transition_forward.1} parent=0 // pred_check_branch
    %26 = sbr.rel (0) target = $region17
  $region16: #{down_transition_forward.1} parent=0 // pred_region
    _
  $region17: #{down_transition_forward.1} parent=0 // pred_fallthru
    _
  // Predicated region
  $region18: #{down_transition_forward.1} parent=0 // pred_check
    _
  $region19: #{down_transition_forward.1} parent=0 // pred_check_branch
    %28 = sbr.rel (0) target = $region21
  $region20: #{down_transition_forward.1} parent=0 // pred_region
    _
  $region21: #{down_transition_forward.1} parent=0 // pred_fallthru
    _
  // Predicated region
  $region22: #{down_transition_forward.1} parent=0 // pred_check
    _
  $region23: #{down_transition_forward.1} parent=0 // pred_check_branch
    %30 = sbr.rel (0) target = $region25
  $region24: #{down_transition_forward.1} parent=0 // pred_region
    _
  $region25: #{down_transition_forward.1} parent=0 // pred_fallthru
    _
  // Predicated region
  $region26: #{down_transition_forward.1} parent=0 // pred_check
    _
  $region27: #{down_transition_forward.1} parent=0 // pred_check_branch
    %32 = sbr.rel (0) target = $region29
  $region28: #{down_transition_forward.1} parent=0 // pred_region
    _
  $region29: #{down_transition_forward.1} parent=0 // pred_fallthru
    _
  // Predicated region
  $region30: #{down_transition_forward.1} parent=0 // pred_check
    _
  $region31: #{down_transition_forward.1} parent=0 // pred_check_branch
    %34 = sbr.rel (0) target = $region33
  $region32: #{down_transition_forward.1} parent=0 // pred_region
    _
  $region33: #{down_transition_forward.1} parent=0 // pred_fallthru
    _
  // Predicated region
  $region34: #{down_transition_forward.1} parent=0 // pred_check
    _
  $region35: #{down_transition_forward.1} parent=0 // pred_check_branch
    %36 = sbr.rel (0) target = $region37
  $region36: #{down_transition_forward.1} parent=0 // pred_region
    _
  $region37: #{down_transition_forward.1} parent=0 // pred_fallthru
    _
  // Predicated region
  $region38: #{down_transition_forward.1} parent=0 // pred_check
    _
  $region39: #{down_transition_forward.1} parent=0 // pred_check_branch
    %38 = sbr.rel (0) target = $region41
  $region40: #{down_transition_forward.1} parent=0 // pred_region
    _
  $region41: #{down_transition_forward.1} parent=0 // pred_fallthru
    _
  // Predicated region
  $region42: #{down_transition_forward.1} parent=0 // pred_check
    _
  $region43: #{down_transition_forward.1} parent=0 // pred_check_branch
    %40 = sbr.rel (0) target = $region45
  $region44: #{down_transition_forward.1} parent=0 // pred_region
    _
  $region45: #{down_transition_forward.1} parent=0 // pred_fallthru
    _
  // Predicated region
  $region46: #{down_transition_forward.1} parent=0 // pred_check
    _
  $region47: #{down_transition_forward.1} parent=0 // pred_check_branch
    %42 = sbr.rel (0) target = $region49
  $region48: #{down_transition_forward.1} parent=0 // pred_region
    _
  $region49: #{down_transition_forward.1} parent=0 // pred_fallthru
    _
  %vm43 = vcmask 516096
  %44 = vst.msk [vmem:[#allocation2] sm:$0x1] %vm43, 0.0
  %45 = vst.msk [vmem:[#allocation2 + $0x18] sm:$0x1] %vm43, 0.0
  %46 = vst.msk [vmem:[#allocation2 + $0x11] sm:$0x1] %vm43, 0.0
  %47 = vst.msk [vmem:[#allocation2 + $0x29] sm:$0x1] %vm43, 0.0
  %v48 = vld [vmem:[%s0] sm:$0xff]
  %v49 = vld [vmem:[%s0 + $0x8] sm:$0xff]
  %v50 = vld [vmem:[%s0 + $0x10] sm:$0xff]
  %v51 = vld [vmem:[%s0 + $0x18] sm:$0xff]
  %vm52 = vcmask 523264
  %53 = vst.msk [vmem:[#allocation2 + $0x1] sm:$0xff] %vm52, %v48
  %54 = vst.msk [vmem:[#allocation2 + $0x9] sm:$0xff] %vm52, %v49
  %55 = vst.msk [vmem:[#allocation2 + $0x19] sm:$0xff] %vm52, %v50
  %56 = vst.msk [vmem:[#allocation2 + $0x21] sm:$0xff] %vm52, %v51
  %v57 = vld [vmem:[#allocation2] sm:$0xff]
  %v58 = vld [vmem:[#allocation2 + $0x8] sm:$0xff]
  %v59 = vld [vmem:[#allocation2 + $0x10] sm:$0x3]
  %v60 = vld [vmem:[#allocation2 + $0x18] sm:$0xff]
  %v61 = vld [vmem:[#allocation2 + $0x20] sm:$0xff]
  %v62 = vld [vmem:[#allocation2 + $0x28] sm:$0x3]
  %v63 = vld [vmem:[%s1] sm:$0xff]
  %v64 = vld [vmem:[%s1 + $0x8] sm:$0xff]
  %v65 = vld [vmem:[%s1 + $0x10] sm:$0xff]
  %v66 = vld [vmem:[%s1 + $0x18] sm:$0xff]
  %v67 = vld [vmem:[%s1 + $0x20] sm:$0xff]
  %v68 = vld [vmem:[%s1 + $0x28] sm:$0xff]
  %v69 = vld [vmem:[%s1 + $0x30] sm:$0xff]
  %v70 = vld [vmem:[%s1 + $0x38] sm:$0xff]
  %vm77 = vcmask 1046528
  %v78 = vrot.slane %v57, 1
  %v79 = vrot.slane %v58, 1
  %v80 = vsel %vm77, %v78, %v79
  %v81 = vrot.slane %v59, 1
  %v82 = vsel %vm77, %v79, %v81
  %v83 = vrot.slane %v60, 1
  %v84 = vrot.slane %v61, 1
  %v85 = vsel %vm77, %v83, %v84
  %v86 = vrot.slane %v62, 1
  %v87 = vsel %vm77, %v84, %v86
  %s88 = scalar_lea.vmem %s1, 64
  %v89 = vld [vmem:[%s88] sm:$0xff]
  %v90 = vld [vmem:[%s88 + $0x8] sm:$0xff]
  %v91 = vld [vmem:[%s88 + $0x10] sm:$0xff]
  %v92 = vld [vmem:[%s88 + $0x18] sm:$0xff]
  %v93 = vld [vmem:[%s88 + $0x20] sm:$0xff]
  %v94 = vld [vmem:[%s88 + $0x28] sm:$0xff]
  %v95 = vld [vmem:[%s88 + $0x30] sm:$0xff]
  %v96 = vld [vmem:[%s88 + $0x38] sm:$0xff]
  %v97 = vsel %vm52, %v80, 0
  %v99 = vsel %vm52, %v82, 0
  %v101 = vsel %vm52, %v85, 0
  %v103 = vsel %vm52, %v87, 0
  %105 = vmatprep.subr.mxu0 0.0
  %v106 = vand.u32 %v89, 4294901760
  %107 = vmatpush1.msra.mxu0 %v106
  %108 = vmatprep.subr.mxu0 0.0
  %v109 = vand.u32 %v90, 4294901760
  %110 = vmatpush1.msra.mxu0 %v109
  %111 = vmatprep.subr.mxu0 0.0
  %v112 = vand.u32 %v91, 4294901760
  %113 = vmatpush1.msra.mxu0 %v112
  %114 = vmatprep.subr.mxu0 0.0
  %v115 = vand.u32 %v92, 4294901760
  %116 = vmatpush1.msra.mxu0 %v115
  %117 = vmatprep.subr.mxu0 0.0
  %v118 = vand.u32 %v93, 4294901760
  %119 = vmatpush1.msra.mxu0 %v118
  %120 = vmatprep.subr.mxu0 0.0
  %v121 = vand.u32 %v94, 4294901760
  %122 = vmatpush1.msra.mxu0 %v121
  %123 = vmatprep.subr.mxu0 0.0
  %v124 = vand.u32 %v95, 4294901760
  %125 = vmatpush1.msra.mxu0 %v124
  %126 = vmatprep.subr.mxu0 0.0
  %v127 = vand.u32 %v96, 4294901760
  %128 = vmatpush1.msra.mxu0 %v127
  %129 = vmatprep.subr.mxu0 0.0
  %130 = vmatpush1.msra.mxu0 0.0
  %131 = vmatprep.subr.mxu0 0.0
  %132 = vmatpush1.msra.mxu0 0.0
  %133 = vmatprep.subr.mxu0 0.0
  %134 = vmatpush1.msra.mxu0 0.0
  %135 = vmatprep.subr.mxu0 0.0
  %136 = vmatpush1.msra.mxu0 0.0
  %137 = vmatprep.subr.mxu0 0.0
  %138 = vmatpush1.msra.mxu0 0.0
  %139 = vmatprep.subr.mxu0 0.0
  %140 = vmatpush1.msra.mxu0 0.0
  %141 = vmatprep.subr.mxu0 0.0
  %142 = vmatpush1.msra.mxu0 0.0
  %143 = vmatprep.subr.mxu0 0.0
  %144 = vmatpush1.msra.mxu0 0.0
  %145 = vmatprep.subr.mxu0 0.0
  %146 = vmatpush1.msra.mxu0 0.0
  %147 = vmatprep.subr.mxu0 0.0
  %148 = vmatpush1.msra.mxu0 0.0
  %149 = vmatprep.subr.mxu0 0.0
  %150 = vmatpush1.msra.mxu0 0.0
  %151 = vmatprep.subr.mxu0 0.0
  %152 = vmatpush1.msra.mxu0 0.0
  %153 = vmatprep.subr.mxu0 0.0
  %154 = vmatpush1.msra.mxu0 0.0
  %155 = vmatprep.subr.mxu0 0.0
  %156 = vmatpush1.msra.mxu0 0.0
  %157 = vmatprep.subr.mxu0 0.0
  %158 = vmatpush1.msra.mxu0 0.0
  %159 = vmatprep.subr.mxu0 0.0
  %160 = vmatpush1.msra.mxu0 0.0
  %161 = vmatprep.subr.mxu0 0.0
  %162 = vmatpush1.msra.mxu0 0.0
  %163 = vmatprep.subr.mxu0 0.0
  %164 = vmatpush1.msra.mxu0 0.0
  %165 = vmatprep.subr.mxu0 0.0
  %166 = vmatpush1.msra.mxu0 0.0
  %167 = vmatprep.subr.mxu0 0.0
  %168 = vmatpush1.msra.mxu0 0.0
  %169 = vmatprep.subr.mxu0 0.0
  %170 = vmatpush1.msra.mxu0 0.0
  %171 = vmatprep.subr.mxu0 0.0
  %172 = vmatpush1.msra.mxu0 0.0
  %173 = vmatprep.subr.mxu0 0.0
  %174 = vmatpush1.msra.mxu0 0.0
  %175 = vmatprep.subr.mxu0 0.0
  %176 = vmatpush1.msra.mxu0 0.0
  %177 = vmatprep.mubr.f32.mxu0 0.0
  %v178 = vand.u32 %v97, 4294901760
  %v179 = vsub.f32 %v97, %v178
  %v180 = vand.u32 %v179, 4294901760
  %v181 = vsub.f32 %v179, %v180
  %v182 = vand.u32 %v181, 4294901760
  %183 = vmatmul.mubr.f32.gmra.mrb[0].mxu0 %v182
  %v184 = vpop.f32.mrb[0].mxu0
  %v185 = vadd.f32 0.0, %v184
  %v186 = vpop.f32.mrb[0].mxu0
  %187 = vmatprep.mubr.f32.mxu0 0.0
  %v188 = vand.u32 %v99, 4294901760
  %v189 = vsub.f32 %v99, %v188
  %v190 = vand.u32 %v189, 4294901760
  %v191 = vsub.f32 %v189, %v190
  %v192 = vand.u32 %v191, 4294901760
  %193 = vmatmul.mubr.f32.gmra.mrb[0].mxu0 %v192
  %v194 = vpop.f32.mrb[0].mxu0
  %v195 = vadd.f32 0.0, %v194
  %v196 = vpop.f32.mrb[0].mxu0
  %197 = vmatprep.mubr.f32.mxu0 0.0
  %v198 = vand.u32 %v101, 4294901760
  %v199 = vsub.f32 %v101, %v198
  %v200 = vand.u32 %v199, 4294901760
  %v201 = vsub.f32 %v199, %v200
  %v202 = vand.u32 %v201, 4294901760
  %203 = vmatmul.mubr.f32.gmra.mrb[0].mxu0 %v202
  %v204 = vpop.f32.mrb[0].mxu0
  %v205 = vadd.f32 0.0, %v204
  %v206 = vpop.f32.mrb[0].mxu0
  %207 = vmatprep.mubr.f32.mxu0 0.0
  %v208 = vand.u32 %v103, 4294901760
  %v209 = vsub.f32 %v103, %v208
  %v210 = vand.u32 %v209, 4294901760
  %v211 = vsub.f32 %v209, %v210
  %v212 = vand.u32 %v211, 4294901760
  %213 = vmatmul.mubr.f32.gmra.mrb[0].mxu0 %v212
  %v214 = vpop.f32.mrb[0].mxu0
  %v215 = vadd.f32 0.0, %v214
  %v216 = vpop.f32.mrb[0].mxu0
  %217 = vdwg.mxu0
  %218 = vmatprep.subr.mxu0 0.0
  %v219 = vand.u32 %v89, 4294901760
  %v220 = vsub.f32 %v89, %v219
  %v221 = vand.u32 %v220, 4294901760
  %v222 = vsub.f32 %v220, %v221
  %v223 = vand.u32 %v222, 4294901760
  %224 = vmatpush1.msra.mxu0 %v223
  %225 = vmatprep.subr.mxu0 0.0
  %v226 = vand.u32 %v90, 4294901760
  %v227 = vsub.f32 %v90, %v226
  %v228 = vand.u32 %v227, 4294901760
  %v229 = vsub.f32 %v227, %v228
  %v230 = vand.u32 %v229, 4294901760
  %231 = vmatpush1.msra.mxu0 %v230
  %232 = vmatprep.subr.mxu0 0.0
  %v233 = vand.u32 %v91, 4294901760
  %v234 = vsub.f32 %v91, %v233
  %v235 = vand.u32 %v234, 4294901760
  %v236 = vsub.f32 %v234, %v235
  %v237 = vand.u32 %v236, 4294901760
  %238 = vmatpush1.msra.mxu0 %v237
  %239 = vmatprep.subr.mxu0 0.0
  %v240 = vand.u32 %v92, 4294901760
  %v241 = vsub.f32 %v92, %v240
  %v242 = vand.u32 %v241, 4294901760
  %v243 = vsub.f32 %v241, %v242
  %v244 = vand.u32 %v243, 4294901760
  %245 = vmatpush1.msra.mxu0 %v244
  %246 = vmatprep.subr.mxu0 0.0
  %v247 = vand.u32 %v93, 4294901760
  %v248 = vsub.f32 %v93, %v247
  %v249 = vand.u32 %v248, 4294901760
  %v250 = vsub.f32 %v248, %v249
  %v251 = vand.u32 %v250, 4294901760
  %252 = vmatpush1.msra.mxu0 %v251
  %253 = vmatprep.subr.mxu0 0.0
  %v254 = vand.u32 %v94, 4294901760
  %v255 = vsub.f32 %v94, %v254
  %v256 = vand.u32 %v255, 4294901760
  %v257 = vsub.f32 %v255, %v256
  %v258 = vand.u32 %v257, 4294901760
  %259 = vmatpush1.msra.mxu0 %v258
  %260 = vmatprep.subr.mxu0 0.0
  %v261 = vand.u32 %v95, 4294901760
  %v262 = vsub.f32 %v95, %v261
  %v263 = vand.u32 %v262, 4294901760
  %v264 = vsub.f32 %v262, %v263
  %v265 = vand.u32 %v264, 4294901760
  %266 = vmatpush1.msra.mxu0 %v265
  %267 = vmatprep.subr.mxu0 0.0
  %v268 = vand.u32 %v96, 4294901760
  %v269 = vsub.f32 %v96, %v268
  %v270 = vand.u32 %v269, 4294901760
  %v271 = vsub.f32 %v269, %v270
  %v272 = vand.u32 %v271, 4294901760
  %273 = vmatpush1.msra.mxu0 %v272
  %274 = vmatprep.subr.mxu0 0.0
  %275 = vmatpush1.msra.mxu0 0.0
  %276 = vmatprep.subr.mxu0 0.0
  %277 = vmatpush1.msra.mxu0 0.0
  %278 = vmatprep.subr.mxu0 0.0
  %279 = vmatpush1.msra.mxu0 0.0
  %280 = vmatprep.subr.mxu0 0.0
  %281 = vmatpush1.msra.mxu0 0.0
  %282 = vmatprep.subr.mxu0 0.0
  %283 = vmatpush1.msra.mxu0 0.0
  %284 = vmatprep.subr.mxu0 0.0
  %285 = vmatpush1.msra.mxu0 0.0
  %286 = vmatprep.subr.mxu0 0.0
  %287 = vmatpush1.msra.mxu0 0.0
  %288 = vmatprep.subr.mxu0 0.0
  %289 = vmatpush1.msra.mxu0 0.0
  %290 = vmatprep.subr.mxu0 0.0
  %291 = vmatpush1.msra.mxu0 0.0
  %292 = vmatprep.subr.mxu0 0.0
  %293 = vmatpush1.msra.mxu0 0.0
  %294 = vmatprep.subr.mxu0 0.0
  %295 = vmatpush1.msra.mxu0 0.0
  %296 = vmatprep.subr.mxu0 0.0
  %297 = vmatpush1.msra.mxu0 0.0
  %298 = vmatprep.subr.mxu0 0.0
  %299 = vmatpush1.msra.mxu0 0.0
  %300 = vmatprep.subr.mxu0 0.0
  %301 = vmatpush1.msra.mxu0 0.0
  %302 = vmatprep.subr.mxu0 0.0
  %303 = vmatpush1.msra.mxu0 0.0
  %304 = vmatprep.subr.mxu0 0.0
  %305 = vmatpush1.msra.mxu0 0.0
  %306 = vmatprep.subr.mxu0 0.0
  %307 = vmatpush1.msra.mxu0 0.0
  %308 = vmatprep.subr.mxu0 0.0
  %309 = vmatpush1.msra.mxu0 0.0
  %310 = vmatprep.subr.mxu0 0.0
  %311 = vmatpush1.msra.mxu0 0.0
  %312 = vmatprep.subr.mxu0 0.0
  %313 = vmatpush1.msra.mxu0 0.0
  %314 = vmatprep.subr.mxu0 0.0
  %315 = vmatpush1.msra.mxu0 0.0
  %316 = vmatprep.subr.mxu0 0.0
  %317 = vmatpush1.msra.mxu0 0.0
  %318 = vmatprep.subr.mxu0 0.0
  %319 = vmatpush1.msra.mxu0 0.0
  %320 = vmatprep.subr.mxu0 0.0
  %321 = vmatpush1.msra.mxu0 0.0
  %322 = vmatprep.mubr.f32.mxu0 0.0
  %v323 = vand.u32 %v97, 4294901760
  %324 = vmatmul.mubr.f32.gmra.mrb[0].mxu0 %v323
  %v325 = vpop.f32.mrb[0].mxu0
  %v326 = vadd.f32 %v185, %v325
  %v327 = vpop.f32.mrb[0].mxu0
  %328 = vmatprep.mubr.f32.mxu0 0.0
  %v329 = vand.u32 %v99, 4294901760
  %330 = vmatmul.mubr.f32.gmra.mrb[0].mxu0 %v329
  %v331 = vpop.f32.mrb[0].mxu0
  %v332 = vadd.f32 %v195, %v331
  %v333 = vpop.f32.mrb[0].mxu0
  %334 = vmatprep.mubr.f32.mxu0 0.0
  %v335 = vand.u32 %v101, 4294901760
  %336 = vmatmul.mubr.f32.gmra.mrb[0].mxu0 %v335
  %v337 = vpop.f32.mrb[0].mxu0
  %v338 = vadd.f32 %v205, %v337
  %v339 = vpop.f32.mrb[0].mxu0
  %340 = vmatprep.mubr.f32.mxu0 0.0
  %v341 = vand.u32 %v103, 4294901760
  %342 = vmatmul.mubr.f32.gmra.mrb[0].mxu0 %v341
  %v343 = vpop.f32.mrb[0].mxu0
  %v344 = vadd.f32 %v215, %v343
  %v345 = vpop.f32.mrb[0].mxu0
  %346 = vdwg.mxu0
  %347 = vmatprep.subr.mxu0 0.0
  %v348 = vand.u32 %v89, 4294901760
  %v349 = vsub.f32 %v89, %v348
  %350 = vmatpush1.msra.mxu0 %v349
  %351 = vmatprep.subr.mxu0 0.0
  %v352 = vand.u32 %v90, 4294901760
  %v353 = vsub.f32 %v90, %v352
  %354 = vmatpush1.msra.mxu0 %v353
  %355 = vmatprep.subr.mxu0 0.0
  %v356 = vand.u32 %v91, 4294901760
  %v357 = vsub.f32 %v91, %v356
  %358 = vmatpush1.msra.mxu0 %v357
  %359 = vmatprep.subr.mxu0 0.0
  %v360 = vand.u32 %v92, 4294901760
  %v361 = vsub.f32 %v92, %v360
  %362 = vmatpush1.msra.mxu0 %v361
  %363 = vmatprep.subr.mxu0 0.0
  %v364 = vand.u32 %v93, 4294901760
  %v365 = vsub.f32 %v93, %v364
  %366 = vmatpush1.msra.mxu0 %v365
  %367 = vmatprep.subr.mxu0 0.0
  %v368 = vand.u32 %v94, 4294901760
  %v369 = vsub.f32 %v94, %v368
  %370 = vmatpush1.msra.mxu0 %v369
  %371 = vmatprep.subr.mxu0 0.0
  %v372 = vand.u32 %v95, 4294901760
  %v373 = vsub.f32 %v95, %v372
  %374 = vmatpush1.msra.mxu0 %v373
  %375 = vmatprep.subr.mxu0 0.0
  %v376 = vand.u32 %v96, 4294901760
  %v377 = vsub.f32 %v96, %v376
  %378 = vmatpush1.msra.mxu0 %v377
  %379 = vmatprep.subr.mxu0 0.0
  %380 = vmatpush1.msra.mxu0 0.0
  %381 = vmatprep.subr.mxu0 0.0
  %382 = vmatpush1.msra.mxu0 0.0
  %383 = vmatprep.subr.mxu0 0.0
  %384 = vmatpush1.msra.mxu0 0.0
  %385 = vmatprep.subr.mxu0 0.0
  %386 = vmatpush1.msra.mxu0 0.0
  %387 = vmatprep.subr.mxu0 0.0
  %388 = vmatpush1.msra.mxu0 0.0
  %389 = vmatprep.subr.mxu0 0.0
  %390 = vmatpush1.msra.mxu0 0.0
  %391 = vmatprep.subr.mxu0 0.0
  %392 = vmatpush1.msra.mxu0 0.0
  %393 = vmatprep.subr.mxu0 0.0
  %394 = vmatpush1.msra.mxu0 0.0
  %395 = vmatprep.subr.mxu0 0.0
  %396 = vmatpush1.msra.mxu0 0.0
  %397 = vmatprep.subr.mxu0 0.0
  %398 = vmatpush1.msra.mxu0 0.0
  %399 = vmatprep.subr.mxu0 0.0
  %400 = vmatpush1.msra.mxu0 0.0
  %401 = vmatprep.subr.mxu0 0.0
  %402 = vmatpush1.msra.mxu0 0.0
  %403 = vmatprep.subr.mxu0 0.0
  %404 = vmatpush1.msra.mxu0 0.0
  %405 = vmatprep.subr.mxu0 0.0
  %406 = vmatpush1.msra.mxu0 0.0
  %407 = vmatprep.subr.mxu0 0.0
  %408 = vmatpush1.msra.mxu0 0.0
  %409 = vmatprep.subr.mxu0 0.0
  %410 = vmatpush1.msra.mxu0 0.0
  %411 = vmatprep.subr.mxu0 0.0
  %412 = vmatpush1.msra.mxu0 0.0
  %413 = vmatprep.subr.mxu0 0.0
  %414 = vmatpush1.msra.mxu0 0.0
  %415 = vmatprep.subr.mxu0 0.0
  %416 = vmatpush1.msra.mxu0 0.0
  %417 = vmatprep.subr.mxu0 0.0
  %418 = vmatpush1.msra.mxu0 0.0
  %419 = vmatprep.subr.mxu0 0.0
  %420 = vmatpush1.msra.mxu0 0.0
  %421 = vmatprep.subr.mxu0 0.0
  %422 = vmatpush1.msra.mxu0 0.0
  %423 = vmatprep.subr.mxu0 0.0
  %424 = vmatpush1.msra.mxu0 0.0
  %425 = vmatprep.subr.mxu0 0.0
  %426 = vmatpush1.msra.mxu0 0.0
  %427 = vmatprep.mubr.f32.mxu0 0.0
  %v428 = vand.u32 %v97, 4294901760
  %v429 = vsub.f32 %v97, %v428
  %430 = vmatmul.mubr.f32.gmra.mrb[0].mxu0 %v429
  %v431 = vpop.f32.mrb[0].mxu0
  %v432 = vadd.f32 %v326, %v431
  %v433 = vpop.f32.mrb[0].mxu0
  %434 = vmatprep.mubr.f32.mxu0 0.0
  %v435 = vand.u32 %v99, 4294901760
  %v436 = vsub.f32 %v99, %v435
  %437 = vmatmul.mubr.f32.gmra.mrb[0].mxu0 %v436
  %v438 = vpop.f32.mrb[0].mxu0
  %v439 = vadd.f32 %v332, %v438
  %v440 = vpop.f32.mrb[0].mxu0
  %441 = vmatprep.mubr.f32.mxu0 0.0
  %v442 = vand.u32 %v101, 4294901760
  %v443 = vsub.f32 %v101, %v442
  %444 = vmatmul.mubr.f32.gmra.mrb[0].mxu0 %v443
  %v445 = vpop.f32.mrb[0].mxu0
  %v446 = vadd.f32 %v338, %v445
  %v447 = vpop.f32.mrb[0].mxu0
  %448 = vmatprep.mubr.f32.mxu0 0.0
  %v449 = vand.u32 %v103, 4294901760
  %v450 = vsub.f32 %v103, %v449
  %451 = vmatmul.mubr.f32.gmra.mrb[0].mxu0 %v450
  %v452 = vpop.f32.mrb[0].mxu0
  %v453 = vadd.f32 %v344, %v452
  %v454 = vpop.f32.mrb[0].mxu0
  %455 = vdwg.mxu0
  %456 = vmatprep.subr.mxu0 0.0
  %v457 = vand.u32 %v89, 4294901760
  %458 = vmatpush1.msra.mxu0 %v457
  %459 = vmatprep.subr.mxu0 0.0
  %v460 = vand.u32 %v90, 4294901760
  %461 = vmatpush1.msra.mxu0 %v460
  %462 = vmatprep.subr.mxu0 0.0
  %v463 = vand.u32 %v91, 4294901760
  %464 = vmatpush1.msra.mxu0 %v463
  %465 = vmatprep.subr.mxu0 0.0
  %v466 = vand.u32 %v92, 4294901760
  %467 = vmatpush1.msra.mxu0 %v466
  %468 = vmatprep.subr.mxu0 0.0
  %v469 = vand.u32 %v93, 4294901760
  %470 = vmatpush1.msra.mxu0 %v469
  %471 = vmatprep.subr.mxu0 0.0
  %v472 = vand.u32 %v94, 4294901760
  %473 = vmatpush1.msra.mxu0 %v472
  %474 = vmatprep.subr.mxu0 0.0
  %v475 = vand.u32 %v95, 4294901760
  %476 = vmatpush1.msra.mxu0 %v475
  %477 = vmatprep.subr.mxu0 0.0
  %v478 = vand.u32 %v96, 4294901760
  %479 = vmatpush1.msra.mxu0 %v478
  %480 = vmatprep.subr.mxu0 0.0
  %481 = vmatpush1.msra.mxu0 0.0
  %482 = vmatprep.subr.mxu0 0.0
  %483 = vmatpush1.msra.mxu0 0.0
  %484 = vmatprep.subr.mxu0 0.0
  %485 = vmatpush1.msra.mxu0 0.0
  %486 = vmatprep.subr.mxu0 0.0
  %487 = vmatpush1.msra.mxu0 0.0
  %488 = vmatprep.subr.mxu0 0.0
  %489 = vmatpush1.msra.mxu0 0.0
  %490 = vmatprep.subr.mxu0 0.0
  %491 = vmatpush1.msra.mxu0 0.0
  %492 = vmatprep.subr.mxu0 0.0
  %493 = vmatpush1.msra.mxu0 0.0
  %494 = vmatprep.subr.mxu0 0.0
  %495 = vmatpush1.msra.mxu0 0.0
  %496 = vmatprep.subr.mxu0 0.0
  %497 = vmatpush1.msra.mxu0 0.0
  %498 = vmatprep.subr.mxu0 0.0
  %499 = vmatpush1.msra.mxu0 0.0
  %500 = vmatprep.subr.mxu0 0.0
  %501 = vmatpush1.msra.mxu0 0.0
  %502 = vmatprep.subr.mxu0 0.0
  %503 = vmatpush1.msra.mxu0 0.0
  %504 = vmatprep.subr.mxu0 0.0
  %505 = vmatpush1.msra.mxu0 0.0
  %506 = vmatprep.subr.mxu0 0.0
  %507 = vmatpush1.msra.mxu0 0.0
  %508 = vmatprep.subr.mxu0 0.0
  %509 = vmatpush1.msra.mxu0 0.0
  %510 = vmatprep.subr.mxu0 0.0
  %511 = vmatpush1.msra.mxu0 0.0
  %512 = vmatprep.subr.mxu0 0.0
  %513 = vmatpush1.msra.mxu0 0.0
  %514 = vmatprep.subr.mxu0 0.0
  %515 = vmatpush1.msra.mxu0 0.0
  %516 = vmatprep.subr.mxu0 0.0
  %517 = vmatpush1.msra.mxu0 0.0
  %518 = vmatprep.subr.mxu0 0.0
  %519 = vmatpush1.msra.mxu0 0.0
  %520 = vmatprep.subr.mxu0 0.0
  %521 = vmatpush1.msra.mxu0 0.0
  %522 = vmatprep.subr.mxu0 0.0
  %523 = vmatpush1.msra.mxu0 0.0
  %524 = vmatprep.subr.mxu0 0.0
  %525 = vmatpush1.msra.mxu0 0.0
  %526 = vmatprep.subr.mxu0 0.0
  %527 = vmatpush1.msra.mxu0 0.0
  %528 = vmatprep.mubr.f32.mxu0 0.0
  %v529 = vand.u32 %v97, 4294901760
  %v530 = vsub.f32 %v97, %v529
  %v531 = vand.u32 %v530, 4294901760
  %532 = vmatmul.mubr.f32.gmra.mrb[0].mxu0 %v531
  %v533 = vpop.f32.mrb[0].mxu0
  %v534 = vadd.f32 %v432, %v533
  %v535 = vpop.f32.mrb[0].mxu0
  %536 = vmatprep.mubr.f32.mxu0 0.0
  %v537 = vand.u32 %v99, 4294901760
  %v538 = vsub.f32 %v99, %v537
  %v539 = vand.u32 %v538, 4294901760
  %540 = vmatmul.mubr.f32.gmra.mrb[0].mxu0 %v539
  %v541 = vpop.f32.mrb[0].mxu0
  %v542 = vadd.f32 %v439, %v541
  %v543 = vpop.f32.mrb[0].mxu0
  %544 = vmatprep.mubr.f32.mxu0 0.0
  %v545 = vand.u32 %v101, 4294901760
  %v546 = vsub.f32 %v101, %v545
  %v547 = vand.u32 %v546, 4294901760
  %548 = vmatmul.mubr.f32.gmra.mrb[0].mxu0 %v547
  %v549 = vpop.f32.mrb[0].mxu0
  %v550 = vadd.f32 %v446, %v549
  %v551 = vpop.f32.mrb[0].mxu0
  %552 = vmatprep.mubr.f32.mxu0 0.0
  %v553 = vand.u32 %v103, 4294901760
  %v554 = vsub.f32 %v103, %v553
  %v555 = vand.u32 %v554, 4294901760
  %556 = vmatmul.mubr.f32.gmra.mrb[0].mxu0 %v555
  %v557 = vpop.f32.mrb[0].mxu0
  %v558 = vadd.f32 %v453, %v557
  %v559 = vpop.f32.mrb[0].mxu0
  %560 = vdwg.mxu0
  %561 = vmatprep.subr.mxu0 0.0
  %v562 = vand.u32 %v89, 4294901760
  %v563 = vsub.f32 %v89, %v562
  %v564 = vand.u32 %v563, 4294901760
  %565 = vmatpush1.msra.mxu0 %v564
  %566 = vmatprep.subr.mxu0 0.0
  %v567 = vand.u32 %v90, 4294901760
  %v568 = vsub.f32 %v90, %v567
  %v569 = vand.u32 %v568, 4294901760
  %570 = vmatpush1.msra.mxu0 %v569
  %571 = vmatprep.subr.mxu0 0.0
  %v572 = vand.u32 %v91, 4294901760
  %v573 = vsub.f32 %v91, %v572
  %v574 = vand.u32 %v573, 4294901760
  %575 = vmatpush1.msra.mxu0 %v574
  %576 = vmatprep.subr.mxu0 0.0
  %v577 = vand.u32 %v92, 4294901760
  %v578 = vsub.f32 %v92, %v577
  %v579 = vand.u32 %v578, 4294901760
  %580 = vmatpush1.msra.mxu0 %v579
  %581 = vmatprep.subr.mxu0 0.0
  %v582 = vand.u32 %v93, 4294901760
  %v583 = vsub.f32 %v93, %v582
  %v584 = vand.u32 %v583, 4294901760
  %585 = vmatpush1.msra.mxu0 %v584
  %586 = vmatprep.subr.mxu0 0.0
  %v587 = vand.u32 %v94, 4294901760
  %v588 = vsub.f32 %v94, %v587
  %v589 = vand.u32 %v588, 4294901760
  %590 = vmatpush1.msra.mxu0 %v589
  %591 = vmatprep.subr.mxu0 0.0
  %v592 = vand.u32 %v95, 4294901760
  %v593 = vsub.f32 %v95, %v592
  %v594 = vand.u32 %v593, 4294901760
  %595 = vmatpush1.msra.mxu0 %v594
  %596 = vmatprep.subr.mxu0 0.0
  %v597 = vand.u32 %v96, 4294901760
  %v598 = vsub.f32 %v96, %v597
  %v599 = vand.u32 %v598, 4294901760
  %600 = vmatpush1.msra.mxu0 %v599
  %601 = vmatprep.subr.mxu0 0.0
  %602 = vmatpush1.msra.mxu0 0.0
  %603 = vmatprep.subr.mxu0 0.0
  %604 = vmatpush1.msra.mxu0 0.0
  %605 = vmatprep.subr.mxu0 0.0
  %606 = vmatpush1.msra.mxu0 0.0
  %607 = vmatprep.subr.mxu0 0.0
  %608 = vmatpush1.msra.mxu0 0.0
  %609 = vmatprep.subr.mxu0 0.0
  %610 = vmatpush1.msra.mxu0 0.0
  %611 = vmatprep.subr.mxu0 0.0
  %612 = vmatpush1.msra.mxu0 0.0
  %613 = vmatprep.subr.mxu0 0.0
  %614 = vmatpush1.msra.mxu0 0.0
  %615 = vmatprep.subr.mxu0 0.0
  %616 = vmatpush1.msra.mxu0 0.0
  %617 = vmatprep.subr.mxu0 0.0
  %618 = vmatpush1.msra.mxu0 0.0
  %619 = vmatprep.subr.mxu0 0.0
  %620 = vmatpush1.msra.mxu0 0.0
  %621 = vmatprep.subr.mxu0 0.0
  %622 = vmatpush1.msra.mxu0 0.0
  %623 = vmatprep.subr.mxu0 0.0
  %624 = vmatpush1.msra.mxu0 0.0
  %625 = vmatprep.subr.mxu0 0.0
  %626 = vmatpush1.msra.mxu0 0.0
  %627 = vmatprep.subr.mxu0 0.0
  %628 = vmatpush1.msra.mxu0 0.0
  %629 = vmatprep.subr.mxu0 0.0
  %630 = vmatpush1.msra.mxu0 0.0
  %631 = vmatprep.subr.mxu0 0.0
  %632 = vmatpush1.msra.mxu0 0.0
  %633 = vmatprep.subr.mxu0 0.0
  %634 = vmatpush1.msra.mxu0 0.0
  %635 = vmatprep.subr.mxu0 0.0
  %636 = vmatpush1.msra.mxu0 0.0
  %637 = vmatprep.subr.mxu0 0.0
  %638 = vmatpush1.msra.mxu0 0.0
  %639 = vmatprep.subr.mxu0 0.0
  %640 = vmatpush1.msra.mxu0 0.0
  %641 = vmatprep.subr.mxu0 0.0
  %642 = vmatpush1.msra.mxu0 0.0
  %643 = vmatprep.subr.mxu0 0.0
  %644 = vmatpush1.msra.mxu0 0.0
  %645 = vmatprep.subr.mxu0 0.0
  %646 = vmatpush1.msra.mxu0 0.0
  %647 = vmatprep.subr.mxu0 0.0
  %648 = vmatpush1.msra.mxu0 0.0
  %649 = vmatprep.mubr.f32.mxu0 0.0
  %v650 = vand.u32 %v97, 4294901760
  %651 = vmatmul.mubr.f32.gmra.mrb[0].mxu0 %v650
  %v652 = vpop.f32.mrb[0].mxu0
  %v653 = vadd.f32 %v534, %v652
  %v654 = vpop.f32.mrb[0].mxu0
  %655 = vmatprep.mubr.f32.mxu0 0.0
  %v656 = vand.u32 %v99, 4294901760
  %657 = vmatmul.mubr.f32.gmra.mrb[0].mxu0 %v656
  %v658 = vpop.f32.mrb[0].mxu0
  %v659 = vadd.f32 %v542, %v658
  %v660 = vpop.f32.mrb[0].mxu0
  %661 = vmatprep.mubr.f32.mxu0 0.0
  %v662 = vand.u32 %v101, 4294901760
  %663 = vmatmul.mubr.f32.gmra.mrb[0].mxu0 %v662
  %v664 = vpop.f32.mrb[0].mxu0
  %v665 = vadd.f32 %v550, %v664
  %v666 = vpop.f32.mrb[0].mxu0
  %667 = vmatprep.mubr.f32.mxu0 0.0
  %v668 = vand.u32 %v103, 4294901760
  %669 = vmatmul.mubr.f32.gmra.mrb[0].mxu0 %v668
  %v670 = vpop.f32.mrb[0].mxu0
  %v671 = vadd.f32 %v558, %v670
  %v672 = vpop.f32.mrb[0].mxu0
  %673 = vdwg.mxu0
  %674 = vmatprep.subr.mxu0 0.0
  %v675 = vand.u32 %v89, 4294901760
  %676 = vmatpush1.msra.mxu0 %v675
  %677 = vmatprep.subr.mxu0 0.0
  %v678 = vand.u32 %v90, 4294901760
  %679 = vmatpush1.msra.mxu0 %v678
  %680 = vmatprep.subr.mxu0 0.0
  %v681 = vand.u32 %v91, 4294901760
  %682 = vmatpush1.msra.mxu0 %v681
  %683 = vmatprep.subr.mxu0 0.0
  %v684 = vand.u32 %v92, 4294901760
  %685 = vmatpush1.msra.mxu0 %v684
  %686 = vmatprep.subr.mxu0 0.0
  %v687 = vand.u32 %v93, 4294901760
  %688 = vmatpush1.msra.mxu0 %v687
  %689 = vmatprep.subr.mxu0 0.0
  %v690 = vand.u32 %v94, 4294901760
  %691 = vmatpush1.msra.mxu0 %v690
  %692 = vmatprep.subr.mxu0 0.0
  %v693 = vand.u32 %v95, 4294901760
  %694 = vmatpush1.msra.mxu0 %v693
  %695 = vmatprep.subr.mxu0 0.0
  %v696 = vand.u32 %v96, 4294901760
  %697 = vmatpush1.msra.mxu0 %v696
  %698 = vmatprep.subr.mxu0 0.0
  %699 = vmatpush1.msra.mxu0 0.0
  %700 = vmatprep.subr.mxu0 0.0
  %701 = vmatpush1.msra.mxu0 0.0
  %702 = vmatprep.subr.mxu0 0.0
  %703 = vmatpush1.msra.mxu0 0.0
  %704 = vmatprep.subr.mxu0 0.0
  %705 = vmatpush1.msra.mxu0 0.0
  %706 = vmatprep.subr.mxu0 0.0
  %707 = vmatpush1.msra.mxu0 0.0
  %708 = vmatprep.subr.mxu0 0.0
  %709 = vmatpush1.msra.mxu0 0.0
  %710 = vmatprep.subr.mxu0 0.0
  %711 = vmatpush1.msra.mxu0 0.0
  %712 = vmatprep.subr.mxu0 0.0
  %713 = vmatpush1.msra.mxu0 0.0
  %714 = vmatprep.subr.mxu0 0.0
  %715 = vmatpush1.msra.mxu0 0.0
  %716 = vmatprep.subr.mxu0 0.0
  %717 = vmatpush1.msra.mxu0 0.0
  %718 = vmatprep.subr.mxu0 0.0
  %719 = vmatpush1.msra.mxu0 0.0
  %720 = vmatprep.subr.mxu0 0.0
  %721 = vmatpush1.msra.mxu0 0.0
  %722 = vmatprep.subr.mxu0 0.0
  %723 = vmatpush1.msra.mxu0 0.0
  %724 = vmatprep.subr.mxu0 0.0
  %725 = vmatpush1.msra.mxu0 0.0
  %726 = vmatprep.subr.mxu0 0.0
  %727 = vmatpush1.msra.mxu0 0.0
  %728 = vmatprep.subr.mxu0 0.0
  %729 = vmatpush1.msra.mxu0 0.0
  %730 = vmatprep.subr.mxu0 0.0
  %731 = vmatpush1.msra.mxu0 0.0
  %732 = vmatprep.subr.mxu0 0.0
  %733 = vmatpush1.msra.mxu0 0.0
  %734 = vmatprep.subr.mxu0 0.0
  %735 = vmatpush1.msra.mxu0 0.0
  %736 = vmatprep.subr.mxu0 0.0
  %737 = vmatpush1.msra.mxu0 0.0
  %738 = vmatprep.subr.mxu0 0.0
  %739 = vmatpush1.msra.mxu0 0.0
  %740 = vmatprep.subr.mxu0 0.0
  %741 = vmatpush1.msra.mxu0 0.0
  %742 = vmatprep.subr.mxu0 0.0
  %743 = vmatpush1.msra.mxu0 0.0
  %744 = vmatprep.subr.mxu0 0.0
  %745 = vmatpush1.msra.mxu0 0.0
  %746 = vmatprep.mubr.f32.mxu0 0.0
  %v747 = vand.u32 %v97, 4294901760
  %748 = vmatmul.mubr.f32.gmra.mrb[0].mxu0 %v747
  %v749 = vpop.f32.mrb[0].mxu0
  %v750 = vadd.f32 %v653, %v749
  %v751 = vpop.f32.mrb[0].mxu0
  %752 = vmatprep.mubr.f32.mxu0 0.0
  %v753 = vand.u32 %v99, 4294901760
  %754 = vmatmul.mubr.f32.gmra.mrb[0].mxu0 %v753
  %v755 = vpop.f32.mrb[0].mxu0
  %v756 = vadd.f32 %v659, %v755
  %v757 = vpop.f32.mrb[0].mxu0
  %758 = vmatprep.mubr.f32.mxu0 0.0
  %v759 = vand.u32 %v101, 4294901760
  %760 = vmatmul.mubr.f32.gmra.mrb[0].mxu0 %v759
  %v761 = vpop.f32.mrb[0].mxu0
  %v762 = vadd.f32 %v665, %v761
  %v763 = vpop.f32.mrb[0].mxu0
  %764 = vmatprep.mubr.f32.mxu0 0.0
  %v765 = vand.u32 %v103, 4294901760
  %766 = vmatmul.mubr.f32.gmra.mrb[0].mxu0 %v765
  %v767 = vpop.f32.mrb[0].mxu0
  %v768 = vadd.f32 %v671, %v767
  %v769 = vpop.f32.mrb[0].mxu0
  %770 = vdwg.mxu0
  %v771 = vsel %vm52, %v57, 0
  %v773 = vsel %vm52, %v58, 0
  %v775 = vsel %vm52, %v60, 0
  %v777 = vsel %vm52, %v61, 0
  %779 = vmatprep.subr.mxu0 0.0
  %v780 = vand.u32 %v63, 4294901760
  %781 = vmatpush1.msra.mxu0 %v780
  %782 = vmatprep.subr.mxu0 0.0
  %v783 = vand.u32 %v64, 4294901760
  %784 = vmatpush1.msra.mxu0 %v783
  %785 = vmatprep.subr.mxu0 0.0
  %v786 = vand.u32 %v65, 4294901760
  %787 = vmatpush1.msra.mxu0 %v786
  %788 = vmatprep.subr.mxu0 0.0
  %v789 = vand.u32 %v66, 4294901760
  %790 = vmatpush1.msra.mxu0 %v789
  %791 = vmatprep.subr.mxu0 0.0
  %v792 = vand.u32 %v67, 4294901760
  %793 = vmatpush1.msra.mxu0 %v792
  %794 = vmatprep.subr.mxu0 0.0
  %v795 = vand.u32 %v68, 4294901760
  %796 = vmatpush1.msra.mxu0 %v795
  %797 = vmatprep.subr.mxu0 0.0
  %v798 = vand.u32 %v69, 4294901760
  %799 = vmatpush1.msra.mxu0 %v798
  %800 = vmatprep.subr.mxu0 0.0
  %v801 = vand.u32 %v70, 4294901760
  %802 = vmatpush1.msra.mxu0 %v801
  %803 = vmatprep.subr.mxu0 0.0
  %804 = vmatpush1.msra.mxu0 0.0
  %805 = vmatprep.subr.mxu0 0.0
  %806 = vmatpush1.msra.mxu0 0.0
  %807 = vmatprep.subr.mxu0 0.0
  %808 = vmatpush1.msra.mxu0 0.0
  %809 = vmatprep.subr.mxu0 0.0
  %810 = vmatpush1.msra.mxu0 0.0
  %811 = vmatprep.subr.mxu0 0.0
  %812 = vmatpush1.msra.mxu0 0.0
  %813 = vmatprep.subr.mxu0 0.0
  %814 = vmatpush1.msra.mxu0 0.0
  %815 = vmatprep.subr.mxu0 0.0
  %816 = vmatpush1.msra.mxu0 0.0
  %817 = vmatprep.subr.mxu0 0.0
  %818 = vmatpush1.msra.mxu0 0.0
  %819 = vmatprep.subr.mxu0 0.0
  %820 = vmatpush1.msra.mxu0 0.0
  %821 = vmatprep.subr.mxu0 0.0
  %822 = vmatpush1.msra.mxu0 0.0
  %823 = vmatprep.subr.mxu0 0.0
  %824 = vmatpush1.msra.mxu0 0.0
  %825 = vmatprep.subr.mxu0 0.0
  %826 = vmatpush1.msra.mxu0 0.0
  %827 = vmatprep.subr.mxu0 0.0
  %828 = vmatpush1.msra.mxu0 0.0
  %829 = vmatprep.subr.mxu0 0.0
  %830 = vmatpush1.msra.mxu0 0.0
  %831 = vmatprep.subr.mxu0 0.0
  %832 = vmatpush1.msra.mxu0 0.0
  %833 = vmatprep.subr.mxu0 0.0
  %834 = vmatpush1.msra.mxu0 0.0
  %835 = vmatprep.subr.mxu0 0.0
  %836 = vmatpush1.msra.mxu0 0.0
  %837 = vmatprep.subr.mxu0 0.0
  %838 = vmatpush1.msra.mxu0 0.0
  %839 = vmatprep.subr.mxu0 0.0
  %840 = vmatpush1.msra.mxu0 0.0
  %841 = vmatprep.subr.mxu0 0.0
  %842 = vmatpush1.msra.mxu0 0.0
  %843 = vmatprep.subr.mxu0 0.0
  %844 = vmatpush1.msra.mxu0 0.0
  %845 = vmatprep.subr.mxu0 0.0
  %846 = vmatpush1.msra.mxu0 0.0
  %847 = vmatprep.subr.mxu0 0.0
  %848 = vmatpush1.msra.mxu0 0.0
  %849 = vmatprep.subr.mxu0 0.0
  %850 = vmatpush1.msra.mxu0 0.0
  %851 = vmatprep.mubr.f32.mxu0 0.0
  %v852 = vand.u32 %v771, 4294901760
  %v853 = vsub.f32 %v771, %v852
  %v854 = vand.u32 %v853, 4294901760
  %v855 = vsub.f32 %v853, %v854
  %v856 = vand.u32 %v855, 4294901760
  %857 = vmatmul.mubr.f32.gmra.mrb[0].mxu0 %v856
  %v858 = vpop.f32.mrb[0].mxu0
  %v859 = vadd.f32 %v750, %v858
  %v860 = vpop.f32.mrb[0].mxu0
  %861 = vmatprep.mubr.f32.mxu0 0.0
  %v862 = vand.u32 %v773, 4294901760
  %v863 = vsub.f32 %v773, %v862
  %v864 = vand.u32 %v863, 4294901760
  %v865 = vsub.f32 %v863, %v864
  %v866 = vand.u32 %v865, 4294901760
  %867 = vmatmul.mubr.f32.gmra.mrb[0].mxu0 %v866
  %v868 = vpop.f32.mrb[0].mxu0
  %v869 = vadd.f32 %v756, %v868
  %v870 = vpop.f32.mrb[0].mxu0
  %871 = vmatprep.mubr.f32.mxu0 0.0
  %v872 = vand.u32 %v775, 4294901760
  %v873 = vsub.f32 %v775, %v872
  %v874 = vand.u32 %v873, 4294901760
  %v875 = vsub.f32 %v873, %v874
  %v876 = vand.u32 %v875, 4294901760
  %877 = vmatmul.mubr.f32.gmra.mrb[0].mxu0 %v876
  %v878 = vpop.f32.mrb[0].mxu0
  %v879 = vadd.f32 %v762, %v878
  %v880 = vpop.f32.mrb[0].mxu0
  %881 = vmatprep.mubr.f32.mxu0 0.0
  %v882 = vand.u32 %v777, 4294901760
  %v883 = vsub.f32 %v777, %v882
  %v884 = vand.u32 %v883, 4294901760
  %v885 = vsub.f32 %v883, %v884
  %v886 = vand.u32 %v885, 4294901760
  %887 = vmatmul.mubr.f32.gmra.mrb[0].mxu0 %v886
  %v888 = vpop.f32.mrb[0].mxu0
  %v889 = vadd.f32 %v768, %v888
  %v890 = vpop.f32.mrb[0].mxu0
  %891 = vdwg.mxu0
  %892 = vmatprep.subr.mxu0 0.0
  %v893 = vand.u32 %v63, 4294901760
  %v894 = vsub.f32 %v63, %v893
  %v895 = vand.u32 %v894, 4294901760
  %v896 = vsub.f32 %v894, %v895
  %v897 = vand.u32 %v896, 4294901760
  %898 = vmatpush1.msra.mxu0 %v897
  %899 = vmatprep.subr.mxu0 0.0
  %v900 = vand.u32 %v64, 4294901760
  %v901 = vsub.f32 %v64, %v900
  %v902 = vand.u32 %v901, 4294901760
  %v903 = vsub.f32 %v901, %v902
  %v904 = vand.u32 %v903, 4294901760
  %905 = vmatpush1.msra.mxu0 %v904
  %906 = vmatprep.subr.mxu0 0.0
  %v907 = vand.u32 %v65, 4294901760
  %v908 = vsub.f32 %v65, %v907
  %v909 = vand.u32 %v908, 4294901760
  %v910 = vsub.f32 %v908, %v909
  %v911 = vand.u32 %v910, 4294901760
  %912 = vmatpush1.msra.mxu0 %v911
  %913 = vmatprep.subr.mxu0 0.0
  %v914 = vand.u32 %v66, 4294901760
  %v915 = vsub.f32 %v66, %v914
  %v916 = vand.u32 %v915, 4294901760
  %v917 = vsub.f32 %v915, %v916
  %v918 = vand.u32 %v917, 4294901760
  %919 = vmatpush1.msra.mxu0 %v918
  %920 = vmatprep.subr.mxu0 0.0
  %v921 = vand.u32 %v67, 4294901760
  %v922 = vsub.f32 %v67, %v921
  %v923 = vand.u32 %v922, 4294901760
  %v924 = vsub.f32 %v922, %v923
  %v925 = vand.u32 %v924, 4294901760
  %926 = vmatpush1.msra.mxu0 %v925
  %927 = vmatprep.subr.mxu0 0.0
  %v928 = vand.u32 %v68, 4294901760
  %v929 = vsub.f32 %v68, %v928
  %v930 = vand.u32 %v929, 4294901760
  %v931 = vsub.f32 %v929, %v930
  %v932 = vand.u32 %v931, 4294901760
  %933 = vmatpush1.msra.mxu0 %v932
  %934 = vmatprep.subr.mxu0 0.0
  %v935 = vand.u32 %v69, 4294901760
  %v936 = vsub.f32 %v69, %v935
  %v937 = vand.u32 %v936, 4294901760
  %v938 = vsub.f32 %v936, %v937
  %v939 = vand.u32 %v938, 4294901760
  %940 = vmatpush1.msra.mxu0 %v939
  %941 = vmatprep.subr.mxu0 0.0
  %v942 = vand.u32 %v70, 4294901760
  %v943 = vsub.f32 %v70, %v942
  %v944 = vand.u32 %v943, 4294901760
  %v945 = vsub.f32 %v943, %v944
  %v946 = vand.u32 %v945, 4294901760
  %947 = vmatpush1.msra.mxu0 %v946
  %948 = vmatprep.subr.mxu0 0.0
  %949 = vmatpush1.msra.mxu0 0.0
  %950 = vmatprep.subr.mxu0 0.0
  %951 = vmatpush1.msra.mxu0 0.0
  %952 = vmatprep.subr.mxu0 0.0
  %953 = vmatpush1.msra.mxu0 0.0
  %954 = vmatprep.subr.mxu0 0.0
  %955 = vmatpush1.msra.mxu0 0.0
  %956 = vmatprep.subr.mxu0 0.0
  %957 = vmatpush1.msra.mxu0 0.0
  %958 = vmatprep.subr.mxu0 0.0
  %959 = vmatpush1.msra.mxu0 0.0
  %960 = vmatprep.subr.mxu0 0.0
  %961 = vmatpush1.msra.mxu0 0.0
  %962 = vmatprep.subr.mxu0 0.0
  %963 = vmatpush1.msra.mxu0 0.0
  %964 = vmatprep.subr.mxu0 0.0
  %965 = vmatpush1.msra.mxu0 0.0
  %966 = vmatprep.subr.mxu0 0.0
  %967 = vmatpush1.msra.mxu0 0.0
  %968 = vmatprep.subr.mxu0 0.0
  %969 = vmatpush1.msra.mxu0 0.0
  %970 = vmatprep.subr.mxu0 0.0
  %971 = vmatpush1.msra.mxu0 0.0
  %972 = vmatprep.subr.mxu0 0.0
  %973 = vmatpush1.msra.mxu0 0.0
  %974 = vmatprep.subr.mxu0 0.0
  %975 = vmatpush1.msra.mxu0 0.0
  %976 = vmatprep.subr.mxu0 0.0
  %977 = vmatpush1.msra.mxu0 0.0
  %978 = vmatprep.subr.mxu0 0.0
  %979 = vmatpush1.msra.mxu0 0.0
  %980 = vmatprep.subr.mxu0 0.0
  %981 = vmatpush1.msra.mxu0 0.0
  %982 = vmatprep.subr.mxu0 0.0
  %983 = vmatpush1.msra.mxu0 0.0
  %984 = vmatprep.subr.mxu0 0.0
  %985 = vmatpush1.msra.mxu0 0.0
  %986 = vmatprep.subr.mxu0 0.0
  %987 = vmatpush1.msra.mxu0 0.0
  %988 = vmatprep.subr.mxu0 0.0
  %989 = vmatpush1.msra.mxu0 0.0
  %990 = vmatprep.subr.mxu0 0.0
  %991 = vmatpush1.msra.mxu0 0.0
  %992 = vmatprep.subr.mxu0 0.0
  %993 = vmatpush1.msra.mxu0 0.0
  %994 = vmatprep.subr.mxu0 0.0
  %995 = vmatpush1.msra.mxu0 0.0
  %996 = vmatprep.mubr.f32.mxu0 0.0
  %v997 = vand.u32 %v771, 4294901760
  %998 = vmatmul.mubr.f32.gmra.mrb[0].mxu0 %v997
  %v999 = vpop.f32.mrb[0].mxu0
  %v1000 = vadd.f32 %v859, %v999
  %v1001 = vpop.f32.mrb[0].mxu0
  %1002 = vmatprep.mubr.f32.mxu0 0.0
  %v1003 = vand.u32 %v773, 4294901760
  %1004 = vmatmul.mubr.f32.gmra.mrb[0].mxu0 %v1003
  %v1005 = vpop.f32.mrb[0].mxu0
  %v1006 = vadd.f32 %v869, %v1005
  %v1007 = vpop.f32.mrb[0].mxu0
  %1008 = vmatprep.mubr.f32.mxu0 0.0
  %v1009 = vand.u32 %v775, 4294901760
  %1010 = vmatmul.mubr.f32.gmra.mrb[0].mxu0 %v1009
  %v1011 = vpop.f32.mrb[0].mxu0
  %v1012 = vadd.f32 %v879, %v1011
  %v1013 = vpop.f32.mrb[0].mxu0
  %1014 = vmatprep.mubr.f32.mxu0 0.0
  %v1015 = vand.u32 %v777, 4294901760
  %1016 = vmatmul.mubr.f32.gmra.mrb[0].mxu0 %v1015
  %v1017 = vpop.f32.mrb[0].mxu0
  %v1018 = vadd.f32 %v889, %v1017
  %v1019 = vpop.f32.mrb[0].mxu0
  %1020 = vdwg.mxu0
  %1021 = vmatprep.subr.mxu0 0.0
  %v1022 = vand.u32 %v63, 4294901760
  %v1023 = vsub.f32 %v63, %v1022
  %1024 = vmatpush1.msra.mxu0 %v1023
  %1025 = vmatprep.subr.mxu0 0.0
  %v1026 = vand.u32 %v64, 4294901760
  %v1027 = vsub.f32 %v64, %v1026
  %1028 = vmatpush1.msra.mxu0 %v1027
  %1029 = vmatprep.subr.mxu0 0.0
  %v1030 = vand.u32 %v65, 4294901760
  %v1031 = vsub.f32 %v65, %v1030
  %1032 = vmatpush1.msra.mxu0 %v1031
  %1033 = vmatprep.subr.mxu0 0.0
  %v1034 = vand.u32 %v66, 4294901760
  %v1035 = vsub.f32 %v66, %v1034
  %1036 = vmatpush1.msra.mxu0 %v1035
  %1037 = vmatprep.subr.mxu0 0.0
  %v1038 = vand.u32 %v67, 4294901760
  %v1039 = vsub.f32 %v67, %v1038
  %1040 = vmatpush1.msra.mxu0 %v1039
  %1041 = vmatprep.subr.mxu0 0.0
  %v1042 = vand.u32 %v68, 4294901760
  %v1043 = vsub.f32 %v68, %v1042
  %1044 = vmatpush1.msra.mxu0 %v1043
  %1045 = vmatprep.subr.mxu0 0.0
  %v1046 = vand.u32 %v69, 4294901760
  %v1047 = vsub.f32 %v69, %v1046
  %1048 = vmatpush1.msra.mxu0 %v1047
  %1049 = vmatprep.subr.mxu0 0.0
  %v1050 = vand.u32 %v70, 4294901760
  %v1051 = vsub.f32 %v70, %v1050
  %1052 = vmatpush1.msra.mxu0 %v1051
  %1053 = vmatprep.subr.mxu0 0.0
  %1054 = vmatpush1.msra.mxu0 0.0
  %1055 = vmatprep.subr.mxu0 0.0
  %1056 = vmatpush1.msra.mxu0 0.0
  %1057 = vmatprep.subr.mxu0 0.0
  %1058 = vmatpush1.msra.mxu0 0.0
  %1059 = vmatprep.subr.mxu0 0.0
  %1060 = vmatpush1.msra.mxu0 0.0
  %1061 = vmatprep.subr.mxu0 0.0
  %1062 = vmatpush1.msra.mxu0 0.0
  %1063 = vmatprep.subr.mxu0 0.0
  %1064 = vmatpush1.msra.mxu0 0.0
  %1065 = vmatprep.subr.mxu0 0.0
  %1066 = vmatpush1.msra.mxu0 0.0
  %1067 = vmatprep.subr.mxu0 0.0
  %1068 = vmatpush1.msra.mxu0 0.0
  %1069 = vmatprep.subr.mxu0 0.0
  %1070 = vmatpush1.msra.mxu0 0.0
  %1071 = vmatprep.subr.mxu0 0.0
  %1072 = vmatpush1.msra.mxu0 0.0
  %1073 = vmatprep.subr.mxu0 0.0
  %1074 = vmatpush1.msra.mxu0 0.0
  %1075 = vmatprep.subr.mxu0 0.0
  %1076 = vmatpush1.msra.mxu0 0.0
  %1077 = vmatprep.subr.mxu0 0.0
  %1078 = vmatpush1.msra.mxu0 0.0
  %1079 = vmatprep.subr.mxu0 0.0
  %1080 = vmatpush1.msra.mxu0 0.0
  %1081 = vmatprep.subr.mxu0 0.0
  %1082 = vmatpush1.msra.mxu0 0.0
  %1083 = vmatprep.subr.mxu0 0.0
  %1084 = vmatpush1.msra.mxu0 0.0
  %1085 = vmatprep.subr.mxu0 0.0
  %1086 = vmatpush1.msra.mxu0 0.0
  %1087 = vmatprep.subr.mxu0 0.0
  %1088 = vmatpush1.msra.mxu0 0.0
  %1089 = vmatprep.subr.mxu0 0.0
  %1090 = vmatpush1.msra.mxu0 0.0
  %1091 = vmatprep.subr.mxu0 0.0
  %1092 = vmatpush1.msra.mxu0 0.0
  %1093 = vmatprep.subr.mxu0 0.0
  %1094 = vmatpush1.msra.mxu0 0.0
  %1095 = vmatprep.subr.mxu0 0.0
  %1096 = vmatpush1.msra.mxu0 0.0
  %1097 = vmatprep.subr.mxu0 0.0
  %1098 = vmatpush1.msra.mxu0 0.0
  %1099 = vmatprep.subr.mxu0 0.0
  %1100 = vmatpush1.msra.mxu0 0.0
  %1101 = vmatprep.mubr.f32.mxu0 0.0
  %v1102 = vand.u32 %v771, 4294901760
  %v1103 = vsub.f32 %v771, %v1102
  %1104 = vmatmul.mubr.f32.gmra.mrb[0].mxu0 %v1103
  %v1105 = vpop.f32.mrb[0].mxu0
  %v1106 = vadd.f32 %v1000, %v1105
  %v1107 = vpop.f32.mrb[0].mxu0
  %1108 = vmatprep.mubr.f32.mxu0 0.0
  %v1109 = vand.u32 %v773, 4294901760
  %v1110 = vsub.f32 %v773, %v1109
  %1111 = vmatmul.mubr.f32.gmra.mrb[0].mxu0 %v1110
  %v1112 = vpop.f32.mrb[0].mxu0
  %v1113 = vadd.f32 %v1006, %v1112
  %v1114 = vpop.f32.mrb[0].mxu0
  %1115 = vmatprep.mubr.f32.mxu0 0.0
  %v1116 = vand.u32 %v775, 4294901760
  %v1117 = vsub.f32 %v775, %v1116
  %1118 = vmatmul.mubr.f32.gmra.mrb[0].mxu0 %v1117
  %v1119 = vpop.f32.mrb[0].mxu0
  %v1120 = vadd.f32 %v1012, %v1119
  %v1121 = vpop.f32.mrb[0].mxu0
  %1122 = vmatprep.mubr.f32.mxu0 0.0
  %v1123 = vand.u32 %v777, 4294901760
  %v1124 = vsub.f32 %v777, %v1123
  %1125 = vmatmul.mubr.f32.gmra.mrb[0].mxu0 %v1124
  %v1126 = vpop.f32.mrb[0].mxu0
  %v1127 = vadd.f32 %v1018, %v1126
  %v1128 = vpop.f32.mrb[0].mxu0
  %1129 = vdwg.mxu0
  %1130 = vmatprep.subr.mxu0 0.0
  %v1131 = vand.u32 %v63, 4294901760
  %1132 = vmatpush1.msra.mxu0 %v1131
  %1133 = vmatprep.subr.mxu0 0.0
  %v1134 = vand.u32 %v64, 4294901760
  %1135 = vmatpush1.msra.mxu0 %v1134
  %1136 = vmatprep.subr.mxu0 0.0
  %v1137 = vand.u32 %v65, 4294901760
  %1138 = vmatpush1.msra.mxu0 %v1137
  %1139 = vmatprep.subr.mxu0 0.0
  %v1140 = vand.u32 %v66, 4294901760
  %1141 = vmatpush1.msra.mxu0 %v1140
  %1142 = vmatprep.subr.mxu0 0.0
  %v1143 = vand.u32 %v67, 4294901760
  %1144 = vmatpush1.msra.mxu0 %v1143
  %1145 = vmatprep.subr.mxu0 0.0
  %v1146 = vand.u32 %v68, 4294901760
  %1147 = vmatpush1.msra.mxu0 %v1146
  %1148 = vmatprep.subr.mxu0 0.0
  %v1149 = vand.u32 %v69, 4294901760
  %1150 = vmatpush1.msra.mxu0 %v1149
  %1151 = vmatprep.subr.mxu0 0.0
  %v1152 = vand.u32 %v70, 4294901760
  %1153 = vmatpush1.msra.mxu0 %v1152
  %1154 = vmatprep.subr.mxu0 0.0
  %1155 = vmatpush1.msra.mxu0 0.0
  %1156 = vmatprep.subr.mxu0 0.0
  %1157 = vmatpush1.msra.mxu0 0.0
  %1158 = vmatprep.subr.mxu0 0.0
  %1159 = vmatpush1.msra.mxu0 0.0
  %1160 = vmatprep.subr.mxu0 0.0
  %1161 = vmatpush1.msra.mxu0 0.0
  %1162 = vmatprep.subr.mxu0 0.0
  %1163 = vmatpush1.msra.mxu0 0.0
  %1164 = vmatprep.subr.mxu0 0.0
  %1165 = vmatpush1.msra.mxu0 0.0
  %1166 = vmatprep.subr.mxu0 0.0
  %1167 = vmatpush1.msra.mxu0 0.0
  %1168 = vmatprep.subr.mxu0 0.0
  %1169 = vmatpush1.msra.mxu0 0.0
  %1170 = vmatprep.subr.mxu0 0.0
  %1171 = vmatpush1.msra.mxu0 0.0
  %1172 = vmatprep.subr.mxu0 0.0
  %1173 = vmatpush1.msra.mxu0 0.0
  %1174 = vmatprep.subr.mxu0 0.0
  %1175 = vmatpush1.msra.mxu0 0.0
  %1176 = vmatprep.subr.mxu0 0.0
  %1177 = vmatpush1.msra.mxu0 0.0
  %1178 = vmatprep.subr.mxu0 0.0
  %1179 = vmatpush1.msra.mxu0 0.0
  %1180 = vmatprep.subr.mxu0 0.0
  %1181 = vmatpush1.msra.mxu0 0.0
  %1182 = vmatprep.subr.mxu0 0.0
  %1183 = vmatpush1.msra.mxu0 0.0
  %1184 = vmatprep.subr.mxu0 0.0
  %1185 = vmatpush1.msra.mxu0 0.0
  %1186 = vmatprep.subr.mxu0 0.0
  %1187 = vmatpush1.msra.mxu0 0.0
  %1188 = vmatprep.subr.mxu0 0.0
  %1189 = vmatpush1.msra.mxu0 0.0
  %1190 = vmatprep.subr.mxu0 0.0
  %1191 = vmatpush1.msra.mxu0 0.0
  %1192 = vmatprep.subr.mxu0 0.0
  %1193 = vmatpush1.msra.mxu0 0.0
  %1194 = vmatprep.subr.mxu0 0.0
  %1195 = vmatpush1.msra.mxu0 0.0
  %1196 = vmatprep.subr.mxu0 0.0
  %1197 = vmatpush1.msra.mxu0 0.0
  %1198 = vmatprep.subr.mxu0 0.0
  %1199 = vmatpush1.msra.mxu0 0.0
  %1200 = vmatprep.subr.mxu0 0.0
  %1201 = vmatpush1.msra.mxu0 0.0
  %1202 = vmatprep.mubr.f32.mxu0 0.0
  %v1203 = vand.u32 %v771, 4294901760
  %v1204 = vsub.f32 %v771, %v1203
  %v1205 = vand.u32 %v1204, 4294901760
  %1206 = vmatmul.mubr.f32.gmra.mrb[0].mxu0 %v1205
  %v1207 = vpop.f32.mrb[0].mxu0
  %v1208 = vadd.f32 %v1106, %v1207
  %v1209 = vpop.f32.mrb[0].mxu0
  %1210 = vmatprep.mubr.f32.mxu0 0.0
  %v1211 = vand.u32 %v773, 4294901760
  %v1212 = vsub.f32 %v773, %v1211
  %v1213 = vand.u32 %v1212, 4294901760
  %1214 = vmatmul.mubr.f32.gmra.mrb[0].mxu0 %v1213
  %v1215 = vpop.f32.mrb[0].mxu0
  %v1216 = vadd.f32 %v1113, %v1215
  %v1217 = vpop.f32.mrb[0].mxu0
  %1218 = vmatprep.mubr.f32.mxu0 0.0
  %v1219 = vand.u32 %v775, 4294901760
  %v1220 = vsub.f32 %v775, %v1219
  %v1221 = vand.u32 %v1220, 4294901760
  %1222 = vmatmul.mubr.f32.gmra.mrb[0].mxu0 %v1221
  %v1223 = vpop.f32.mrb[0].mxu0
  %v1224 = vadd.f32 %v1120, %v1223
  %v1225 = vpop.f32.mrb[0].mxu0
  %1226 = vmatprep.mubr.f32.mxu0 0.0
  %v1227 = vand.u32 %v777, 4294901760
  %v1228 = vsub.f32 %v777, %v1227
  %v1229 = vand.u32 %v1228, 4294901760
  %1230 = vmatmul.mubr.f32.gmra.mrb[0].mxu0 %v1229
  %v1231 = vpop.f32.mrb[0].mxu0
  %v1232 = vadd.f32 %v1127, %v1231
  %v1233 = vpop.f32.mrb[0].mxu0
  %1234 = vdwg.mxu0
  %1235 = vmatprep.subr.mxu0 0.0
  %v1236 = vand.u32 %v63, 4294901760
  %v1237 = vsub.f32 %v63, %v1236
  %v1238 = vand.u32 %v1237, 4294901760
  %1239 = vmatpush1.msra.mxu0 %v1238
  %1240 = vmatprep.subr.mxu0 0.0
  %v1241 = vand.u32 %v64, 4294901760
  %v1242 = vsub.f32 %v64, %v1241
  %v1243 = vand.u32 %v1242, 4294901760
  %1244 = vmatpush1.msra.mxu0 %v1243
  %1245 = vmatprep.subr.mxu0 0.0
  %v1246 = vand.u32 %v65, 4294901760
  %v1247 = vsub.f32 %v65, %v1246
  %v1248 = vand.u32 %v1247, 4294901760
  %1249 = vmatpush1.msra.mxu0 %v1248
  %1250 = vmatprep.subr.mxu0 0.0
  %v1251 = vand.u32 %v66, 4294901760
  %v1252 = vsub.f32 %v66, %v1251
  %v1253 = vand.u32 %v1252, 4294901760
  %1254 = vmatpush1.msra.mxu0 %v1253
  %1255 = vmatprep.subr.mxu0 0.0
  %v1256 = vand.u32 %v67, 4294901760
  %v1257 = vsub.f32 %v67, %v1256
  %v1258 = vand.u32 %v1257, 4294901760
  %1259 = vmatpush1.msra.mxu0 %v1258
  %1260 = vmatprep.subr.mxu0 0.0
  %v1261 = vand.u32 %v68, 4294901760
  %v1262 = vsub.f32 %v68, %v1261
  %v1263 = vand.u32 %v1262, 4294901760
  %1264 = vmatpush1.msra.mxu0 %v1263
  %1265 = vmatprep.subr.mxu0 0.0
  %v1266 = vand.u32 %v69, 4294901760
  %v1267 = vsub.f32 %v69, %v1266
  %v1268 = vand.u32 %v1267, 4294901760
  %1269 = vmatpush1.msra.mxu0 %v1268
  %1270 = vmatprep.subr.mxu0 0.0
  %v1271 = vand.u32 %v70, 4294901760
  %v1272 = vsub.f32 %v70, %v1271
  %v1273 = vand.u32 %v1272, 4294901760
  %1274 = vmatpush1.msra.mxu0 %v1273
  %1275 = vmatprep.subr.mxu0 0.0
  %1276 = vmatpush1.msra.mxu0 0.0
  %1277 = vmatprep.subr.mxu0 0.0
  %1278 = vmatpush1.msra.mxu0 0.0
  %1279 = vmatprep.subr.mxu0 0.0
  %1280 = vmatpush1.msra.mxu0 0.0
  %1281 = vmatprep.subr.mxu0 0.0
  %1282 = vmatpush1.msra.mxu0 0.0
  %1283 = vmatprep.subr.mxu0 0.0
  %1284 = vmatpush1.msra.mxu0 0.0
  %1285 = vmatprep.subr.mxu0 0.0
  %1286 = vmatpush1.msra.mxu0 0.0
  %1287 = vmatprep.subr.mxu0 0.0
  %1288 = vmatpush1.msra.mxu0 0.0
  %1289 = vmatprep.subr.mxu0 0.0
  %1290 = vmatpush1.msra.mxu0 0.0
  %1291 = vmatprep.subr.mxu0 0.0
  %1292 = vmatpush1.msra.mxu0 0.0
  %1293 = vmatprep.subr.mxu0 0.0
  %1294 = vmatpush1.msra.mxu0 0.0
  %1295 = vmatprep.subr.mxu0 0.0
  %1296 = vmatpush1.msra.mxu0 0.0
  %1297 = vmatprep.subr.mxu0 0.0
  %1298 = vmatpush1.msra.mxu0 0.0
  %1299 = vmatprep.subr.mxu0 0.0
  %1300 = vmatpush1.msra.mxu0 0.0
  %1301 = vmatprep.subr.mxu0 0.0
  %1302 = vmatpush1.msra.mxu0 0.0
  %1303 = vmatprep.subr.mxu0 0.0
  %1304 = vmatpush1.msra.mxu0 0.0
  %1305 = vmatprep.subr.mxu0 0.0
  %1306 = vmatpush1.msra.mxu0 0.0
  %1307 = vmatprep.subr.mxu0 0.0
  %1308 = vmatpush1.msra.mxu0 0.0
  %1309 = vmatprep.subr.mxu0 0.0
  %1310 = vmatpush1.msra.mxu0 0.0
  %1311 = vmatprep.subr.mxu0 0.0
  %1312 = vmatpush1.msra.mxu0 0.0
  %1313 = vmatprep.subr.mxu0 0.0
  %1314 = vmatpush1.msra.mxu0 0.0
  %1315 = vmatprep.subr.mxu0 0.0
  %1316 = vmatpush1.msra.mxu0 0.0
  %1317 = vmatprep.subr.mxu0 0.0
  %1318 = vmatpush1.msra.mxu0 0.0
  %1319 = vmatprep.subr.mxu0 0.0
  %1320 = vmatpush1.msra.mxu0 0.0
  %1321 = vmatprep.subr.mxu0 0.0
  %1322 = vmatpush1.msra.mxu0 0.0
  %1323 = vmatprep.mubr.f32.mxu0 0.0
  %v1324 = vand.u32 %v771, 4294901760
  %1325 = vmatmul.mubr.f32.gmra.mrb[0].mxu0 %v1324
  %v1326 = vpop.f32.mrb[0].mxu0
  %v1327 = vadd.f32 %v1208, %v1326
  %v1328 = vpop.f32.mrb[0].mxu0
  %1329 = vmatprep.mubr.f32.mxu0 0.0
  %v1330 = vand.u32 %v773, 4294901760
  %1331 = vmatmul.mubr.f32.gmra.mrb[0].mxu0 %v1330
  %v1332 = vpop.f32.mrb[0].mxu0
  %v1333 = vadd.f32 %v1216, %v1332
  %v1334 = vpop.f32.mrb[0].mxu0
  %1335 = vmatprep.mubr.f32.mxu0 0.0
  %v1336 = vand.u32 %v775, 4294901760
  %1337 = vmatmul.mubr.f32.gmra.mrb[0].mxu0 %v1336
  %v1338 = vpop.f32.mrb[0].mxu0
  %v1339 = vadd.f32 %v1224, %v1338
  %v1340 = vpop.f32.mrb[0].mxu0
  %1341 = vmatprep.mubr.f32.mxu0 0.0
  %v1342 = vand.u32 %v777, 4294901760
  %1343 = vmatmul.mubr.f32.gmra.mrb[0].mxu0 %v1342
  %v1344 = vpop.f32.mrb[0].mxu0
  %v1345 = vadd.f32 %v1232, %v1344
  %v1346 = vpop.f32.mrb[0].mxu0
  %1347 = vdwg.mxu0
  %1348 = vmatprep.subr.mxu0 0.0
  %v1349 = vand.u32 %v63, 4294901760
  %1350 = vmatpush1.msra.mxu0 %v1349
  %1351 = vmatprep.subr.mxu0 0.0
  %v1352 = vand.u32 %v64, 4294901760
  %1353 = vmatpush1.msra.mxu0 %v1352
  %1354 = vmatprep.subr.mxu0 0.0
  %v1355 = vand.u32 %v65, 4294901760
  %1356 = vmatpush1.msra.mxu0 %v1355
  %1357 = vmatprep.subr.mxu0 0.0
  %v1358 = vand.u32 %v66, 4294901760
  %1359 = vmatpush1.msra.mxu0 %v1358
  %1360 = vmatprep.subr.mxu0 0.0
  %v1361 = vand.u32 %v67, 4294901760
  %1362 = vmatpush1.msra.mxu0 %v1361
  %1363 = vmatprep.subr.mxu0 0.0
  %v1364 = vand.u32 %v68, 4294901760
  %1365 = vmatpush1.msra.mxu0 %v1364
  %1366 = vmatprep.subr.mxu0 0.0
  %v1367 = vand.u32 %v69, 4294901760
  %1368 = vmatpush1.msra.mxu0 %v1367
  %1369 = vmatprep.subr.mxu0 0.0
  %v1370 = vand.u32 %v70, 4294901760
  %1371 = vmatpush1.msra.mxu0 %v1370
  %1372 = vmatprep.subr.mxu0 0.0
  %1373 = vmatpush1.msra.mxu0 0.0
  %1374 = vmatprep.subr.mxu0 0.0
  %1375 = vmatpush1.msra.mxu0 0.0
  %1376 = vmatprep.subr.mxu0 0.0
  %1377 = vmatpush1.msra.mxu0 0.0
  %1378 = vmatprep.subr.mxu0 0.0
  %1379 = vmatpush1.msra.mxu0 0.0
  %1380 = vmatprep.subr.mxu0 0.0
  %1381 = vmatpush1.msra.mxu0 0.0
  %1382 = vmatprep.subr.mxu0 0.0
  %1383 = vmatpush1.msra.mxu0 0.0
  %1384 = vmatprep.subr.mxu0 0.0
  %1385 = vmatpush1.msra.mxu0 0.0
  %1386 = vmatprep.subr.mxu0 0.0
  %1387 = vmatpush1.msra.mxu0 0.0
  %1388 = vmatprep.subr.mxu0 0.0
  %1389 = vmatpush1.msra.mxu0 0.0
  %1390 = vmatprep.subr.mxu0 0.0
  %1391 = vmatpush1.msra.mxu0 0.0
  %1392 = vmatprep.subr.mxu0 0.0
  %1393 = vmatpush1.msra.mxu0 0.0
  %1394 = vmatprep.subr.mxu0 0.0
  %1395 = vmatpush1.msra.mxu0 0.0
  %1396 = vmatprep.subr.mxu0 0.0
  %1397 = vmatpush1.msra.mxu0 0.0
  %1398 = vmatprep.subr.mxu0 0.0
  %1399 = vmatpush1.msra.mxu0 0.0
  %1400 = vmatprep.subr.mxu0 0.0
  %1401 = vmatpush1.msra.mxu0 0.0
  %1402 = vmatprep.subr.mxu0 0.0
  %1403 = vmatpush1.msra.mxu0 0.0
  %1404 = vmatprep.subr.mxu0 0.0
  %1405 = vmatpush1.msra.mxu0 0.0
  %1406 = vmatprep.subr.mxu0 0.0
  %1407 = vmatpush1.msra.mxu0 0.0
  %1408 = vmatprep.subr.mxu0 0.0
  %1409 = vmatpush1.msra.mxu0 0.0
  %1410 = vmatprep.subr.mxu0 0.0
  %1411 = vmatpush1.msra.mxu0 0.0
  %1412 = vmatprep.subr.mxu0 0.0
  %1413 = vmatpush1.msra.mxu0 0.0
  %1414 = vmatprep.subr.mxu0 0.0
  %1415 = vmatpush1.msra.mxu0 0.0
  %1416 = vmatprep.subr.mxu0 0.0
  %1417 = vmatpush1.msra.mxu0 0.0
  %1418 = vmatprep.subr.mxu0 0.0
  %1419 = vmatpush1.msra.mxu0 0.0
  %1420 = vmatprep.mubr.f32.mxu0 0.0
  %v1421 = vand.u32 %v771, 4294901760
  %1422 = vmatmul.mubr.f32.gmra.mrb[0].mxu0 %v1421
  %v1423 = vpop.f32.mrb[0].mxu0
  %v1424 = vadd.f32 %v1327, %v1423
  %v1425 = vpop.f32.mrb[0].mxu0
  %1426 = vmatprep.mubr.f32.mxu0 0.0
  %v1427 = vand.u32 %v773, 4294901760
  %1428 = vmatmul.mubr.f32.gmra.mrb[0].mxu0 %v1427
  %v1429 = vpop.f32.mrb[0].mxu0
  %v1430 = vadd.f32 %v1333, %v1429
  %v1431 = vpop.f32.mrb[0].mxu0
  %1432 = vmatprep.mubr.f32.mxu0 0.0
  %v1433 = vand.u32 %v775, 4294901760
  %1434 = vmatmul.mubr.f32.gmra.mrb[0].mxu0 %v1433
  %v1435 = vpop.f32.mrb[0].mxu0
  %v1436 = vadd.f32 %v1339, %v1435
  %v1437 = vpop.f32.mrb[0].mxu0
  %1438 = vmatprep.mubr.f32.mxu0 0.0
  %v1439 = vand.u32 %v777, 4294901760
  %1440 = vmatmul.mubr.f32.gmra.mrb[0].mxu0 %v1439
  %v1441 = vpop.f32.mrb[0].mxu0
  %v1442 = vadd.f32 %v1345, %v1441
  %v1443 = vpop.f32.mrb[0].mxu0
  %1444 = vdwg.mxu0
  %vm1445 = vcmask 1045504
  %v1446 = vrot.slane %v57, 2
  %v1447 = vrot.slane %v58, 2
  %v1448 = vsel %vm1445, %v1446, %v1447
  %v1449 = vrot.slane %v59, 2
  %v1450 = vsel %vm1445, %v1447, %v1449
  %v1451 = vrot.slane %v60, 2
  %v1452 = vrot.slane %v61, 2
  %v1453 = vsel %vm1445, %v1451, %v1452
  %v1454 = vrot.slane %v62, 2
  %v1455 = vsel %vm1445, %v1452, %v1454
  %s1456 = scalar_lea.vmem %s1, 128
  %v1457 = vld [vmem:[%s1456] sm:$0xff]
  %v1458 = vld [vmem:[%s1456 + $0x8] sm:$0xff]
  %v1459 = vld [vmem:[%s1456 + $0x10] sm:$0xff]
  %v1460 = vld [vmem:[%s1456 + $0x18] sm:$0xff]
  %v1461 = vld [vmem:[%s1456 + $0x20] sm:$0xff]
  %v1462 = vld [vmem:[%s1456 + $0x28] sm:$0xff]
  %v1463 = vld [vmem:[%s1456 + $0x30] sm:$0xff]
  %v1464 = vld [vmem:[%s1456 + $0x38] sm:$0xff]
  %v1465 = vsel %vm52, %v1448, 0
  %v1467 = vsel %vm52, %v1450, 0
  %v1469 = vsel %vm52, %v1453, 0
  %v1471 = vsel %vm52, %v1455, 0
  %1473 = vmatprep.subr.mxu0 0.0
  %v1474 = vand.u32 %v1457, 4294901760
  %1475 = vmatpush1.msra.mxu0 %v1474
  %1476 = vmatprep.subr.mxu0 0.0
  %v1477 = vand.u32 %v1458, 4294901760
  %1478 = vmatpush1.msra.mxu0 %v1477
  %1479 = vmatprep.subr.mxu0 0.0
  %v1480 = vand.u32 %v1459, 4294901760
  %1481 = vmatpush1.msra.mxu0 %v1480
  %1482 = vmatprep.subr.mxu0 0.0
  %v1483 = vand.u32 %v1460, 4294901760
  %1484 = vmatpush1.msra.mxu0 %v1483
  %1485 = vmatprep.subr.mxu0 0.0
  %v1486 = vand.u32 %v1461, 4294901760
  %1487 = vmatpush1.msra.mxu0 %v1486
  %1488 = vmatprep.subr.mxu0 0.0
  %v1489 = vand.u32 %v1462, 4294901760
  %1490 = vmatpush1.msra.mxu0 %v1489
  %1491 = vmatprep.subr.mxu0 0.0
  %v1492 = vand.u32 %v1463, 4294901760
  %1493 = vmatpush1.msra.mxu0 %v1492
  %1494 = vmatprep.subr.mxu0 0.0
  %v1495 = vand.u32 %v1464, 4294901760
  %1496 = vmatpush1.msra.mxu0 %v1495
  %1497 = vmatprep.subr.mxu0 0.0
  %1498 = vmatpush1.msra.mxu0 0.0
  %1499 = vmatprep.subr.mxu0 0.0
  %1500 = vmatpush1.msra.mxu0 0.0
  %1501 = vmatprep.subr.mxu0 0.0
  %1502 = vmatpush1.msra.mxu0 0.0
  %1503 = vmatprep.subr.mxu0 0.0
  %1504 = vmatpush1.msra.mxu0 0.0
  %1505 = vmatprep.subr.mxu0 0.0
  %1506 = vmatpush1.msra.mxu0 0.0
  %1507 = vmatprep.subr.mxu0 0.0
  %1508 = vmatpush1.msra.mxu0 0.0
  %1509 = vmatprep.subr.mxu0 0.0
  %1510 = vmatpush1.msra.mxu0 0.0
  %1511 = vmatprep.subr.mxu0 0.0
  %1512 = vmatpush1.msra.mxu0 0.0
  %1513 = vmatprep.subr.mxu0 0.0
  %1514 = vmatpush1.msra.mxu0 0.0
  %1515 = vmatprep.subr.mxu0 0.0
  %1516 = vmatpush1.msra.mxu0 0.0
  %1517 = vmatprep.subr.mxu0 0.0
  %1518 = vmatpush1.msra.mxu0 0.0
  %1519 = vmatprep.subr.mxu0 0.0
  %1520 = vmatpush1.msra.mxu0 0.0
  %1521 = vmatprep.subr.mxu0 0.0
  %1522 = vmatpush1.msra.mxu0 0.0
  %1523 = vmatprep.subr.mxu0 0.0
  %1524 = vmatpush1.msra.mxu0 0.0
  %1525 = vmatprep.subr.mxu0 0.0
  %1526 = vmatpush1.msra.mxu0 0.0
  %1527 = vmatprep.subr.mxu0 0.0
  %1528 = vmatpush1.msra.mxu0 0.0
  %1529 = vmatprep.subr.mxu0 0.0
  %1530 = vmatpush1.msra.mxu0 0.0
  %1531 = vmatprep.subr.mxu0 0.0
  %1532 = vmatpush1.msra.mxu0 0.0
  %1533 = vmatprep.subr.mxu0 0.0
  %1534 = vmatpush1.msra.mxu0 0.0
  %1535 = vmatprep.subr.mxu0 0.0
  %1536 = vmatpush1.msra.mxu0 0.0
  %1537 = vmatprep.subr.mxu0 0.0
  %1538 = vmatpush1.msra.mxu0 0.0
  %1539 = vmatprep.subr.mxu0 0.0
  %1540 = vmatpush1.msra.mxu0 0.0
  %1541 = vmatprep.subr.mxu0 0.0
  %1542 = vmatpush1.msra.mxu0 0.0
  %1543 = vmatprep.subr.mxu0 0.0
  %1544 = vmatpush1.msra.mxu0 0.0
  %1545 = vmatprep.mubr.f32.mxu0 0.0
  %v1546 = vand.u32 %v1465, 4294901760
  %v1547 = vsub.f32 %v1465, %v1546
  %v1548 = vand.u32 %v1547, 4294901760
  %v1549 = vsub.f32 %v1547, %v1548
  %v1550 = vand.u32 %v1549, 4294901760
  %1551 = vmatmul.mubr.f32.gmra.mrb[0].mxu0 %v1550
  %v1552 = vpop.f32.mrb[0].mxu0
  %v1553 = vadd.f32 0.0, %v1552
  %v1554 = vpop.f32.mrb[0].mxu0
  %1555 = vmatprep.mubr.f32.mxu0 0.0
  %v1556 = vand.u32 %v1467, 4294901760
  %v1557 = vsub.f32 %v1467, %v1556
  %v1558 = vand.u32 %v1557, 4294901760
  %v1559 = vsub.f32 %v1557, %v1558
  %v1560 = vand.u32 %v1559, 4294901760
  %1561 = vmatmul.mubr.f32.gmra.mrb[0].mxu0 %v1560
  %v1562 = vpop.f32.mrb[0].mxu0
  %v1563 = vadd.f32 0.0, %v1562
  %v1564 = vpop.f32.mrb[0].mxu0
  %1565 = vmatprep.mubr.f32.mxu0 0.0
  %v1566 = vand.u32 %v1469, 4294901760
  %v1567 = vsub.f32 %v1469, %v1566
  %v1568 = vand.u32 %v1567, 4294901760
  %v1569 = vsub.f32 %v1567, %v1568
  %v1570 = vand.u32 %v1569, 4294901760
  %1571 = vmatmul.mubr.f32.gmra.mrb[0].mxu0 %v1570
  %v1572 = vpop.f32.mrb[0].mxu0
  %v1573 = vadd.f32 0.0, %v1572
  %v1574 = vpop.f32.mrb[0].mxu0
  %1575 = vmatprep.mubr.f32.mxu0 0.0
  %v1576 = vand.u32 %v1471, 4294901760
  %v1577 = vsub.f32 %v1471, %v1576
  %v1578 = vand.u32 %v1577, 4294901760
  %v1579 = vsub.f32 %v1577, %v1578
  %v1580 = vand.u32 %v1579, 4294901760
  %1581 = vmatmul.mubr.f32.gmra.mrb[0].mxu0 %v1580
  %v1582 = vpop.f32.mrb[0].mxu0
  %v1583 = vadd.f32 0.0, %v1582
  %v1584 = vpop.f32.mrb[0].mxu0
  %1585 = vdwg.mxu0
  %1586 = vmatprep.subr.mxu0 0.0
  %v1587 = vand.u32 %v1457, 4294901760
  %v1588 = vsub.f32 %v1457, %v1587
  %v1589 = vand.u32 %v1588, 4294901760
  %v1590 = vsub.f32 %v1588, %v1589
  %v1591 = vand.u32 %v1590, 4294901760
  %1592 = vmatpush1.msra.mxu0 %v1591
  %1593 = vmatprep.subr.mxu0 0.0
  %v1594 = vand.u32 %v1458, 4294901760
  %v1595 = vsub.f32 %v1458, %v1594
  %v1596 = vand.u32 %v1595, 4294901760
  %v1597 = vsub.f32 %v1595, %v1596
  %v1598 = vand.u32 %v1597, 4294901760
  %1599 = vmatpush1.msra.mxu0 %v1598
  %1600 = vmatprep.subr.mxu0 0.0
  %v1601 = vand.u32 %v1459, 4294901760
  %v1602 = vsub.f32 %v1459, %v1601
  %v1603 = vand.u32 %v1602, 4294901760
  %v1604 = vsub.f32 %v1602, %v1603
  %v1605 = vand.u32 %v1604, 4294901760
  %1606 = vmatpush1.msra.mxu0 %v1605
  %1607 = vmatprep.subr.mxu0 0.0
  %v1608 = vand.u32 %v1460, 4294901760
  %v1609 = vsub.f32 %v1460, %v1608
  %v1610 = vand.u32 %v1609, 4294901760
  %v1611 = vsub.f32 %v1609, %v1610
  %v1612 = vand.u32 %v1611, 4294901760
  %1613 = vmatpush1.msra.mxu0 %v1612
  %1614 = vmatprep.subr.mxu0 0.0
  %v1615 = vand.u32 %v1461, 4294901760
  %v1616 = vsub.f32 %v1461, %v1615
  %v1617 = vand.u32 %v1616, 4294901760
  %v1618 = vsub.f32 %v1616, %v1617
  %v1619 = vand.u32 %v1618, 4294901760
  %1620 = vmatpush1.msra.mxu0 %v1619
  %1621 = vmatprep.subr.mxu0 0.0
  %v1622 = vand.u32 %v1462, 4294901760
  %v1623 = vsub.f32 %v1462, %v1622
  %v1624 = vand.u32 %v1623, 4294901760
  %v1625 = vsub.f32 %v1623, %v1624
  %v1626 = vand.u32 %v1625, 4294901760
  %1627 = vmatpush1.msra.mxu0 %v1626
  %1628 = vmatprep.subr.mxu0 0.0
  %v1629 = vand.u32 %v1463, 4294901760
  %v1630 = vsub.f32 %v1463, %v1629
  %v1631 = vand.u32 %v1630, 4294901760
  %v1632 = vsub.f32 %v1630, %v1631
  %v1633 = vand.u32 %v1632, 4294901760
  %1634 = vmatpush1.msra.mxu0 %v1633
  %1635 = vmatprep.subr.mxu0 0.0
  %v1636 = vand.u32 %v1464, 4294901760
  %v1637 = vsub.f32 %v1464, %v1636
  %v1638 = vand.u32 %v1637, 4294901760
  %v1639 = vsub.f32 %v1637, %v1638
  %v1640 = vand.u32 %v1639, 4294901760
  %1641 = vmatpush1.msra.mxu0 %v1640
  %1642 = vmatprep.subr.mxu0 0.0
  %1643 = vmatpush1.msra.mxu0 0.0
  %1644 = vmatprep.subr.mxu0 0.0
  %1645 = vmatpush1.msra.mxu0 0.0
  %1646 = vmatprep.subr.mxu0 0.0
  %1647 = vmatpush1.msra.mxu0 0.0
  %1648 = vmatprep.subr.mxu0 0.0
  %1649 = vmatpush1.msra.mxu0 0.0
  %1650 = vmatprep.subr.mxu0 0.0
  %1651 = vmatpush1.msra.mxu0 0.0
  %1652 = vmatprep.subr.mxu0 0.0
  %1653 = vmatpush1.msra.mxu0 0.0
  %1654 = vmatprep.subr.mxu0 0.0
  %1655 = vmatpush1.msra.mxu0 0.0
  %1656 = vmatprep.subr.mxu0 0.0
  %1657 = vmatpush1.msra.mxu0 0.0
  %1658 = vmatprep.subr.mxu0 0.0
  %1659 = vmatpush1.msra.mxu0 0.0
  %1660 = vmatprep.subr.mxu0 0.0
  %1661 = vmatpush1.msra.mxu0 0.0
  %1662 = vmatprep.subr.mxu0 0.0
  %1663 = vmatpush1.msra.mxu0 0.0
  %1664 = vmatprep.subr.mxu0 0.0
  %1665 = vmatpush1.msra.mxu0 0.0
  %1666 = vmatprep.subr.mxu0 0.0
  %1667 = vmatpush1.msra.mxu0 0.0
  %1668 = vmatprep.subr.mxu0 0.0
  %1669 = vmatpush1.msra.mxu0 0.0
  %1670 = vmatprep.subr.mxu0 0.0
  %1671 = vmatpush1.msra.mxu0 0.0
  %1672 = vmatprep.subr.mxu0 0.0
  %1673 = vmatpush1.msra.mxu0 0.0
  %1674 = vmatprep.subr.mxu0 0.0
  %1675 = vmatpush1.msra.mxu0 0.0
  %1676 = vmatprep.subr.mxu0 0.0
  %1677 = vmatpush1.msra.mxu0 0.0
  %1678 = vmatprep.subr.mxu0 0.0
  %1679 = vmatpush1.msra.mxu0 0.0
  %1680 = vmatprep.subr.mxu0 0.0
  %1681 = vmatpush1.msra.mxu0 0.0
  %1682 = vmatprep.subr.mxu0 0.0
  %1683 = vmatpush1.msra.mxu0 0.0
  %1684 = vmatprep.subr.mxu0 0.0
  %1685 = vmatpush1.msra.mxu0 0.0
  %1686 = vmatprep.subr.mxu0 0.0
  %1687 = vmatpush1.msra.mxu0 0.0
  %1688 = vmatprep.subr.mxu0 0.0
  %1689 = vmatpush1.msra.mxu0 0.0
  %1690 = vmatprep.mubr.f32.mxu0 0.0
  %v1691 = vand.u32 %v1465, 4294901760
  %1692 = vmatmul.mubr.f32.gmra.mrb[0].mxu0 %v1691
  %v1693 = vpop.f32.mrb[0].mxu0
  %v1694 = vadd.f32 %v1553, %v1693
  %v1695 = vpop.f32.mrb[0].mxu0
  %1696 = vmatprep.mubr.f32.mxu0 0.0
  %v1697 = vand.u32 %v1467, 4294901760
  %1698 = vmatmul.mubr.f32.gmra.mrb[0].mxu0 %v1697
  %v1699 = vpop.f32.mrb[0].mxu0
  %v1700 = vadd.f32 %v1563, %v1699
  %v1701 = vpop.f32.mrb[0].mxu0
  %1702 = vmatprep.mubr.f32.mxu0 0.0
  %v1703 = vand.u32 %v1469, 4294901760
  %1704 = vmatmul.mubr.f32.gmra.mrb[0].mxu0 %v1703
  %v1705 = vpop.f32.mrb[0].mxu0
  %v1706 = vadd.f32 %v1573, %v1705
  %v1707 = vpop.f32.mrb[0].mxu0
  %1708 = vmatprep.mubr.f32.mxu0 0.0
  %v1709 = vand.u32 %v1471, 4294901760
  %1710 = vmatmul.mubr.f32.gmra.mrb[0].mxu0 %v1709
  %v1711 = vpop.f32.mrb[0].mxu0
  %v1712 = vadd.f32 %v1583, %v1711
  %v1713 = vpop.f32.mrb[0].mxu0
  %1714 = vdwg.mxu0
  %1715 = vmatprep.subr.mxu0 0.0
  %v1716 = vand.u32 %v1457, 4294901760
  %v1717 = vsub.f32 %v1457, %v1716
  %1718 = vmatpush1.msra.mxu0 %v1717
  %1719 = vmatprep.subr.mxu0 0.0
  %v1720 = vand.u32 %v1458, 4294901760
  %v1721 = vsub.f32 %v1458, %v1720
  %1722 = vmatpush1.msra.mxu0 %v1721
  %1723 = vmatprep.subr.mxu0 0.0
  %v1724 = vand.u32 %v1459, 4294901760
  %v1725 = vsub.f32 %v1459, %v1724
  %1726 = vmatpush1.msra.mxu0 %v1725
  %1727 = vmatprep.subr.mxu0 0.0
  %v1728 = vand.u32 %v1460, 4294901760
  %v1729 = vsub.f32 %v1460, %v1728
  %1730 = vmatpush1.msra.mxu0 %v1729
  %1731 = vmatprep.subr.mxu0 0.0
  %v1732 = vand.u32 %v1461, 4294901760
  %v1733 = vsub.f32 %v1461, %v1732
  %1734 = vmatpush1.msra.mxu0 %v1733
  %1735 = vmatprep.subr.mxu0 0.0
  %v1736 = vand.u32 %v1462, 4294901760
  %v1737 = vsub.f32 %v1462, %v1736
  %1738 = vmatpush1.msra.mxu0 %v1737
  %1739 = vmatprep.subr.mxu0 0.0
  %v1740 = vand.u32 %v1463, 4294901760
  %v1741 = vsub.f32 %v1463, %v1740
  %1742 = vmatpush1.msra.mxu0 %v1741
  %1743 = vmatprep.subr.mxu0 0.0
  %v1744 = vand.u32 %v1464, 4294901760
  %v1745 = vsub.f32 %v1464, %v1744
  %1746 = vmatpush1.msra.mxu0 %v1745
  %1747 = vmatprep.subr.mxu0 0.0
  %1748 = vmatpush1.msra.mxu0 0.0
  %1749 = vmatprep.subr.mxu0 0.0
  %1750 = vmatpush1.msra.mxu0 0.0
  %1751 = vmatprep.subr.mxu0 0.0
  %1752 = vmatpush1.msra.mxu0 0.0
  %1753 = vmatprep.subr.mxu0 0.0
  %1754 = vmatpush1.msra.mxu0 0.0
  %1755 = vmatprep.subr.mxu0 0.0
  %1756 = vmatpush1.msra.mxu0 0.0
  %1757 = vmatprep.subr.mxu0 0.0
  %1758 = vmatpush1.msra.mxu0 0.0
  %1759 = vmatprep.subr.mxu0 0.0
  %1760 = vmatpush1.msra.mxu0 0.0
  %1761 = vmatprep.subr.mxu0 0.0
  %1762 = vmatpush1.msra.mxu0 0.0
  %1763 = vmatprep.subr.mxu0 0.0
  %1764 = vmatpush1.msra.mxu0 0.0
  %1765 = vmatprep.subr.mxu0 0.0
  %1766 = vmatpush1.msra.mxu0 0.0
  %1767 = vmatprep.subr.mxu0 0.0
  %1768 = vmatpush1.msra.mxu0 0.0
  %1769 = vmatprep.subr.mxu0 0.0
  %1770 = vmatpush1.msra.mxu0 0.0
  %1771 = vmatprep.subr.mxu0 0.0
  %1772 = vmatpush1.msra.mxu0 0.0
  %1773 = vmatprep.subr.mxu0 0.0
  %1774 = vmatpush1.msra.mxu0 0.0
  %1775 = vmatprep.subr.mxu0 0.0
  %1776 = vmatpush1.msra.mxu0 0.0
  %1777 = vmatprep.subr.mxu0 0.0
  %1778 = vmatpush1.msra.mxu0 0.0
  %1779 = vmatprep.subr.mxu0 0.0
  %1780 = vmatpush1.msra.mxu0 0.0
  %1781 = vmatprep.subr.mxu0 0.0
  %1782 = vmatpush1.msra.mxu0 0.0
  %1783 = vmatprep.subr.mxu0 0.0
  %1784 = vmatpush1.msra.mxu0 0.0
  %1785 = vmatprep.subr.mxu0 0.0
  %1786 = vmatpush1.msra.mxu0 0.0
  %1787 = vmatprep.subr.mxu0 0.0
  %1788 = vmatpush1.msra.mxu0 0.0
  %1789 = vmatprep.subr.mxu0 0.0
  %1790 = vmatpush1.msra.mxu0 0.0
  %1791 = vmatprep.subr.mxu0 0.0
  %1792 = vmatpush1.msra.mxu0 0.0
  %1793 = vmatprep.subr.mxu0 0.0
  %1794 = vmatpush1.msra.mxu0 0.0
  %1795 = vmatprep.mubr.f32.mxu0 0.0
  %v1796 = vand.u32 %v1465, 4294901760
  %v1797 = vsub.f32 %v1465, %v1796
  %1798 = vmatmul.mubr.f32.gmra.mrb[0].mxu0 %v1797
  %v1799 = vpop.f32.mrb[0].mxu0
  %v1800 = vadd.f32 %v1694, %v1799
  %v1801 = vpop.f32.mrb[0].mxu0
  %1802 = vmatprep.mubr.f32.mxu0 0.0
  %v1803 = vand.u32 %v1467, 4294901760
  %v1804 = vsub.f32 %v1467, %v1803
  %1805 = vmatmul.mubr.f32.gmra.mrb[0].mxu0 %v1804
  %v1806 = vpop.f32.mrb[0].mxu0
  %v1807 = vadd.f32 %v1700, %v1806
  %v1808 = vpop.f32.mrb[0].mxu0
  %1809 = vmatprep.mubr.f32.mxu0 0.0
  %v1810 = vand.u32 %v1469, 4294901760
  %v1811 = vsub.f32 %v1469, %v1810
  %1812 = vmatmul.mubr.f32.gmra.mrb[0].mxu0 %v1811
  %v1813 = vpop.f32.mrb[0].mxu0
  %v1814 = vadd.f32 %v1706, %v1813
  %v1815 = vpop.f32.mrb[0].mxu0
  %1816 = vmatprep.mubr.f32.mxu0 0.0
  %v1817 = vand.u32 %v1471, 4294901760
  %v1818 = vsub.f32 %v1471, %v1817
  %1819 = vmatmul.mubr.f32.gmra.mrb[0].mxu0 %v1818
  %v1820 = vpop.f32.mrb[0].mxu0
  %v1821 = vadd.f32 %v1712, %v1820
  %v1822 = vpop.f32.mrb[0].mxu0
  %1823 = vdwg.mxu0
  %1824 = vmatprep.subr.mxu0 0.0
  %v1825 = vand.u32 %v1457, 4294901760
  %1826 = vmatpush1.msra.mxu0 %v1825
  %1827 = vmatprep.subr.mxu0 0.0
  %v1828 = vand.u32 %v1458, 4294901760
  %1829 = vmatpush1.msra.mxu0 %v1828
  %1830 = vmatprep.subr.mxu0 0.0
  %v1831 = vand.u32 %v1459, 4294901760
  %1832 = vmatpush1.msra.mxu0 %v1831
  %1833 = vmatprep.subr.mxu0 0.0
  %v1834 = vand.u32 %v1460, 4294901760
  %1835 = vmatpush1.msra.mxu0 %v1834
  %1836 = vmatprep.subr.mxu0 0.0
  %v1837 = vand.u32 %v1461, 4294901760
  %1838 = vmatpush1.msra.mxu0 %v1837
  %1839 = vmatprep.subr.mxu0 0.0
  %v1840 = vand.u32 %v1462, 4294901760
  %1841 = vmatpush1.msra.mxu0 %v1840
  %1842 = vmatprep.subr.mxu0 0.0
  %v1843 = vand.u32 %v1463, 4294901760
  %1844 = vmatpush1.msra.mxu0 %v1843
  %1845 = vmatprep.subr.mxu0 0.0
  %v1846 = vand.u32 %v1464, 4294901760
  %1847 = vmatpush1.msra.mxu0 %v1846
  %1848 = vmatprep.subr.mxu0 0.0
  %1849 = vmatpush1.msra.mxu0 0.0
  %1850 = vmatprep.subr.mxu0 0.0
  %1851 = vmatpush1.msra.mxu0 0.0
  %1852 = vmatprep.subr.mxu0 0.0
  %1853 = vmatpush1.msra.mxu0 0.0
  %1854 = vmatprep.subr.mxu0 0.0
  %1855 = vmatpush1.msra.mxu0 0.0
  %1856 = vmatprep.subr.mxu0 0.0
  %1857 = vmatpush1.msra.mxu0 0.0
  %1858 = vmatprep.subr.mxu0 0.0
  %1859 = vmatpush1.msra.mxu0 0.0
  %1860 = vmatprep.subr.mxu0 0.0
  %1861 = vmatpush1.msra.mxu0 0.0
  %1862 = vmatprep.subr.mxu0 0.0
  %1863 = vmatpush1.msra.mxu0 0.0
  %1864 = vmatprep.subr.mxu0 0.0
  %1865 = vmatpush1.msra.mxu0 0.0
  %1866 = vmatprep.subr.mxu0 0.0
  %1867 = vmatpush1.msra.mxu0 0.0
  %1868 = vmatprep.subr.mxu0 0.0
  %1869 = vmatpush1.msra.mxu0 0.0
  %1870 = vmatprep.subr.mxu0 0.0
  %1871 = vmatpush1.msra.mxu0 0.0
  %1872 = vmatprep.subr.mxu0 0.0
  %1873 = vmatpush1.msra.mxu0 0.0
  %1874 = vmatprep.subr.mxu0 0.0
  %1875 = vmatpush1.msra.mxu0 0.0
  %1876 = vmatprep.subr.mxu0 0.0
  %1877 = vmatpush1.msra.mxu0 0.0
  %1878 = vmatprep.subr.mxu0 0.0
  %1879 = vmatpush1.msra.mxu0 0.0
  %1880 = vmatprep.subr.mxu0 0.0
  %1881 = vmatpush1.msra.mxu0 0.0
  %1882 = vmatprep.subr.mxu0 0.0
  %1883 = vmatpush1.msra.mxu0 0.0
  %1884 = vmatprep.subr.mxu0 0.0
  %1885 = vmatpush1.msra.mxu0 0.0
  %1886 = vmatprep.subr.mxu0 0.0
  %1887 = vmatpush1.msra.mxu0 0.0
  %1888 = vmatprep.subr.mxu0 0.0
  %1889 = vmatpush1.msra.mxu0 0.0
  %1890 = vmatprep.subr.mxu0 0.0
  %1891 = vmatpush1.msra.mxu0 0.0
  %1892 = vmatprep.subr.mxu0 0.0
  %1893 = vmatpush1.msra.mxu0 0.0
  %1894 = vmatprep.subr.mxu0 0.0
  %1895 = vmatpush1.msra.mxu0 0.0
  %1896 = vmatprep.mubr.f32.mxu0 0.0
  %v1897 = vand.u32 %v1465, 4294901760
  %v1898 = vsub.f32 %v1465, %v1897
  %v1899 = vand.u32 %v1898, 4294901760
  %1900 = vmatmul.mubr.f32.gmra.mrb[0].mxu0 %v1899
  %v1901 = vpop.f32.mrb[0].mxu0
  %v1902 = vadd.f32 %v1800, %v1901
  %v1903 = vpop.f32.mrb[0].mxu0
  %1904 = vmatprep.mubr.f32.mxu0 0.0
  %v1905 = vand.u32 %v1467, 4294901760
  %v1906 = vsub.f32 %v1467, %v1905
  %v1907 = vand.u32 %v1906, 4294901760
  %1908 = vmatmul.mubr.f32.gmra.mrb[0].mxu0 %v1907
  %v1909 = vpop.f32.mrb[0].mxu0
  %v1910 = vadd.f32 %v1807, %v1909
  %v1911 = vpop.f32.mrb[0].mxu0
  %1912 = vmatprep.mubr.f32.mxu0 0.0
  %v1913 = vand.u32 %v1469, 4294901760
  %v1914 = vsub.f32 %v1469, %v1913
  %v1915 = vand.u32 %v1914, 4294901760
  %1916 = vmatmul.mubr.f32.gmra.mrb[0].mxu0 %v1915
  %v1917 = vpop.f32.mrb[0].mxu0
  %v1918 = vadd.f32 %v1814, %v1917
  %v1919 = vpop.f32.mrb[0].mxu0
  %1920 = vmatprep.mubr.f32.mxu0 0.0
  %v1921 = vand.u32 %v1471, 4294901760
  %v1922 = vsub.f32 %v1471, %v1921
  %v1923 = vand.u32 %v1922, 4294901760
  %1924 = vmatmul.mubr.f32.gmra.mrb[0].mxu0 %v1923
  %v1925 = vpop.f32.mrb[0].mxu0
  %v1926 = vadd.f32 %v1821, %v1925
  %v1927 = vpop.f32.mrb[0].mxu0
  %1928 = vdwg.mxu0
  %1929 = vmatprep.subr.mxu0 0.0
  %v1930 = vand.u32 %v1457, 4294901760
  %v1931 = vsub.f32 %v1457, %v1930
  %v1932 = vand.u32 %v1931, 4294901760
  %1933 = vmatpush1.msra.mxu0 %v1932
  %1934 = vmatprep.subr.mxu0 0.0
  %v1935 = vand.u32 %v1458, 4294901760
  %v1936 = vsub.f32 %v1458, %v1935
  %v1937 = vand.u32 %v1936, 4294901760
  %1938 = vmatpush1.msra.mxu0 %v1937
  %1939 = vmatprep.subr.mxu0 0.0
  %v1940 = vand.u32 %v1459, 4294901760
  %v1941 = vsub.f32 %v1459, %v1940
  %v1942 = vand.u32 %v1941, 4294901760
  %1943 = vmatpush1.msra.mxu0 %v1942
  %1944 = vmatprep.subr.mxu0 0.0
  %v1945 = vand.u32 %v1460, 4294901760
  %v1946 = vsub.f32 %v1460, %v1945
  %v1947 = vand.u32 %v1946, 4294901760
  %1948 = vmatpush1.msra.mxu0 %v1947
  %1949 = vmatprep.subr.mxu0 0.0
  %v1950 = vand.u32 %v1461, 4294901760
  %v1951 = vsub.f32 %v1461, %v1950
  %v1952 = vand.u32 %v1951, 4294901760
  %1953 = vmatpush1.msra.mxu0 %v1952
  %1954 = vmatprep.subr.mxu0 0.0
  %v1955 = vand.u32 %v1462, 4294901760
  %v1956 = vsub.f32 %v1462, %v1955
  %v1957 = vand.u32 %v1956, 4294901760
  %1958 = vmatpush1.msra.mxu0 %v1957
  %1959 = vmatprep.subr.mxu0 0.0
  %v1960 = vand.u32 %v1463, 4294901760
  %v1961 = vsub.f32 %v1463, %v1960
  %v1962 = vand.u32 %v1961, 4294901760
  %1963 = vmatpush1.msra.mxu0 %v1962
  %1964 = vmatprep.subr.mxu0 0.0
  %v1965 = vand.u32 %v1464, 4294901760
  %v1966 = vsub.f32 %v1464, %v1965
  %v1967 = vand.u32 %v1966, 4294901760
  %1968 = vmatpush1.msra.mxu0 %v1967
  %1969 = vmatprep.subr.mxu0 0.0
  %1970 = vmatpush1.msra.mxu0 0.0
  %1971 = vmatprep.subr.mxu0 0.0
  %1972 = vmatpush1.msra.mxu0 0.0
  %1973 = vmatprep.subr.mxu0 0.0
  %1974 = vmatpush1.msra.mxu0 0.0
  %1975 = vmatprep.subr.mxu0 0.0
  %1976 = vmatpush1.msra.mxu0 0.0
  %1977 = vmatprep.subr.mxu0 0.0
  %1978 = vmatpush1.msra.mxu0 0.0
  %1979 = vmatprep.subr.mxu0 0.0
  %1980 = vmatpush1.msra.mxu0 0.0
  %1981 = vmatprep.subr.mxu0 0.0
  %1982 = vmatpush1.msra.mxu0 0.0
  %1983 = vmatprep.subr.mxu0 0.0
  %1984 = vmatpush1.msra.mxu0 0.0
  %1985 = vmatprep.subr.mxu0 0.0
  %1986 = vmatpush1.msra.mxu0 0.0
  %1987 = vmatprep.subr.mxu0 0.0
  %1988 = vmatpush1.msra.mxu0 0.0
  %1989 = vmatprep.subr.mxu0 0.0
  %1990 = vmatpush1.msra.mxu0 0.0
  %1991 = vmatprep.subr.mxu0 0.0
  %1992 = vmatpush1.msra.mxu0 0.0
  %1993 = vmatprep.subr.mxu0 0.0
  %1994 = vmatpush1.msra.mxu0 0.0
  %1995 = vmatprep.subr.mxu0 0.0
  %1996 = vmatpush1.msra.mxu0 0.0
  %1997 = vmatprep.subr.mxu0 0.0
  %1998 = vmatpush1.msra.mxu0 0.0
  %1999 = vmatprep.subr.mxu0 0.0
  %2000 = vmatpush1.msra.mxu0 0.0
  %2001 = vmatprep.subr.mxu0 0.0
  %2002 = vmatpush1.msra.mxu0 0.0
  %2003 = vmatprep.subr.mxu0 0.0
  %2004 = vmatpush1.msra.mxu0 0.0
  %2005 = vmatprep.subr.mxu0 0.0
  %2006 = vmatpush1.msra.mxu0 0.0
  %2007 = vmatprep.subr.mxu0 0.0
  %2008 = vmatpush1.msra.mxu0 0.0
  %2009 = vmatprep.subr.mxu0 0.0
  %2010 = vmatpush1.msra.mxu0 0.0
  %2011 = vmatprep.subr.mxu0 0.0
  %2012 = vmatpush1.msra.mxu0 0.0
  %2013 = vmatprep.subr.mxu0 0.0
  %2014 = vmatpush1.msra.mxu0 0.0
  %2015 = vmatprep.subr.mxu0 0.0
  %2016 = vmatpush1.msra.mxu0 0.0
  %2017 = vmatprep.mubr.f32.mxu0 0.0
  %v2018 = vand.u32 %v1465, 4294901760
  %2019 = vmatmul.mubr.f32.gmra.mrb[0].mxu0 %v2018
  %v2020 = vpop.f32.mrb[0].mxu0
  %v2021 = vadd.f32 %v1902, %v2020
  %v2022 = vpop.f32.mrb[0].mxu0
  %2023 = vmatprep.mubr.f32.mxu0 0.0
  %v2024 = vand.u32 %v1467, 4294901760
  %2025 = vmatmul.mubr.f32.gmra.mrb[0].mxu0 %v2024
  %v2026 = vpop.f32.mrb[0].mxu0
  %v2027 = vadd.f32 %v1910, %v2026
  %v2028 = vpop.f32.mrb[0].mxu0
  %2029 = vmatprep.mubr.f32.mxu0 0.0
  %v2030 = vand.u32 %v1469, 4294901760
  %2031 = vmatmul.mubr.f32.gmra.mrb[0].mxu0 %v2030
  %v2032 = vpop.f32.mrb[0].mxu0
  %v2033 = vadd.f32 %v1918, %v2032
  %v2034 = vpop.f32.mrb[0].mxu0
  %2035 = vmatprep.mubr.f32.mxu0 0.0
  %v2036 = vand.u32 %v1471, 4294901760
  %2037 = vmatmul.mubr.f32.gmra.mrb[0].mxu0 %v2036
  %v2038 = vpop.f32.mrb[0].mxu0
  %v2039 = vadd.f32 %v1926, %v2038
  %v2040 = vpop.f32.mrb[0].mxu0
  %2041 = vdwg.mxu0
  %2042 = vmatprep.subr.mxu0 0.0
  %v2043 = vand.u32 %v1457, 4294901760
  %2044 = vmatpush1.msra.mxu0 %v2043
  %2045 = vmatprep.subr.mxu0 0.0
  %v2046 = vand.u32 %v1458, 4294901760
  %2047 = vmatpush1.msra.mxu0 %v2046
  %2048 = vmatprep.subr.mxu0 0.0
  %v2049 = vand.u32 %v1459, 4294901760
  %2050 = vmatpush1.msra.mxu0 %v2049
  %2051 = vmatprep.subr.mxu0 0.0
  %v2052 = vand.u32 %v1460, 4294901760
  %2053 = vmatpush1.msra.mxu0 %v2052
  %2054 = vmatprep.subr.mxu0 0.0
  %v2055 = vand.u32 %v1461, 4294901760
  %2056 = vmatpush1.msra.mxu0 %v2055
  %2057 = vmatprep.subr.mxu0 0.0
  %v2058 = vand.u32 %v1462, 4294901760
  %2059 = vmatpush1.msra.mxu0 %v2058
  %2060 = vmatprep.subr.mxu0 0.0
  %v2061 = vand.u32 %v1463, 4294901760
  %2062 = vmatpush1.msra.mxu0 %v2061
  %2063 = vmatprep.subr.mxu0 0.0
  %v2064 = vand.u32 %v1464, 4294901760
  %2065 = vmatpush1.msra.mxu0 %v2064
  %2066 = vmatprep.subr.mxu0 0.0
  %2067 = vmatpush1.msra.mxu0 0.0
  %2068 = vmatprep.subr.mxu0 0.0
  %2069 = vmatpush1.msra.mxu0 0.0
  %2070 = vmatprep.subr.mxu0 0.0
  %2071 = vmatpush1.msra.mxu0 0.0
  %2072 = vmatprep.subr.mxu0 0.0
  %2073 = vmatpush1.msra.mxu0 0.0
  %2074 = vmatprep.subr.mxu0 0.0
  %2075 = vmatpush1.msra.mxu0 0.0
  %2076 = vmatprep.subr.mxu0 0.0
  %2077 = vmatpush1.msra.mxu0 0.0
  %2078 = vmatprep.subr.mxu0 0.0
  %2079 = vmatpush1.msra.mxu0 0.0
  %2080 = vmatprep.subr.mxu0 0.0
  %2081 = vmatpush1.msra.mxu0 0.0
  %2082 = vmatprep.subr.mxu0 0.0
  %2083 = vmatpush1.msra.mxu0 0.0
  %2084 = vmatprep.subr.mxu0 0.0
  %2085 = vmatpush1.msra.mxu0 0.0
  %2086 = vmatprep.subr.mxu0 0.0
  %2087 = vmatpush1.msra.mxu0 0.0
  %2088 = vmatprep.subr.mxu0 0.0
  %2089 = vmatpush1.msra.mxu0 0.0
  %2090 = vmatprep.subr.mxu0 0.0
  %2091 = vmatpush1.msra.mxu0 0.0
  %2092 = vmatprep.subr.mxu0 0.0
  %2093 = vmatpush1.msra.mxu0 0.0
  %2094 = vmatprep.subr.mxu0 0.0
  %2095 = vmatpush1.msra.mxu0 0.0
  %2096 = vmatprep.subr.mxu0 0.0
  %2097 = vmatpush1.msra.mxu0 0.0
  %2098 = vmatprep.subr.mxu0 0.0
  %2099 = vmatpush1.msra.mxu0 0.0
  %2100 = vmatprep.subr.mxu0 0.0
  %2101 = vmatpush1.msra.mxu0 0.0
  %2102 = vmatprep.subr.mxu0 0.0
  %2103 = vmatpush1.msra.mxu0 0.0
  %2104 = vmatprep.subr.mxu0 0.0
  %2105 = vmatpush1.msra.mxu0 0.0
  %2106 = vmatprep.subr.mxu0 0.0
  %2107 = vmatpush1.msra.mxu0 0.0
  %2108 = vmatprep.subr.mxu0 0.0
  %2109 = vmatpush1.msra.mxu0 0.0
  %2110 = vmatprep.subr.mxu0 0.0
  %2111 = vmatpush1.msra.mxu0 0.0
  %2112 = vmatprep.subr.mxu0 0.0
  %2113 = vmatpush1.msra.mxu0 0.0
  %2114 = vmatprep.mubr.f32.mxu0 0.0
  %v2115 = vand.u32 %v1465, 4294901760
  %2116 = vmatmul.mubr.f32.gmra.mrb[0].mxu0 %v2115
  %v2117 = vpop.f32.mrb[0].mxu0
  %v2118 = vadd.f32 %v2021, %v2117
  %v2119 = vpop.f32.mrb[0].mxu0
  %2120 = vmatprep.mubr.f32.mxu0 0.0
  %v2121 = vand.u32 %v1467, 4294901760
  %2122 = vmatmul.mubr.f32.gmra.mrb[0].mxu0 %v2121
  %v2123 = vpop.f32.mrb[0].mxu0
  %v2124 = vadd.f32 %v2027, %v2123
  %v2125 = vpop.f32.mrb[0].mxu0
  %2126 = vmatprep.mubr.f32.mxu0 0.0
  %v2127 = vand.u32 %v1469, 4294901760
  %2128 = vmatmul.mubr.f32.gmra.mrb[0].mxu0 %v2127
  %v2129 = vpop.f32.mrb[0].mxu0
  %v2130 = vadd.f32 %v2033, %v2129
  %v2131 = vpop.f32.mrb[0].mxu0
  %2132 = vmatprep.mubr.f32.mxu0 0.0
  %v2133 = vand.u32 %v1471, 4294901760
  %2134 = vmatmul.mubr.f32.gmra.mrb[0].mxu0 %v2133
  %v2135 = vpop.f32.mrb[0].mxu0
  %v2136 = vadd.f32 %v2039, %v2135
  %v2137 = vpop.f32.mrb[0].mxu0
  %2138 = vdwg.mxu0
  %v2139 = vadd.f32 %v1424, %v2118
  %v2140 = vadd.f32 %v1430, %v2124
  %v2141 = vadd.f32 %v1436, %v2130
  %v2142 = vadd.f32 %v1442, %v2136
  %v2143 = vadd.f32 %v2139, %v2140
  %v2144 = vadd.f32 %v2143, %v2141
  %v2145 = vadd.f32 %v2144, %v2142
  %v2146 = vrot.slane %v2145, 4
  %v2147 = vadd.f32 %v2145, %v2146
  %v2148 = vrot.slane %v2147, 2
  %v2149 = vadd.f32 %v2147, %v2148
  %v2150 = vrot.slane %v2149, 1
  %v2151 = vadd.f32 %v2149, %v2150
  %v2152 = vmul.f32 %v2139, %v2139
  %v2153 = vmul.f32 %v2140, %v2140
  %v2154 = vmul.f32 %v2141, %v2141
  %v2155 = vmul.f32 %v2142, %v2142
  %v2156 = vadd.f32 %v2152, %v2153
  %v2157 = vadd.f32 %v2156, %v2154
  %v2158 = vadd.f32 %v2157, %v2155
  %v2159 = vrot.slane %v2158, 4
  %v2160 = vadd.f32 %v2158, %v2159
  %v2161 = vrot.slane %v2160, 2
  %v2162 = vadd.f32 %v2160, %v2161
  %v2163 = vrot.slane %v2162, 1
  %v2164 = vadd.f32 %v2162, %v2163
  %v2165 = vld [vmem:[%s7] sm:$0xff]
  %v2166 = vld [vmem:[%s7 + $0x8] sm:$0xff]
  %v2167 = vld [vmem:[%s7 + $0x10] sm:$0xff]
  %v2168 = vld [vmem:[%s7 + $0x18] sm:$0xff]
  %v2169 = vld [vmem:[%s7 + $0x20] sm:$0xff]
  %v2170 = vld [vmem:[%s7 + $0x28] sm:$0xff]
  %v2171 = vld [vmem:[%s7 + $0x30] sm:$0xff]
  %v2172 = vld [vmem:[%s7 + $0x38] sm:$0xff]
  %v2173 = vld [vmem:[%s7 + $0x40] sm:$0xff]
  %v2174 = vld [vmem:[%s7 + $0x48] sm:$0xff]
  %v2175 = vld [vmem:[%s7 + $0x50] sm:$0xff]
  %v2176 = vld [vmem:[%s7 + $0x58] sm:$0xff]
  %v2177 = vld [vmem:[%s7 + $0x60] sm:$0xff]
  %v2178 = vld [vmem:[%s7 + $0x68] sm:$0xff]
  %v2179 = vld [vmem:[%s7 + $0x70] sm:$0xff]
  %v2180 = vld [vmem:[%s7 + $0x78] sm:$0xff]
  %2181 = vmatprep.subr.mxu0 0.0
  %v2182 = vand.u32 %v2165, 4294901760
  %2183 = vmatpush1.msra.mxu0 %v2182
  %2184 = vmatprep.subr.mxu0 0.0
  %v2185 = vand.u32 %v2166, 4294901760
  %2186 = vmatpush1.msra.mxu0 %v2185
  %2187 = vmatprep.subr.mxu0 0.0
  %v2188 = vand.u32 %v2167, 4294901760
  %2189 = vmatpush1.msra.mxu0 %v2188
  %2190 = vmatprep.subr.mxu0 0.0
  %v2191 = vand.u32 %v2168, 4294901760
  %2192 = vmatpush1.msra.mxu0 %v2191
  %2193 = vmatprep.subr.mxu0 0.0
  %v2194 = vand.u32 %v2169, 4294901760
  %2195 = vmatpush1.msra.mxu0 %v2194
  %2196 = vmatprep.subr.mxu0 0.0
  %v2197 = vand.u32 %v2170, 4294901760
  %2198 = vmatpush1.msra.mxu0 %v2197
  %2199 = vmatprep.subr.mxu0 0.0
  %v2200 = vand.u32 %v2171, 4294901760
  %2201 = vmatpush1.msra.mxu0 %v2200
  %2202 = vmatprep.subr.mxu0 0.0
  %v2203 = vand.u32 %v2172, 4294901760
  %2204 = vmatpush1.msra.mxu0 %v2203
  %2205 = vmatprep.subr.mxu0 0.0
  %v2206 = vand.u32 %v2173, 4294901760
  %2207 = vmatpush1.msra.mxu0 %v2206
  %2208 = vmatprep.subr.mxu0 0.0
  %v2209 = vand.u32 %v2174, 4294901760
  %2210 = vmatpush1.msra.mxu0 %v2209
  %2211 = vmatprep.subr.mxu0 0.0
  %v2212 = vand.u32 %v2175, 4294901760
  %2213 = vmatpush1.msra.mxu0 %v2212
  %2214 = vmatprep.subr.mxu0 0.0
  %v2215 = vand.u32 %v2176, 4294901760
  %2216 = vmatpush1.msra.mxu0 %v2215
  %2217 = vmatprep.subr.mxu0 0.0
  %v2218 = vand.u32 %v2177, 4294901760
  %2219 = vmatpush1.msra.mxu0 %v2218
  %2220 = vmatprep.subr.mxu0 0.0
  %v2221 = vand.u32 %v2178, 4294901760
  %2222 = vmatpush1.msra.mxu0 %v2221
  %2223 = vmatprep.subr.mxu0 0.0
  %v2224 = vand.u32 %v2179, 4294901760
  %2225 = vmatpush1.msra.mxu0 %v2224
  %2226 = vmatprep.subr.mxu0 0.0
  %v2227 = vand.u32 %v2180, 4294901760
  %2228 = vmatpush1.msra.mxu0 %v2227
  %2229 = vmatprep.subr.mxu0 0.0
  %2230 = vmatpush1.msra.mxu0 0.0
  %2231 = vmatprep.subr.mxu0 0.0
  %2232 = vmatpush1.msra.mxu0 0.0
  %2233 = vmatprep.subr.mxu0 0.0
  %2234 = vmatpush1.msra.mxu0 0.0
  %2235 = vmatprep.subr.mxu0 0.0
  %2236 = vmatpush1.msra.mxu0 0.0
  %2237 = vmatprep.subr.mxu0 0.0
  %2238 = vmatpush1.msra.mxu0 0.0
  %2239 = vmatprep.subr.mxu0 0.0
  %2240 = vmatpush1.msra.mxu0 0.0
  %2241 = vmatprep.subr.mxu0 0.0
  %2242 = vmatpush1.msra.mxu0 0.0
  %2243 = vmatprep.subr.mxu0 0.0
  %2244 = vmatpush1.msra.mxu0 0.0
  %2245 = vmatprep.subr.mxu0 0.0
  %2246 = vmatpush1.msra.mxu0 0.0
  %2247 = vmatprep.subr.mxu0 0.0
  %2248 = vmatpush1.msra.mxu0 0.0
  %2249 = vmatprep.subr.mxu0 0.0
  %2250 = vmatpush1.msra.mxu0 0.0
  %2251 = vmatprep.subr.mxu0 0.0
  %2252 = vmatpush1.msra.mxu0 0.0
  %2253 = vmatprep.subr.mxu0 0.0
  %2254 = vmatpush1.msra.mxu0 0.0
  %2255 = vmatprep.subr.mxu0 0.0
  %2256 = vmatpush1.msra.mxu0 0.0
  %2257 = vmatprep.subr.mxu0 0.0
  %2258 = vmatpush1.msra.mxu0 0.0
  %2259 = vmatprep.subr.mxu0 0.0
  %2260 = vmatpush1.msra.mxu0 0.0
  %2261 = vmatprep.mubr.f32.mxu0 0.0
  %v2262 = vand.u32 %v2151, 4294901760
  %v2263 = vsub.f32 %v2151, %v2262
  %v2264 = vand.u32 %v2263, 4294901760
  %v2265 = vsub.f32 %v2263, %v2264
  %v2266 = vand.u32 %v2265, 4294901760
  %2267 = vmatmul.mubr.f32.gmra.mrb[0].mxu0 %v2266
  %v2268 = vpop.f32.mrb[0].mxu0
  %v2269 = vadd.f32 0.0, %v2268
  %v2270 = vpop.f32.mrb[0].mxu0
  %2271 = vdwg.mxu0
  %2272 = vmatprep.subr.mxu0 0.0
  %v2273 = vand.u32 %v2165, 4294901760
  %v2274 = vsub.f32 %v2165, %v2273
  %v2275 = vand.u32 %v2274, 4294901760
  %v2276 = vsub.f32 %v2274, %v2275
  %v2277 = vand.u32 %v2276, 4294901760
  %2278 = vmatpush1.msra.mxu0 %v2277
  %2279 = vmatprep.subr.mxu0 0.0
  %v2280 = vand.u32 %v2166, 4294901760
  %v2281 = vsub.f32 %v2166, %v2280
  %v2282 = vand.u32 %v2281, 4294901760
  %v2283 = vsub.f32 %v2281, %v2282
  %v2284 = vand.u32 %v2283, 4294901760
  %2285 = vmatpush1.msra.mxu0 %v2284
  %2286 = vmatprep.subr.mxu0 0.0
  %v2287 = vand.u32 %v2167, 4294901760
  %v2288 = vsub.f32 %v2167, %v2287
  %v2289 = vand.u32 %v2288, 4294901760
  %v2290 = vsub.f32 %v2288, %v2289
  %v2291 = vand.u32 %v2290, 4294901760
  %2292 = vmatpush1.msra.mxu0 %v2291
  %2293 = vmatprep.subr.mxu0 0.0
  %v2294 = vand.u32 %v2168, 4294901760
  %v2295 = vsub.f32 %v2168, %v2294
  %v2296 = vand.u32 %v2295, 4294901760
  %v2297 = vsub.f32 %v2295, %v2296
  %v2298 = vand.u32 %v2297, 4294901760
  %2299 = vmatpush1.msra.mxu0 %v2298
  %2300 = vmatprep.subr.mxu0 0.0
  %v2301 = vand.u32 %v2169, 4294901760
  %v2302 = vsub.f32 %v2169, %v2301
  %v2303 = vand.u32 %v2302, 4294901760
  %v2304 = vsub.f32 %v2302, %v2303
  %v2305 = vand.u32 %v2304, 4294901760
  %2306 = vmatpush1.msra.mxu0 %v2305
  %2307 = vmatprep.subr.mxu0 0.0
  %v2308 = vand.u32 %v2170, 4294901760
  %v2309 = vsub.f32 %v2170, %v2308
  %v2310 = vand.u32 %v2309, 4294901760
  %v2311 = vsub.f32 %v2309, %v2310
  %v2312 = vand.u32 %v2311, 4294901760
  %2313 = vmatpush1.msra.mxu0 %v2312
  %2314 = vmatprep.subr.mxu0 0.0
  %v2315 = vand.u32 %v2171, 4294901760
  %v2316 = vsub.f32 %v2171, %v2315
  %v2317 = vand.u32 %v2316, 4294901760
  %v2318 = vsub.f32 %v2316, %v2317
  %v2319 = vand.u32 %v2318, 4294901760
  %2320 = vmatpush1.msra.mxu0 %v2319
  %2321 = vmatprep.subr.mxu0 0.0
  %v2322 = vand.u32 %v2172, 4294901760
  %v2323 = vsub.f32 %v2172, %v2322
  %v2324 = vand.u32 %v2323, 4294901760
  %v2325 = vsub.f32 %v2323, %v2324
  %v2326 = vand.u32 %v2325, 4294901760
  %2327 = vmatpush1.msra.mxu0 %v2326
  %2328 = vmatprep.subr.mxu0 0.0
  %v2329 = vand.u32 %v2173, 4294901760
  %v2330 = vsub.f32 %v2173, %v2329
  %v2331 = vand.u32 %v2330, 4294901760
  %v2332 = vsub.f32 %v2330, %v2331
  %v2333 = vand.u32 %v2332, 4294901760
  %2334 = vmatpush1.msra.mxu0 %v2333
  %2335 = vmatprep.subr.mxu0 0.0
  %v2336 = vand.u32 %v2174, 4294901760
  %v2337 = vsub.f32 %v2174, %v2336
  %v2338 = vand.u32 %v2337, 4294901760
  %v2339 = vsub.f32 %v2337, %v2338
  %v2340 = vand.u32 %v2339, 4294901760
  %2341 = vmatpush1.msra.mxu0 %v2340
  %2342 = vmatprep.subr.mxu0 0.0
  %v2343 = vand.u32 %v2175, 4294901760
  %v2344 = vsub.f32 %v2175, %v2343
  %v2345 = vand.u32 %v2344, 4294901760
  %v2346 = vsub.f32 %v2344, %v2345
  %v2347 = vand.u32 %v2346, 4294901760
  %2348 = vmatpush1.msra.mxu0 %v2347
  %2349 = vmatprep.subr.mxu0 0.0
  %v2350 = vand.u32 %v2176, 4294901760
  %v2351 = vsub.f32 %v2176, %v2350
  %v2352 = vand.u32 %v2351, 4294901760
  %v2353 = vsub.f32 %v2351, %v2352
  %v2354 = vand.u32 %v2353, 4294901760
  %2355 = vmatpush1.msra.mxu0 %v2354
  %2356 = vmatprep.subr.mxu0 0.0
  %v2357 = vand.u32 %v2177, 4294901760
  %v2358 = vsub.f32 %v2177, %v2357
  %v2359 = vand.u32 %v2358, 4294901760
  %v2360 = vsub.f32 %v2358, %v2359
  %v2361 = vand.u32 %v2360, 4294901760
  %2362 = vmatpush1.msra.mxu0 %v2361
  %2363 = vmatprep.subr.mxu0 0.0
  %v2364 = vand.u32 %v2178, 4294901760
  %v2365 = vsub.f32 %v2178, %v2364
  %v2366 = vand.u32 %v2365, 4294901760
  %v2367 = vsub.f32 %v2365, %v2366
  %v2368 = vand.u32 %v2367, 4294901760
  %2369 = vmatpush1.msra.mxu0 %v2368
  %2370 = vmatprep.subr.mxu0 0.0
  %v2371 = vand.u32 %v2179, 4294901760
  %v2372 = vsub.f32 %v2179, %v2371
  %v2373 = vand.u32 %v2372, 4294901760
  %v2374 = vsub.f32 %v2372, %v2373
  %v2375 = vand.u32 %v2374, 4294901760
  %2376 = vmatpush1.msra.mxu0 %v2375
  %2377 = vmatprep.subr.mxu0 0.0
  %v2378 = vand.u32 %v2180, 4294901760
  %v2379 = vsub.f32 %v2180, %v2378
  %v2380 = vand.u32 %v2379, 4294901760
  %v2381 = vsub.f32 %v2379, %v2380
  %v2382 = vand.u32 %v2381, 4294901760
  %2383 = vmatpush1.msra.mxu0 %v2382
  %2384 = vmatprep.subr.mxu0 0.0
  %2385 = vmatpush1.msra.mxu0 0.0
  %2386 = vmatprep.subr.mxu0 0.0
  %2387 = vmatpush1.msra.mxu0 0.0
  %2388 = vmatprep.subr.mxu0 0.0
  %2389 = vmatpush1.msra.mxu0 0.0
  %2390 = vmatprep.subr.mxu0 0.0
  %2391 = vmatpush1.msra.mxu0 0.0
  %2392 = vmatprep.subr.mxu0 0.0
  %2393 = vmatpush1.msra.mxu0 0.0
  %2394 = vmatprep.subr.mxu0 0.0
  %2395 = vmatpush1.msra.mxu0 0.0
  %2396 = vmatprep.subr.mxu0 0.0
  %2397 = vmatpush1.msra.mxu0 0.0
  %2398 = vmatprep.subr.mxu0 0.0
  %2399 = vmatpush1.msra.mxu0 0.0
  %2400 = vmatprep.subr.mxu0 0.0
  %2401 = vmatpush1.msra.mxu0 0.0
  %2402 = vmatprep.subr.mxu0 0.0
  %2403 = vmatpush1.msra.mxu0 0.0
  %2404 = vmatprep.subr.mxu0 0.0
  %2405 = vmatpush1.msra.mxu0 0.0
  %2406 = vmatprep.subr.mxu0 0.0
  %2407 = vmatpush1.msra.mxu0 0.0
  %2408 = vmatprep.subr.mxu0 0.0
  %2409 = vmatpush1.msra.mxu0 0.0
  %2410 = vmatprep.subr.mxu0 0.0
  %2411 = vmatpush1.msra.mxu0 0.0
  %2412 = vmatprep.subr.mxu0 0.0
  %2413 = vmatpush1.msra.mxu0 0.0
  %2414 = vmatprep.subr.mxu0 0.0
  %2415 = vmatpush1.msra.mxu0 0.0
  %2416 = vmatprep.mubr.f32.mxu0 0.0
  %v2417 = vand.u32 %v2151, 4294901760
  %2418 = vmatmul.mubr.f32.gmra.mrb[0].mxu0 %v2417
  %v2419 = vpop.f32.mrb[0].mxu0
  %v2420 = vadd.f32 %v2269, %v2419
  %v2421 = vpop.f32.mrb[0].mxu0
  %2422 = vdwg.mxu0
  %2423 = vmatprep.subr.mxu0 0.0
  %v2424 = vand.u32 %v2165, 4294901760
  %v2425 = vsub.f32 %v2165, %v2424
  %2426 = vmatpush1.msra.mxu0 %v2425
  %2427 = vmatprep.subr.mxu0 0.0
  %v2428 = vand.u32 %v2166, 4294901760
  %v2429 = vsub.f32 %v2166, %v2428
  %2430 = vmatpush1.msra.mxu0 %v2429
  %2431 = vmatprep.subr.mxu0 0.0
  %v2432 = vand.u32 %v2167, 4294901760
  %v2433 = vsub.f32 %v2167, %v2432
  %2434 = vmatpush1.msra.mxu0 %v2433
  %2435 = vmatprep.subr.mxu0 0.0
  %v2436 = vand.u32 %v2168, 4294901760
  %v2437 = vsub.f32 %v2168, %v2436
  %2438 = vmatpush1.msra.mxu0 %v2437
  %2439 = vmatprep.subr.mxu0 0.0
  %v2440 = vand.u32 %v2169, 4294901760
  %v2441 = vsub.f32 %v2169, %v2440
  %2442 = vmatpush1.msra.mxu0 %v2441
  %2443 = vmatprep.subr.mxu0 0.0
  %v2444 = vand.u32 %v2170, 4294901760
  %v2445 = vsub.f32 %v2170, %v2444
  %2446 = vmatpush1.msra.mxu0 %v2445
  %2447 = vmatprep.subr.mxu0 0.0
  %v2448 = vand.u32 %v2171, 4294901760
  %v2449 = vsub.f32 %v2171, %v2448
  %2450 = vmatpush1.msra.mxu0 %v2449
  %2451 = vmatprep.subr.mxu0 0.0
  %v2452 = vand.u32 %v2172, 4294901760
  %v2453 = vsub.f32 %v2172, %v2452
  %2454 = vmatpush1.msra.mxu0 %v2453
  %2455 = vmatprep.subr.mxu0 0.0
  %v2456 = vand.u32 %v2173, 4294901760
  %v2457 = vsub.f32 %v2173, %v2456
  %2458 = vmatpush1.msra.mxu0 %v2457
  %2459 = vmatprep.subr.mxu0 0.0
  %v2460 = vand.u32 %v2174, 4294901760
  %v2461 = vsub.f32 %v2174, %v2460
  %2462 = vmatpush1.msra.mxu0 %v2461
  %2463 = vmatprep.subr.mxu0 0.0
  %v2464 = vand.u32 %v2175, 4294901760
  %v2465 = vsub.f32 %v2175, %v2464
  %2466 = vmatpush1.msra.mxu0 %v2465
  %2467 = vmatprep.subr.mxu0 0.0
  %v2468 = vand.u32 %v2176, 4294901760
  %v2469 = vsub.f32 %v2176, %v2468
  %2470 = vmatpush1.msra.mxu0 %v2469
  %2471 = vmatprep.subr.mxu0 0.0
  %v2472 = vand.u32 %v2177, 4294901760
  %v2473 = vsub.f32 %v2177, %v2472
  %2474 = vmatpush1.msra.mxu0 %v2473
  %2475 = vmatprep.subr.mxu0 0.0
  %v2476 = vand.u32 %v2178, 4294901760
  %v2477 = vsub.f32 %v2178, %v2476
  %2478 = vmatpush1.msra.mxu0 %v2477
  %2479 = vmatprep.subr.mxu0 0.0
  %v2480 = vand.u32 %v2179, 4294901760
  %v2481 = vsub.f32 %v2179, %v2480
  %2482 = vmatpush1.msra.mxu0 %v2481
  %2483 = vmatprep.subr.mxu0 0.0
  %v2484 = vand.u32 %v2180, 4294901760
  %v2485 = vsub.f32 %v2180, %v2484
  %2486 = vmatpush1.msra.mxu0 %v2485
  %2487 = vmatprep.subr.mxu0 0.0
  %2488 = vmatpush1.msra.mxu0 0.0
  %2489 = vmatprep.subr.mxu0 0.0
  %2490 = vmatpush1.msra.mxu0 0.0
  %2491 = vmatprep.subr.mxu0 0.0
  %2492 = vmatpush1.msra.mxu0 0.0
  %2493 = vmatprep.subr.mxu0 0.0
  %2494 = vmatpush1.msra.mxu0 0.0
  %2495 = vmatprep.subr.mxu0 0.0
  %2496 = vmatpush1.msra.mxu0 0.0
  %2497 = vmatprep.subr.mxu0 0.0
  %2498 = vmatpush1.msra.mxu0 0.0
  %2499 = vmatprep.subr.mxu0 0.0
  %2500 = vmatpush1.msra.mxu0 0.0
  %2501 = vmatprep.subr.mxu0 0.0
  %2502 = vmatpush1.msra.mxu0 0.0
  %2503 = vmatprep.subr.mxu0 0.0
  %2504 = vmatpush1.msra.mxu0 0.0
  %2505 = vmatprep.subr.mxu0 0.0
  %2506 = vmatpush1.msra.mxu0 0.0
  %2507 = vmatprep.subr.mxu0 0.0
  %2508 = vmatpush1.msra.mxu0 0.0
  %2509 = vmatprep.subr.mxu0 0.0
  %2510 = vmatpush1.msra.mxu0 0.0
  %2511 = vmatprep.subr.mxu0 0.0
  %2512 = vmatpush1.msra.mxu0 0.0
  %2513 = vmatprep.subr.mxu0 0.0
  %2514 = vmatpush1.msra.mxu0 0.0
  %2515 = vmatprep.subr.mxu0 0.0
  %2516 = vmatpush1.msra.mxu0 0.0
  %2517 = vmatprep.subr.mxu0 0.0
  %2518 = vmatpush1.msra.mxu0 0.0
  %2519 = vmatprep.mubr.f32.mxu0 0.0
  %v2520 = vand.u32 %v2151, 4294901760
  %v2521 = vsub.f32 %v2151, %v2520
  %2522 = vmatmul.mubr.f32.gmra.mrb[0].mxu0 %v2521
  %v2523 = vpop.f32.mrb[0].mxu0
  %v2524 = vadd.f32 %v2420, %v2523
  %v2525 = vpop.f32.mrb[0].mxu0
  %2526 = vdwg.mxu0
  %2527 = vmatprep.subr.mxu0 0.0
  %v2528 = vand.u32 %v2165, 4294901760
  %2529 = vmatpush1.msra.mxu0 %v2528
  %2530 = vmatprep.subr.mxu0 0.0
  %v2531 = vand.u32 %v2166, 4294901760
  %2532 = vmatpush1.msra.mxu0 %v2531
  %2533 = vmatprep.subr.mxu0 0.0
  %v2534 = vand.u32 %v2167, 4294901760
  %2535 = vmatpush1.msra.mxu0 %v2534
  %2536 = vmatprep.subr.mxu0 0.0
  %v2537 = vand.u32 %v2168, 4294901760
  %2538 = vmatpush1.msra.mxu0 %v2537
  %2539 = vmatprep.subr.mxu0 0.0
  %v2540 = vand.u32 %v2169, 4294901760
  %2541 = vmatpush1.msra.mxu0 %v2540
  %2542 = vmatprep.subr.mxu0 0.0
  %v2543 = vand.u32 %v2170, 4294901760
  %2544 = vmatpush1.msra.mxu0 %v2543
  %2545 = vmatprep.subr.mxu0 0.0
  %v2546 = vand.u32 %v2171, 4294901760
  %2547 = vmatpush1.msra.mxu0 %v2546
  %2548 = vmatprep.subr.mxu0 0.0
  %v2549 = vand.u32 %v2172, 4294901760
  %2550 = vmatpush1.msra.mxu0 %v2549
  %2551 = vmatprep.subr.mxu0 0.0
  %v2552 = vand.u32 %v2173, 4294901760
  %2553 = vmatpush1.msra.mxu0 %v2552
  %2554 = vmatprep.subr.mxu0 0.0
  %v2555 = vand.u32 %v2174, 4294901760
  %2556 = vmatpush1.msra.mxu0 %v2555
  %2557 = vmatprep.subr.mxu0 0.0
  %v2558 = vand.u32 %v2175, 4294901760
  %2559 = vmatpush1.msra.mxu0 %v2558
  %2560 = vmatprep.subr.mxu0 0.0
  %v2561 = vand.u32 %v2176, 4294901760
  %2562 = vmatpush1.msra.mxu0 %v2561
  %2563 = vmatprep.subr.mxu0 0.0
  %v2564 = vand.u32 %v2177, 4294901760
  %2565 = vmatpush1.msra.mxu0 %v2564
  %2566 = vmatprep.subr.mxu0 0.0
  %v2567 = vand.u32 %v2178, 4294901760
  %2568 = vmatpush1.msra.mxu0 %v2567
  %2569 = vmatprep.subr.mxu0 0.0
  %v2570 = vand.u32 %v2179, 4294901760
  %2571 = vmatpush1.msra.mxu0 %v2570
  %2572 = vmatprep.subr.mxu0 0.0
  %v2573 = vand.u32 %v2180, 4294901760
  %2574 = vmatpush1.msra.mxu0 %v2573
  %2575 = vmatprep.subr.mxu0 0.0
  %2576 = vmatpush1.msra.mxu0 0.0
  %2577 = vmatprep.subr.mxu0 0.0
  %2578 = vmatpush1.msra.mxu0 0.0
  %2579 = vmatprep.subr.mxu0 0.0
  %2580 = vmatpush1.msra.mxu0 0.0
  %2581 = vmatprep.subr.mxu0 0.0
  %2582 = vmatpush1.msra.mxu0 0.0
  %2583 = vmatprep.subr.mxu0 0.0
  %2584 = vmatpush1.msra.mxu0 0.0
  %2585 = vmatprep.subr.mxu0 0.0
  %2586 = vmatpush1.msra.mxu0 0.0
  %2587 = vmatprep.subr.mxu0 0.0
  %2588 = vmatpush1.msra.mxu0 0.0
  %2589 = vmatprep.subr.mxu0 0.0
  %2590 = vmatpush1.msra.mxu0 0.0
  %2591 = vmatprep.subr.mxu0 0.0
  %2592 = vmatpush1.msra.mxu0 0.0
  %2593 = vmatprep.subr.mxu0 0.0
  %2594 = vmatpush1.msra.mxu0 0.0
  %2595 = vmatprep.subr.mxu0 0.0
  %2596 = vmatpush1.msra.mxu0 0.0
  %2597 = vmatprep.subr.mxu0 0.0
  %2598 = vmatpush1.msra.mxu0 0.0
  %2599 = vmatprep.subr.mxu0 0.0
  %2600 = vmatpush1.msra.mxu0 0.0
  %2601 = vmatprep.subr.mxu0 0.0
  %2602 = vmatpush1.msra.mxu0 0.0
  %2603 = vmatprep.subr.mxu0 0.0
  %2604 = vmatpush1.msra.mxu0 0.0
  %2605 = vmatprep.subr.mxu0 0.0
  %2606 = vmatpush1.msra.mxu0 0.0
  %2607 = vmatprep.mubr.f32.mxu0 0.0
  %v2608 = vand.u32 %v2151, 4294901760
  %v2609 = vsub.f32 %v2151, %v2608
  %v2610 = vand.u32 %v2609, 4294901760
  %2611 = vmatmul.mubr.f32.gmra.mrb[0].mxu0 %v2610
  %v2612 = vpop.f32.mrb[0].mxu0
  %v2613 = vadd.f32 %v2524, %v2612
  %v2614 = vpop.f32.mrb[0].mxu0
  %2615 = vdwg.mxu0
  %2616 = vmatprep.subr.mxu0 0.0
  %v2617 = vand.u32 %v2165, 4294901760
  %v2618 = vsub.f32 %v2165, %v2617
  %v2619 = vand.u32 %v2618, 4294901760
  %2620 = vmatpush1.msra.mxu0 %v2619
  %2621 = vmatprep.subr.mxu0 0.0
  %v2622 = vand.u32 %v2166, 4294901760
  %v2623 = vsub.f32 %v2166, %v2622
  %v2624 = vand.u32 %v2623, 4294901760
  %2625 = vmatpush1.msra.mxu0 %v2624
  %2626 = vmatprep.subr.mxu0 0.0
  %v2627 = vand.u32 %v2167, 4294901760
  %v2628 = vsub.f32 %v2167, %v2627
  %v2629 = vand.u32 %v2628, 4294901760
  %2630 = vmatpush1.msra.mxu0 %v2629
  %2631 = vmatprep.subr.mxu0 0.0
  %v2632 = vand.u32 %v2168, 4294901760
  %v2633 = vsub.f32 %v2168, %v2632
  %v2634 = vand.u32 %v2633, 4294901760
  %2635 = vmatpush1.msra.mxu0 %v2634
  %2636 = vmatprep.subr.mxu0 0.0
  %v2637 = vand.u32 %v2169, 4294901760
  %v2638 = vsub.f32 %v2169, %v2637
  %v2639 = vand.u32 %v2638, 4294901760
  %2640 = vmatpush1.msra.mxu0 %v2639
  %2641 = vmatprep.subr.mxu0 0.0
  %v2642 = vand.u32 %v2170, 4294901760
  %v2643 = vsub.f32 %v2170, %v2642
  %v2644 = vand.u32 %v2643, 4294901760
  %2645 = vmatpush1.msra.mxu0 %v2644
  %2646 = vmatprep.subr.mxu0 0.0
  %v2647 = vand.u32 %v2171, 4294901760
  %v2648 = vsub.f32 %v2171, %v2647
  %v2649 = vand.u32 %v2648, 4294901760
  %2650 = vmatpush1.msra.mxu0 %v2649
  %2651 = vmatprep.subr.mxu0 0.0
  %v2652 = vand.u32 %v2172, 4294901760
  %v2653 = vsub.f32 %v2172, %v2652
  %v2654 = vand.u32 %v2653, 4294901760
  %2655 = vmatpush1.msra.mxu0 %v2654
  %2656 = vmatprep.subr.mxu0 0.0
  %v2657 = vand.u32 %v2173, 4294901760
  %v2658 = vsub.f32 %v2173, %v2657
  %v2659 = vand.u32 %v2658, 4294901760
  %2660 = vmatpush1.msra.mxu0 %v2659
  %2661 = vmatprep.subr.mxu0 0.0
  %v2662 = vand.u32 %v2174, 4294901760
  %v2663 = vsub.f32 %v2174, %v2662
  %v2664 = vand.u32 %v2663, 4294901760
  %2665 = vmatpush1.msra.mxu0 %v2664
  %2666 = vmatprep.subr.mxu0 0.0
  %v2667 = vand.u32 %v2175, 4294901760
  %v2668 = vsub.f32 %v2175, %v2667
  %v2669 = vand.u32 %v2668, 4294901760
  %2670 = vmatpush1.msra.mxu0 %v2669
  %2671 = vmatprep.subr.mxu0 0.0
  %v2672 = vand.u32 %v2176, 4294901760
  %v2673 = vsub.f32 %v2176, %v2672
  %v2674 = vand.u32 %v2673, 4294901760
  %2675 = vmatpush1.msra.mxu0 %v2674
  %2676 = vmatprep.subr.mxu0 0.0
  %v2677 = vand.u32 %v2177, 4294901760
  %v2678 = vsub.f32 %v2177, %v2677
  %v2679 = vand.u32 %v2678, 4294901760
  %2680 = vmatpush1.msra.mxu0 %v2679
  %2681 = vmatprep.subr.mxu0 0.0
  %v2682 = vand.u32 %v2178, 4294901760
  %v2683 = vsub.f32 %v2178, %v2682
  %v2684 = vand.u32 %v2683, 4294901760
  %2685 = vmatpush1.msra.mxu0 %v2684
  %2686 = vmatprep.subr.mxu0 0.0
  %v2687 = vand.u32 %v2179, 4294901760
  %v2688 = vsub.f32 %v2179, %v2687
  %v2689 = vand.u32 %v2688, 4294901760
  %2690 = vmatpush1.msra.mxu0 %v2689
  %2691 = vmatprep.subr.mxu0 0.0
  %v2692 = vand.u32 %v2180, 4294901760
  %v2693 = vsub.f32 %v2180, %v2692
  %v2694 = vand.u32 %v2693, 4294901760
  %2695 = vmatpush1.msra.mxu0 %v2694
  %2696 = vmatprep.subr.mxu0 0.0
  %2697 = vmatpush1.msra.mxu0 0.0
  %2698 = vmatprep.subr.mxu0 0.0
  %2699 = vmatpush1.msra.mxu0 0.0
  %2700 = vmatprep.subr.mxu0 0.0
  %2701 = vmatpush1.msra.mxu0 0.0
  %2702 = vmatprep.subr.mxu0 0.0
  %2703 = vmatpush1.msra.mxu0 0.0
  %2704 = vmatprep.subr.mxu0 0.0
  %2705 = vmatpush1.msra.mxu0 0.0
  %2706 = vmatprep.subr.mxu0 0.0
  %2707 = vmatpush1.msra.mxu0 0.0
  %2708 = vmatprep.subr.mxu0 0.0
  %2709 = vmatpush1.msra.mxu0 0.0
  %2710 = vmatprep.subr.mxu0 0.0
  %2711 = vmatpush1.msra.mxu0 0.0
  %2712 = vmatprep.subr.mxu0 0.0
  %2713 = vmatpush1.msra.mxu0 0.0
  %2714 = vmatprep.subr.mxu0 0.0
  %2715 = vmatpush1.msra.mxu0 0.0
  %2716 = vmatprep.subr.mxu0 0.0
  %2717 = vmatpush1.msra.mxu0 0.0
  %2718 = vmatprep.subr.mxu0 0.0
  %2719 = vmatpush1.msra.mxu0 0.0
  %2720 = vmatprep.subr.mxu0 0.0
  %2721 = vmatpush1.msra.mxu0 0.0
  %2722 = vmatprep.subr.mxu0 0.0
  %2723 = vmatpush1.msra.mxu0 0.0
  %2724 = vmatprep.subr.mxu0 0.0
  %2725 = vmatpush1.msra.mxu0 0.0
  %2726 = vmatprep.subr.mxu0 0.0
  %2727 = vmatpush1.msra.mxu0 0.0
  %2728 = vmatprep.mubr.f32.mxu0 0.0
  %v2729 = vand.u32 %v2151, 4294901760
  %2730 = vmatmul.mubr.f32.gmra.mrb[0].mxu0 %v2729
  %v2731 = vpop.f32.mrb[0].mxu0
  %v2732 = vadd.f32 %v2613, %v2731
  %v2733 = vpop.f32.mrb[0].mxu0
  %2734 = vdwg.mxu0
  %2735 = vmatprep.subr.mxu0 0.0
  %v2736 = vand.u32 %v2165, 4294901760
  %2737 = vmatpush1.msra.mxu0 %v2736
  %2738 = vmatprep.subr.mxu0 0.0
  %v2739 = vand.u32 %v2166, 4294901760
  %2740 = vmatpush1.msra.mxu0 %v2739
  %2741 = vmatprep.subr.mxu0 0.0
  %v2742 = vand.u32 %v2167, 4294901760
  %2743 = vmatpush1.msra.mxu0 %v2742
  %2744 = vmatprep.subr.mxu0 0.0
  %v2745 = vand.u32 %v2168, 4294901760
  %2746 = vmatpush1.msra.mxu0 %v2745
  %2747 = vmatprep.subr.mxu0 0.0
  %v2748 = vand.u32 %v2169, 4294901760
  %2749 = vmatpush1.msra.mxu0 %v2748
  %2750 = vmatprep.subr.mxu0 0.0
  %v2751 = vand.u32 %v2170, 4294901760
  %2752 = vmatpush1.msra.mxu0 %v2751
  %2753 = vmatprep.subr.mxu0 0.0
  %v2754 = vand.u32 %v2171, 4294901760
  %2755 = vmatpush1.msra.mxu0 %v2754
  %2756 = vmatprep.subr.mxu0 0.0
  %v2757 = vand.u32 %v2172, 4294901760
  %2758 = vmatpush1.msra.mxu0 %v2757
  %2759 = vmatprep.subr.mxu0 0.0
  %v2760 = vand.u32 %v2173, 4294901760
  %2761 = vmatpush1.msra.mxu0 %v2760
  %2762 = vmatprep.subr.mxu0 0.0
  %v2763 = vand.u32 %v2174, 4294901760
  %2764 = vmatpush1.msra.mxu0 %v2763
  %2765 = vmatprep.subr.mxu0 0.0
  %v2766 = vand.u32 %v2175, 4294901760
  %2767 = vmatpush1.msra.mxu0 %v2766
  %2768 = vmatprep.subr.mxu0 0.0
  %v2769 = vand.u32 %v2176, 4294901760
  %2770 = vmatpush1.msra.mxu0 %v2769
  %2771 = vmatprep.subr.mxu0 0.0
  %v2772 = vand.u32 %v2177, 4294901760
  %2773 = vmatpush1.msra.mxu0 %v2772
  %2774 = vmatprep.subr.mxu0 0.0
  %v2775 = vand.u32 %v2178, 4294901760
  %2776 = vmatpush1.msra.mxu0 %v2775
  %2777 = vmatprep.subr.mxu0 0.0
  %v2778 = vand.u32 %v2179, 4294901760
  %2779 = vmatpush1.msra.mxu0 %v2778
  %2780 = vmatprep.subr.mxu0 0.0
  %v2781 = vand.u32 %v2180, 4294901760
  %2782 = vmatpush1.msra.mxu0 %v2781
  %2783 = vmatprep.subr.mxu0 0.0
  %2784 = vmatpush1.msra.mxu0 0.0
  %2785 = vmatprep.subr.mxu0 0.0
  %2786 = vmatpush1.msra.mxu0 0.0
  %2787 = vmatprep.subr.mxu0 0.0
  %2788 = vmatpush1.msra.mxu0 0.0
  %2789 = vmatprep.subr.mxu0 0.0
  %2790 = vmatpush1.msra.mxu0 0.0
  %2791 = vmatprep.subr.mxu0 0.0
  %2792 = vmatpush1.msra.mxu0 0.0
  %2793 = vmatprep.subr.mxu0 0.0
  %2794 = vmatpush1.msra.mxu0 0.0
  %2795 = vmatprep.subr.mxu0 0.0
  %2796 = vmatpush1.msra.mxu0 0.0
  %2797 = vmatprep.subr.mxu0 0.0
  %2798 = vmatpush1.msra.mxu0 0.0
  %2799 = vmatprep.subr.mxu0 0.0
  %2800 = vmatpush1.msra.mxu0 0.0
  %2801 = vmatprep.subr.mxu0 0.0
  %2802 = vmatpush1.msra.mxu0 0.0
  %2803 = vmatprep.subr.mxu0 0.0
  %2804 = vmatpush1.msra.mxu0 0.0
  %2805 = vmatprep.subr.mxu0 0.0
  %2806 = vmatpush1.msra.mxu0 0.0
  %2807 = vmatprep.subr.mxu0 0.0
  %2808 = vmatpush1.msra.mxu0 0.0
  %2809 = vmatprep.subr.mxu0 0.0
  %2810 = vmatpush1.msra.mxu0 0.0
  %2811 = vmatprep.subr.mxu0 0.0
  %2812 = vmatpush1.msra.mxu0 0.0
  %2813 = vmatprep.subr.mxu0 0.0
  %2814 = vmatpush1.msra.mxu0 0.0
  %2815 = vmatprep.mubr.f32.mxu0 0.0
  %v2816 = vand.u32 %v2151, 4294901760
  %2817 = vmatmul.mubr.f32.gmra.mrb[0].mxu0 %v2816
  %v2818 = vpop.f32.mrb[0].mxu0
  %v2819 = vadd.f32 %v2732, %v2818
  %v2820 = vpop.f32.mrb[0].mxu0
  %2821 = vdwg.mxu0
  %v2822 = vmul.f32 %v2819, 0.001953125
  %2823 = vmatprep.subr.mxu0 0.0
  %v2824 = vand.u32 %v2165, 4294901760
  %2825 = vmatpush1.msra.mxu0 %v2824
  %2826 = vmatprep.subr.mxu0 0.0
  %v2827 = vand.u32 %v2166, 4294901760
  %2828 = vmatpush1.msra.mxu0 %v2827
  %2829 = vmatprep.subr.mxu0 0.0
  %v2830 = vand.u32 %v2167, 4294901760
  %2831 = vmatpush1.msra.mxu0 %v2830
  %2832 = vmatprep.subr.mxu0 0.0
  %v2833 = vand.u32 %v2168, 4294901760
  %2834 = vmatpush1.msra.mxu0 %v2833
  %2835 = vmatprep.subr.mxu0 0.0
  %v2836 = vand.u32 %v2169, 4294901760
  %2837 = vmatpush1.msra.mxu0 %v2836
  %2838 = vmatprep.subr.mxu0 0.0
  %v2839 = vand.u32 %v2170, 4294901760
  %2840 = vmatpush1.msra.mxu0 %v2839
  %2841 = vmatprep.subr.mxu0 0.0
  %v2842 = vand.u32 %v2171, 4294901760
  %2843 = vmatpush1.msra.mxu0 %v2842
  %2844 = vmatprep.subr.mxu0 0.0
  %v2845 = vand.u32 %v2172, 4294901760
  %2846 = vmatpush1.msra.mxu0 %v2845
  %2847 = vmatprep.subr.mxu0 0.0
  %v2848 = vand.u32 %v2173, 4294901760
  %2849 = vmatpush1.msra.mxu0 %v2848
  %2850 = vmatprep.subr.mxu0 0.0
  %v2851 = vand.u32 %v2174, 4294901760
  %2852 = vmatpush1.msra.mxu0 %v2851
  %2853 = vmatprep.subr.mxu0 0.0
  %v2854 = vand.u32 %v2175, 4294901760
  %2855 = vmatpush1.msra.mxu0 %v2854
  %2856 = vmatprep.subr.mxu0 0.0
  %v2857 = vand.u32 %v2176, 4294901760
  %2858 = vmatpush1.msra.mxu0 %v2857
  %2859 = vmatprep.subr.mxu0 0.0
  %v2860 = vand.u32 %v2177, 4294901760
  %2861 = vmatpush1.msra.mxu0 %v2860
  %2862 = vmatprep.subr.mxu0 0.0
  %v2863 = vand.u32 %v2178, 4294901760
  %2864 = vmatpush1.msra.mxu0 %v2863
  %2865 = vmatprep.subr.mxu0 0.0
  %v2866 = vand.u32 %v2179, 4294901760
  %2867 = vmatpush1.msra.mxu0 %v2866
  %2868 = vmatprep.subr.mxu0 0.0
  %v2869 = vand.u32 %v2180, 4294901760
  %2870 = vmatpush1.msra.mxu0 %v2869
  %2871 = vmatprep.subr.mxu0 0.0
  %2872 = vmatpush1.msra.mxu0 0.0
  %2873 = vmatprep.subr.mxu0 0.0
  %2874 = vmatpush1.msra.mxu0 0.0
  %2875 = vmatprep.subr.mxu0 0.0
  %2876 = vmatpush1.msra.mxu0 0.0
  %2877 = vmatprep.subr.mxu0 0.0
  %2878 = vmatpush1.msra.mxu0 0.0
  %2879 = vmatprep.subr.mxu0 0.0
  %2880 = vmatpush1.msra.mxu0 0.0
  %2881 = vmatprep.subr.mxu0 0.0
  %2882 = vmatpush1.msra.mxu0 0.0
  %2883 = vmatprep.subr.mxu0 0.0
  %2884 = vmatpush1.msra.mxu0 0.0
  %2885 = vmatprep.subr.mxu0 0.0
  %2886 = vmatpush1.msra.mxu0 0.0
  %2887 = vmatprep.subr.mxu0 0.0
  %2888 = vmatpush1.msra.mxu0 0.0
  %2889 = vmatprep.subr.mxu0 0.0
  %2890 = vmatpush1.msra.mxu0 0.0
  %2891 = vmatprep.subr.mxu0 0.0
  %2892 = vmatpush1.msra.mxu0 0.0
  %2893 = vmatprep.subr.mxu0 0.0
  %2894 = vmatpush1.msra.mxu0 0.0
  %2895 = vmatprep.subr.mxu0 0.0
  %2896 = vmatpush1.msra.mxu0 0.0
  %2897 = vmatprep.subr.mxu0 0.0
  %2898 = vmatpush1.msra.mxu0 0.0
  %2899 = vmatprep.subr.mxu0 0.0
  %2900 = vmatpush1.msra.mxu0 0.0
  %2901 = vmatprep.subr.mxu0 0.0
  %2902 = vmatpush1.msra.mxu0 0.0
  %2903 = vmatprep.mubr.f32.mxu0 0.0
  %v2904 = vand.u32 %v2164, 4294901760
  %v2905 = vsub.f32 %v2164, %v2904
  %v2906 = vand.u32 %v2905, 4294901760
  %v2907 = vsub.f32 %v2905, %v2906
  %v2908 = vand.u32 %v2907, 4294901760
  %2909 = vmatmul.mubr.f32.gmra.mrb[0].mxu0 %v2908
  %v2910 = vpop.f32.mrb[0].mxu0
  %v2911 = vadd.f32 0.0, %v2910
  %v2912 = vpop.f32.mrb[0].mxu0
  %2913 = vdwg.mxu0
  %2914 = vmatprep.subr.mxu0 0.0
  %v2915 = vand.u32 %v2165, 4294901760
  %v2916 = vsub.f32 %v2165, %v2915
  %v2917 = vand.u32 %v2916, 4294901760
  %v2918 = vsub.f32 %v2916, %v2917
  %v2919 = vand.u32 %v2918, 4294901760
  %2920 = vmatpush1.msra.mxu0 %v2919
  %2921 = vmatprep.subr.mxu0 0.0
  %v2922 = vand.u32 %v2166, 4294901760
  %v2923 = vsub.f32 %v2166, %v2922
  %v2924 = vand.u32 %v2923, 4294901760
  %v2925 = vsub.f32 %v2923, %v2924
  %v2926 = vand.u32 %v2925, 4294901760
  %2927 = vmatpush1.msra.mxu0 %v2926
  %2928 = vmatprep.subr.mxu0 0.0
  %v2929 = vand.u32 %v2167, 4294901760
  %v2930 = vsub.f32 %v2167, %v2929
  %v2931 = vand.u32 %v2930, 4294901760
  %v2932 = vsub.f32 %v2930, %v2931
  %v2933 = vand.u32 %v2932, 4294901760
  %2934 = vmatpush1.msra.mxu0 %v2933
  %2935 = vmatprep.subr.mxu0 0.0
  %v2936 = vand.u32 %v2168, 4294901760
  %v2937 = vsub.f32 %v2168, %v2936
  %v2938 = vand.u32 %v2937, 4294901760
  %v2939 = vsub.f32 %v2937, %v2938
  %v2940 = vand.u32 %v2939, 4294901760
  %2941 = vmatpush1.msra.mxu0 %v2940
  %2942 = vmatprep.subr.mxu0 0.0
  %v2943 = vand.u32 %v2169, 4294901760
  %v2944 = vsub.f32 %v2169, %v2943
  %v2945 = vand.u32 %v2944, 4294901760
  %v2946 = vsub.f32 %v2944, %v2945
  %v2947 = vand.u32 %v2946, 4294901760
  %2948 = vmatpush1.msra.mxu0 %v2947
  %2949 = vmatprep.subr.mxu0 0.0
  %v2950 = vand.u32 %v2170, 4294901760
  %v2951 = vsub.f32 %v2170, %v2950
  %v2952 = vand.u32 %v2951, 4294901760
  %v2953 = vsub.f32 %v2951, %v2952
  %v2954 = vand.u32 %v2953, 4294901760
  %2955 = vmatpush1.msra.mxu0 %v2954
  %2956 = vmatprep.subr.mxu0 0.0
  %v2957 = vand.u32 %v2171, 4294901760
  %v2958 = vsub.f32 %v2171, %v2957
  %v2959 = vand.u32 %v2958, 4294901760
  %v2960 = vsub.f32 %v2958, %v2959
  %v2961 = vand.u32 %v2960, 4294901760
  %2962 = vmatpush1.msra.mxu0 %v2961
  %2963 = vmatprep.subr.mxu0 0.0
  %v2964 = vand.u32 %v2172, 4294901760
  %v2965 = vsub.f32 %v2172, %v2964
  %v2966 = vand.u32 %v2965, 4294901760
  %v2967 = vsub.f32 %v2965, %v2966
  %v2968 = vand.u32 %v2967, 4294901760
  %2969 = vmatpush1.msra.mxu0 %v2968
  %2970 = vmatprep.subr.mxu0 0.0
  %v2971 = vand.u32 %v2173, 4294901760
  %v2972 = vsub.f32 %v2173, %v2971
  %v2973 = vand.u32 %v2972, 4294901760
  %v2974 = vsub.f32 %v2972, %v2973
  %v2975 = vand.u32 %v2974, 4294901760
  %2976 = vmatpush1.msra.mxu0 %v2975
  %2977 = vmatprep.subr.mxu0 0.0
  %v2978 = vand.u32 %v2174, 4294901760
  %v2979 = vsub.f32 %v2174, %v2978
  %v2980 = vand.u32 %v2979, 4294901760
  %v2981 = vsub.f32 %v2979, %v2980
  %v2982 = vand.u32 %v2981, 4294901760
  %2983 = vmatpush1.msra.mxu0 %v2982
  %2984 = vmatprep.subr.mxu0 0.0
  %v2985 = vand.u32 %v2175, 4294901760
  %v2986 = vsub.f32 %v2175, %v2985
  %v2987 = vand.u32 %v2986, 4294901760
  %v2988 = vsub.f32 %v2986, %v2987
  %v2989 = vand.u32 %v2988, 4294901760
  %2990 = vmatpush1.msra.mxu0 %v2989
  %2991 = vmatprep.subr.mxu0 0.0
  %v2992 = vand.u32 %v2176, 4294901760
  %v2993 = vsub.f32 %v2176, %v2992
  %v2994 = vand.u32 %v2993, 4294901760
  %v2995 = vsub.f32 %v2993, %v2994
  %v2996 = vand.u32 %v2995, 4294901760
  %2997 = vmatpush1.msra.mxu0 %v2996
  %2998 = vmatprep.subr.mxu0 0.0
  %v2999 = vand.u32 %v2177, 4294901760
  %v3000 = vsub.f32 %v2177, %v2999
  %v3001 = vand.u32 %v3000, 4294901760
  %v3002 = vsub.f32 %v3000, %v3001
  %v3003 = vand.u32 %v3002, 4294901760
  %3004 = vmatpush1.msra.mxu0 %v3003
  %3005 = vmatprep.subr.mxu0 0.0
  %v3006 = vand.u32 %v2178, 4294901760
  %v3007 = vsub.f32 %v2178, %v3006
  %v3008 = vand.u32 %v3007, 4294901760
  %v3009 = vsub.f32 %v3007, %v3008
  %v3010 = vand.u32 %v3009, 4294901760
  %3011 = vmatpush1.msra.mxu0 %v3010
  %3012 = vmatprep.subr.mxu0 0.0
  %v3013 = vand.u32 %v2179, 4294901760
  %v3014 = vsub.f32 %v2179, %v3013
  %v3015 = vand.u32 %v3014, 4294901760
  %v3016 = vsub.f32 %v3014, %v3015
  %v3017 = vand.u32 %v3016, 4294901760
  %3018 = vmatpush1.msra.mxu0 %v3017
  %3019 = vmatprep.subr.mxu0 0.0
  %v3020 = vand.u32 %v2180, 4294901760
  %v3021 = vsub.f32 %v2180, %v3020
  %v3022 = vand.u32 %v3021, 4294901760
  %v3023 = vsub.f32 %v3021, %v3022
  %v3024 = vand.u32 %v3023, 4294901760
  %3025 = vmatpush1.msra.mxu0 %v3024
  %3026 = vmatprep.subr.mxu0 0.0
  %3027 = vmatpush1.msra.mxu0 0.0
  %3028 = vmatprep.subr.mxu0 0.0
  %3029 = vmatpush1.msra.mxu0 0.0
  %3030 = vmatprep.subr.mxu0 0.0
  %3031 = vmatpush1.msra.mxu0 0.0
  %3032 = vmatprep.subr.mxu0 0.0
  %3033 = vmatpush1.msra.mxu0 0.0
  %3034 = vmatprep.subr.mxu0 0.0
  %3035 = vmatpush1.msra.mxu0 0.0
  %3036 = vmatprep.subr.mxu0 0.0
  %3037 = vmatpush1.msra.mxu0 0.0
  %3038 = vmatprep.subr.mxu0 0.0
  %3039 = vmatpush1.msra.mxu0 0.0
  %3040 = vmatprep.subr.mxu0 0.0
  %3041 = vmatpush1.msra.mxu0 0.0
  %3042 = vmatprep.subr.mxu0 0.0
  %3043 = vmatpush1.msra.mxu0 0.0
  %3044 = vmatprep.subr.mxu0 0.0
  %3045 = vmatpush1.msra.mxu0 0.0
  %3046 = vmatprep.subr.mxu0 0.0
  %3047 = vmatpush1.msra.mxu0 0.0
  %3048 = vmatprep.subr.mxu0 0.0
  %3049 = vmatpush1.msra.mxu0 0.0
  %3050 = vmatprep.subr.mxu0 0.0
  %3051 = vmatpush1.msra.mxu0 0.0
  %3052 = vmatprep.subr.mxu0 0.0
  %3053 = vmatpush1.msra.mxu0 0.0
  %3054 = vmatprep.subr.mxu0 0.0
  %3055 = vmatpush1.msra.mxu0 0.0
  %3056 = vmatprep.subr.mxu0 0.0
  %3057 = vmatpush1.msra.mxu0 0.0
  %3058 = vmatprep.mubr.f32.mxu0 0.0
  %v3059 = vand.u32 %v2164, 4294901760
  %3060 = vmatmul.mubr.f32.gmra.mrb[0].mxu0 %v3059
  %v3061 = vpop.f32.mrb[0].mxu0
  %v3062 = vadd.f32 %v2911, %v3061
  %v3063 = vpop.f32.mrb[0].mxu0
  %3064 = vdwg.mxu0
  %3065 = vmatprep.subr.mxu0 0.0
  %v3066 = vand.u32 %v2165, 4294901760
  %v3067 = vsub.f32 %v2165, %v3066
  %3068 = vmatpush1.msra.mxu0 %v3067
  %3069 = vmatprep.subr.mxu0 0.0
  %v3070 = vand.u32 %v2166, 4294901760
  %v3071 = vsub.f32 %v2166, %v3070
  %3072 = vmatpush1.msra.mxu0 %v3071
  %3073 = vmatprep.subr.mxu0 0.0
  %v3074 = vand.u32 %v2167, 4294901760
  %v3075 = vsub.f32 %v2167, %v3074
  %3076 = vmatpush1.msra.mxu0 %v3075
  %3077 = vmatprep.subr.mxu0 0.0
  %v3078 = vand.u32 %v2168, 4294901760
  %v3079 = vsub.f32 %v2168, %v3078
  %3080 = vmatpush1.msra.mxu0 %v3079
  %3081 = vmatprep.subr.mxu0 0.0
  %v3082 = vand.u32 %v2169, 4294901760
  %v3083 = vsub.f32 %v2169, %v3082
  %3084 = vmatpush1.msra.mxu0 %v3083
  %3085 = vmatprep.subr.mxu0 0.0
  %v3086 = vand.u32 %v2170, 4294901760
  %v3087 = vsub.f32 %v2170, %v3086
  %3088 = vmatpush1.msra.mxu0 %v3087
  %3089 = vmatprep.subr.mxu0 0.0
  %v3090 = vand.u32 %v2171, 4294901760
  %v3091 = vsub.f32 %v2171, %v3090
  %3092 = vmatpush1.msra.mxu0 %v3091
  %3093 = vmatprep.subr.mxu0 0.0
  %v3094 = vand.u32 %v2172, 4294901760
  %v3095 = vsub.f32 %v2172, %v3094
  %3096 = vmatpush1.msra.mxu0 %v3095
  %3097 = vmatprep.subr.mxu0 0.0
  %v3098 = vand.u32 %v2173, 4294901760
  %v3099 = vsub.f32 %v2173, %v3098
  %3100 = vmatpush1.msra.mxu0 %v3099
  %3101 = vmatprep.subr.mxu0 0.0
  %v3102 = vand.u32 %v2174, 4294901760
  %v3103 = vsub.f32 %v2174, %v3102
  %3104 = vmatpush1.msra.mxu0 %v3103
  %3105 = vmatprep.subr.mxu0 0.0
  %v3106 = vand.u32 %v2175, 4294901760
  %v3107 = vsub.f32 %v2175, %v3106
  %3108 = vmatpush1.msra.mxu0 %v3107
  %3109 = vmatprep.subr.mxu0 0.0
  %v3110 = vand.u32 %v2176, 4294901760
  %v3111 = vsub.f32 %v2176, %v3110
  %3112 = vmatpush1.msra.mxu0 %v3111
  %3113 = vmatprep.subr.mxu0 0.0
  %v3114 = vand.u32 %v2177, 4294901760
  %v3115 = vsub.f32 %v2177, %v3114
  %3116 = vmatpush1.msra.mxu0 %v3115
  %3117 = vmatprep.subr.mxu0 0.0
  %v3118 = vand.u32 %v2178, 4294901760
  %v3119 = vsub.f32 %v2178, %v3118
  %3120 = vmatpush1.msra.mxu0 %v3119
  %3121 = vmatprep.subr.mxu0 0.0
  %v3122 = vand.u32 %v2179, 4294901760
  %v3123 = vsub.f32 %v2179, %v3122
  %3124 = vmatpush1.msra.mxu0 %v3123
  %3125 = vmatprep.subr.mxu0 0.0
  %v3126 = vand.u32 %v2180, 4294901760
  %v3127 = vsub.f32 %v2180, %v3126
  %3128 = vmatpush1.msra.mxu0 %v3127
  %3129 = vmatprep.subr.mxu0 0.0
  %3130 = vmatpush1.msra.mxu0 0.0
  %3131 = vmatprep.subr.mxu0 0.0
  %3132 = vmatpush1.msra.mxu0 0.0
  %3133 = vmatprep.subr.mxu0 0.0
  %3134 = vmatpush1.msra.mxu0 0.0
  %3135 = vmatprep.subr.mxu0 0.0
  %3136 = vmatpush1.msra.mxu0 0.0
  %3137 = vmatprep.subr.mxu0 0.0
  %3138 = vmatpush1.msra.mxu0 0.0
  %3139 = vmatprep.subr.mxu0 0.0
  %3140 = vmatpush1.msra.mxu0 0.0
  %3141 = vmatprep.subr.mxu0 0.0
  %3142 = vmatpush1.msra.mxu0 0.0
  %3143 = vmatprep.subr.mxu0 0.0
  %3144 = vmatpush1.msra.mxu0 0.0
  %3145 = vmatprep.subr.mxu0 0.0
  %3146 = vmatpush1.msra.mxu0 0.0
  %3147 = vmatprep.subr.mxu0 0.0
  %3148 = vmatpush1.msra.mxu0 0.0
  %3149 = vmatprep.subr.mxu0 0.0
  %3150 = vmatpush1.msra.mxu0 0.0
  %3151 = vmatprep.subr.mxu0 0.0
  %3152 = vmatpush1.msra.mxu0 0.0
  %3153 = vmatprep.subr.mxu0 0.0
  %3154 = vmatpush1.msra.mxu0 0.0
  %3155 = vmatprep.subr.mxu0 0.0
  %3156 = vmatpush1.msra.mxu0 0.0
  %3157 = vmatprep.subr.mxu0 0.0
  %3158 = vmatpush1.msra.mxu0 0.0
  %3159 = vmatprep.subr.mxu0 0.0
  %3160 = vmatpush1.msra.mxu0 0.0
  %3161 = vmatprep.mubr.f32.mxu0 0.0
  %v3162 = vand.u32 %v2164, 4294901760
  %v3163 = vsub.f32 %v2164, %v3162
  %3164 = vmatmul.mubr.f32.gmra.mrb[0].mxu0 %v3163
  %v3165 = vpop.f32.mrb[0].mxu0
  %v3166 = vadd.f32 %v3062, %v3165
  %v3167 = vpop.f32.mrb[0].mxu0
  %3168 = vdwg.mxu0
  %3169 = vmatprep.subr.mxu0 0.0
  %v3170 = vand.u32 %v2165, 4294901760
  %3171 = vmatpush1.msra.mxu0 %v3170
  %3172 = vmatprep.subr.mxu0 0.0
  %v3173 = vand.u32 %v2166, 4294901760
  %3174 = vmatpush1.msra.mxu0 %v3173
  %3175 = vmatprep.subr.mxu0 0.0
  %v3176 = vand.u32 %v2167, 4294901760
  %3177 = vmatpush1.msra.mxu0 %v3176
  %3178 = vmatprep.subr.mxu0 0.0
  %v3179 = vand.u32 %v2168, 4294901760
  %3180 = vmatpush1.msra.mxu0 %v3179
  %3181 = vmatprep.subr.mxu0 0.0
  %v3182 = vand.u32 %v2169, 4294901760
  %3183 = vmatpush1.msra.mxu0 %v3182
  %3184 = vmatprep.subr.mxu0 0.0
  %v3185 = vand.u32 %v2170, 4294901760
  %3186 = vmatpush1.msra.mxu0 %v3185
  %3187 = vmatprep.subr.mxu0 0.0
  %v3188 = vand.u32 %v2171, 4294901760
  %3189 = vmatpush1.msra.mxu0 %v3188
  %3190 = vmatprep.subr.mxu0 0.0
  %v3191 = vand.u32 %v2172, 4294901760
  %3192 = vmatpush1.msra.mxu0 %v3191
  %3193 = vmatprep.subr.mxu0 0.0
  %v3194 = vand.u32 %v2173, 4294901760
  %3195 = vmatpush1.msra.mxu0 %v3194
  %3196 = vmatprep.subr.mxu0 0.0
  %v3197 = vand.u32 %v2174, 4294901760
  %3198 = vmatpush1.msra.mxu0 %v3197
  %3199 = vmatprep.subr.mxu0 0.0
  %v3200 = vand.u32 %v2175, 4294901760
  %3201 = vmatpush1.msra.mxu0 %v3200
  %3202 = vmatprep.subr.mxu0 0.0
  %v3203 = vand.u32 %v2176, 4294901760
  %3204 = vmatpush1.msra.mxu0 %v3203
  %3205 = vmatprep.subr.mxu0 0.0
  %v3206 = vand.u32 %v2177, 4294901760
  %3207 = vmatpush1.msra.mxu0 %v3206
  %3208 = vmatprep.subr.mxu0 0.0
  %v3209 = vand.u32 %v2178, 4294901760
  %3210 = vmatpush1.msra.mxu0 %v3209
  %3211 = vmatprep.subr.mxu0 0.0
  %v3212 = vand.u32 %v2179, 4294901760
  %3213 = vmatpush1.msra.mxu0 %v3212
  %3214 = vmatprep.subr.mxu0 0.0
  %v3215 = vand.u32 %v2180, 4294901760
  %3216 = vmatpush1.msra.mxu0 %v3215
  %3217 = vmatprep.subr.mxu0 0.0
  %3218 = vmatpush1.msra.mxu0 0.0
  %3219 = vmatprep.subr.mxu0 0.0
  %3220 = vmatpush1.msra.mxu0 0.0
  %3221 = vmatprep.subr.mxu0 0.0
  %3222 = vmatpush1.msra.mxu0 0.0
  %3223 = vmatprep.subr.mxu0 0.0
  %3224 = vmatpush1.msra.mxu0 0.0
  %3225 = vmatprep.subr.mxu0 0.0
  %3226 = vmatpush1.msra.mxu0 0.0
  %3227 = vmatprep.subr.mxu0 0.0
  %3228 = vmatpush1.msra.mxu0 0.0
  %3229 = vmatprep.subr.mxu0 0.0
  %3230 = vmatpush1.msra.mxu0 0.0
  %3231 = vmatprep.subr.mxu0 0.0
  %3232 = vmatpush1.msra.mxu0 0.0
  %3233 = vmatprep.subr.mxu0 0.0
  %3234 = vmatpush1.msra.mxu0 0.0
  %3235 = vmatprep.subr.mxu0 0.0
  %3236 = vmatpush1.msra.mxu0 0.0
  %3237 = vmatprep.subr.mxu0 0.0
  %3238 = vmatpush1.msra.mxu0 0.0
  %3239 = vmatprep.subr.mxu0 0.0
  %3240 = vmatpush1.msra.mxu0 0.0
  %3241 = vmatprep.subr.mxu0 0.0
  %3242 = vmatpush1.msra.mxu0 0.0
  %3243 = vmatprep.subr.mxu0 0.0
  %3244 = vmatpush1.msra.mxu0 0.0
  %3245 = vmatprep.subr.mxu0 0.0
  %3246 = vmatpush1.msra.mxu0 0.0
  %3247 = vmatprep.subr.mxu0 0.0
  %3248 = vmatpush1.msra.mxu0 0.0
  %3249 = vmatprep.mubr.f32.mxu0 0.0
  %v3250 = vand.u32 %v2164, 4294901760
  %v3251 = vsub.f32 %v2164, %v3250
  %v3252 = vand.u32 %v3251, 4294901760
  %3253 = vmatmul.mubr.f32.gmra.mrb[0].mxu0 %v3252
  %v3254 = vpop.f32.mrb[0].mxu0
  %v3255 = vadd.f32 %v3166, %v3254
  %v3256 = vpop.f32.mrb[0].mxu0
  %3257 = vdwg.mxu0
  %3258 = vmatprep.subr.mxu0 0.0
  %v3259 = vand.u32 %v2165, 4294901760
  %v3260 = vsub.f32 %v2165, %v3259
  %v3261 = vand.u32 %v3260, 4294901760
  %3262 = vmatpush1.msra.mxu0 %v3261
  %3263 = vmatprep.subr.mxu0 0.0
  %v3264 = vand.u32 %v2166, 4294901760
  %v3265 = vsub.f32 %v2166, %v3264
  %v3266 = vand.u32 %v3265, 4294901760
  %3267 = vmatpush1.msra.mxu0 %v3266
  %3268 = vmatprep.subr.mxu0 0.0
  %v3269 = vand.u32 %v2167, 4294901760
  %v3270 = vsub.f32 %v2167, %v3269
  %v3271 = vand.u32 %v3270, 4294901760
  %3272 = vmatpush1.msra.mxu0 %v3271
  %3273 = vmatprep.subr.mxu0 0.0
  %v3274 = vand.u32 %v2168, 4294901760
  %v3275 = vsub.f32 %v2168, %v3274
  %v3276 = vand.u32 %v3275, 4294901760
  %3277 = vmatpush1.msra.mxu0 %v3276
  %3278 = vmatprep.subr.mxu0 0.0
  %v3279 = vand.u32 %v2169, 4294901760
  %v3280 = vsub.f32 %v2169, %v3279
  %v3281 = vand.u32 %v3280, 4294901760
  %3282 = vmatpush1.msra.mxu0 %v3281
  %3283 = vmatprep.subr.mxu0 0.0
  %v3284 = vand.u32 %v2170, 4294901760
  %v3285 = vsub.f32 %v2170, %v3284
  %v3286 = vand.u32 %v3285, 4294901760
  %3287 = vmatpush1.msra.mxu0 %v3286
  %3288 = vmatprep.subr.mxu0 0.0
  %v3289 = vand.u32 %v2171, 4294901760
  %v3290 = vsub.f32 %v2171, %v3289
  %v3291 = vand.u32 %v3290, 4294901760
  %3292 = vmatpush1.msra.mxu0 %v3291
  %3293 = vmatprep.subr.mxu0 0.0
  %v3294 = vand.u32 %v2172, 4294901760
  %v3295 = vsub.f32 %v2172, %v3294
  %v3296 = vand.u32 %v3295, 4294901760
  %3297 = vmatpush1.msra.mxu0 %v3296
  %3298 = vmatprep.subr.mxu0 0.0
  %v3299 = vand.u32 %v2173, 4294901760
  %v3300 = vsub.f32 %v2173, %v3299
  %v3301 = vand.u32 %v3300, 4294901760
  %3302 = vmatpush1.msra.mxu0 %v3301
  %3303 = vmatprep.subr.mxu0 0.0
  %v3304 = vand.u32 %v2174, 4294901760
  %v3305 = vsub.f32 %v2174, %v3304
  %v3306 = vand.u32 %v3305, 4294901760
  %3307 = vmatpush1.msra.mxu0 %v3306
  %3308 = vmatprep.subr.mxu0 0.0
  %v3309 = vand.u32 %v2175, 4294901760
  %v3310 = vsub.f32 %v2175, %v3309
  %v3311 = vand.u32 %v3310, 4294901760
  %3312 = vmatpush1.msra.mxu0 %v3311
  %3313 = vmatprep.subr.mxu0 0.0
  %v3314 = vand.u32 %v2176, 4294901760
  %v3315 = vsub.f32 %v2176, %v3314
  %v3316 = vand.u32 %v3315, 4294901760
  %3317 = vmatpush1.msra.mxu0 %v3316
  %3318 = vmatprep.subr.mxu0 0.0
  %v3319 = vand.u32 %v2177, 4294901760
  %v3320 = vsub.f32 %v2177, %v3319
  %v3321 = vand.u32 %v3320, 4294901760
  %3322 = vmatpush1.msra.mxu0 %v3321
  %3323 = vmatprep.subr.mxu0 0.0
  %v3324 = vand.u32 %v2178, 4294901760
  %v3325 = vsub.f32 %v2178, %v3324
  %v3326 = vand.u32 %v3325, 4294901760
  %3327 = vmatpush1.msra.mxu0 %v3326
  %3328 = vmatprep.subr.mxu0 0.0
  %v3329 = vand.u32 %v2179, 4294901760
  %v3330 = vsub.f32 %v2179, %v3329
  %v3331 = vand.u32 %v3330, 4294901760
  %3332 = vmatpush1.msra.mxu0 %v3331
  %3333 = vmatprep.subr.mxu0 0.0
  %v3334 = vand.u32 %v2180, 4294901760
  %v3335 = vsub.f32 %v2180, %v3334
  %v3336 = vand.u32 %v3335, 4294901760
  %3337 = vmatpush1.msra.mxu0 %v3336
  %3338 = vmatprep.subr.mxu0 0.0
  %3339 = vmatpush1.msra.mxu0 0.0
  %3340 = vmatprep.subr.mxu0 0.0
  %3341 = vmatpush1.msra.mxu0 0.0
  %3342 = vmatprep.subr.mxu0 0.0
  %3343 = vmatpush1.msra.mxu0 0.0
  %3344 = vmatprep.subr.mxu0 0.0
  %3345 = vmatpush1.msra.mxu0 0.0
  %3346 = vmatprep.subr.mxu0 0.0
  %3347 = vmatpush1.msra.mxu0 0.0
  %3348 = vmatprep.subr.mxu0 0.0
  %3349 = vmatpush1.msra.mxu0 0.0
  %3350 = vmatprep.subr.mxu0 0.0
  %3351 = vmatpush1.msra.mxu0 0.0
  %3352 = vmatprep.subr.mxu0 0.0
  %3353 = vmatpush1.msra.mxu0 0.0
  %3354 = vmatprep.subr.mxu0 0.0
  %3355 = vmatpush1.msra.mxu0 0.0
  %3356 = vmatprep.subr.mxu0 0.0
  %3357 = vmatpush1.msra.mxu0 0.0
  %3358 = vmatprep.subr.mxu0 0.0
  %3359 = vmatpush1.msra.mxu0 0.0
  %3360 = vmatprep.subr.mxu0 0.0
  %3361 = vmatpush1.msra.mxu0 0.0
  %3362 = vmatprep.subr.mxu0 0.0
  %3363 = vmatpush1.msra.mxu0 0.0
  %3364 = vmatprep.subr.mxu0 0.0
  %3365 = vmatpush1.msra.mxu0 0.0
  %3366 = vmatprep.subr.mxu0 0.0
  %3367 = vmatpush1.msra.mxu0 0.0
  %3368 = vmatprep.subr.mxu0 0.0
  %3369 = vmatpush1.msra.mxu0 0.0
  %3370 = vmatprep.mubr.f32.mxu0 0.0
  %v3371 = vand.u32 %v2164, 4294901760
  %3372 = vmatmul.mubr.f32.gmra.mrb[0].mxu0 %v3371
  %v3373 = vpop.f32.mrb[0].mxu0
  %v3374 = vadd.f32 %v3255, %v3373
  %v3375 = vpop.f32.mrb[0].mxu0
  %3376 = vdwg.mxu0
  %3377 = vmatprep.subr.mxu0 0.0
  %v3378 = vand.u32 %v2165, 4294901760
  %3379 = vmatpush1.msra.mxu0 %v3378
  %3380 = vmatprep.subr.mxu0 0.0
  %v3381 = vand.u32 %v2166, 4294901760
  %3382 = vmatpush1.msra.mxu0 %v3381
  %3383 = vmatprep.subr.mxu0 0.0
  %v3384 = vand.u32 %v2167, 4294901760
  %3385 = vmatpush1.msra.mxu0 %v3384
  %3386 = vmatprep.subr.mxu0 0.0
  %v3387 = vand.u32 %v2168, 4294901760
  %3388 = vmatpush1.msra.mxu0 %v3387
  %3389 = vmatprep.subr.mxu0 0.0
  %v3390 = vand.u32 %v2169, 4294901760
  %3391 = vmatpush1.msra.mxu0 %v3390
  %3392 = vmatprep.subr.mxu0 0.0
  %v3393 = vand.u32 %v2170, 4294901760
  %3394 = vmatpush1.msra.mxu0 %v3393
  %3395 = vmatprep.subr.mxu0 0.0
  %v3396 = vand.u32 %v2171, 4294901760
  %3397 = vmatpush1.msra.mxu0 %v3396
  %3398 = vmatprep.subr.mxu0 0.0
  %v3399 = vand.u32 %v2172, 4294901760
  %3400 = vmatpush1.msra.mxu0 %v3399
  %3401 = vmatprep.subr.mxu0 0.0
  %v3402 = vand.u32 %v2173, 4294901760
  %3403 = vmatpush1.msra.mxu0 %v3402
  %3404 = vmatprep.subr.mxu0 0.0
  %v3405 = vand.u32 %v2174, 4294901760
  %3406 = vmatpush1.msra.mxu0 %v3405
  %3407 = vmatprep.subr.mxu0 0.0
  %v3408 = vand.u32 %v2175, 4294901760
  %3409 = vmatpush1.msra.mxu0 %v3408
  %3410 = vmatprep.subr.mxu0 0.0
  %v3411 = vand.u32 %v2176, 4294901760
  %3412 = vmatpush1.msra.mxu0 %v3411
  %3413 = vmatprep.subr.mxu0 0.0
  %v3414 = vand.u32 %v2177, 4294901760
  %3415 = vmatpush1.msra.mxu0 %v3414
  %3416 = vmatprep.subr.mxu0 0.0
  %v3417 = vand.u32 %v2178, 4294901760
  %3418 = vmatpush1.msra.mxu0 %v3417
  %3419 = vmatprep.subr.mxu0 0.0
  %v3420 = vand.u32 %v2179, 4294901760
  %3421 = vmatpush1.msra.mxu0 %v3420
  %3422 = vmatprep.subr.mxu0 0.0
  %v3423 = vand.u32 %v2180, 4294901760
  %3424 = vmatpush1.msra.mxu0 %v3423
  %3425 = vmatprep.subr.mxu0 0.0
  %3426 = vmatpush1.msra.mxu0 0.0
  %3427 = vmatprep.subr.mxu0 0.0
  %3428 = vmatpush1.msra.mxu0 0.0
  %3429 = vmatprep.subr.mxu0 0.0
  %3430 = vmatpush1.msra.mxu0 0.0
  %3431 = vmatprep.subr.mxu0 0.0
  %3432 = vmatpush1.msra.mxu0 0.0
  %3433 = vmatprep.subr.mxu0 0.0
  %3434 = vmatpush1.msra.mxu0 0.0
  %3435 = vmatprep.subr.mxu0 0.0
  %3436 = vmatpush1.msra.mxu0 0.0
  %3437 = vmatprep.subr.mxu0 0.0
  %3438 = vmatpush1.msra.mxu0 0.0
  %3439 = vmatprep.subr.mxu0 0.0
  %3440 = vmatpush1.msra.mxu0 0.0
  %3441 = vmatprep.subr.mxu0 0.0
  %3442 = vmatpush1.msra.mxu0 0.0
  %3443 = vmatprep.subr.mxu0 0.0
  %3444 = vmatpush1.msra.mxu0 0.0
  %3445 = vmatprep.subr.mxu0 0.0
  %3446 = vmatpush1.msra.mxu0 0.0
  %3447 = vmatprep.subr.mxu0 0.0
  %3448 = vmatpush1.msra.mxu0 0.0
  %3449 = vmatprep.subr.mxu0 0.0
  %3450 = vmatpush1.msra.mxu0 0.0
  %3451 = vmatprep.subr.mxu0 0.0
  %3452 = vmatpush1.msra.mxu0 0.0
  %3453 = vmatprep.subr.mxu0 0.0
  %3454 = vmatpush1.msra.mxu0 0.0
  %3455 = vmatprep.subr.mxu0 0.0
  %3456 = vmatpush1.msra.mxu0 0.0
  %3457 = vmatprep.mubr.f32.mxu0 0.0
  %v3458 = vand.u32 %v2164, 4294901760
  %3459 = vmatmul.mubr.f32.gmra.mrb[0].mxu0 %v3458
  %v3460 = vpop.f32.mrb[0].mxu0
  %v3461 = vadd.f32 %v3374, %v3460
  %v3462 = vpop.f32.mrb[0].mxu0
  %3463 = vdwg.mxu0
  %v3464 = vmul.f32 %v3461, 0.001953125
  %v3465 = vmul.f32 %v2822, %v2822
  %v3466 = vsub.f32 %v3464, %v3465
  %v3467 = vld [vmem:[%s2] sm:$0x1]
  %v3468 = vadd.f32 %v3466, 1e-05
  %v3469 = vrsqrt.pop %v3468
  %v3470 = vmul.f32 %v3467, %v3469
  %v3471 = vld [vmem:[%s3] sm:$0x1]
  %v3472 = vmul.f32 %v2822, %v3470
  %v3473 = vsub.f32 %v3471, %v3472
  %v3475 = vlaneseq
  %v3476 = vshrl.u32 %v3475, 7
  %v3477 = vsub.s32 0, %v3476
  %v3478 = vrot.slane %v3470, %v3477
  %v3480 = vmul.f32 %v2139, %v3478
  %v3481 = vmul.f32 %v2140, %v3478
  %v3482 = vmul.f32 %v2141, %v3478
  %v3483 = vmul.f32 %v2142, %v3478
  %v3485 = vlaneseq
  %v3486 = vshrl.u32 %v3485, 7
  %v3487 = vsub.s32 0, %v3486
  %v3488 = vrot.slane %v3473, %v3487
  %v3490 = vadd.f32 %v3480, %v3488
  %v3491 = vadd.f32 %v3481, %v3488
  %v3492 = vadd.f32 %v3482, %v3488
  %v3493 = vadd.f32 %v3483, %v3488
  %v3494 = vmax.f32 %v3490, 0.0
  %v3495 = vmax.f32 %v3491, 0.0
  %v3496 = vmax.f32 %v3492, 0.0
  %v3497 = vmax.f32 %v3493, 0.0
  %3498 = vst [vmem:[#allocation3] sm:$0x1] 0.0
  %3499 = vst [vmem:[#allocation3 + $0x18] sm:$0x1] 0.0
  %3500 = vst [vmem:[#allocation3 + $0x11] sm:$0x1] 0.0
  %3501 = vst [vmem:[#allocation3 + $0x29] sm:$0x1] 0.0
  %3502 = vst [vmem:[#allocation3 + $0x1] sm:$0xff] %v3494
  %3503 = vst [vmem:[#allocation3 + $0x9] sm:$0xff] %v3495
  %3504 = vst [vmem:[#allocation3 + $0x19] sm:$0xff] %v3496
  %3505 = vst [vmem:[#allocation3 + $0x21] sm:$0xff] %v3497
  %v3506 = vld [vmem:[#allocation3] sm:$0xff]
  %v3507 = vld [vmem:[#allocation3 + $0x8] sm:$0xff]
  %v3508 = vld [vmem:[#allocation3 + $0x10] sm:$0x3]
  %v3509 = vld [vmem:[#allocation3 + $0x18] sm:$0xff]
  %v3510 = vld [vmem:[#allocation3 + $0x20] sm:$0xff]
  %v3511 = vld [vmem:[#allocation3 + $0x28] sm:$0x3]
  %v3512 = vld [vmem:[%s4] sm:$0xff]
  %v3513 = vld [vmem:[%s4 + $0x8] sm:$0xff]
  %v3514 = vld [vmem:[%s4 + $0x10] sm:$0xff]
  %v3515 = vld [vmem:[%s4 + $0x18] sm:$0xff]
  %v3516 = vld [vmem:[%s4 + $0x20] sm:$0xff]
  %v3517 = vld [vmem:[%s4 + $0x28] sm:$0xff]
  %v3518 = vld [vmem:[%s4 + $0x30] sm:$0xff]
  %v3519 = vld [vmem:[%s4 + $0x38] sm:$0xff]
  %v3520 = vld [vmem:[%s4 + $0x40] sm:$0xff]
  %v3521 = vld [vmem:[%s4 + $0x48] sm:$0xff]
  %v3522 = vld [vmem:[%s4 + $0x50] sm:$0xff]
  %v3523 = vld [vmem:[%s4 + $0x58] sm:$0xff]
  %v3524 = vld [vmem:[%s4 + $0x60] sm:$0xff]
  %v3525 = vld [vmem:[%s4 + $0x68] sm:$0xff]
  %v3526 = vld [vmem:[%s4 + $0x70] sm:$0xff]
  %v3527 = vld [vmem:[%s4 + $0x78] sm:$0xff]
  %v3534 = vrot.slane %v3506, 1
  %v3535 = vrot.slane %v3507, 1
  %v3536 = vsel %vm77, %v3534, %v3535
  %v3537 = vrot.slane %v3508, 1
  %v3538 = vsel %vm77, %v3535, %v3537
  %v3539 = vrot.slane %v3509, 1
  %v3540 = vrot.slane %v3510, 1
  %v3541 = vsel %vm77, %v3539, %v3540
  %v3542 = vrot.slane %v3511, 1
  %v3543 = vsel %vm77, %v3540, %v3542
  %s3548 = scalar_lea.vmem %s4, 128
  %v3549 = vld [vmem:[%s3548] sm:$0xff]
  %v3550 = vld [vmem:[%s3548 + $0x8] sm:$0xff]
  %v3551 = vld [vmem:[%s3548 + $0x10] sm:$0xff]
  %v3552 = vld [vmem:[%s3548 + $0x18] sm:$0xff]
  %v3553 = vld [vmem:[%s3548 + $0x20] sm:$0xff]
  %v3554 = vld [vmem:[%s3548 + $0x28] sm:$0xff]
  %v3555 = vld [vmem:[%s3548 + $0x30] sm:$0xff]
  %v3556 = vld [vmem:[%s3548 + $0x38] sm:$0xff]
  %v3557 = vld [vmem:[%s3548 + $0x40] sm:$0xff]
  %v3558 = vld [vmem:[%s3548 + $0x48] sm:$0xff]
  %v3559 = vld [vmem:[%s3548 + $0x50] sm:$0xff]
  %v3560 = vld [vmem:[%s3548 + $0x58] sm:$0xff]
  %v3561 = vld [vmem:[%s3548 + $0x60] sm:$0xff]
  %v3562 = vld [vmem:[%s3548 + $0x68] sm:$0xff]
  %v3563 = vld [vmem:[%s3548 + $0x70] sm:$0xff]
  %v3564 = vld [vmem:[%s3548 + $0x78] sm:$0xff]
  %3565 = vmatprep.subr.mxu0 0.0
  %v3566 = vand.u32 %v3549, 4294901760
  %3567 = vmatpush1.msra.mxu0 %v3566
  %3568 = vmatprep.subr.mxu0 0.0
  %v3569 = vand.u32 %v3550, 4294901760
  %3570 = vmatpush1.msra.mxu0 %v3569
  %3571 = vmatprep.subr.mxu0 0.0
  %v3572 = vand.u32 %v3551, 4294901760
  %3573 = vmatpush1.msra.mxu0 %v3572
  %3574 = vmatprep.subr.mxu0 0.0
  %v3575 = vand.u32 %v3552, 4294901760
  %3576 = vmatpush1.msra.mxu0 %v3575
  %3577 = vmatprep.subr.mxu0 0.0
  %v3578 = vand.u32 %v3553, 4294901760
  %3579 = vmatpush1.msra.mxu0 %v3578
  %3580 = vmatprep.subr.mxu0 0.0
  %v3581 = vand.u32 %v3554, 4294901760
  %3582 = vmatpush1.msra.mxu0 %v3581
  %3583 = vmatprep.subr.mxu0 0.0
  %v3584 = vand.u32 %v3555, 4294901760
  %3585 = vmatpush1.msra.mxu0 %v3584
  %3586 = vmatprep.subr.mxu0 0.0
  %v3587 = vand.u32 %v3556, 4294901760
  %3588 = vmatpush1.msra.mxu0 %v3587
  %3589 = vmatprep.subr.mxu0 0.0
  %v3590 = vand.u32 %v3557, 4294901760
  %3591 = vmatpush1.msra.mxu0 %v3590
  %3592 = vmatprep.subr.mxu0 0.0
  %v3593 = vand.u32 %v3558, 4294901760
  %3594 = vmatpush1.msra.mxu0 %v3593
  %3595 = vmatprep.subr.mxu0 0.0
  %v3596 = vand.u32 %v3559, 4294901760
  %3597 = vmatpush1.msra.mxu0 %v3596
  %3598 = vmatprep.subr.mxu0 0.0
  %v3599 = vand.u32 %v3560, 4294901760
  %3600 = vmatpush1.msra.mxu0 %v3599
  %3601 = vmatprep.subr.mxu0 0.0
  %v3602 = vand.u32 %v3561, 4294901760
  %3603 = vmatpush1.msra.mxu0 %v3602
  %3604 = vmatprep.subr.mxu0 0.0
  %v3605 = vand.u32 %v3562, 4294901760
  %3606 = vmatpush1.msra.mxu0 %v3605
  %3607 = vmatprep.subr.mxu0 0.0
  %v3608 = vand.u32 %v3563, 4294901760
  %3609 = vmatpush1.msra.mxu0 %v3608
  %3610 = vmatprep.subr.mxu0 0.0
  %v3611 = vand.u32 %v3564, 4294901760
  %3612 = vmatpush1.msra.mxu0 %v3611
  %3613 = vmatprep.subr.mxu0 0.0
  %3614 = vmatpush1.msra.mxu0 0.0
  %3615 = vmatprep.subr.mxu0 0.0
  %3616 = vmatpush1.msra.mxu0 0.0
  %3617 = vmatprep.subr.mxu0 0.0
  %3618 = vmatpush1.msra.mxu0 0.0
  %3619 = vmatprep.subr.mxu0 0.0
  %3620 = vmatpush1.msra.mxu0 0.0
  %3621 = vmatprep.subr.mxu0 0.0
  %3622 = vmatpush1.msra.mxu0 0.0
  %3623 = vmatprep.subr.mxu0 0.0
  %3624 = vmatpush1.msra.mxu0 0.0
  %3625 = vmatprep.subr.mxu0 0.0
  %3626 = vmatpush1.msra.mxu0 0.0
  %3627 = vmatprep.subr.mxu0 0.0
  %3628 = vmatpush1.msra.mxu0 0.0
  %3629 = vmatprep.subr.mxu0 0.0
  %3630 = vmatpush1.msra.mxu0 0.0
  %3631 = vmatprep.subr.mxu0 0.0
  %3632 = vmatpush1.msra.mxu0 0.0
  %3633 = vmatprep.subr.mxu0 0.0
  %3634 = vmatpush1.msra.mxu0 0.0
  %3635 = vmatprep.subr.mxu0 0.0
  %3636 = vmatpush1.msra.mxu0 0.0
  %3637 = vmatprep.subr.mxu0 0.0
  %3638 = vmatpush1.msra.mxu0 0.0
  %3639 = vmatprep.subr.mxu0 0.0
  %3640 = vmatpush1.msra.mxu0 0.0
  %3641 = vmatprep.subr.mxu0 0.0
  %3642 = vmatpush1.msra.mxu0 0.0
  %3643 = vmatprep.subr.mxu0 0.0
  %3644 = vmatpush1.msra.mxu0 0.0
  %3645 = vmatprep.mubr.f32.mxu0 0.0
  %v3646 = vand.u32 %v3536, 4294901760
  %v3647 = vsub.f32 %v3536, %v3646
  %v3648 = vand.u32 %v3647, 4294901760
  %v3649 = vsub.f32 %v3647, %v3648
  %v3650 = vand.u32 %v3649, 4294901760
  %3651 = vmatmul.mubr.f32.gmra.mrb[0].mxu0 %v3650
  %v3652 = vpop.f32.mrb[0].mxu0
  %v3653 = vadd.f32 0.0, %v3652
  %v3654 = vpop.f32.mrb[0].mxu0
  %3655 = vmatprep.mubr.f32.mxu0 0.0
  %v3656 = vand.u32 %v3538, 4294901760
  %v3657 = vsub.f32 %v3538, %v3656
  %v3658 = vand.u32 %v3657, 4294901760
  %v3659 = vsub.f32 %v3657, %v3658
  %v3660 = vand.u32 %v3659, 4294901760
  %3661 = vmatmul.mubr.f32.gmra.mrb[0].mxu0 %v3660
  %v3662 = vpop.f32.mrb[0].mxu0
  %v3663 = vadd.f32 0.0, %v3662
  %v3664 = vpop.f32.mrb[0].mxu0
  %3665 = vmatprep.mubr.f32.mxu0 0.0
  %v3666 = vand.u32 %v3541, 4294901760
  %v3667 = vsub.f32 %v3541, %v3666
  %v3668 = vand.u32 %v3667, 4294901760
  %v3669 = vsub.f32 %v3667, %v3668
  %v3670 = vand.u32 %v3669, 4294901760
  %3671 = vmatmul.mubr.f32.gmra.mrb[0].mxu0 %v3670
  %v3672 = vpop.f32.mrb[0].mxu0
  %v3673 = vadd.f32 0.0, %v3672
  %v3674 = vpop.f32.mrb[0].mxu0
  %3675 = vmatprep.mubr.f32.mxu0 0.0
  %v3676 = vand.u32 %v3543, 4294901760
  %v3677 = vsub.f32 %v3543, %v3676
  %v3678 = vand.u32 %v3677, 4294901760
  %v3679 = vsub.f32 %v3677, %v3678
  %v3680 = vand.u32 %v3679, 4294901760
  %3681 = vmatmul.mubr.f32.gmra.mrb[0].mxu0 %v3680
  %v3682 = vpop.f32.mrb[0].mxu0
  %v3683 = vadd.f32 0.0, %v3682
  %v3684 = vpop.f32.mrb[0].mxu0
  %3685 = vdwg.mxu0
  %3686 = vmatprep.subr.mxu0 0.0
  %v3687 = vand.u32 %v3549, 4294901760
  %v3688 = vsub.f32 %v3549, %v3687
  %v3689 = vand.u32 %v3688, 4294901760
  %v3690 = vsub.f32 %v3688, %v3689
  %v3691 = vand.u32 %v3690, 4294901760
  %3692 = vmatpush1.msra.mxu0 %v3691
  %3693 = vmatprep.subr.mxu0 0.0
  %v3694 = vand.u32 %v3550, 4294901760
  %v3695 = vsub.f32 %v3550, %v3694
  %v3696 = vand.u32 %v3695, 4294901760
  %v3697 = vsub.f32 %v3695, %v3696
  %v3698 = vand.u32 %v3697, 4294901760
  %3699 = vmatpush1.msra.mxu0 %v3698
  %3700 = vmatprep.subr.mxu0 0.0
  %v3701 = vand.u32 %v3551, 4294901760
  %v3702 = vsub.f32 %v3551, %v3701
  %v3703 = vand.u32 %v3702, 4294901760
  %v3704 = vsub.f32 %v3702, %v3703
  %v3705 = vand.u32 %v3704, 4294901760
  %3706 = vmatpush1.msra.mxu0 %v3705
  %3707 = vmatprep.subr.mxu0 0.0
  %v3708 = vand.u32 %v3552, 4294901760
  %v3709 = vsub.f32 %v3552, %v3708
  %v3710 = vand.u32 %v3709, 4294901760
  %v3711 = vsub.f32 %v3709, %v3710
  %v3712 = vand.u32 %v3711, 4294901760
  %3713 = vmatpush1.msra.mxu0 %v3712
  %3714 = vmatprep.subr.mxu0 0.0
  %v3715 = vand.u32 %v3553, 4294901760
  %v3716 = vsub.f32 %v3553, %v3715
  %v3717 = vand.u32 %v3716, 4294901760
  %v3718 = vsub.f32 %v3716, %v3717
  %v3719 = vand.u32 %v3718, 4294901760
  %3720 = vmatpush1.msra.mxu0 %v3719
  %3721 = vmatprep.subr.mxu0 0.0
  %v3722 = vand.u32 %v3554, 4294901760
  %v3723 = vsub.f32 %v3554, %v3722
  %v3724 = vand.u32 %v3723, 4294901760
  %v3725 = vsub.f32 %v3723, %v3724
  %v3726 = vand.u32 %v3725, 4294901760
  %3727 = vmatpush1.msra.mxu0 %v3726
  %3728 = vmatprep.subr.mxu0 0.0
  %v3729 = vand.u32 %v3555, 4294901760
  %v3730 = vsub.f32 %v3555, %v3729
  %v3731 = vand.u32 %v3730, 4294901760
  %v3732 = vsub.f32 %v3730, %v3731
  %v3733 = vand.u32 %v3732, 4294901760
  %3734 = vmatpush1.msra.mxu0 %v3733
  %3735 = vmatprep.subr.mxu0 0.0
  %v3736 = vand.u32 %v3556, 4294901760
  %v3737 = vsub.f32 %v3556, %v3736
  %v3738 = vand.u32 %v3737, 4294901760
  %v3739 = vsub.f32 %v3737, %v3738
  %v3740 = vand.u32 %v3739, 4294901760
  %3741 = vmatpush1.msra.mxu0 %v3740
  %3742 = vmatprep.subr.mxu0 0.0
  %v3743 = vand.u32 %v3557, 4294901760
  %v3744 = vsub.f32 %v3557, %v3743
  %v3745 = vand.u32 %v3744, 4294901760
  %v3746 = vsub.f32 %v3744, %v3745
  %v3747 = vand.u32 %v3746, 4294901760
  %3748 = vmatpush1.msra.mxu0 %v3747
  %3749 = vmatprep.subr.mxu0 0.0
  %v3750 = vand.u32 %v3558, 4294901760
  %v3751 = vsub.f32 %v3558, %v3750
  %v3752 = vand.u32 %v3751, 4294901760
  %v3753 = vsub.f32 %v3751, %v3752
  %v3754 = vand.u32 %v3753, 4294901760
  %3755 = vmatpush1.msra.mxu0 %v3754
  %3756 = vmatprep.subr.mxu0 0.0
  %v3757 = vand.u32 %v3559, 4294901760
  %v3758 = vsub.f32 %v3559, %v3757
  %v3759 = vand.u32 %v3758, 4294901760
  %v3760 = vsub.f32 %v3758, %v3759
  %v3761 = vand.u32 %v3760, 4294901760
  %3762 = vmatpush1.msra.mxu0 %v3761
  %3763 = vmatprep.subr.mxu0 0.0
  %v3764 = vand.u32 %v3560, 4294901760
  %v3765 = vsub.f32 %v3560, %v3764
  %v3766 = vand.u32 %v3765, 4294901760
  %v3767 = vsub.f32 %v3765, %v3766
  %v3768 = vand.u32 %v3767, 4294901760
  %3769 = vmatpush1.msra.mxu0 %v3768
  %3770 = vmatprep.subr.mxu0 0.0
  %v3771 = vand.u32 %v3561, 4294901760
  %v3772 = vsub.f32 %v3561, %v3771
  %v3773 = vand.u32 %v3772, 4294901760
  %v3774 = vsub.f32 %v3772, %v3773
  %v3775 = vand.u32 %v3774, 4294901760
  %3776 = vmatpush1.msra.mxu0 %v3775
  %3777 = vmatprep.subr.mxu0 0.0
  %v3778 = vand.u32 %v3562, 4294901760
  %v3779 = vsub.f32 %v3562, %v3778
  %v3780 = vand.u32 %v3779, 4294901760
  %v3781 = vsub.f32 %v3779, %v3780
  %v3782 = vand.u32 %v3781, 4294901760
  %3783 = vmatpush1.msra.mxu0 %v3782
  %3784 = vmatprep.subr.mxu0 0.0
  %v3785 = vand.u32 %v3563, 4294901760
  %v3786 = vsub.f32 %v3563, %v3785
  %v3787 = vand.u32 %v3786, 4294901760
  %v3788 = vsub.f32 %v3786, %v3787
  %v3789 = vand.u32 %v3788, 4294901760
  %3790 = vmatpush1.msra.mxu0 %v3789
  %3791 = vmatprep.subr.mxu0 0.0
  %v3792 = vand.u32 %v3564, 4294901760
  %v3793 = vsub.f32 %v3564, %v3792
  %v3794 = vand.u32 %v3793, 4294901760
  %v3795 = vsub.f32 %v3793, %v3794
  %v3796 = vand.u32 %v3795, 4294901760
  %3797 = vmatpush1.msra.mxu0 %v3796
  %3798 = vmatprep.subr.mxu0 0.0
  %3799 = vmatpush1.msra.mxu0 0.0
  %3800 = vmatprep.subr.mxu0 0.0
  %3801 = vmatpush1.msra.mxu0 0.0
  %3802 = vmatprep.subr.mxu0 0.0
  %3803 = vmatpush1.msra.mxu0 0.0
  %3804 = vmatprep.subr.mxu0 0.0
  %3805 = vmatpush1.msra.mxu0 0.0
  %3806 = vmatprep.subr.mxu0 0.0
  %3807 = vmatpush1.msra.mxu0 0.0
  %3808 = vmatprep.subr.mxu0 0.0
  %3809 = vmatpush1.msra.mxu0 0.0
  %3810 = vmatprep.subr.mxu0 0.0
  %3811 = vmatpush1.msra.mxu0 0.0
  %3812 = vmatprep.subr.mxu0 0.0
  %3813 = vmatpush1.msra.mxu0 0.0
  %3814 = vmatprep.subr.mxu0 0.0
  %3815 = vmatpush1.msra.mxu0 0.0
  %3816 = vmatprep.subr.mxu0 0.0
  %3817 = vmatpush1.msra.mxu0 0.0
  %3818 = vmatprep.subr.mxu0 0.0
  %3819 = vmatpush1.msra.mxu0 0.0
  %3820 = vmatprep.subr.mxu0 0.0
  %3821 = vmatpush1.msra.mxu0 0.0
  %3822 = vmatprep.subr.mxu0 0.0
  %3823 = vmatpush1.msra.mxu0 0.0
  %3824 = vmatprep.subr.mxu0 0.0
  %3825 = vmatpush1.msra.mxu0 0.0
  %3826 = vmatprep.subr.mxu0 0.0
  %3827 = vmatpush1.msra.mxu0 0.0
  %3828 = vmatprep.subr.mxu0 0.0
  %3829 = vmatpush1.msra.mxu0 0.0
  %3830 = vmatprep.mubr.f32.mxu0 0.0
  %v3831 = vand.u32 %v3536, 4294901760
  %3832 = vmatmul.mubr.f32.gmra.mrb[0].mxu0 %v3831
  %v3833 = vpop.f32.mrb[0].mxu0
  %v3834 = vadd.f32 %v3653, %v3833
  %v3835 = vpop.f32.mrb[0].mxu0
  %3836 = vmatprep.mubr.f32.mxu0 0.0
  %v3837 = vand.u32 %v3538, 4294901760
  %3838 = vmatmul.mubr.f32.gmra.mrb[0].mxu0 %v3837
  %v3839 = vpop.f32.mrb[0].mxu0
  %v3840 = vadd.f32 %v3663, %v3839
  %v3841 = vpop.f32.mrb[0].mxu0
  %3842 = vmatprep.mubr.f32.mxu0 0.0
  %v3843 = vand.u32 %v3541, 4294901760
  %3844 = vmatmul.mubr.f32.gmra.mrb[0].mxu0 %v3843
  %v3845 = vpop.f32.mrb[0].mxu0
  %v3846 = vadd.f32 %v3673, %v3845
  %v3847 = vpop.f32.mrb[0].mxu0
  %3848 = vmatprep.mubr.f32.mxu0 0.0
  %v3849 = vand.u32 %v3543, 4294901760
  %3850 = vmatmul.mubr.f32.gmra.mrb[0].mxu0 %v3849
  %v3851 = vpop.f32.mrb[0].mxu0
  %v3852 = vadd.f32 %v3683, %v3851
  %v3853 = vpop.f32.mrb[0].mxu0
  %3854 = vdwg.mxu0
  %3855 = vmatprep.subr.mxu0 0.0
  %v3856 = vand.u32 %v3549, 4294901760
  %v3857 = vsub.f32 %v3549, %v3856
  %3858 = vmatpush1.msra.mxu0 %v3857
  %3859 = vmatprep.subr.mxu0 0.0
  %v3860 = vand.u32 %v3550, 4294901760
  %v3861 = vsub.f32 %v3550, %v3860
  %3862 = vmatpush1.msra.mxu0 %v3861
  %3863 = vmatprep.subr.mxu0 0.0
  %v3864 = vand.u32 %v3551, 4294901760
  %v3865 = vsub.f32 %v3551, %v3864
  %3866 = vmatpush1.msra.mxu0 %v3865
  %3867 = vmatprep.subr.mxu0 0.0
  %v3868 = vand.u32 %v3552, 4294901760
  %v3869 = vsub.f32 %v3552, %v3868
  %3870 = vmatpush1.msra.mxu0 %v3869
  %3871 = vmatprep.subr.mxu0 0.0
  %v3872 = vand.u32 %v3553, 4294901760
  %v3873 = vsub.f32 %v3553, %v3872
  %3874 = vmatpush1.msra.mxu0 %v3873
  %3875 = vmatprep.subr.mxu0 0.0
  %v3876 = vand.u32 %v3554, 4294901760
  %v3877 = vsub.f32 %v3554, %v3876
  %3878 = vmatpush1.msra.mxu0 %v3877
  %3879 = vmatprep.subr.mxu0 0.0
  %v3880 = vand.u32 %v3555, 4294901760
  %v3881 = vsub.f32 %v3555, %v3880
  %3882 = vmatpush1.msra.mxu0 %v3881
  %3883 = vmatprep.subr.mxu0 0.0
  %v3884 = vand.u32 %v3556, 4294901760
  %v3885 = vsub.f32 %v3556, %v3884
  %3886 = vmatpush1.msra.mxu0 %v3885
  %3887 = vmatprep.subr.mxu0 0.0
  %v3888 = vand.u32 %v3557, 4294901760
  %v3889 = vsub.f32 %v3557, %v3888
  %3890 = vmatpush1.msra.mxu0 %v3889
  %3891 = vmatprep.subr.mxu0 0.0
  %v3892 = vand.u32 %v3558, 4294901760
  %v3893 = vsub.f32 %v3558, %v3892
  %3894 = vmatpush1.msra.mxu0 %v3893
  %3895 = vmatprep.subr.mxu0 0.0
  %v3896 = vand.u32 %v3559, 4294901760
  %v3897 = vsub.f32 %v3559, %v3896
  %3898 = vmatpush1.msra.mxu0 %v3897
  %3899 = vmatprep.subr.mxu0 0.0
  %v3900 = vand.u32 %v3560, 4294901760
  %v3901 = vsub.f32 %v3560, %v3900
  %3902 = vmatpush1.msra.mxu0 %v3901
  %3903 = vmatprep.subr.mxu0 0.0
  %v3904 = vand.u32 %v3561, 4294901760
  %v3905 = vsub.f32 %v3561, %v3904
  %3906 = vmatpush1.msra.mxu0 %v3905
  %3907 = vmatprep.subr.mxu0 0.0
  %v3908 = vand.u32 %v3562, 4294901760
  %v3909 = vsub.f32 %v3562, %v3908
  %3910 = vmatpush1.msra.mxu0 %v3909
  %3911 = vmatprep.subr.mxu0 0.0
  %v3912 = vand.u32 %v3563, 4294901760
  %v3913 = vsub.f32 %v3563, %v3912
  %3914 = vmatpush1.msra.mxu0 %v3913
  %3915 = vmatprep.subr.mxu0 0.0
  %v3916 = vand.u32 %v3564, 4294901760
  %v3917 = vsub.f32 %v3564, %v3916
  %3918 = vmatpush1.msra.mxu0 %v3917
  %3919 = vmatprep.subr.mxu0 0.0
  %3920 = vmatpush1.msra.mxu0 0.0
  %3921 = vmatprep.subr.mxu0 0.0
  %3922 = vmatpush1.msra.mxu0 0.0
  %3923 = vmatprep.subr.mxu0 0.0
  %3924 = vmatpush1.msra.mxu0 0.0
  %3925 = vmatprep.subr.mxu0 0.0
  %3926 = vmatpush1.msra.mxu0 0.0
  %3927 = vmatprep.subr.mxu0 0.0
  %3928 = vmatpush1.msra.mxu0 0.0
  %3929 = vmatprep.subr.mxu0 0.0
  %3930 = vmatpush1.msra.mxu0 0.0
  %3931 = vmatprep.subr.mxu0 0.0
  %3932 = vmatpush1.msra.mxu0 0.0
  %3933 = vmatprep.subr.mxu0 0.0
  %3934 = vmatpush1.msra.mxu0 0.0
  %3935 = vmatprep.subr.mxu0 0.0
  %3936 = vmatpush1.msra.mxu0 0.0
  %3937 = vmatprep.subr.mxu0 0.0
  %3938 = vmatpush1.msra.mxu0 0.0
  %3939 = vmatprep.subr.mxu0 0.0
  %3940 = vmatpush1.msra.mxu0 0.0
  %3941 = vmatprep.subr.mxu0 0.0
  %3942 = vmatpush1.msra.mxu0 0.0
  %3943 = vmatprep.subr.mxu0 0.0
  %3944 = vmatpush1.msra.mxu0 0.0
  %3945 = vmatprep.subr.mxu0 0.0
  %3946 = vmatpush1.msra.mxu0 0.0
  %3947 = vmatprep.subr.mxu0 0.0
  %3948 = vmatpush1.msra.mxu0 0.0
  %3949 = vmatprep.subr.mxu0 0.0
  %3950 = vmatpush1.msra.mxu0 0.0
  %3951 = vmatprep.mubr.f32.mxu0 0.0
  %v3952 = vand.u32 %v3536, 4294901760
  %v3953 = vsub.f32 %v3536, %v3952
  %3954 = vmatmul.mubr.f32.gmra.mrb[0].mxu0 %v3953
  %v3955 = vpop.f32.mrb[0].mxu0
  %v3956 = vadd.f32 %v3834, %v3955
  %v3957 = vpop.f32.mrb[0].mxu0
  %3958 = vmatprep.mubr.f32.mxu0 0.0
  %v3959 = vand.u32 %v3538, 4294901760
  %v3960 = vsub.f32 %v3538, %v3959
  %3961 = vmatmul.mubr.f32.gmra.mrb[0].mxu0 %v3960
  %v3962 = vpop.f32.mrb[0].mxu0
  %v3963 = vadd.f32 %v3840, %v3962
  %v3964 = vpop.f32.mrb[0].mxu0
  %3965 = vmatprep.mubr.f32.mxu0 0.0
  %v3966 = vand.u32 %v3541, 4294901760
  %v3967 = vsub.f32 %v3541, %v3966
  %3968 = vmatmul.mubr.f32.gmra.mrb[0].mxu0 %v3967
  %v3969 = vpop.f32.mrb[0].mxu0
  %v3970 = vadd.f32 %v3846, %v3969
  %v3971 = vpop.f32.mrb[0].mxu0
  %3972 = vmatprep.mubr.f32.mxu0 0.0
  %v3973 = vand.u32 %v3543, 4294901760
  %v3974 = vsub.f32 %v3543, %v3973
  %3975 = vmatmul.mubr.f32.gmra.mrb[0].mxu0 %v3974
  %v3976 = vpop.f32.mrb[0].mxu0
  %v3977 = vadd.f32 %v3852, %v3976
  %v3978 = vpop.f32.mrb[0].mxu0
  %3979 = vdwg.mxu0
  %3980 = vmatprep.subr.mxu0 0.0
  %v3981 = vand.u32 %v3549, 4294901760
  %3982 = vmatpush1.msra.mxu0 %v3981
  %3983 = vmatprep.subr.mxu0 0.0
  %v3984 = vand.u32 %v3550, 4294901760
  %3985 = vmatpush1.msra.mxu0 %v3984
  %3986 = vmatprep.subr.mxu0 0.0
  %v3987 = vand.u32 %v3551, 4294901760
  %3988 = vmatpush1.msra.mxu0 %v3987
  %3989 = vmatprep.subr.mxu0 0.0
  %v3990 = vand.u32 %v3552, 4294901760
  %3991 = vmatpush1.msra.mxu0 %v3990
  %3992 = vmatprep.subr.mxu0 0.0
  %v3993 = vand.u32 %v3553, 4294901760
  %3994 = vmatpush1.msra.mxu0 %v3993
  %3995 = vmatprep.subr.mxu0 0.0
  %v3996 = vand.u32 %v3554, 4294901760
  %3997 = vmatpush1.msra.mxu0 %v3996
  %3998 = vmatprep.subr.mxu0 0.0
  %v3999 = vand.u32 %v3555, 4294901760
  %4000 = vmatpush1.msra.mxu0 %v3999
  %4001 = vmatprep.subr.mxu0 0.0
  %v4002 = vand.u32 %v3556, 4294901760
  %4003 = vmatpush1.msra.mxu0 %v4002
  %4004 = vmatprep.subr.mxu0 0.0
  %v4005 = vand.u32 %v3557, 4294901760
  %4006 = vmatpush1.msra.mxu0 %v4005
  %4007 = vmatprep.subr.mxu0 0.0
  %v4008 = vand.u32 %v3558, 4294901760
  %4009 = vmatpush1.msra.mxu0 %v4008
  %4010 = vmatprep.subr.mxu0 0.0
  %v4011 = vand.u32 %v3559, 4294901760
  %4012 = vmatpush1.msra.mxu0 %v4011
  %4013 = vmatprep.subr.mxu0 0.0
  %v4014 = vand.u32 %v3560, 4294901760
  %4015 = vmatpush1.msra.mxu0 %v4014
  %4016 = vmatprep.subr.mxu0 0.0
  %v4017 = vand.u32 %v3561, 4294901760
  %4018 = vmatpush1.msra.mxu0 %v4017
  %4019 = vmatprep.subr.mxu0 0.0
  %v4020 = vand.u32 %v3562, 4294901760
  %4021 = vmatpush1.msra.mxu0 %v4020
  %4022 = vmatprep.subr.mxu0 0.0
  %v4023 = vand.u32 %v3563, 4294901760
  %4024 = vmatpush1.msra.mxu0 %v4023
  %4025 = vmatprep.subr.mxu0 0.0
  %v4026 = vand.u32 %v3564, 4294901760
  %4027 = vmatpush1.msra.mxu0 %v4026
  %4028 = vmatprep.subr.mxu0 0.0
  %4029 = vmatpush1.msra.mxu0 0.0
  %4030 = vmatprep.subr.mxu0 0.0
  %4031 = vmatpush1.msra.mxu0 0.0
  %4032 = vmatprep.subr.mxu0 0.0
  %4033 = vmatpush1.msra.mxu0 0.0
  %4034 = vmatprep.subr.mxu0 0.0
  %4035 = vmatpush1.msra.mxu0 0.0
  %4036 = vmatprep.subr.mxu0 0.0
  %4037 = vmatpush1.msra.mxu0 0.0
  %4038 = vmatprep.subr.mxu0 0.0
  %4039 = vmatpush1.msra.mxu0 0.0
  %4040 = vmatprep.subr.mxu0 0.0
  %4041 = vmatpush1.msra.mxu0 0.0
  %4042 = vmatprep.subr.mxu0 0.0
  %4043 = vmatpush1.msra.mxu0 0.0
  %4044 = vmatprep.subr.mxu0 0.0
  %4045 = vmatpush1.msra.mxu0 0.0
  %4046 = vmatprep.subr.mxu0 0.0
  %4047 = vmatpush1.msra.mxu0 0.0
  %4048 = vmatprep.subr.mxu0 0.0
  %4049 = vmatpush1.msra.mxu0 0.0
  %4050 = vmatprep.subr.mxu0 0.0
  %4051 = vmatpush1.msra.mxu0 0.0
  %4052 = vmatprep.subr.mxu0 0.0
  %4053 = vmatpush1.msra.mxu0 0.0
  %4054 = vmatprep.subr.mxu0 0.0
  %4055 = vmatpush1.msra.mxu0 0.0
  %4056 = vmatprep.subr.mxu0 0.0
  %4057 = vmatpush1.msra.mxu0 0.0
  %4058 = vmatprep.subr.mxu0 0.0
  %4059 = vmatpush1.msra.mxu0 0.0
  %4060 = vmatprep.mubr.f32.mxu0 0.0
  %v4061 = vand.u32 %v3536, 4294901760
  %v4062 = vsub.f32 %v3536, %v4061
  %v4063 = vand.u32 %v4062, 4294901760
  %4064 = vmatmul.mubr.f32.gmra.mrb[0].mxu0 %v4063
  %v4065 = vpop.f32.mrb[0].mxu0
  %v4066 = vadd.f32 %v3956, %v4065
  %v4067 = vpop.f32.mrb[0].mxu0
  %4068 = vmatprep.mubr.f32.mxu0 0.0
  %v4069 = vand.u32 %v3538, 4294901760
  %v4070 = vsub.f32 %v3538, %v4069
  %v4071 = vand.u32 %v4070, 4294901760
  %4072 = vmatmul.mubr.f32.gmra.mrb[0].mxu0 %v4071
  %v4073 = vpop.f32.mrb[0].mxu0
  %v4074 = vadd.f32 %v3963, %v4073
  %v4075 = vpop.f32.mrb[0].mxu0
  %4076 = vmatprep.mubr.f32.mxu0 0.0
  %v4077 = vand.u32 %v3541, 4294901760
  %v4078 = vsub.f32 %v3541, %v4077
  %v4079 = vand.u32 %v4078, 4294901760
  %4080 = vmatmul.mubr.f32.gmra.mrb[0].mxu0 %v4079
  %v4081 = vpop.f32.mrb[0].mxu0
  %v4082 = vadd.f32 %v3970, %v4081
  %v4083 = vpop.f32.mrb[0].mxu0
  %4084 = vmatprep.mubr.f32.mxu0 0.0
  %v4085 = vand.u32 %v3543, 4294901760
  %v4086 = vsub.f32 %v3543, %v4085
  %v4087 = vand.u32 %v4086, 4294901760
  %4088 = vmatmul.mubr.f32.gmra.mrb[0].mxu0 %v4087
  %v4089 = vpop.f32.mrb[0].mxu0
  %v4090 = vadd.f32 %v3977, %v4089
  %v4091 = vpop.f32.mrb[0].mxu0
  %4092 = vdwg.mxu0
  %4093 = vmatprep.subr.mxu0 0.0
  %v4094 = vand.u32 %v3549, 4294901760
  %v4095 = vsub.f32 %v3549, %v4094
  %v4096 = vand.u32 %v4095, 4294901760
  %4097 = vmatpush1.msra.mxu0 %v4096
  %4098 = vmatprep.subr.mxu0 0.0
  %v4099 = vand.u32 %v3550, 4294901760
  %v4100 = vsub.f32 %v3550, %v4099
  %v4101 = vand.u32 %v4100, 4294901760
  %4102 = vmatpush1.msra.mxu0 %v4101
  %4103 = vmatprep.subr.mxu0 0.0
  %v4104 = vand.u32 %v3551, 4294901760
  %v4105 = vsub.f32 %v3551, %v4104
  %v4106 = vand.u32 %v4105, 4294901760
  %4107 = vmatpush1.msra.mxu0 %v4106
  %4108 = vmatprep.subr.mxu0 0.0
  %v4109 = vand.u32 %v3552, 4294901760
  %v4110 = vsub.f32 %v3552, %v4109
  %v4111 = vand.u32 %v4110, 4294901760
  %4112 = vmatpush1.msra.mxu0 %v4111
  %4113 = vmatprep.subr.mxu0 0.0
  %v4114 = vand.u32 %v3553, 4294901760
  %v4115 = vsub.f32 %v3553, %v4114
  %v4116 = vand.u32 %v4115, 4294901760
  %4117 = vmatpush1.msra.mxu0 %v4116
  %4118 = vmatprep.subr.mxu0 0.0
  %v4119 = vand.u32 %v3554, 4294901760
  %v4120 = vsub.f32 %v3554, %v4119
  %v4121 = vand.u32 %v4120, 4294901760
  %4122 = vmatpush1.msra.mxu0 %v4121
  %4123 = vmatprep.subr.mxu0 0.0
  %v4124 = vand.u32 %v3555, 4294901760
  %v4125 = vsub.f32 %v3555, %v4124
  %v4126 = vand.u32 %v4125, 4294901760
  %4127 = vmatpush1.msra.mxu0 %v4126
  %4128 = vmatprep.subr.mxu0 0.0
  %v4129 = vand.u32 %v3556, 4294901760
  %v4130 = vsub.f32 %v3556, %v4129
  %v4131 = vand.u32 %v4130, 4294901760
  %4132 = vmatpush1.msra.mxu0 %v4131
  %4133 = vmatprep.subr.mxu0 0.0
  %v4134 = vand.u32 %v3557, 4294901760
  %v4135 = vsub.f32 %v3557, %v4134
  %v4136 = vand.u32 %v4135, 4294901760
  %4137 = vmatpush1.msra.mxu0 %v4136
  %4138 = vmatprep.subr.mxu0 0.0
  %v4139 = vand.u32 %v3558, 4294901760
  %v4140 = vsub.f32 %v3558, %v4139
  %v4141 = vand.u32 %v4140, 4294901760
  %4142 = vmatpush1.msra.mxu0 %v4141
  %4143 = vmatprep.subr.mxu0 0.0
  %v4144 = vand.u32 %v3559, 4294901760
  %v4145 = vsub.f32 %v3559, %v4144
  %v4146 = vand.u32 %v4145, 4294901760
  %4147 = vmatpush1.msra.mxu0 %v4146
  %4148 = vmatprep.subr.mxu0 0.0
  %v4149 = vand.u32 %v3560, 4294901760
  %v4150 = vsub.f32 %v3560, %v4149
  %v4151 = vand.u32 %v4150, 4294901760
  %4152 = vmatpush1.msra.mxu0 %v4151
  %4153 = vmatprep.subr.mxu0 0.0
  %v4154 = vand.u32 %v3561, 4294901760
  %v4155 = vsub.f32 %v3561, %v4154
  %v4156 = vand.u32 %v4155, 4294901760
  %4157 = vmatpush1.msra.mxu0 %v4156
  %4158 = vmatprep.subr.mxu0 0.0
  %v4159 = vand.u32 %v3562, 4294901760
  %v4160 = vsub.f32 %v3562, %v4159
  %v4161 = vand.u32 %v4160, 4294901760
  %4162 = vmatpush1.msra.mxu0 %v4161
  %4163 = vmatprep.subr.mxu0 0.0
  %v4164 = vand.u32 %v3563, 4294901760
  %v4165 = vsub.f32 %v3563, %v4164
  %v4166 = vand.u32 %v4165, 4294901760
  %4167 = vmatpush1.msra.mxu0 %v4166
  %4168 = vmatprep.subr.mxu0 0.0
  %v4169 = vand.u32 %v3564, 4294901760
  %v4170 = vsub.f32 %v3564, %v4169
  %v4171 = vand.u32 %v4170, 4294901760
  %4172 = vmatpush1.msra.mxu0 %v4171
  %4173 = vmatprep.subr.mxu0 0.0
  %4174 = vmatpush1.msra.mxu0 0.0
  %4175 = vmatprep.subr.mxu0 0.0
  %4176 = vmatpush1.msra.mxu0 0.0
  %4177 = vmatprep.subr.mxu0 0.0
  %4178 = vmatpush1.msra.mxu0 0.0
  %4179 = vmatprep.subr.mxu0 0.0
  %4180 = vmatpush1.msra.mxu0 0.0
  %4181 = vmatprep.subr.mxu0 0.0
  %4182 = vmatpush1.msra.mxu0 0.0
  %4183 = vmatprep.subr.mxu0 0.0
  %4184 = vmatpush1.msra.mxu0 0.0
  %4185 = vmatprep.subr.mxu0 0.0
  %4186 = vmatpush1.msra.mxu0 0.0
  %4187 = vmatprep.subr.mxu0 0.0
  %4188 = vmatpush1.msra.mxu0 0.0
  %4189 = vmatprep.subr.mxu0 0.0
  %4190 = vmatpush1.msra.mxu0 0.0
  %4191 = vmatprep.subr.mxu0 0.0
  %4192 = vmatpush1.msra.mxu0 0.0
  %4193 = vmatprep.subr.mxu0 0.0
  %4194 = vmatpush1.msra.mxu0 0.0
  %4195 = vmatprep.subr.mxu0 0.0
  %4196 = vmatpush1.msra.mxu0 0.0
  %4197 = vmatprep.subr.mxu0 0.0
  %4198 = vmatpush1.msra.mxu0 0.0
  %4199 = vmatprep.subr.mxu0 0.0
  %4200 = vmatpush1.msra.mxu0 0.0
  %4201 = vmatprep.subr.mxu0 0.0
  %4202 = vmatpush1.msra.mxu0 0.0
  %4203 = vmatprep.subr.mxu0 0.0
  %4204 = vmatpush1.msra.mxu0 0.0
  %4205 = vmatprep.mubr.f32.mxu0 0.0
  %v4206 = vand.u32 %v3536, 4294901760
  %4207 = vmatmul.mubr.f32.gmra.mrb[0].mxu0 %v4206
  %v4208 = vpop.f32.mrb[0].mxu0
  %v4209 = vadd.f32 %v4066, %v4208
  %v4210 = vpop.f32.mrb[0].mxu0
  %4211 = vmatprep.mubr.f32.mxu0 0.0
  %v4212 = vand.u32 %v3538, 4294901760
  %4213 = vmatmul.mubr.f32.gmra.mrb[0].mxu0 %v4212
  %v4214 = vpop.f32.mrb[0].mxu0
  %v4215 = vadd.f32 %v4074, %v4214
  %v4216 = vpop.f32.mrb[0].mxu0
  %4217 = vmatprep.mubr.f32.mxu0 0.0
  %v4218 = vand.u32 %v3541, 4294901760
  %4219 = vmatmul.mubr.f32.gmra.mrb[0].mxu0 %v4218
  %v4220 = vpop.f32.mrb[0].mxu0
  %v4221 = vadd.f32 %v4082, %v4220
  %v4222 = vpop.f32.mrb[0].mxu0
  %4223 = vmatprep.mubr.f32.mxu0 0.0
  %v4224 = vand.u32 %v3543, 4294901760
  %4225 = vmatmul.mubr.f32.gmra.mrb[0].mxu0 %v4224
  %v4226 = vpop.f32.mrb[0].mxu0
  %v4227 = vadd.f32 %v4090, %v4226
  %v4228 = vpop.f32.mrb[0].mxu0
  %4229 = vdwg.mxu0
  %4230 = vmatprep.subr.mxu0 0.0
  %v4231 = vand.u32 %v3549, 4294901760
  %4232 = vmatpush1.msra.mxu0 %v4231
  %4233 = vmatprep.subr.mxu0 0.0
  %v4234 = vand.u32 %v3550, 4294901760
  %4235 = vmatpush1.msra.mxu0 %v4234
  %4236 = vmatprep.subr.mxu0 0.0
  %v4237 = vand.u32 %v3551, 4294901760
  %4238 = vmatpush1.msra.mxu0 %v4237
  %4239 = vmatprep.subr.mxu0 0.0
  %v4240 = vand.u32 %v3552, 4294901760
  %4241 = vmatpush1.msra.mxu0 %v4240
  %4242 = vmatprep.subr.mxu0 0.0
  %v4243 = vand.u32 %v3553, 4294901760
  %4244 = vmatpush1.msra.mxu0 %v4243
  %4245 = vmatprep.subr.mxu0 0.0
  %v4246 = vand.u32 %v3554, 4294901760
  %4247 = vmatpush1.msra.mxu0 %v4246
  %4248 = vmatprep.subr.mxu0 0.0
  %v4249 = vand.u32 %v3555, 4294901760
  %4250 = vmatpush1.msra.mxu0 %v4249
  %4251 = vmatprep.subr.mxu0 0.0
  %v4252 = vand.u32 %v3556, 4294901760
  %4253 = vmatpush1.msra.mxu0 %v4252
  %4254 = vmatprep.subr.mxu0 0.0
  %v4255 = vand.u32 %v3557, 4294901760
  %4256 = vmatpush1.msra.mxu0 %v4255
  %4257 = vmatprep.subr.mxu0 0.0
  %v4258 = vand.u32 %v3558, 4294901760
  %4259 = vmatpush1.msra.mxu0 %v4258
  %4260 = vmatprep.subr.mxu0 0.0
  %v4261 = vand.u32 %v3559, 4294901760
  %4262 = vmatpush1.msra.mxu0 %v4261
  %4263 = vmatprep.subr.mxu0 0.0
  %v4264 = vand.u32 %v3560, 4294901760
  %4265 = vmatpush1.msra.mxu0 %v4264
  %4266 = vmatprep.subr.mxu0 0.0
  %v4267 = vand.u32 %v3561, 4294901760
  %4268 = vmatpush1.msra.mxu0 %v4267
  %4269 = vmatprep.subr.mxu0 0.0
  %v4270 = vand.u32 %v3562, 4294901760
  %4271 = vmatpush1.msra.mxu0 %v4270
  %4272 = vmatprep.subr.mxu0 0.0
  %v4273 = vand.u32 %v3563, 4294901760
  %4274 = vmatpush1.msra.mxu0 %v4273
  %4275 = vmatprep.subr.mxu0 0.0
  %v4276 = vand.u32 %v3564, 4294901760
  %4277 = vmatpush1.msra.mxu0 %v4276
  %4278 = vmatprep.subr.mxu0 0.0
  %4279 = vmatpush1.msra.mxu0 0.0
  %4280 = vmatprep.subr.mxu0 0.0
  %4281 = vmatpush1.msra.mxu0 0.0
  %4282 = vmatprep.subr.mxu0 0.0
  %4283 = vmatpush1.msra.mxu0 0.0
  %4284 = vmatprep.subr.mxu0 0.0
  %4285 = vmatpush1.msra.mxu0 0.0
  %4286 = vmatprep.subr.mxu0 0.0
  %4287 = vmatpush1.msra.mxu0 0.0
  %4288 = vmatprep.subr.mxu0 0.0
  %4289 = vmatpush1.msra.mxu0 0.0
  %4290 = vmatprep.subr.mxu0 0.0
  %4291 = vmatpush1.msra.mxu0 0.0
  %4292 = vmatprep.subr.mxu0 0.0
  %4293 = vmatpush1.msra.mxu0 0.0
  %4294 = vmatprep.subr.mxu0 0.0
  %4295 = vmatpush1.msra.mxu0 0.0
  %4296 = vmatprep.subr.mxu0 0.0
  %4297 = vmatpush1.msra.mxu0 0.0
  %4298 = vmatprep.subr.mxu0 0.0
  %4299 = vmatpush1.msra.mxu0 0.0
  %4300 = vmatprep.subr.mxu0 0.0
  %4301 = vmatpush1.msra.mxu0 0.0
  %4302 = vmatprep.subr.mxu0 0.0
  %4303 = vmatpush1.msra.mxu0 0.0
  %4304 = vmatprep.subr.mxu0 0.0
  %4305 = vmatpush1.msra.mxu0 0.0
  %4306 = vmatprep.subr.mxu0 0.0
  %4307 = vmatpush1.msra.mxu0 0.0
  %4308 = vmatprep.subr.mxu0 0.0
  %4309 = vmatpush1.msra.mxu0 0.0
  %4310 = vmatprep.mubr.f32.mxu0 0.0
  %v4311 = vand.u32 %v3536, 4294901760
  %4312 = vmatmul.mubr.f32.gmra.mrb[0].mxu0 %v4311
  %v4313 = vpop.f32.mrb[0].mxu0
  %v4314 = vadd.f32 %v4209, %v4313
  %v4315 = vpop.f32.mrb[0].mxu0
  %4316 = vmatprep.mubr.f32.mxu0 0.0
  %v4317 = vand.u32 %v3538, 4294901760
  %4318 = vmatmul.mubr.f32.gmra.mrb[0].mxu0 %v4317
  %v4319 = vpop.f32.mrb[0].mxu0
  %v4320 = vadd.f32 %v4215, %v4319
  %v4321 = vpop.f32.mrb[0].mxu0
  %4322 = vmatprep.mubr.f32.mxu0 0.0
  %v4323 = vand.u32 %v3541, 4294901760
  %4324 = vmatmul.mubr.f32.gmra.mrb[0].mxu0 %v4323
  %v4325 = vpop.f32.mrb[0].mxu0
  %v4326 = vadd.f32 %v4221, %v4325
  %v4327 = vpop.f32.mrb[0].mxu0
  %4328 = vmatprep.mubr.f32.mxu0 0.0
  %v4329 = vand.u32 %v3543, 4294901760
  %4330 = vmatmul.mubr.f32.gmra.mrb[0].mxu0 %v4329
  %v4331 = vpop.f32.mrb[0].mxu0
  %v4332 = vadd.f32 %v4227, %v4331
  %v4333 = vpop.f32.mrb[0].mxu0
  %4334 = vdwg.mxu0
  %4335 = vmatprep.subr.mxu0 0.0
  %v4336 = vand.u32 %v3512, 4294901760
  %4337 = vmatpush1.msra.mxu0 %v4336
  %4338 = vmatprep.subr.mxu0 0.0
  %v4339 = vand.u32 %v3513, 4294901760
  %4340 = vmatpush1.msra.mxu0 %v4339
  %4341 = vmatprep.subr.mxu0 0.0
  %v4342 = vand.u32 %v3514, 4294901760
  %4343 = vmatpush1.msra.mxu0 %v4342
  %4344 = vmatprep.subr.mxu0 0.0
  %v4345 = vand.u32 %v3515, 4294901760
  %4346 = vmatpush1.msra.mxu0 %v4345
  %4347 = vmatprep.subr.mxu0 0.0
  %v4348 = vand.u32 %v3516, 4294901760
  %4349 = vmatpush1.msra.mxu0 %v4348
  %4350 = vmatprep.subr.mxu0 0.0
  %v4351 = vand.u32 %v3517, 4294901760
  %4352 = vmatpush1.msra.mxu0 %v4351
  %4353 = vmatprep.subr.mxu0 0.0
  %v4354 = vand.u32 %v3518, 4294901760
  %4355 = vmatpush1.msra.mxu0 %v4354
  %4356 = vmatprep.subr.mxu0 0.0
  %v4357 = vand.u32 %v3519, 4294901760
  %4358 = vmatpush1.msra.mxu0 %v4357
  %4359 = vmatprep.subr.mxu0 0.0
  %v4360 = vand.u32 %v3520, 4294901760
  %4361 = vmatpush1.msra.mxu0 %v4360
  %4362 = vmatprep.subr.mxu0 0.0
  %v4363 = vand.u32 %v3521, 4294901760
  %4364 = vmatpush1.msra.mxu0 %v4363
  %4365 = vmatprep.subr.mxu0 0.0
  %v4366 = vand.u32 %v3522, 4294901760
  %4367 = vmatpush1.msra.mxu0 %v4366
  %4368 = vmatprep.subr.mxu0 0.0
  %v4369 = vand.u32 %v3523, 4294901760
  %4370 = vmatpush1.msra.mxu0 %v4369
  %4371 = vmatprep.subr.mxu0 0.0
  %v4372 = vand.u32 %v3524, 4294901760
  %4373 = vmatpush1.msra.mxu0 %v4372
  %4374 = vmatprep.subr.mxu0 0.0
  %v4375 = vand.u32 %v3525, 4294901760
  %4376 = vmatpush1.msra.mxu0 %v4375
  %4377 = vmatprep.subr.mxu0 0.0
  %v4378 = vand.u32 %v3526, 4294901760
  %4379 = vmatpush1.msra.mxu0 %v4378
  %4380 = vmatprep.subr.mxu0 0.0
  %v4381 = vand.u32 %v3527, 4294901760
  %4382 = vmatpush1.msra.mxu0 %v4381
  %4383 = vmatprep.subr.mxu0 0.0
  %4384 = vmatpush1.msra.mxu0 0.0
  %4385 = vmatprep.subr.mxu0 0.0
  %4386 = vmatpush1.msra.mxu0 0.0
  %4387 = vmatprep.subr.mxu0 0.0
  %4388 = vmatpush1.msra.mxu0 0.0
  %4389 = vmatprep.subr.mxu0 0.0
  %4390 = vmatpush1.msra.mxu0 0.0
  %4391 = vmatprep.subr.mxu0 0.0
  %4392 = vmatpush1.msra.mxu0 0.0
  %4393 = vmatprep.subr.mxu0 0.0
  %4394 = vmatpush1.msra.mxu0 0.0
  %4395 = vmatprep.subr.mxu0 0.0
  %4396 = vmatpush1.msra.mxu0 0.0
  %4397 = vmatprep.subr.mxu0 0.0
  %4398 = vmatpush1.msra.mxu0 0.0
  %4399 = vmatprep.subr.mxu0 0.0
  %4400 = vmatpush1.msra.mxu0 0.0
  %4401 = vmatprep.subr.mxu0 0.0
  %4402 = vmatpush1.msra.mxu0 0.0
  %4403 = vmatprep.subr.mxu0 0.0
  %4404 = vmatpush1.msra.mxu0 0.0
  %4405 = vmatprep.subr.mxu0 0.0
  %4406 = vmatpush1.msra.mxu0 0.0
  %4407 = vmatprep.subr.mxu0 0.0
  %4408 = vmatpush1.msra.mxu0 0.0
  %4409 = vmatprep.subr.mxu0 0.0
  %4410 = vmatpush1.msra.mxu0 0.0
  %4411 = vmatprep.subr.mxu0 0.0
  %4412 = vmatpush1.msra.mxu0 0.0
  %4413 = vmatprep.subr.mxu0 0.0
  %4414 = vmatpush1.msra.mxu0 0.0
  %4415 = vmatprep.mubr.f32.mxu0 0.0
  %v4416 = vand.u32 %v3506, 4294901760
  %v4417 = vsub.f32 %v3506, %v4416
  %v4418 = vand.u32 %v4417, 4294901760
  %v4419 = vsub.f32 %v4417, %v4418
  %v4420 = vand.u32 %v4419, 4294901760
  %4421 = vmatmul.mubr.f32.gmra.mrb[0].mxu0 %v4420
  %v4422 = vpop.f32.mrb[0].mxu0
  %v4423 = vadd.f32 %v4314, %v4422
  %v4424 = vpop.f32.mrb[0].mxu0
  %4425 = vmatprep.mubr.f32.mxu0 0.0
  %v4426 = vand.u32 %v3507, 4294901760
  %v4427 = vsub.f32 %v3507, %v4426
  %v4428 = vand.u32 %v4427, 4294901760
  %v4429 = vsub.f32 %v4427, %v4428
  %v4430 = vand.u32 %v4429, 4294901760
  %4431 = vmatmul.mubr.f32.gmra.mrb[0].mxu0 %v4430
  %v4432 = vpop.f32.mrb[0].mxu0
  %v4433 = vadd.f32 %v4320, %v4432
  %v4434 = vpop.f32.mrb[0].mxu0
  %4435 = vmatprep.mubr.f32.mxu0 0.0
  %v4436 = vand.u32 %v3509, 4294901760
  %v4437 = vsub.f32 %v3509, %v4436
  %v4438 = vand.u32 %v4437, 4294901760
  %v4439 = vsub.f32 %v4437, %v4438
  %v4440 = vand.u32 %v4439, 4294901760
  %4441 = vmatmul.mubr.f32.gmra.mrb[0].mxu0 %v4440
  %v4442 = vpop.f32.mrb[0].mxu0
  %v4443 = vadd.f32 %v4326, %v4442
  %v4444 = vpop.f32.mrb[0].mxu0
  %4445 = vmatprep.mubr.f32.mxu0 0.0
  %v4446 = vand.u32 %v3510, 4294901760
  %v4447 = vsub.f32 %v3510, %v4446
  %v4448 = vand.u32 %v4447, 4294901760
  %v4449 = vsub.f32 %v4447, %v4448
  %v4450 = vand.u32 %v4449, 4294901760
  %4451 = vmatmul.mubr.f32.gmra.mrb[0].mxu0 %v4450
  %v4452 = vpop.f32.mrb[0].mxu0
  %v4453 = vadd.f32 %v4332, %v4452
  %v4454 = vpop.f32.mrb[0].mxu0
  %4455 = vdwg.mxu0
  %4456 = vmatprep.subr.mxu0 0.0
  %v4457 = vand.u32 %v3512, 4294901760
  %v4458 = vsub.f32 %v3512, %v4457
  %v4459 = vand.u32 %v4458, 4294901760
  %v4460 = vsub.f32 %v4458, %v4459
  %v4461 = vand.u32 %v4460, 4294901760
  %4462 = vmatpush1.msra.mxu0 %v4461
  %4463 = vmatprep.subr.mxu0 0.0
  %v4464 = vand.u32 %v3513, 4294901760
  %v4465 = vsub.f32 %v3513, %v4464
  %v4466 = vand.u32 %v4465, 4294901760
  %v4467 = vsub.f32 %v4465, %v4466
  %v4468 = vand.u32 %v4467, 4294901760
  %4469 = vmatpush1.msra.mxu0 %v4468
  %4470 = vmatprep.subr.mxu0 0.0
  %v4471 = vand.u32 %v3514, 4294901760
  %v4472 = vsub.f32 %v3514, %v4471
  %v4473 = vand.u32 %v4472, 4294901760
  %v4474 = vsub.f32 %v4472, %v4473
  %v4475 = vand.u32 %v4474, 4294901760
  %4476 = vmatpush1.msra.mxu0 %v4475
  %4477 = vmatprep.subr.mxu0 0.0
  %v4478 = vand.u32 %v3515, 4294901760
  %v4479 = vsub.f32 %v3515, %v4478
  %v4480 = vand.u32 %v4479, 4294901760
  %v4481 = vsub.f32 %v4479, %v4480
  %v4482 = vand.u32 %v4481, 4294901760
  %4483 = vmatpush1.msra.mxu0 %v4482
  %4484 = vmatprep.subr.mxu0 0.0
  %v4485 = vand.u32 %v3516, 4294901760
  %v4486 = vsub.f32 %v3516, %v4485
  %v4487 = vand.u32 %v4486, 4294901760
  %v4488 = vsub.f32 %v4486, %v4487
  %v4489 = vand.u32 %v4488, 4294901760
  %4490 = vmatpush1.msra.mxu0 %v4489
  %4491 = vmatprep.subr.mxu0 0.0
  %v4492 = vand.u32 %v3517, 4294901760
  %v4493 = vsub.f32 %v3517, %v4492
  %v4494 = vand.u32 %v4493, 4294901760
  %v4495 = vsub.f32 %v4493, %v4494
  %v4496 = vand.u32 %v4495, 4294901760
  %4497 = vmatpush1.msra.mxu0 %v4496
  %4498 = vmatprep.subr.mxu0 0.0
  %v4499 = vand.u32 %v3518, 4294901760
  %v4500 = vsub.f32 %v3518, %v4499
  %v4501 = vand.u32 %v4500, 4294901760
  %v4502 = vsub.f32 %v4500, %v4501
  %v4503 = vand.u32 %v4502, 4294901760
  %4504 = vmatpush1.msra.mxu0 %v4503
  %4505 = vmatprep.subr.mxu0 0.0
  %v4506 = vand.u32 %v3519, 4294901760
  %v4507 = vsub.f32 %v3519, %v4506
  %v4508 = vand.u32 %v4507, 4294901760
  %v4509 = vsub.f32 %v4507, %v4508
  %v4510 = vand.u32 %v4509, 4294901760
  %4511 = vmatpush1.msra.mxu0 %v4510
  %4512 = vmatprep.subr.mxu0 0.0
  %v4513 = vand.u32 %v3520, 4294901760
  %v4514 = vsub.f32 %v3520, %v4513
  %v4515 = vand.u32 %v4514, 4294901760
  %v4516 = vsub.f32 %v4514, %v4515
  %v4517 = vand.u32 %v4516, 4294901760
  %4518 = vmatpush1.msra.mxu0 %v4517
  %4519 = vmatprep.subr.mxu0 0.0
  %v4520 = vand.u32 %v3521, 4294901760
  %v4521 = vsub.f32 %v3521, %v4520
  %v4522 = vand.u32 %v4521, 4294901760
  %v4523 = vsub.f32 %v4521, %v4522
  %v4524 = vand.u32 %v4523, 4294901760
  %4525 = vmatpush1.msra.mxu0 %v4524
  %4526 = vmatprep.subr.mxu0 0.0
  %v4527 = vand.u32 %v3522, 4294901760
  %v4528 = vsub.f32 %v3522, %v4527
  %v4529 = vand.u32 %v4528, 4294901760
  %v4530 = vsub.f32 %v4528, %v4529
  %v4531 = vand.u32 %v4530, 4294901760
  %4532 = vmatpush1.msra.mxu0 %v4531
  %4533 = vmatprep.subr.mxu0 0.0
  %v4534 = vand.u32 %v3523, 4294901760
  %v4535 = vsub.f32 %v3523, %v4534
  %v4536 = vand.u32 %v4535, 4294901760
  %v4537 = vsub.f32 %v4535, %v4536
  %v4538 = vand.u32 %v4537, 4294901760
  %4539 = vmatpush1.msra.mxu0 %v4538
  %4540 = vmatprep.subr.mxu0 0.0
  %v4541 = vand.u32 %v3524, 4294901760
  %v4542 = vsub.f32 %v3524, %v4541
  %v4543 = vand.u32 %v4542, 4294901760
  %v4544 = vsub.f32 %v4542, %v4543
  %v4545 = vand.u32 %v4544, 4294901760
  %4546 = vmatpush1.msra.mxu0 %v4545
  %4547 = vmatprep.subr.mxu0 0.0
  %v4548 = vand.u32 %v3525, 4294901760
  %v4549 = vsub.f32 %v3525, %v4548
  %v4550 = vand.u32 %v4549, 4294901760
  %v4551 = vsub.f32 %v4549, %v4550
  %v4552 = vand.u32 %v4551, 4294901760
  %4553 = vmatpush1.msra.mxu0 %v4552
  %4554 = vmatprep.subr.mxu0 0.0
  %v4555 = vand.u32 %v3526, 4294901760
  %v4556 = vsub.f32 %v3526, %v4555
  %v4557 = vand.u32 %v4556, 4294901760
  %v4558 = vsub.f32 %v4556, %v4557
  %v4559 = vand.u32 %v4558, 4294901760
  %4560 = vmatpush1.msra.mxu0 %v4559
  %4561 = vmatprep.subr.mxu0 0.0
  %v4562 = vand.u32 %v3527, 4294901760
  %v4563 = vsub.f32 %v3527, %v4562
  %v4564 = vand.u32 %v4563, 4294901760
  %v4565 = vsub.f32 %v4563, %v4564
  %v4566 = vand.u32 %v4565, 4294901760
  %4567 = vmatpush1.msra.mxu0 %v4566
  %4568 = vmatprep.subr.mxu0 0.0
  %4569 = vmatpush1.msra.mxu0 0.0
  %4570 = vmatprep.subr.mxu0 0.0
  %4571 = vmatpush1.msra.mxu0 0.0
  %4572 = vmatprep.subr.mxu0 0.0
  %4573 = vmatpush1.msra.mxu0 0.0
  %4574 = vmatprep.subr.mxu0 0.0
  %4575 = vmatpush1.msra.mxu0 0.0
  %4576 = vmatprep.subr.mxu0 0.0
  %4577 = vmatpush1.msra.mxu0 0.0
  %4578 = vmatprep.subr.mxu0 0.0
  %4579 = vmatpush1.msra.mxu0 0.0
  %4580 = vmatprep.subr.mxu0 0.0
  %4581 = vmatpush1.msra.mxu0 0.0
  %4582 = vmatprep.subr.mxu0 0.0
  %4583 = vmatpush1.msra.mxu0 0.0
  %4584 = vmatprep.subr.mxu0 0.0
  %4585 = vmatpush1.msra.mxu0 0.0
  %4586 = vmatprep.subr.mxu0 0.0
  %4587 = vmatpush1.msra.mxu0 0.0
  %4588 = vmatprep.subr.mxu0 0.0
  %4589 = vmatpush1.msra.mxu0 0.0
  %4590 = vmatprep.subr.mxu0 0.0
  %4591 = vmatpush1.msra.mxu0 0.0
  %4592 = vmatprep.subr.mxu0 0.0
  %4593 = vmatpush1.msra.mxu0 0.0
  %4594 = vmatprep.subr.mxu0 0.0
  %4595 = vmatpush1.msra.mxu0 0.0
  %4596 = vmatprep.subr.mxu0 0.0
  %4597 = vmatpush1.msra.mxu0 0.0
  %4598 = vmatprep.subr.mxu0 0.0
  %4599 = vmatpush1.msra.mxu0 0.0
  %4600 = vmatprep.mubr.f32.mxu0 0.0
  %v4601 = vand.u32 %v3506, 4294901760
  %4602 = vmatmul.mubr.f32.gmra.mrb[0].mxu0 %v4601
  %v4603 = vpop.f32.mrb[0].mxu0
  %v4604 = vadd.f32 %v4423, %v4603
  %v4605 = vpop.f32.mrb[0].mxu0
  %4606 = vmatprep.mubr.f32.mxu0 0.0
  %v4607 = vand.u32 %v3507, 4294901760
  %4608 = vmatmul.mubr.f32.gmra.mrb[0].mxu0 %v4607
  %v4609 = vpop.f32.mrb[0].mxu0
  %v4610 = vadd.f32 %v4433, %v4609
  %v4611 = vpop.f32.mrb[0].mxu0
  %4612 = vmatprep.mubr.f32.mxu0 0.0
  %v4613 = vand.u32 %v3509, 4294901760
  %4614 = vmatmul.mubr.f32.gmra.mrb[0].mxu0 %v4613
  %v4615 = vpop.f32.mrb[0].mxu0
  %v4616 = vadd.f32 %v4443, %v4615
  %v4617 = vpop.f32.mrb[0].mxu0
  %4618 = vmatprep.mubr.f32.mxu0 0.0
  %v4619 = vand.u32 %v3510, 4294901760
  %4620 = vmatmul.mubr.f32.gmra.mrb[0].mxu0 %v4619
  %v4621 = vpop.f32.mrb[0].mxu0
  %v4622 = vadd.f32 %v4453, %v4621
  %v4623 = vpop.f32.mrb[0].mxu0
  %4624 = vdwg.mxu0
  %4625 = vmatprep.subr.mxu0 0.0
  %v4626 = vand.u32 %v3512, 4294901760
  %v4627 = vsub.f32 %v3512, %v4626
  %4628 = vmatpush1.msra.mxu0 %v4627
  %4629 = vmatprep.subr.mxu0 0.0
  %v4630 = vand.u32 %v3513, 4294901760
  %v4631 = vsub.f32 %v3513, %v4630
  %4632 = vmatpush1.msra.mxu0 %v4631
  %4633 = vmatprep.subr.mxu0 0.0
  %v4634 = vand.u32 %v3514, 4294901760
  %v4635 = vsub.f32 %v3514, %v4634
  %4636 = vmatpush1.msra.mxu0 %v4635
  %4637 = vmatprep.subr.mxu0 0.0
  %v4638 = vand.u32 %v3515, 4294901760
  %v4639 = vsub.f32 %v3515, %v4638
  %4640 = vmatpush1.msra.mxu0 %v4639
  %4641 = vmatprep.subr.mxu0 0.0
  %v4642 = vand.u32 %v3516, 4294901760
  %v4643 = vsub.f32 %v3516, %v4642
  %4644 = vmatpush1.msra.mxu0 %v4643
  %4645 = vmatprep.subr.mxu0 0.0
  %v4646 = vand.u32 %v3517, 4294901760
  %v4647 = vsub.f32 %v3517, %v4646
  %4648 = vmatpush1.msra.mxu0 %v4647
  %4649 = vmatprep.subr.mxu0 0.0
  %v4650 = vand.u32 %v3518, 4294901760
  %v4651 = vsub.f32 %v3518, %v4650
  %4652 = vmatpush1.msra.mxu0 %v4651
  %4653 = vmatprep.subr.mxu0 0.0
  %v4654 = vand.u32 %v3519, 4294901760
  %v4655 = vsub.f32 %v3519, %v4654
  %4656 = vmatpush1.msra.mxu0 %v4655
  %4657 = vmatprep.subr.mxu0 0.0
  %v4658 = vand.u32 %v3520, 4294901760
  %v4659 = vsub.f32 %v3520, %v4658
  %4660 = vmatpush1.msra.mxu0 %v4659
  %4661 = vmatprep.subr.mxu0 0.0
  %v4662 = vand.u32 %v3521, 4294901760
  %v4663 = vsub.f32 %v3521, %v4662
  %4664 = vmatpush1.msra.mxu0 %v4663
  %4665 = vmatprep.subr.mxu0 0.0
  %v4666 = vand.u32 %v3522, 4294901760
  %v4667 = vsub.f32 %v3522, %v4666
  %4668 = vmatpush1.msra.mxu0 %v4667
  %4669 = vmatprep.subr.mxu0 0.0
  %v4670 = vand.u32 %v3523, 4294901760
  %v4671 = vsub.f32 %v3523, %v4670
  %4672 = vmatpush1.msra.mxu0 %v4671
  %4673 = vmatprep.subr.mxu0 0.0
  %v4674 = vand.u32 %v3524, 4294901760
  %v4675 = vsub.f32 %v3524, %v4674
  %4676 = vmatpush1.msra.mxu0 %v4675
  %4677 = vmatprep.subr.mxu0 0.0
  %v4678 = vand.u32 %v3525, 4294901760
  %v4679 = vsub.f32 %v3525, %v4678
  %4680 = vmatpush1.msra.mxu0 %v4679
  %4681 = vmatprep.subr.mxu0 0.0
  %v4682 = vand.u32 %v3526, 4294901760
  %v4683 = vsub.f32 %v3526, %v4682
  %4684 = vmatpush1.msra.mxu0 %v4683
  %4685 = vmatprep.subr.mxu0 0.0
  %v4686 = vand.u32 %v3527, 4294901760
  %v4687 = vsub.f32 %v3527, %v4686
  %4688 = vmatpush1.msra.mxu0 %v4687
  %4689 = vmatprep.subr.mxu0 0.0
  %4690 = vmatpush1.msra.mxu0 0.0
  %4691 = vmatprep.subr.mxu0 0.0
  %4692 = vmatpush1.msra.mxu0 0.0
  %4693 = vmatprep.subr.mxu0 0.0
  %4694 = vmatpush1.msra.mxu0 0.0
  %4695 = vmatprep.subr.mxu0 0.0
  %4696 = vmatpush1.msra.mxu0 0.0
  %4697 = vmatprep.subr.mxu0 0.0
  %4698 = vmatpush1.msra.mxu0 0.0
  %4699 = vmatprep.subr.mxu0 0.0
  %4700 = vmatpush1.msra.mxu0 0.0
  %4701 = vmatprep.subr.mxu0 0.0
  %4702 = vmatpush1.msra.mxu0 0.0
  %4703 = vmatprep.subr.mxu0 0.0
  %4704 = vmatpush1.msra.mxu0 0.0
  %4705 = vmatprep.subr.mxu0 0.0
  %4706 = vmatpush1.msra.mxu0 0.0
  %4707 = vmatprep.subr.mxu0 0.0
  %4708 = vmatpush1.msra.mxu0 0.0
  %4709 = vmatprep.subr.mxu0 0.0
  %4710 = vmatpush1.msra.mxu0 0.0
  %4711 = vmatprep.subr.mxu0 0.0
  %4712 = vmatpush1.msra.mxu0 0.0
  %4713 = vmatprep.subr.mxu0 0.0
  %4714 = vmatpush1.msra.mxu0 0.0
  %4715 = vmatprep.subr.mxu0 0.0
  %4716 = vmatpush1.msra.mxu0 0.0
  %4717 = vmatprep.subr.mxu0 0.0
  %4718 = vmatpush1.msra.mxu0 0.0
  %4719 = vmatprep.subr.mxu0 0.0
  %4720 = vmatpush1.msra.mxu0 0.0
  %4721 = vmatprep.mubr.f32.mxu0 0.0
  %v4722 = vand.u32 %v3506, 4294901760
  %v4723 = vsub.f32 %v3506, %v4722
  %4724 = vmatmul.mubr.f32.gmra.mrb[0].mxu0 %v4723
  %v4725 = vpop.f32.mrb[0].mxu0
  %v4726 = vadd.f32 %v4604, %v4725
  %v4727 = vpop.f32.mrb[0].mxu0
  %4728 = vmatprep.mubr.f32.mxu0 0.0
  %v4729 = vand.u32 %v3507, 4294901760
  %v4730 = vsub.f32 %v3507, %v4729
  %4731 = vmatmul.mubr.f32.gmra.mrb[0].mxu0 %v4730
  %v4732 = vpop.f32.mrb[0].mxu0
  %v4733 = vadd.f32 %v4610, %v4732
  %v4734 = vpop.f32.mrb[0].mxu0
  %4735 = vmatprep.mubr.f32.mxu0 0.0
  %v4736 = vand.u32 %v3509, 4294901760
  %v4737 = vsub.f32 %v3509, %v4736
  %4738 = vmatmul.mubr.f32.gmra.mrb[0].mxu0 %v4737
  %v4739 = vpop.f32.mrb[0].mxu0
  %v4740 = vadd.f32 %v4616, %v4739
  %v4741 = vpop.f32.mrb[0].mxu0
  %4742 = vmatprep.mubr.f32.mxu0 0.0
  %v4743 = vand.u32 %v3510, 4294901760
  %v4744 = vsub.f32 %v3510, %v4743
  %4745 = vmatmul.mubr.f32.gmra.mrb[0].mxu0 %v4744
  %v4746 = vpop.f32.mrb[0].mxu0
  %v4747 = vadd.f32 %v4622, %v4746
  %v4748 = vpop.f32.mrb[0].mxu0
  %4749 = vdwg.mxu0
  %4750 = vmatprep.subr.mxu0 0.0
  %v4751 = vand.u32 %v3512, 4294901760
  %4752 = vmatpush1.msra.mxu0 %v4751
  %4753 = vmatprep.subr.mxu0 0.0
  %v4754 = vand.u32 %v3513, 4294901760
  %4755 = vmatpush1.msra.mxu0 %v4754
  %4756 = vmatprep.subr.mxu0 0.0
  %v4757 = vand.u32 %v3514, 4294901760
  %4758 = vmatpush1.msra.mxu0 %v4757
  %4759 = vmatprep.subr.mxu0 0.0
  %v4760 = vand.u32 %v3515, 4294901760
  %4761 = vmatpush1.msra.mxu0 %v4760
  %4762 = vmatprep.subr.mxu0 0.0
  %v4763 = vand.u32 %v3516, 4294901760
  %4764 = vmatpush1.msra.mxu0 %v4763
  %4765 = vmatprep.subr.mxu0 0.0
  %v4766 = vand.u32 %v3517, 4294901760
  %4767 = vmatpush1.msra.mxu0 %v4766
  %4768 = vmatprep.subr.mxu0 0.0
  %v4769 = vand.u32 %v3518, 4294901760
  %4770 = vmatpush1.msra.mxu0 %v4769
  %4771 = vmatprep.subr.mxu0 0.0
  %v4772 = vand.u32 %v3519, 4294901760
  %4773 = vmatpush1.msra.mxu0 %v4772
  %4774 = vmatprep.subr.mxu0 0.0
  %v4775 = vand.u32 %v3520, 4294901760
  %4776 = vmatpush1.msra.mxu0 %v4775
  %4777 = vmatprep.subr.mxu0 0.0
  %v4778 = vand.u32 %v3521, 4294901760
  %4779 = vmatpush1.msra.mxu0 %v4778
  %4780 = vmatprep.subr.mxu0 0.0
  %v4781 = vand.u32 %v3522, 4294901760
  %4782 = vmatpush1.msra.mxu0 %v4781
  %4783 = vmatprep.subr.mxu0 0.0
  %v4784 = vand.u32 %v3523, 4294901760
  %4785 = vmatpush1.msra.mxu0 %v4784
  %4786 = vmatprep.subr.mxu0 0.0
  %v4787 = vand.u32 %v3524, 4294901760
  %4788 = vmatpush1.msra.mxu0 %v4787
  %4789 = vmatprep.subr.mxu0 0.0
  %v4790 = vand.u32 %v3525, 4294901760
  %4791 = vmatpush1.msra.mxu0 %v4790
  %4792 = vmatprep.subr.mxu0 0.0
  %v4793 = vand.u32 %v3526, 4294901760
  %4794 = vmatpush1.msra.mxu0 %v4793
  %4795 = vmatprep.subr.mxu0 0.0
  %v4796 = vand.u32 %v3527, 4294901760
  %4797 = vmatpush1.msra.mxu0 %v4796
  %4798 = vmatprep.subr.mxu0 0.0
  %4799 = vmatpush1.msra.mxu0 0.0
  %4800 = vmatprep.subr.mxu0 0.0
  %4801 = vmatpush1.msra.mxu0 0.0
  %4802 = vmatprep.subr.mxu0 0.0
  %4803 = vmatpush1.msra.mxu0 0.0
  %4804 = vmatprep.subr.mxu0 0.0
  %4805 = vmatpush1.msra.mxu0 0.0
  %4806 = vmatprep.subr.mxu0 0.0
  %4807 = vmatpush1.msra.mxu0 0.0
  %4808 = vmatprep.subr.mxu0 0.0
  %4809 = vmatpush1.msra.mxu0 0.0
  %4810 = vmatprep.subr.mxu0 0.0
  %4811 = vmatpush1.msra.mxu0 0.0
  %4812 = vmatprep.subr.mxu0 0.0
  %4813 = vmatpush1.msra.mxu0 0.0
  %4814 = vmatprep.subr.mxu0 0.0
  %4815 = vmatpush1.msra.mxu0 0.0
  %4816 = vmatprep.subr.mxu0 0.0
  %4817 = vmatpush1.msra.mxu0 0.0
  %4818 = vmatprep.subr.mxu0 0.0
  %4819 = vmatpush1.msra.mxu0 0.0
  %4820 = vmatprep.subr.mxu0 0.0
  %4821 = vmatpush1.msra.mxu0 0.0
  %4822 = vmatprep.subr.mxu0 0.0
  %4823 = vmatpush1.msra.mxu0 0.0
  %4824 = vmatprep.subr.mxu0 0.0
  %4825 = vmatpush1.msra.mxu0 0.0
  %4826 = vmatprep.subr.mxu0 0.0
  %4827 = vmatpush1.msra.mxu0 0.0
  %4828 = vmatprep.subr.mxu0 0.0
  %4829 = vmatpush1.msra.mxu0 0.0
  %4830 = vmatprep.mubr.f32.mxu0 0.0
  %v4831 = vand.u32 %v3506, 4294901760
  %v4832 = vsub.f32 %v3506, %v4831
  %v4833 = vand.u32 %v4832, 4294901760
  %4834 = vmatmul.mubr.f32.gmra.mrb[0].mxu0 %v4833
  %v4835 = vpop.f32.mrb[0].mxu0
  %v4836 = vadd.f32 %v4726, %v4835
  %v4837 = vpop.f32.mrb[0].mxu0
  %4838 = vmatprep.mubr.f32.mxu0 0.0
  %v4839 = vand.u32 %v3507, 4294901760
  %v4840 = vsub.f32 %v3507, %v4839
  %v4841 = vand.u32 %v4840, 4294901760
  %4842 = vmatmul.mubr.f32.gmra.mrb[0].mxu0 %v4841
  %v4843 = vpop.f32.mrb[0].mxu0
  %v4844 = vadd.f32 %v4733, %v4843
  %v4845 = vpop.f32.mrb[0].mxu0
  %4846 = vmatprep.mubr.f32.mxu0 0.0
  %v4847 = vand.u32 %v3509, 4294901760
  %v4848 = vsub.f32 %v3509, %v4847
  %v4849 = vand.u32 %v4848, 4294901760
  %4850 = vmatmul.mubr.f32.gmra.mrb[0].mxu0 %v4849
  %v4851 = vpop.f32.mrb[0].mxu0
  %v4852 = vadd.f32 %v4740, %v4851
  %v4853 = vpop.f32.mrb[0].mxu0
  %4854 = vmatprep.mubr.f32.mxu0 0.0
  %v4855 = vand.u32 %v3510, 4294901760
  %v4856 = vsub.f32 %v3510, %v4855
  %v4857 = vand.u32 %v4856, 4294901760
  %4858 = vmatmul.mubr.f32.gmra.mrb[0].mxu0 %v4857
  %v4859 = vpop.f32.mrb[0].mxu0
  %v4860 = vadd.f32 %v4747, %v4859
  %v4861 = vpop.f32.mrb[0].mxu0
  %4862 = vdwg.mxu0
  %4863 = vmatprep.subr.mxu0 0.0
  %v4864 = vand.u32 %v3512, 4294901760
  %v4865 = vsub.f32 %v3512, %v4864
  %v4866 = vand.u32 %v4865, 4294901760
  %4867 = vmatpush1.msra.mxu0 %v4866
  %4868 = vmatprep.subr.mxu0 0.0
  %v4869 = vand.u32 %v3513, 4294901760
  %v4870 = vsub.f32 %v3513, %v4869
  %v4871 = vand.u32 %v4870, 4294901760
  %4872 = vmatpush1.msra.mxu0 %v4871
  %4873 = vmatprep.subr.mxu0 0.0
  %v4874 = vand.u32 %v3514, 4294901760
  %v4875 = vsub.f32 %v3514, %v4874
  %v4876 = vand.u32 %v4875, 4294901760
  %4877 = vmatpush1.msra.mxu0 %v4876
  %4878 = vmatprep.subr.mxu0 0.0
  %v4879 = vand.u32 %v3515, 4294901760
  %v4880 = vsub.f32 %v3515, %v4879
  %v4881 = vand.u32 %v4880, 4294901760
  %4882 = vmatpush1.msra.mxu0 %v4881
  %4883 = vmatprep.subr.mxu0 0.0
  %v4884 = vand.u32 %v3516, 4294901760
  %v4885 = vsub.f32 %v3516, %v4884
  %v4886 = vand.u32 %v4885, 4294901760
  %4887 = vmatpush1.msra.mxu0 %v4886
  %4888 = vmatprep.subr.mxu0 0.0
  %v4889 = vand.u32 %v3517, 4294901760
  %v4890 = vsub.f32 %v3517, %v4889
  %v4891 = vand.u32 %v4890, 4294901760
  %4892 = vmatpush1.msra.mxu0 %v4891
  %4893 = vmatprep.subr.mxu0 0.0
  %v4894 = vand.u32 %v3518, 4294901760
  %v4895 = vsub.f32 %v3518, %v4894
  %v4896 = vand.u32 %v4895, 4294901760
  %4897 = vmatpush1.msra.mxu0 %v4896
  %4898 = vmatprep.subr.mxu0 0.0
  %v4899 = vand.u32 %v3519, 4294901760
  %v4900 = vsub.f32 %v3519, %v4899
  %v4901 = vand.u32 %v4900, 4294901760
  %4902 = vmatpush1.msra.mxu0 %v4901
  %4903 = vmatprep.subr.mxu0 0.0
  %v4904 = vand.u32 %v3520, 4294901760
  %v4905 = vsub.f32 %v3520, %v4904
  %v4906 = vand.u32 %v4905, 4294901760
  %4907 = vmatpush1.msra.mxu0 %v4906
  %4908 = vmatprep.subr.mxu0 0.0
  %v4909 = vand.u32 %v3521, 4294901760
  %v4910 = vsub.f32 %v3521, %v4909
  %v4911 = vand.u32 %v4910, 4294901760
  %4912 = vmatpush1.msra.mxu0 %v4911
  %4913 = vmatprep.subr.mxu0 0.0
  %v4914 = vand.u32 %v3522, 4294901760
  %v4915 = vsub.f32 %v3522, %v4914
  %v4916 = vand.u32 %v4915, 4294901760
  %4917 = vmatpush1.msra.mxu0 %v4916
  %4918 = vmatprep.subr.mxu0 0.0
  %v4919 = vand.u32 %v3523, 4294901760
  %v4920 = vsub.f32 %v3523, %v4919
  %v4921 = vand.u32 %v4920, 4294901760
  %4922 = vmatpush1.msra.mxu0 %v4921
  %4923 = vmatprep.subr.mxu0 0.0
  %v4924 = vand.u32 %v3524, 4294901760
  %v4925 = vsub.f32 %v3524, %v4924
  %v4926 = vand.u32 %v4925, 4294901760
  %4927 = vmatpush1.msra.mxu0 %v4926
  %4928 = vmatprep.subr.mxu0 0.0
  %v4929 = vand.u32 %v3525, 4294901760
  %v4930 = vsub.f32 %v3525, %v4929
  %v4931 = vand.u32 %v4930, 4294901760
  %4932 = vmatpush1.msra.mxu0 %v4931
  %4933 = vmatprep.subr.mxu0 0.0
  %v4934 = vand.u32 %v3526, 4294901760
  %v4935 = vsub.f32 %v3526, %v4934
  %v4936 = vand.u32 %v4935, 4294901760
  %4937 = vmatpush1.msra.mxu0 %v4936
  %4938 = vmatprep.subr.mxu0 0.0
  %v4939 = vand.u32 %v3527, 4294901760
  %v4940 = vsub.f32 %v3527, %v4939
  %v4941 = vand.u32 %v4940, 4294901760
  %4942 = vmatpush1.msra.mxu0 %v4941
  %4943 = vmatprep.subr.mxu0 0.0
  %4944 = vmatpush1.msra.mxu0 0.0
  %4945 = vmatprep.subr.mxu0 0.0
  %4946 = vmatpush1.msra.mxu0 0.0
  %4947 = vmatprep.subr.mxu0 0.0
  %4948 = vmatpush1.msra.mxu0 0.0
  %4949 = vmatprep.subr.mxu0 0.0
  %4950 = vmatpush1.msra.mxu0 0.0
  %4951 = vmatprep.subr.mxu0 0.0
  %4952 = vmatpush1.msra.mxu0 0.0
  %4953 = vmatprep.subr.mxu0 0.0
  %4954 = vmatpush1.msra.mxu0 0.0
  %4955 = vmatprep.subr.mxu0 0.0
  %4956 = vmatpush1.msra.mxu0 0.0
  %4957 = vmatprep.subr.mxu0 0.0
  %4958 = vmatpush1.msra.mxu0 0.0
  %4959 = vmatprep.subr.mxu0 0.0
  %4960 = vmatpush1.msra.mxu0 0.0
  %4961 = vmatprep.subr.mxu0 0.0
  %4962 = vmatpush1.msra.mxu0 0.0
  %4963 = vmatprep.subr.mxu0 0.0
  %4964 = vmatpush1.msra.mxu0 0.0
  %4965 = vmatprep.subr.mxu0 0.0
  %4966 = vmatpush1.msra.mxu0 0.0
  %4967 = vmatprep.subr.mxu0 0.0
  %4968 = vmatpush1.msra.mxu0 0.0
  %4969 = vmatprep.subr.mxu0 0.0
  %4970 = vmatpush1.msra.mxu0 0.0
  %4971 = vmatprep.subr.mxu0 0.0
  %4972 = vmatpush1.msra.mxu0 0.0
  %4973 = vmatprep.subr.mxu0 0.0
  %4974 = vmatpush1.msra.mxu0 0.0
  %4975 = vmatprep.mubr.f32.mxu0 0.0
  %v4976 = vand.u32 %v3506, 4294901760
  %4977 = vmatmul.mubr.f32.gmra.mrb[0].mxu0 %v4976
  %v4978 = vpop.f32.mrb[0].mxu0
  %v4979 = vadd.f32 %v4836, %v4978
  %v4980 = vpop.f32.mrb[0].mxu0
  %4981 = vmatprep.mubr.f32.mxu0 0.0
  %v4982 = vand.u32 %v3507, 4294901760
  %4983 = vmatmul.mubr.f32.gmra.mrb[0].mxu0 %v4982
  %v4984 = vpop.f32.mrb[0].mxu0
  %v4985 = vadd.f32 %v4844, %v4984
  %v4986 = vpop.f32.mrb[0].mxu0
  %4987 = vmatprep.mubr.f32.mxu0 0.0
  %v4988 = vand.u32 %v3509, 4294901760
  %4989 = vmatmul.mubr.f32.gmra.mrb[0].mxu0 %v4988
  %v4990 = vpop.f32.mrb[0].mxu0
  %v4991 = vadd.f32 %v4852, %v4990
  %v4992 = vpop.f32.mrb[0].mxu0
  %4993 = vmatprep.mubr.f32.mxu0 0.0
  %v4994 = vand.u32 %v3510, 4294901760
  %4995 = vmatmul.mubr.f32.gmra.mrb[0].mxu0 %v4994
  %v4996 = vpop.f32.mrb[0].mxu0
  %v4997 = vadd.f32 %v4860, %v4996
  %v4998 = vpop.f32.mrb[0].mxu0
  %4999 = vdwg.mxu0
  %5000 = vmatprep.subr.mxu0 0.0
  %v5001 = vand.u32 %v3512, 4294901760
  %5002 = vmatpush1.msra.mxu0 %v5001
  %5003 = vmatprep.subr.mxu0 0.0
  %v5004 = vand.u32 %v3513, 4294901760
  %5005 = vmatpush1.msra.mxu0 %v5004
  %5006 = vmatprep.subr.mxu0 0.0
  %v5007 = vand.u32 %v3514, 4294901760
  %5008 = vmatpush1.msra.mxu0 %v5007
  %5009 = vmatprep.subr.mxu0 0.0
  %v5010 = vand.u32 %v3515, 4294901760
  %5011 = vmatpush1.msra.mxu0 %v5010
  %5012 = vmatprep.subr.mxu0 0.0
  %v5013 = vand.u32 %v3516, 4294901760
  %5014 = vmatpush1.msra.mxu0 %v5013
  %5015 = vmatprep.subr.mxu0 0.0
  %v5016 = vand.u32 %v3517, 4294901760
  %5017 = vmatpush1.msra.mxu0 %v5016
  %5018 = vmatprep.subr.mxu0 0.0
  %v5019 = vand.u32 %v3518, 4294901760
  %5020 = vmatpush1.msra.mxu0 %v5019
  %5021 = vmatprep.subr.mxu0 0.0
  %v5022 = vand.u32 %v3519, 4294901760
  %5023 = vmatpush1.msra.mxu0 %v5022
  %5024 = vmatprep.subr.mxu0 0.0
  %v5025 = vand.u32 %v3520, 4294901760
  %5026 = vmatpush1.msra.mxu0 %v5025
  %5027 = vmatprep.subr.mxu0 0.0
  %v5028 = vand.u32 %v3521, 4294901760
  %5029 = vmatpush1.msra.mxu0 %v5028
  %5030 = vmatprep.subr.mxu0 0.0
  %v5031 = vand.u32 %v3522, 4294901760
  %5032 = vmatpush1.msra.mxu0 %v5031
  %5033 = vmatprep.subr.mxu0 0.0
  %v5034 = vand.u32 %v3523, 4294901760
  %5035 = vmatpush1.msra.mxu0 %v5034
  %5036 = vmatprep.subr.mxu0 0.0
  %v5037 = vand.u32 %v3524, 4294901760
  %5038 = vmatpush1.msra.mxu0 %v5037
  %5039 = vmatprep.subr.mxu0 0.0
  %v5040 = vand.u32 %v3525, 4294901760
  %5041 = vmatpush1.msra.mxu0 %v5040
  %5042 = vmatprep.subr.mxu0 0.0
  %v5043 = vand.u32 %v3526, 4294901760
  %5044 = vmatpush1.msra.mxu0 %v5043
  %5045 = vmatprep.subr.mxu0 0.0
  %v5046 = vand.u32 %v3527, 4294901760
  %5047 = vmatpush1.msra.mxu0 %v5046
  %5048 = vmatprep.subr.mxu0 0.0
  %5049 = vmatpush1.msra.mxu0 0.0
  %5050 = vmatprep.subr.mxu0 0.0
  %5051 = vmatpush1.msra.mxu0 0.0
  %5052 = vmatprep.subr.mxu0 0.0
  %5053 = vmatpush1.msra.mxu0 0.0
  %5054 = vmatprep.subr.mxu0 0.0
  %5055 = vmatpush1.msra.mxu0 0.0
  %5056 = vmatprep.subr.mxu0 0.0
  %5057 = vmatpush1.msra.mxu0 0.0
  %5058 = vmatprep.subr.mxu0 0.0
  %5059 = vmatpush1.msra.mxu0 0.0
  %5060 = vmatprep.subr.mxu0 0.0
  %5061 = vmatpush1.msra.mxu0 0.0
  %5062 = vmatprep.subr.mxu0 0.0
  %5063 = vmatpush1.msra.mxu0 0.0
  %5064 = vmatprep.subr.mxu0 0.0
  %5065 = vmatpush1.msra.mxu0 0.0
  %5066 = vmatprep.subr.mxu0 0.0
  %5067 = vmatpush1.msra.mxu0 0.0
  %5068 = vmatprep.subr.mxu0 0.0
  %5069 = vmatpush1.msra.mxu0 0.0
  %5070 = vmatprep.subr.mxu0 0.0
  %5071 = vmatpush1.msra.mxu0 0.0
  %5072 = vmatprep.subr.mxu0 0.0
  %5073 = vmatpush1.msra.mxu0 0.0
  %5074 = vmatprep.subr.mxu0 0.0
  %5075 = vmatpush1.msra.mxu0 0.0
  %5076 = vmatprep.subr.mxu0 0.0
  %5077 = vmatpush1.msra.mxu0 0.0
  %5078 = vmatprep.subr.mxu0 0.0
  %5079 = vmatpush1.msra.mxu0 0.0
  %5080 = vmatprep.mubr.f32.mxu0 0.0
  %v5081 = vand.u32 %v3506, 4294901760
  %5082 = vmatmul.mubr.f32.gmra.mrb[0].mxu0 %v5081
  %v5083 = vpop.f32.mrb[0].mxu0
  %v5084 = vadd.f32 %v4979, %v5083
  %v5085 = vpop.f32.mrb[0].mxu0
  %5086 = vmatprep.mubr.f32.mxu0 0.0
  %v5087 = vand.u32 %v3507, 4294901760
  %5088 = vmatmul.mubr.f32.gmra.mrb[0].mxu0 %v5087
  %v5089 = vpop.f32.mrb[0].mxu0
  %v5090 = vadd.f32 %v4985, %v5089
  %v5091 = vpop.f32.mrb[0].mxu0
  %5092 = vmatprep.mubr.f32.mxu0 0.0
  %v5093 = vand.u32 %v3509, 4294901760
  %5094 = vmatmul.mubr.f32.gmra.mrb[0].mxu0 %v5093
  %v5095 = vpop.f32.mrb[0].mxu0
  %v5096 = vadd.f32 %v4991, %v5095
  %v5097 = vpop.f32.mrb[0].mxu0
  %5098 = vmatprep.mubr.f32.mxu0 0.0
  %v5099 = vand.u32 %v3510, 4294901760
  %5100 = vmatmul.mubr.f32.gmra.mrb[0].mxu0 %v5099
  %v5101 = vpop.f32.mrb[0].mxu0
  %v5102 = vadd.f32 %v4997, %v5101
  %v5103 = vpop.f32.mrb[0].mxu0
  %5104 = vdwg.mxu0
  %v5105 = vrot.slane %v3506, 2
  %v5106 = vrot.slane %v3507, 2
  %v5107 = vsel %vm1445, %v5105, %v5106
  %v5108 = vrot.slane %v3508, 2
  %v5109 = vsel %vm1445, %v5106, %v5108
  %v5110 = vrot.slane %v3509, 2
  %v5111 = vrot.slane %v3510, 2
  %v5112 = vsel %vm1445, %v5110, %v5111
  %v5113 = vrot.slane %v3511, 2
  %v5114 = vsel %vm1445, %v5111, %v5113
  %s5119 = scalar_lea.vmem %s4, 256
  %v5120 = vld [vmem:[%s5119] sm:$0xff]
  %v5121 = vld [vmem:[%s5119 + $0x8] sm:$0xff]
  %v5122 = vld [vmem:[%s5119 + $0x10] sm:$0xff]
  %v5123 = vld [vmem:[%s5119 + $0x18] sm:$0xff]
  %v5124 = vld [vmem:[%s5119 + $0x20] sm:$0xff]
  %v5125 = vld [vmem:[%s5119 + $0x28] sm:$0xff]
  %v5126 = vld [vmem:[%s5119 + $0x30] sm:$0xff]
  %v5127 = vld [vmem:[%s5119 + $0x38] sm:$0xff]
  %v5128 = vld [vmem:[%s5119 + $0x40] sm:$0xff]
  %v5129 = vld [vmem:[%s5119 + $0x48] sm:$0xff]
  %v5130 = vld [vmem:[%s5119 + $0x50] sm:$0xff]
  %v5131 = vld [vmem:[%s5119 + $0x58] sm:$0xff]
  %v5132 = vld [vmem:[%s5119 + $0x60] sm:$0xff]
  %v5133 = vld [vmem:[%s5119 + $0x68] sm:$0xff]
  %v5134 = vld [vmem:[%s5119 + $0x70] sm:$0xff]
  %v5135 = vld [vmem:[%s5119 + $0x78] sm:$0xff]
  %5136 = vmatprep.subr.mxu0 0.0
  %v5137 = vand.u32 %v5120, 4294901760
  %5138 = vmatpush1.msra.mxu0 %v5137
  %5139 = vmatprep.subr.mxu0 0.0
  %v5140 = vand.u32 %v5121, 4294901760
  %5141 = vmatpush1.msra.mxu0 %v5140
  %5142 = vmatprep.subr.mxu0 0.0
  %v5143 = vand.u32 %v5122, 4294901760
  %5144 = vmatpush1.msra.mxu0 %v5143
  %5145 = vmatprep.subr.mxu0 0.0
  %v5146 = vand.u32 %v5123, 4294901760
  %5147 = vmatpush1.msra.mxu0 %v5146
  %5148 = vmatprep.subr.mxu0 0.0
  %v5149 = vand.u32 %v5124, 4294901760
  %5150 = vmatpush1.msra.mxu0 %v5149
  %5151 = vmatprep.subr.mxu0 0.0
  %v5152 = vand.u32 %v5125, 4294901760
  %5153 = vmatpush1.msra.mxu0 %v5152
  %5154 = vmatprep.subr.mxu0 0.0
  %v5155 = vand.u32 %v5126, 4294901760
  %5156 = vmatpush1.msra.mxu0 %v5155
  %5157 = vmatprep.subr.mxu0 0.0
  %v5158 = vand.u32 %v5127, 4294901760
  %5159 = vmatpush1.msra.mxu0 %v5158
  %5160 = vmatprep.subr.mxu0 0.0
  %v5161 = vand.u32 %v5128, 4294901760
  %5162 = vmatpush1.msra.mxu0 %v5161
  %5163 = vmatprep.subr.mxu0 0.0
  %v5164 = vand.u32 %v5129, 4294901760
  %5165 = vmatpush1.msra.mxu0 %v5164
  %5166 = vmatprep.subr.mxu0 0.0
  %v5167 = vand.u32 %v5130, 4294901760
  %5168 = vmatpush1.msra.mxu0 %v5167
  %5169 = vmatprep.subr.mxu0 0.0
  %v5170 = vand.u32 %v5131, 4294901760
  %5171 = vmatpush1.msra.mxu0 %v5170
  %5172 = vmatprep.subr.mxu0 0.0
  %v5173 = vand.u32 %v5132, 4294901760
  %5174 = vmatpush1.msra.mxu0 %v5173
  %5175 = vmatprep.subr.mxu0 0.0
  %v5176 = vand.u32 %v5133, 4294901760
  %5177 = vmatpush1.msra.mxu0 %v5176
  %5178 = vmatprep.subr.mxu0 0.0
  %v5179 = vand.u32 %v5134, 4294901760
  %5180 = vmatpush1.msra.mxu0 %v5179
  %5181 = vmatprep.subr.mxu0 0.0
  %v5182 = vand.u32 %v5135, 4294901760
  %5183 = vmatpush1.msra.mxu0 %v5182
  %5184 = vmatprep.subr.mxu0 0.0
  %5185 = vmatpush1.msra.mxu0 0.0
  %5186 = vmatprep.subr.mxu0 0.0
  %5187 = vmatpush1.msra.mxu0 0.0
  %5188 = vmatprep.subr.mxu0 0.0
  %5189 = vmatpush1.msra.mxu0 0.0
  %5190 = vmatprep.subr.mxu0 0.0
  %5191 = vmatpush1.msra.mxu0 0.0
  %5192 = vmatprep.subr.mxu0 0.0
  %5193 = vmatpush1.msra.mxu0 0.0
  %5194 = vmatprep.subr.mxu0 0.0
  %5195 = vmatpush1.msra.mxu0 0.0
  %5196 = vmatprep.subr.mxu0 0.0
  %5197 = vmatpush1.msra.mxu0 0.0
  %5198 = vmatprep.subr.mxu0 0.0
  %5199 = vmatpush1.msra.mxu0 0.0
  %5200 = vmatprep.subr.mxu0 0.0
  %5201 = vmatpush1.msra.mxu0 0.0
  %5202 = vmatprep.subr.mxu0 0.0
  %5203 = vmatpush1.msra.mxu0 0.0
  %5204 = vmatprep.subr.mxu0 0.0
  %5205 = vmatpush1.msra.mxu0 0.0
  %5206 = vmatprep.subr.mxu0 0.0
  %5207 = vmatpush1.msra.mxu0 0.0
  %5208 = vmatprep.subr.mxu0 0.0
  %5209 = vmatpush1.msra.mxu0 0.0
  %5210 = vmatprep.subr.mxu0 0.0
  %5211 = vmatpush1.msra.mxu0 0.0
  %5212 = vmatprep.subr.mxu0 0.0
  %5213 = vmatpush1.msra.mxu0 0.0
  %5214 = vmatprep.subr.mxu0 0.0
  %5215 = vmatpush1.msra.mxu0 0.0
  %5216 = vmatprep.mubr.f32.mxu0 0.0
  %v5217 = vand.u32 %v5107, 4294901760
  %v5218 = vsub.f32 %v5107, %v5217
  %v5219 = vand.u32 %v5218, 4294901760
  %v5220 = vsub.f32 %v5218, %v5219
  %v5221 = vand.u32 %v5220, 4294901760
  %5222 = vmatmul.mubr.f32.gmra.mrb[0].mxu0 %v5221
  %v5223 = vpop.f32.mrb[0].mxu0
  %v5224 = vadd.f32 0.0, %v5223
  %v5225 = vpop.f32.mrb[0].mxu0
  %5226 = vmatprep.mubr.f32.mxu0 0.0
  %v5227 = vand.u32 %v5109, 4294901760
  %v5228 = vsub.f32 %v5109, %v5227
  %v5229 = vand.u32 %v5228, 4294901760
  %v5230 = vsub.f32 %v5228, %v5229
  %v5231 = vand.u32 %v5230, 4294901760
  %5232 = vmatmul.mubr.f32.gmra.mrb[0].mxu0 %v5231
  %v5233 = vpop.f32.mrb[0].mxu0
  %v5234 = vadd.f32 0.0, %v5233
  %v5235 = vpop.f32.mrb[0].mxu0
  %5236 = vmatprep.mubr.f32.mxu0 0.0
  %v5237 = vand.u32 %v5112, 4294901760
  %v5238 = vsub.f32 %v5112, %v5237
  %v5239 = vand.u32 %v5238, 4294901760
  %v5240 = vsub.f32 %v5238, %v5239
  %v5241 = vand.u32 %v5240, 4294901760
  %5242 = vmatmul.mubr.f32.gmra.mrb[0].mxu0 %v5241
  %v5243 = vpop.f32.mrb[0].mxu0
  %v5244 = vadd.f32 0.0, %v5243
  %v5245 = vpop.f32.mrb[0].mxu0
  %5246 = vmatprep.mubr.f32.mxu0 0.0
  %v5247 = vand.u32 %v5114, 4294901760
  %v5248 = vsub.f32 %v5114, %v5247
  %v5249 = vand.u32 %v5248, 4294901760
  %v5250 = vsub.f32 %v5248, %v5249
  %v5251 = vand.u32 %v5250, 4294901760
  %5252 = vmatmul.mubr.f32.gmra.mrb[0].mxu0 %v5251
  %v5253 = vpop.f32.mrb[0].mxu0
  %v5254 = vadd.f32 0.0, %v5253
  %v5255 = vpop.f32.mrb[0].mxu0
  %5256 = vdwg.mxu0
  %5257 = vmatprep.subr.mxu0 0.0
  %v5258 = vand.u32 %v5120, 4294901760
  %v5259 = vsub.f32 %v5120, %v5258
  %v5260 = vand.u32 %v5259, 4294901760
  %v5261 = vsub.f32 %v5259, %v5260
  %v5262 = vand.u32 %v5261, 4294901760
  %5263 = vmatpush1.msra.mxu0 %v5262
  %5264 = vmatprep.subr.mxu0 0.0
  %v5265 = vand.u32 %v5121, 4294901760
  %v5266 = vsub.f32 %v5121, %v5265
  %v5267 = vand.u32 %v5266, 4294901760
  %v5268 = vsub.f32 %v5266, %v5267
  %v5269 = vand.u32 %v5268, 4294901760
  %5270 = vmatpush1.msra.mxu0 %v5269
  %5271 = vmatprep.subr.mxu0 0.0
  %v5272 = vand.u32 %v5122, 4294901760
  %v5273 = vsub.f32 %v5122, %v5272
  %v5274 = vand.u32 %v5273, 4294901760
  %v5275 = vsub.f32 %v5273, %v5274
  %v5276 = vand.u32 %v5275, 4294901760
  %5277 = vmatpush1.msra.mxu0 %v5276
  %5278 = vmatprep.subr.mxu0 0.0
  %v5279 = vand.u32 %v5123, 4294901760
  %v5280 = vsub.f32 %v5123, %v5279
  %v5281 = vand.u32 %v5280, 4294901760
  %v5282 = vsub.f32 %v5280, %v5281
  %v5283 = vand.u32 %v5282, 4294901760
  %5284 = vmatpush1.msra.mxu0 %v5283
  %5285 = vmatprep.subr.mxu0 0.0
  %v5286 = vand.u32 %v5124, 4294901760
  %v5287 = vsub.f32 %v5124, %v5286
  %v5288 = vand.u32 %v5287, 4294901760
  %v5289 = vsub.f32 %v5287, %v5288
  %v5290 = vand.u32 %v5289, 4294901760
  %5291 = vmatpush1.msra.mxu0 %v5290
  %5292 = vmatprep.subr.mxu0 0.0
  %v5293 = vand.u32 %v5125, 4294901760
  %v5294 = vsub.f32 %v5125, %v5293
  %v5295 = vand.u32 %v5294, 4294901760
  %v5296 = vsub.f32 %v5294, %v5295
  %v5297 = vand.u32 %v5296, 4294901760
  %5298 = vmatpush1.msra.mxu0 %v5297
  %5299 = vmatprep.subr.mxu0 0.0
  %v5300 = vand.u32 %v5126, 4294901760
  %v5301 = vsub.f32 %v5126, %v5300
  %v5302 = vand.u32 %v5301, 4294901760
  %v5303 = vsub.f32 %v5301, %v5302
  %v5304 = vand.u32 %v5303, 4294901760
  %5305 = vmatpush1.msra.mxu0 %v5304
  %5306 = vmatprep.subr.mxu0 0.0
  %v5307 = vand.u32 %v5127, 4294901760
  %v5308 = vsub.f32 %v5127, %v5307
  %v5309 = vand.u32 %v5308, 4294901760
  %v5310 = vsub.f32 %v5308, %v5309
  %v5311 = vand.u32 %v5310, 4294901760
  %5312 = vmatpush1.msra.mxu0 %v5311
  %5313 = vmatprep.subr.mxu0 0.0
  %v5314 = vand.u32 %v5128, 4294901760
  %v5315 = vsub.f32 %v5128, %v5314
  %v5316 = vand.u32 %v5315, 4294901760
  %v5317 = vsub.f32 %v5315, %v5316
  %v5318 = vand.u32 %v5317, 4294901760
  %5319 = vmatpush1.msra.mxu0 %v5318
  %5320 = vmatprep.subr.mxu0 0.0
  %v5321 = vand.u32 %v5129, 4294901760
  %v5322 = vsub.f32 %v5129, %v5321
  %v5323 = vand.u32 %v5322, 4294901760
  %v5324 = vsub.f32 %v5322, %v5323
  %v5325 = vand.u32 %v5324, 4294901760
  %5326 = vmatpush1.msra.mxu0 %v5325
  %5327 = vmatprep.subr.mxu0 0.0
  %v5328 = vand.u32 %v5130, 4294901760
  %v5329 = vsub.f32 %v5130, %v5328
  %v5330 = vand.u32 %v5329, 4294901760
  %v5331 = vsub.f32 %v5329, %v5330
  %v5332 = vand.u32 %v5331, 4294901760
  %5333 = vmatpush1.msra.mxu0 %v5332
  %5334 = vmatprep.subr.mxu0 0.0
  %v5335 = vand.u32 %v5131, 4294901760
  %v5336 = vsub.f32 %v5131, %v5335
  %v5337 = vand.u32 %v5336, 4294901760
  %v5338 = vsub.f32 %v5336, %v5337
  %v5339 = vand.u32 %v5338, 4294901760
  %5340 = vmatpush1.msra.mxu0 %v5339
  %5341 = vmatprep.subr.mxu0 0.0
  %v5342 = vand.u32 %v5132, 4294901760
  %v5343 = vsub.f32 %v5132, %v5342
  %v5344 = vand.u32 %v5343, 4294901760
  %v5345 = vsub.f32 %v5343, %v5344
  %v5346 = vand.u32 %v5345, 4294901760
  %5347 = vmatpush1.msra.mxu0 %v5346
  %5348 = vmatprep.subr.mxu0 0.0
  %v5349 = vand.u32 %v5133, 4294901760
  %v5350 = vsub.f32 %v5133, %v5349
  %v5351 = vand.u32 %v5350, 4294901760
  %v5352 = vsub.f32 %v5350, %v5351
  %v5353 = vand.u32 %v5352, 4294901760
  %5354 = vmatpush1.msra.mxu0 %v5353
  %5355 = vmatprep.subr.mxu0 0.0
  %v5356 = vand.u32 %v5134, 4294901760
  %v5357 = vsub.f32 %v5134, %v5356
  %v5358 = vand.u32 %v5357, 4294901760
  %v5359 = vsub.f32 %v5357, %v5358
  %v5360 = vand.u32 %v5359, 4294901760
  %5361 = vmatpush1.msra.mxu0 %v5360
  %5362 = vmatprep.subr.mxu0 0.0
  %v5363 = vand.u32 %v5135, 4294901760
  %v5364 = vsub.f32 %v5135, %v5363
  %v5365 = vand.u32 %v5364, 4294901760
  %v5366 = vsub.f32 %v5364, %v5365
  %v5367 = vand.u32 %v5366, 4294901760
  %5368 = vmatpush1.msra.mxu0 %v5367
  %5369 = vmatprep.subr.mxu0 0.0
  %5370 = vmatpush1.msra.mxu0 0.0
  %5371 = vmatprep.subr.mxu0 0.0
  %5372 = vmatpush1.msra.mxu0 0.0
  %5373 = vmatprep.subr.mxu0 0.0
  %5374 = vmatpush1.msra.mxu0 0.0
  %5375 = vmatprep.subr.mxu0 0.0
  %5376 = vmatpush1.msra.mxu0 0.0
  %5377 = vmatprep.subr.mxu0 0.0
  %5378 = vmatpush1.msra.mxu0 0.0
  %5379 = vmatprep.subr.mxu0 0.0
  %5380 = vmatpush1.msra.mxu0 0.0
  %5381 = vmatprep.subr.mxu0 0.0
  %5382 = vmatpush1.msra.mxu0 0.0
  %5383 = vmatprep.subr.mxu0 0.0
  %5384 = vmatpush1.msra.mxu0 0.0
  %5385 = vmatprep.subr.mxu0 0.0
  %5386 = vmatpush1.msra.mxu0 0.0
  %5387 = vmatprep.subr.mxu0 0.0
  %5388 = vmatpush1.msra.mxu0 0.0
  %5389 = vmatprep.subr.mxu0 0.0
  %5390 = vmatpush1.msra.mxu0 0.0
  %5391 = vmatprep.subr.mxu0 0.0
  %5392 = vmatpush1.msra.mxu0 0.0
  %5393 = vmatprep.subr.mxu0 0.0
  %5394 = vmatpush1.msra.mxu0 0.0
  %5395 = vmatprep.subr.mxu0 0.0
  %5396 = vmatpush1.msra.mxu0 0.0
  %5397 = vmatprep.subr.mxu0 0.0
  %5398 = vmatpush1.msra.mxu0 0.0
  %5399 = vmatprep.subr.mxu0 0.0
  %5400 = vmatpush1.msra.mxu0 0.0
  %5401 = vmatprep.mubr.f32.mxu0 0.0
  %v5402 = vand.u32 %v5107, 4294901760
  %5403 = vmatmul.mubr.f32.gmra.mrb[0].mxu0 %v5402
  %v5404 = vpop.f32.mrb[0].mxu0
  %v5405 = vadd.f32 %v5224, %v5404
  %v5406 = vpop.f32.mrb[0].mxu0
  %5407 = vmatprep.mubr.f32.mxu0 0.0
  %v5408 = vand.u32 %v5109, 4294901760
  %5409 = vmatmul.mubr.f32.gmra.mrb[0].mxu0 %v5408
  %v5410 = vpop.f32.mrb[0].mxu0
  %v5411 = vadd.f32 %v5234, %v5410
  %v5412 = vpop.f32.mrb[0].mxu0
  %5413 = vmatprep.mubr.f32.mxu0 0.0
  %v5414 = vand.u32 %v5112, 4294901760
  %5415 = vmatmul.mubr.f32.gmra.mrb[0].mxu0 %v5414
  %v5416 = vpop.f32.mrb[0].mxu0
  %v5417 = vadd.f32 %v5244, %v5416
  %v5418 = vpop.f32.mrb[0].mxu0
  %5419 = vmatprep.mubr.f32.mxu0 0.0
  %v5420 = vand.u32 %v5114, 4294901760
  %5421 = vmatmul.mubr.f32.gmra.mrb[0].mxu0 %v5420
  %v5422 = vpop.f32.mrb[0].mxu0
  %v5423 = vadd.f32 %v5254, %v5422
  %v5424 = vpop.f32.mrb[0].mxu0
  %5425 = vdwg.mxu0
  %5426 = vmatprep.subr.mxu0 0.0
  %v5427 = vand.u32 %v5120, 4294901760
  %v5428 = vsub.f32 %v5120, %v5427
  %5429 = vmatpush1.msra.mxu0 %v5428
  %5430 = vmatprep.subr.mxu0 0.0
  %v5431 = vand.u32 %v5121, 4294901760
  %v5432 = vsub.f32 %v5121, %v5431
  %5433 = vmatpush1.msra.mxu0 %v5432
  %5434 = vmatprep.subr.mxu0 0.0
  %v5435 = vand.u32 %v5122, 4294901760
  %v5436 = vsub.f32 %v5122, %v5435
  %5437 = vmatpush1.msra.mxu0 %v5436
  %5438 = vmatprep.subr.mxu0 0.0
  %v5439 = vand.u32 %v5123, 4294901760
  %v5440 = vsub.f32 %v5123, %v5439
  %5441 = vmatpush1.msra.mxu0 %v5440
  %5442 = vmatprep.subr.mxu0 0.0
  %v5443 = vand.u32 %v5124, 4294901760
  %v5444 = vsub.f32 %v5124, %v5443
  %5445 = vmatpush1.msra.mxu0 %v5444
  %5446 = vmatprep.subr.mxu0 0.0
  %v5447 = vand.u32 %v5125, 4294901760
  %v5448 = vsub.f32 %v5125, %v5447
  %5449 = vmatpush1.msra.mxu0 %v5448
  %5450 = vmatprep.subr.mxu0 0.0
  %v5451 = vand.u32 %v5126, 4294901760
  %v5452 = vsub.f32 %v5126, %v5451
  %5453 = vmatpush1.msra.mxu0 %v5452
  %5454 = vmatprep.subr.mxu0 0.0
  %v5455 = vand.u32 %v5127, 4294901760
  %v5456 = vsub.f32 %v5127, %v5455
  %5457 = vmatpush1.msra.mxu0 %v5456
  %5458 = vmatprep.subr.mxu0 0.0
  %v5459 = vand.u32 %v5128, 4294901760
  %v5460 = vsub.f32 %v5128, %v5459
  %5461 = vmatpush1.msra.mxu0 %v5460
  %5462 = vmatprep.subr.mxu0 0.0
  %v5463 = vand.u32 %v5129, 4294901760
  %v5464 = vsub.f32 %v5129, %v5463
  %5465 = vmatpush1.msra.mxu0 %v5464
  %5466 = vmatprep.subr.mxu0 0.0
  %v5467 = vand.u32 %v5130, 4294901760
  %v5468 = vsub.f32 %v5130, %v5467
  %5469 = vmatpush1.msra.mxu0 %v5468
  %5470 = vmatprep.subr.mxu0 0.0
  %v5471 = vand.u32 %v5131, 4294901760
  %v5472 = vsub.f32 %v5131, %v5471
  %5473 = vmatpush1.msra.mxu0 %v5472
  %5474 = vmatprep.subr.mxu0 0.0
  %v5475 = vand.u32 %v5132, 4294901760
  %v5476 = vsub.f32 %v5132, %v5475
  %5477 = vmatpush1.msra.mxu0 %v5476
  %5478 = vmatprep.subr.mxu0 0.0
  %v5479 = vand.u32 %v5133, 4294901760
  %v5480 = vsub.f32 %v5133, %v5479
  %5481 = vmatpush1.msra.mxu0 %v5480
  %5482 = vmatprep.subr.mxu0 0.0
  %v5483 = vand.u32 %v5134, 4294901760
  %v5484 = vsub.f32 %v5134, %v5483
  %5485 = vmatpush1.msra.mxu0 %v5484
  %5486 = vmatprep.subr.mxu0 0.0
  %v5487 = vand.u32 %v5135, 4294901760
  %v5488 = vsub.f32 %v5135, %v5487
  %5489 = vmatpush1.msra.mxu0 %v5488
  %5490 = vmatprep.subr.mxu0 0.0
  %5491 = vmatpush1.msra.mxu0 0.0
  %5492 = vmatprep.subr.mxu0 0.0
  %5493 = vmatpush1.msra.mxu0 0.0
  %5494 = vmatprep.subr.mxu0 0.0
  %5495 = vmatpush1.msra.mxu0 0.0
  %5496 = vmatprep.subr.mxu0 0.0
  %5497 = vmatpush1.msra.mxu0 0.0
  %5498 = vmatprep.subr.mxu0 0.0
  %5499 = vmatpush1.msra.mxu0 0.0
  %5500 = vmatprep.subr.mxu0 0.0
  %5501 = vmatpush1.msra.mxu0 0.0
  %5502 = vmatprep.subr.mxu0 0.0
  %5503 = vmatpush1.msra.mxu0 0.0
  %5504 = vmatprep.subr.mxu0 0.0
  %5505 = vmatpush1.msra.mxu0 0.0
  %5506 = vmatprep.subr.mxu0 0.0
  %5507 = vmatpush1.msra.mxu0 0.0
  %5508 = vmatprep.subr.mxu0 0.0
  %5509 = vmatpush1.msra.mxu0 0.0
  %5510 = vmatprep.subr.mxu0 0.0
  %5511 = vmatpush1.msra.mxu0 0.0
  %5512 = vmatprep.subr.mxu0 0.0
  %5513 = vmatpush1.msra.mxu0 0.0
  %5514 = vmatprep.subr.mxu0 0.0
  %5515 = vmatpush1.msra.mxu0 0.0
  %5516 = vmatprep.subr.mxu0 0.0
  %5517 = vmatpush1.msra.mxu0 0.0
  %5518 = vmatprep.subr.mxu0 0.0
  %5519 = vmatpush1.msra.mxu0 0.0
  %5520 = vmatprep.subr.mxu0 0.0
  %5521 = vmatpush1.msra.mxu0 0.0
  %5522 = vmatprep.mubr.f32.mxu0 0.0
  %v5523 = vand.u32 %v5107, 4294901760
  %v5524 = vsub.f32 %v5107, %v5523
  %5525 = vmatmul.mubr.f32.gmra.mrb[0].mxu0 %v5524
  %v5526 = vpop.f32.mrb[0].mxu0
  %v5527 = vadd.f32 %v5405, %v5526
  %v5528 = vpop.f32.mrb[0].mxu0
  %5529 = vmatprep.mubr.f32.mxu0 0.0
  %v5530 = vand.u32 %v5109, 4294901760
  %v5531 = vsub.f32 %v5109, %v5530
  %5532 = vmatmul.mubr.f32.gmra.mrb[0].mxu0 %v5531
  %v5533 = vpop.f32.mrb[0].mxu0
  %v5534 = vadd.f32 %v5411, %v5533
  %v5535 = vpop.f32.mrb[0].mxu0
  %5536 = vmatprep.mubr.f32.mxu0 0.0
  %v5537 = vand.u32 %v5112, 4294901760
  %v5538 = vsub.f32 %v5112, %v5537
  %5539 = vmatmul.mubr.f32.gmra.mrb[0].mxu0 %v5538
  %v5540 = vpop.f32.mrb[0].mxu0
  %v5541 = vadd.f32 %v5417, %v5540
  %v5542 = vpop.f32.mrb[0].mxu0
  %5543 = vmatprep.mubr.f32.mxu0 0.0
  %v5544 = vand.u32 %v5114, 4294901760
  %v5545 = vsub.f32 %v5114, %v5544
  %5546 = vmatmul.mubr.f32.gmra.mrb[0].mxu0 %v5545
  %v5547 = vpop.f32.mrb[0].mxu0
  %v5548 = vadd.f32 %v5423, %v5547
  %v5549 = vpop.f32.mrb[0].mxu0
  %5550 = vdwg.mxu0
  %5551 = vmatprep.subr.mxu0 0.0
  %v5552 = vand.u32 %v5120, 4294901760
  %5553 = vmatpush1.msra.mxu0 %v5552
  %5554 = vmatprep.subr.mxu0 0.0
  %v5555 = vand.u32 %v5121, 4294901760
  %5556 = vmatpush1.msra.mxu0 %v5555
  %5557 = vmatprep.subr.mxu0 0.0
  %v5558 = vand.u32 %v5122, 4294901760
  %5559 = vmatpush1.msra.mxu0 %v5558
  %5560 = vmatprep.subr.mxu0 0.0
  %v5561 = vand.u32 %v5123, 4294901760
  %5562 = vmatpush1.msra.mxu0 %v5561
  %5563 = vmatprep.subr.mxu0 0.0
  %v5564 = vand.u32 %v5124, 4294901760
  %5565 = vmatpush1.msra.mxu0 %v5564
  %5566 = vmatprep.subr.mxu0 0.0
  %v5567 = vand.u32 %v5125, 4294901760
  %5568 = vmatpush1.msra.mxu0 %v5567
  %5569 = vmatprep.subr.mxu0 0.0
  %v5570 = vand.u32 %v5126, 4294901760
  %5571 = vmatpush1.msra.mxu0 %v5570
  %5572 = vmatprep.subr.mxu0 0.0
  %v5573 = vand.u32 %v5127, 4294901760
  %5574 = vmatpush1.msra.mxu0 %v5573
  %5575 = vmatprep.subr.mxu0 0.0
  %v5576 = vand.u32 %v5128, 4294901760
  %5577 = vmatpush1.msra.mxu0 %v5576
  %5578 = vmatprep.subr.mxu0 0.0
  %v5579 = vand.u32 %v5129, 4294901760
  %5580 = vmatpush1.msra.mxu0 %v5579
  %5581 = vmatprep.subr.mxu0 0.0
  %v5582 = vand.u32 %v5130, 4294901760
  %5583 = vmatpush1.msra.mxu0 %v5582
  %5584 = vmatprep.subr.mxu0 0.0
  %v5585 = vand.u32 %v5131, 4294901760
  %5586 = vmatpush1.msra.mxu0 %v5585
  %5587 = vmatprep.subr.mxu0 0.0
  %v5588 = vand.u32 %v5132, 4294901760
  %5589 = vmatpush1.msra.mxu0 %v5588
  %5590 = vmatprep.subr.mxu0 0.0
  %v5591 = vand.u32 %v5133, 4294901760
  %5592 = vmatpush1.msra.mxu0 %v5591
  %5593 = vmatprep.subr.mxu0 0.0
  %v5594 = vand.u32 %v5134, 4294901760
  %5595 = vmatpush1.msra.mxu0 %v5594
  %5596 = vmatprep.subr.mxu0 0.0
  %v5597 = vand.u32 %v5135, 4294901760
  %5598 = vmatpush1.msra.mxu0 %v5597
  %5599 = vmatprep.subr.mxu0 0.0
  %5600 = vmatpush1.msra.mxu0 0.0
  %5601 = vmatprep.subr.mxu0 0.0
  %5602 = vmatpush1.msra.mxu0 0.0
  %5603 = vmatprep.subr.mxu0 0.0
  %5604 = vmatpush1.msra.mxu0 0.0
  %5605 = vmatprep.subr.mxu0 0.0
  %5606 = vmatpush1.msra.mxu0 0.0
  %5607 = vmatprep.subr.mxu0 0.0
  %5608 = vmatpush1.msra.mxu0 0.0
  %5609 = vmatprep.subr.mxu0 0.0
  %5610 = vmatpush1.msra.mxu0 0.0
  %5611 = vmatprep.subr.mxu0 0.0
  %5612 = vmatpush1.msra.mxu0 0.0
  %5613 = vmatprep.subr.mxu0 0.0
  %5614 = vmatpush1.msra.mxu0 0.0
  %5615 = vmatprep.subr.mxu0 0.0
  %5616 = vmatpush1.msra.mxu0 0.0
  %5617 = vmatprep.subr.mxu0 0.0
  %5618 = vmatpush1.msra.mxu0 0.0
  %5619 = vmatprep.subr.mxu0 0.0
  %5620 = vmatpush1.msra.mxu0 0.0
  %5621 = vmatprep.subr.mxu0 0.0
  %5622 = vmatpush1.msra.mxu0 0.0
  %5623 = vmatprep.subr.mxu0 0.0
  %5624 = vmatpush1.msra.mxu0 0.0
  %5625 = vmatprep.subr.mxu0 0.0
  %5626 = vmatpush1.msra.mxu0 0.0
  %5627 = vmatprep.subr.mxu0 0.0
  %5628 = vmatpush1.msra.mxu0 0.0
  %5629 = vmatprep.subr.mxu0 0.0
  %5630 = vmatpush1.msra.mxu0 0.0
  %5631 = vmatprep.mubr.f32.mxu0 0.0
  %v5632 = vand.u32 %v5107, 4294901760
  %v5633 = vsub.f32 %v5107, %v5632
  %v5634 = vand.u32 %v5633, 4294901760
  %5635 = vmatmul.mubr.f32.gmra.mrb[0].mxu0 %v5634
  %v5636 = vpop.f32.mrb[0].mxu0
  %v5637 = vadd.f32 %v5527, %v5636
  %v5638 = vpop.f32.mrb[0].mxu0
  %5639 = vmatprep.mubr.f32.mxu0 0.0
  %v5640 = vand.u32 %v5109, 4294901760
  %v5641 = vsub.f32 %v5109, %v5640
  %v5642 = vand.u32 %v5641, 4294901760
  %5643 = vmatmul.mubr.f32.gmra.mrb[0].mxu0 %v5642
  %v5644 = vpop.f32.mrb[0].mxu0
  %v5645 = vadd.f32 %v5534, %v5644
  %v5646 = vpop.f32.mrb[0].mxu0
  %5647 = vmatprep.mubr.f32.mxu0 0.0
  %v5648 = vand.u32 %v5112, 4294901760
  %v5649 = vsub.f32 %v5112, %v5648
  %v5650 = vand.u32 %v5649, 4294901760
  %5651 = vmatmul.mubr.f32.gmra.mrb[0].mxu0 %v5650
  %v5652 = vpop.f32.mrb[0].mxu0
  %v5653 = vadd.f32 %v5541, %v5652
  %v5654 = vpop.f32.mrb[0].mxu0
  %5655 = vmatprep.mubr.f32.mxu0 0.0
  %v5656 = vand.u32 %v5114, 4294901760
  %v5657 = vsub.f32 %v5114, %v5656
  %v5658 = vand.u32 %v5657, 4294901760
  %5659 = vmatmul.mubr.f32.gmra.mrb[0].mxu0 %v5658
  %v5660 = vpop.f32.mrb[0].mxu0
  %v5661 = vadd.f32 %v5548, %v5660
  %v5662 = vpop.f32.mrb[0].mxu0
  %5663 = vdwg.mxu0
  %5664 = vmatprep.subr.mxu0 0.0
  %v5665 = vand.u32 %v5120, 4294901760
  %v5666 = vsub.f32 %v5120, %v5665
  %v5667 = vand.u32 %v5666, 4294901760
  %5668 = vmatpush1.msra.mxu0 %v5667
  %5669 = vmatprep.subr.mxu0 0.0
  %v5670 = vand.u32 %v5121, 4294901760
  %v5671 = vsub.f32 %v5121, %v5670
  %v5672 = vand.u32 %v5671, 4294901760
  %5673 = vmatpush1.msra.mxu0 %v5672
  %5674 = vmatprep.subr.mxu0 0.0
  %v5675 = vand.u32 %v5122, 4294901760
  %v5676 = vsub.f32 %v5122, %v5675
  %v5677 = vand.u32 %v5676, 4294901760
  %5678 = vmatpush1.msra.mxu0 %v5677
  %5679 = vmatprep.subr.mxu0 0.0
  %v5680 = vand.u32 %v5123, 4294901760
  %v5681 = vsub.f32 %v5123, %v5680
  %v5682 = vand.u32 %v5681, 4294901760
  %5683 = vmatpush1.msra.mxu0 %v5682
  %5684 = vmatprep.subr.mxu0 0.0
  %v5685 = vand.u32 %v5124, 4294901760
  %v5686 = vsub.f32 %v5124, %v5685
  %v5687 = vand.u32 %v5686, 4294901760
  %5688 = vmatpush1.msra.mxu0 %v5687
  %5689 = vmatprep.subr.mxu0 0.0
  %v5690 = vand.u32 %v5125, 4294901760
  %v5691 = vsub.f32 %v5125, %v5690
  %v5692 = vand.u32 %v5691, 4294901760
  %5693 = vmatpush1.msra.mxu0 %v5692
  %5694 = vmatprep.subr.mxu0 0.0
  %v5695 = vand.u32 %v5126, 4294901760
  %v5696 = vsub.f32 %v5126, %v5695
  %v5697 = vand.u32 %v5696, 4294901760
  %5698 = vmatpush1.msra.mxu0 %v5697
  %5699 = vmatprep.subr.mxu0 0.0
  %v5700 = vand.u32 %v5127, 4294901760
  %v5701 = vsub.f32 %v5127, %v5700
  %v5702 = vand.u32 %v5701, 4294901760
  %5703 = vmatpush1.msra.mxu0 %v5702
  %5704 = vmatprep.subr.mxu0 0.0
  %v5705 = vand.u32 %v5128, 4294901760
  %v5706 = vsub.f32 %v5128, %v5705
  %v5707 = vand.u32 %v5706, 4294901760
  %5708 = vmatpush1.msra.mxu0 %v5707
  %5709 = vmatprep.subr.mxu0 0.0
  %v5710 = vand.u32 %v5129, 4294901760
  %v5711 = vsub.f32 %v5129, %v5710
  %v5712 = vand.u32 %v5711, 4294901760
  %5713 = vmatpush1.msra.mxu0 %v5712
  %5714 = vmatprep.subr.mxu0 0.0
  %v5715 = vand.u32 %v5130, 4294901760
  %v5716 = vsub.f32 %v5130, %v5715
  %v5717 = vand.u32 %v5716, 4294901760
  %5718 = vmatpush1.msra.mxu0 %v5717
  %5719 = vmatprep.subr.mxu0 0.0
  %v5720 = vand.u32 %v5131, 4294901760
  %v5721 = vsub.f32 %v5131, %v5720
  %v5722 = vand.u32 %v5721, 4294901760
  %5723 = vmatpush1.msra.mxu0 %v5722
  %5724 = vmatprep.subr.mxu0 0.0
  %v5725 = vand.u32 %v5132, 4294901760
  %v5726 = vsub.f32 %v5132, %v5725
  %v5727 = vand.u32 %v5726, 4294901760
  %5728 = vmatpush1.msra.mxu0 %v5727
  %5729 = vmatprep.subr.mxu0 0.0
  %v5730 = vand.u32 %v5133, 4294901760
  %v5731 = vsub.f32 %v5133, %v5730
  %v5732 = vand.u32 %v5731, 4294901760
  %5733 = vmatpush1.msra.mxu0 %v5732
  %5734 = vmatprep.subr.mxu0 0.0
  %v5735 = vand.u32 %v5134, 4294901760
  %v5736 = vsub.f32 %v5134, %v5735
  %v5737 = vand.u32 %v5736, 4294901760
  %5738 = vmatpush1.msra.mxu0 %v5737
  %5739 = vmatprep.subr.mxu0 0.0
  %v5740 = vand.u32 %v5135, 4294901760
  %v5741 = vsub.f32 %v5135, %v5740
  %v5742 = vand.u32 %v5741, 4294901760
  %5743 = vmatpush1.msra.mxu0 %v5742
  %5744 = vmatprep.subr.mxu0 0.0
  %5745 = vmatpush1.msra.mxu0 0.0
  %5746 = vmatprep.subr.mxu0 0.0
  %5747 = vmatpush1.msra.mxu0 0.0
  %5748 = vmatprep.subr.mxu0 0.0
  %5749 = vmatpush1.msra.mxu0 0.0
  %5750 = vmatprep.subr.mxu0 0.0
  %5751 = vmatpush1.msra.mxu0 0.0
  %5752 = vmatprep.subr.mxu0 0.0
  %5753 = vmatpush1.msra.mxu0 0.0
  %5754 = vmatprep.subr.mxu0 0.0
  %5755 = vmatpush1.msra.mxu0 0.0
  %5756 = vmatprep.subr.mxu0 0.0
  %5757 = vmatpush1.msra.mxu0 0.0
  %5758 = vmatprep.subr.mxu0 0.0
  %5759 = vmatpush1.msra.mxu0 0.0
  %5760 = vmatprep.subr.mxu0 0.0
  %5761 = vmatpush1.msra.mxu0 0.0
  %5762 = vmatprep.subr.mxu0 0.0
  %5763 = vmatpush1.msra.mxu0 0.0
  %5764 = vmatprep.subr.mxu0 0.0
  %5765 = vmatpush1.msra.mxu0 0.0
  %5766 = vmatprep.subr.mxu0 0.0
  %5767 = vmatpush1.msra.mxu0 0.0
  %5768 = vmatprep.subr.mxu0 0.0
  %5769 = vmatpush1.msra.mxu0 0.0
  %5770 = vmatprep.subr.mxu0 0.0
  %5771 = vmatpush1.msra.mxu0 0.0
  %5772 = vmatprep.subr.mxu0 0.0
  %5773 = vmatpush1.msra.mxu0 0.0
  %5774 = vmatprep.subr.mxu0 0.0
  %5775 = vmatpush1.msra.mxu0 0.0
  %5776 = vmatprep.mubr.f32.mxu0 0.0
  %v5777 = vand.u32 %v5107, 4294901760
  %5778 = vmatmul.mubr.f32.gmra.mrb[0].mxu0 %v5777
  %v5779 = vpop.f32.mrb[0].mxu0
  %v5780 = vadd.f32 %v5637, %v5779
  %v5781 = vpop.f32.mrb[0].mxu0
  %5782 = vmatprep.mubr.f32.mxu0 0.0
  %v5783 = vand.u32 %v5109, 4294901760
  %5784 = vmatmul.mubr.f32.gmra.mrb[0].mxu0 %v5783
  %v5785 = vpop.f32.mrb[0].mxu0
  %v5786 = vadd.f32 %v5645, %v5785
  %v5787 = vpop.f32.mrb[0].mxu0
  %5788 = vmatprep.mubr.f32.mxu0 0.0
  %v5789 = vand.u32 %v5112, 4294901760
  %5790 = vmatmul.mubr.f32.gmra.mrb[0].mxu0 %v5789
  %v5791 = vpop.f32.mrb[0].mxu0
  %v5792 = vadd.f32 %v5653, %v5791
  %v5793 = vpop.f32.mrb[0].mxu0
  %5794 = vmatprep.mubr.f32.mxu0 0.0
  %v5795 = vand.u32 %v5114, 4294901760
  %5796 = vmatmul.mubr.f32.gmra.mrb[0].mxu0 %v5795
  %v5797 = vpop.f32.mrb[0].mxu0
  %v5798 = vadd.f32 %v5661, %v5797
  %v5799 = vpop.f32.mrb[0].mxu0
  %5800 = vdwg.mxu0
  %5801 = vmatprep.subr.mxu0 0.0
  %v5802 = vand.u32 %v5120, 4294901760
  %5803 = vmatpush1.msra.mxu0 %v5802
  %5804 = vmatprep.subr.mxu0 0.0
  %v5805 = vand.u32 %v5121, 4294901760
  %5806 = vmatpush1.msra.mxu0 %v5805
  %5807 = vmatprep.subr.mxu0 0.0
  %v5808 = vand.u32 %v5122, 4294901760
  %5809 = vmatpush1.msra.mxu0 %v5808
  %5810 = vmatprep.subr.mxu0 0.0
  %v5811 = vand.u32 %v5123, 4294901760
  %5812 = vmatpush1.msra.mxu0 %v5811
  %5813 = vmatprep.subr.mxu0 0.0
  %v5814 = vand.u32 %v5124, 4294901760
  %5815 = vmatpush1.msra.mxu0 %v5814
  %5816 = vmatprep.subr.mxu0 0.0
  %v5817 = vand.u32 %v5125, 4294901760
  %5818 = vmatpush1.msra.mxu0 %v5817
  %5819 = vmatprep.subr.mxu0 0.0
  %v5820 = vand.u32 %v5126, 4294901760
  %5821 = vmatpush1.msra.mxu0 %v5820
  %5822 = vmatprep.subr.mxu0 0.0
  %v5823 = vand.u32 %v5127, 4294901760
  %5824 = vmatpush1.msra.mxu0 %v5823
  %5825 = vmatprep.subr.mxu0 0.0
  %v5826 = vand.u32 %v5128, 4294901760
  %5827 = vmatpush1.msra.mxu0 %v5826
  %5828 = vmatprep.subr.mxu0 0.0
  %v5829 = vand.u32 %v5129, 4294901760
  %5830 = vmatpush1.msra.mxu0 %v5829
  %5831 = vmatprep.subr.mxu0 0.0
  %v5832 = vand.u32 %v5130, 4294901760
  %5833 = vmatpush1.msra.mxu0 %v5832
  %5834 = vmatprep.subr.mxu0 0.0
  %v5835 = vand.u32 %v5131, 4294901760
  %5836 = vmatpush1.msra.mxu0 %v5835
  %5837 = vmatprep.subr.mxu0 0.0
  %v5838 = vand.u32 %v5132, 4294901760
  %5839 = vmatpush1.msra.mxu0 %v5838
  %5840 = vmatprep.subr.mxu0 0.0
  %v5841 = vand.u32 %v5133, 4294901760
  %5842 = vmatpush1.msra.mxu0 %v5841
  %5843 = vmatprep.subr.mxu0 0.0
  %v5844 = vand.u32 %v5134, 4294901760
  %5845 = vmatpush1.msra.mxu0 %v5844
  %5846 = vmatprep.subr.mxu0 0.0
  %v5847 = vand.u32 %v5135, 4294901760
  %5848 = vmatpush1.msra.mxu0 %v5847
  %5849 = vmatprep.subr.mxu0 0.0
  %5850 = vmatpush1.msra.mxu0 0.0
  %5851 = vmatprep.subr.mxu0 0.0
  %5852 = vmatpush1.msra.mxu0 0.0
  %5853 = vmatprep.subr.mxu0 0.0
  %5854 = vmatpush1.msra.mxu0 0.0
  %5855 = vmatprep.subr.mxu0 0.0
  %5856 = vmatpush1.msra.mxu0 0.0
  %5857 = vmatprep.subr.mxu0 0.0
  %5858 = vmatpush1.msra.mxu0 0.0
  %5859 = vmatprep.subr.mxu0 0.0
  %5860 = vmatpush1.msra.mxu0 0.0
  %5861 = vmatprep.subr.mxu0 0.0
  %5862 = vmatpush1.msra.mxu0 0.0
  %5863 = vmatprep.subr.mxu0 0.0
  %5864 = vmatpush1.msra.mxu0 0.0
  %5865 = vmatprep.subr.mxu0 0.0
  %5866 = vmatpush1.msra.mxu0 0.0
  %5867 = vmatprep.subr.mxu0 0.0
  %5868 = vmatpush1.msra.mxu0 0.0
  %5869 = vmatprep.subr.mxu0 0.0
  %5870 = vmatpush1.msra.mxu0 0.0
  %5871 = vmatprep.subr.mxu0 0.0
  %5872 = vmatpush1.msra.mxu0 0.0
  %5873 = vmatprep.subr.mxu0 0.0
  %5874 = vmatpush1.msra.mxu0 0.0
  %5875 = vmatprep.subr.mxu0 0.0
  %5876 = vmatpush1.msra.mxu0 0.0
  %5877 = vmatprep.subr.mxu0 0.0
  %5878 = vmatpush1.msra.mxu0 0.0
  %5879 = vmatprep.subr.mxu0 0.0
  %5880 = vmatpush1.msra.mxu0 0.0
  %5881 = vmatprep.mubr.f32.mxu0 0.0
  %v5882 = vand.u32 %v5107, 4294901760
  %5883 = vmatmul.mubr.f32.gmra.mrb[0].mxu0 %v5882
  %v5884 = vpop.f32.mrb[0].mxu0
  %v5885 = vadd.f32 %v5780, %v5884
  %v5886 = vpop.f32.mrb[0].mxu0
  %5887 = vmatprep.mubr.f32.mxu0 0.0
  %v5888 = vand.u32 %v5109, 4294901760
  %5889 = vmatmul.mubr.f32.gmra.mrb[0].mxu0 %v5888
  %v5890 = vpop.f32.mrb[0].mxu0
  %v5891 = vadd.f32 %v5786, %v5890
  %v5892 = vpop.f32.mrb[0].mxu0
  %5893 = vmatprep.mubr.f32.mxu0 0.0
  %v5894 = vand.u32 %v5112, 4294901760
  %5895 = vmatmul.mubr.f32.gmra.mrb[0].mxu0 %v5894
  %v5896 = vpop.f32.mrb[0].mxu0
  %v5897 = vadd.f32 %v5792, %v5896
  %v5898 = vpop.f32.mrb[0].mxu0
  %5899 = vmatprep.mubr.f32.mxu0 0.0
  %v5900 = vand.u32 %v5114, 4294901760
  %5901 = vmatmul.mubr.f32.gmra.mrb[0].mxu0 %v5900
  %v5902 = vpop.f32.mrb[0].mxu0
  %v5903 = vadd.f32 %v5798, %v5902
  %v5904 = vpop.f32.mrb[0].mxu0
  %5905 = vdwg.mxu0
  %v5906 = vadd.f32 %v5084, %v5885
  %v5907 = vadd.f32 %v5090, %v5891
  %v5908 = vadd.f32 %v5096, %v5897
  %v5909 = vadd.f32 %v5102, %v5903
  %v5910 = vadd.f32 %v5906, %v5907
  %v5911 = vadd.f32 %v5910, %v5908
  %v5912 = vadd.f32 %v5911, %v5909
  %v5913 = vrot.slane %v5912, 4
  %v5914 = vadd.f32 %v5912, %v5913
  %v5915 = vrot.slane %v5914, 2
  %v5916 = vadd.f32 %v5914, %v5915
  %v5917 = vrot.slane %v5916, 1
  %v5918 = vadd.f32 %v5916, %v5917
  %v5919 = vmul.f32 %v5906, %v5906
  %v5920 = vmul.f32 %v5907, %v5907
  %v5921 = vmul.f32 %v5908, %v5908
  %v5922 = vmul.f32 %v5909, %v5909
  %v5923 = vadd.f32 %v5919, %v5920
  %v5924 = vadd.f32 %v5923, %v5921
  %v5925 = vadd.f32 %v5924, %v5922
  %v5926 = vrot.slane %v5925, 4
  %v5927 = vadd.f32 %v5925, %v5926
  %v5928 = vrot.slane %v5927, 2
  %v5929 = vadd.f32 %v5927, %v5928
  %v5930 = vrot.slane %v5929, 1
  %v5931 = vadd.f32 %v5929, %v5930
  %v5932 = vld [vmem:[%s7] sm:$0xff]
  %v5933 = vld [vmem:[%s7 + $0x8] sm:$0xff]
  %v5934 = vld [vmem:[%s7 + $0x10] sm:$0xff]
  %v5935 = vld [vmem:[%s7 + $0x18] sm:$0xff]
  %v5936 = vld [vmem:[%s7 + $0x20] sm:$0xff]
  %v5937 = vld [vmem:[%s7 + $0x28] sm:$0xff]
  %v5938 = vld [vmem:[%s7 + $0x30] sm:$0xff]
  %v5939 = vld [vmem:[%s7 + $0x38] sm:$0xff]
  %v5940 = vld [vmem:[%s7 + $0x40] sm:$0xff]
  %v5941 = vld [vmem:[%s7 + $0x48] sm:$0xff]
  %v5942 = vld [vmem:[%s7 + $0x50] sm:$0xff]
  %v5943 = vld [vmem:[%s7 + $0x58] sm:$0xff]
  %v5944 = vld [vmem:[%s7 + $0x60] sm:$0xff]
  %v5945 = vld [vmem:[%s7 + $0x68] sm:$0xff]
  %v5946 = vld [vmem:[%s7 + $0x70] sm:$0xff]
  %v5947 = vld [vmem:[%s7 + $0x78] sm:$0xff]
  %5948 = vmatprep.subr.mxu0 0.0
  %v5949 = vand.u32 %v5932, 4294901760
  %5950 = vmatpush1.msra.mxu0 %v5949
  %5951 = vmatprep.subr.mxu0 0.0
  %v5952 = vand.u32 %v5933, 4294901760
  %5953 = vmatpush1.msra.mxu0 %v5952
  %5954 = vmatprep.subr.mxu0 0.0
  %v5955 = vand.u32 %v5934, 4294901760
  %5956 = vmatpush1.msra.mxu0 %v5955
  %5957 = vmatprep.subr.mxu0 0.0
  %v5958 = vand.u32 %v5935, 4294901760
  %5959 = vmatpush1.msra.mxu0 %v5958
  %5960 = vmatprep.subr.mxu0 0.0
  %v5961 = vand.u32 %v5936, 4294901760
  %5962 = vmatpush1.msra.mxu0 %v5961
  %5963 = vmatprep.subr.mxu0 0.0
  %v5964 = vand.u32 %v5937, 4294901760
  %5965 = vmatpush1.msra.mxu0 %v5964
  %5966 = vmatprep.subr.mxu0 0.0
  %v5967 = vand.u32 %v5938, 4294901760
  %5968 = vmatpush1.msra.mxu0 %v5967
  %5969 = vmatprep.subr.mxu0 0.0
  %v5970 = vand.u32 %v5939, 4294901760
  %5971 = vmatpush1.msra.mxu0 %v5970
  %5972 = vmatprep.subr.mxu0 0.0
  %v5973 = vand.u32 %v5940, 4294901760
  %5974 = vmatpush1.msra.mxu0 %v5973
  %5975 = vmatprep.subr.mxu0 0.0
  %v5976 = vand.u32 %v5941, 4294901760
  %5977 = vmatpush1.msra.mxu0 %v5976
  %5978 = vmatprep.subr.mxu0 0.0
  %v5979 = vand.u32 %v5942, 4294901760
  %5980 = vmatpush1.msra.mxu0 %v5979
  %5981 = vmatprep.subr.mxu0 0.0
  %v5982 = vand.u32 %v5943, 4294901760
  %5983 = vmatpush1.msra.mxu0 %v5982
  %5984 = vmatprep.subr.mxu0 0.0
  %v5985 = vand.u32 %v5944, 4294901760
  %5986 = vmatpush1.msra.mxu0 %v5985
  %5987 = vmatprep.subr.mxu0 0.0
  %v5988 = vand.u32 %v5945, 4294901760
  %5989 = vmatpush1.msra.mxu0 %v5988
  %5990 = vmatprep.subr.mxu0 0.0
  %v5991 = vand.u32 %v5946, 4294901760
  %5992 = vmatpush1.msra.mxu0 %v5991
  %5993 = vmatprep.subr.mxu0 0.0
  %v5994 = vand.u32 %v5947, 4294901760
  %5995 = vmatpush1.msra.mxu0 %v5994
  %5996 = vmatprep.subr.mxu0 0.0
  %5997 = vmatpush1.msra.mxu0 0.0
  %5998 = vmatprep.subr.mxu0 0.0
  %5999 = vmatpush1.msra.mxu0 0.0
  %6000 = vmatprep.subr.mxu0 0.0
  %6001 = vmatpush1.msra.mxu0 0.0
  %6002 = vmatprep.subr.mxu0 0.0
  %6003 = vmatpush1.msra.mxu0 0.0
  %6004 = vmatprep.subr.mxu0 0.0
  %6005 = vmatpush1.msra.mxu0 0.0
  %6006 = vmatprep.subr.mxu0 0.0
  %6007 = vmatpush1.msra.mxu0 0.0
  %6008 = vmatprep.subr.mxu0 0.0
  %6009 = vmatpush1.msra.mxu0 0.0
  %6010 = vmatprep.subr.mxu0 0.0
  %6011 = vmatpush1.msra.mxu0 0.0
  %6012 = vmatprep.subr.mxu0 0.0
  %6013 = vmatpush1.msra.mxu0 0.0
  %6014 = vmatprep.subr.mxu0 0.0
  %6015 = vmatpush1.msra.mxu0 0.0
  %6016 = vmatprep.subr.mxu0 0.0
  %6017 = vmatpush1.msra.mxu0 0.0
  %6018 = vmatprep.subr.mxu0 0.0
  %6019 = vmatpush1.msra.mxu0 0.0
  %6020 = vmatprep.subr.mxu0 0.0
  %6021 = vmatpush1.msra.mxu0 0.0
  %6022 = vmatprep.subr.mxu0 0.0
  %6023 = vmatpush1.msra.mxu0 0.0
  %6024 = vmatprep.subr.mxu0 0.0
  %6025 = vmatpush1.msra.mxu0 0.0
  %6026 = vmatprep.subr.mxu0 0.0
  %6027 = vmatpush1.msra.mxu0 0.0
  %6028 = vmatprep.mubr.f32.mxu0 0.0
  %v6029 = vand.u32 %v5918, 4294901760
  %v6030 = vsub.f32 %v5918, %v6029
  %v6031 = vand.u32 %v6030, 4294901760
  %v6032 = vsub.f32 %v6030, %v6031
  %v6033 = vand.u32 %v6032, 4294901760
  %6034 = vmatmul.mubr.f32.gmra.mrb[0].mxu0 %v6033
  %v6035 = vpop.f32.mrb[0].mxu0
  %v6036 = vadd.f32 0.0, %v6035
  %v6037 = vpop.f32.mrb[0].mxu0
  %6038 = vdwg.mxu0
  %6039 = vmatprep.subr.mxu0 0.0
  %v6040 = vand.u32 %v5932, 4294901760
  %v6041 = vsub.f32 %v5932, %v6040
  %v6042 = vand.u32 %v6041, 4294901760
  %v6043 = vsub.f32 %v6041, %v6042
  %v6044 = vand.u32 %v6043, 4294901760
  %6045 = vmatpush1.msra.mxu0 %v6044
  %6046 = vmatprep.subr.mxu0 0.0
  %v6047 = vand.u32 %v5933, 4294901760
  %v6048 = vsub.f32 %v5933, %v6047
  %v6049 = vand.u32 %v6048, 4294901760
  %v6050 = vsub.f32 %v6048, %v6049
  %v6051 = vand.u32 %v6050, 4294901760
  %6052 = vmatpush1.msra.mxu0 %v6051
  %6053 = vmatprep.subr.mxu0 0.0
  %v6054 = vand.u32 %v5934, 4294901760
  %v6055 = vsub.f32 %v5934, %v6054
  %v6056 = vand.u32 %v6055, 4294901760
  %v6057 = vsub.f32 %v6055, %v6056
  %v6058 = vand.u32 %v6057, 4294901760
  %6059 = vmatpush1.msra.mxu0 %v6058
  %6060 = vmatprep.subr.mxu0 0.0
  %v6061 = vand.u32 %v5935, 4294901760
  %v6062 = vsub.f32 %v5935, %v6061
  %v6063 = vand.u32 %v6062, 4294901760
  %v6064 = vsub.f32 %v6062, %v6063
  %v6065 = vand.u32 %v6064, 4294901760
  %6066 = vmatpush1.msra.mxu0 %v6065
  %6067 = vmatprep.subr.mxu0 0.0
  %v6068 = vand.u32 %v5936, 4294901760
  %v6069 = vsub.f32 %v5936, %v6068
  %v6070 = vand.u32 %v6069, 4294901760
  %v6071 = vsub.f32 %v6069, %v6070
  %v6072 = vand.u32 %v6071, 4294901760
  %6073 = vmatpush1.msra.mxu0 %v6072
  %6074 = vmatprep.subr.mxu0 0.0
  %v6075 = vand.u32 %v5937, 4294901760
  %v6076 = vsub.f32 %v5937, %v6075
  %v6077 = vand.u32 %v6076, 4294901760
  %v6078 = vsub.f32 %v6076, %v6077
  %v6079 = vand.u32 %v6078, 4294901760
  %6080 = vmatpush1.msra.mxu0 %v6079
  %6081 = vmatprep.subr.mxu0 0.0
  %v6082 = vand.u32 %v5938, 4294901760
  %v6083 = vsub.f32 %v5938, %v6082
  %v6084 = vand.u32 %v6083, 4294901760
  %v6085 = vsub.f32 %v6083, %v6084
  %v6086 = vand.u32 %v6085, 4294901760
  %6087 = vmatpush1.msra.mxu0 %v6086
  %6088 = vmatprep.subr.mxu0 0.0
  %v6089 = vand.u32 %v5939, 4294901760
  %v6090 = vsub.f32 %v5939, %v6089
  %v6091 = vand.u32 %v6090, 4294901760
  %v6092 = vsub.f32 %v6090, %v6091
  %v6093 = vand.u32 %v6092, 4294901760
  %6094 = vmatpush1.msra.mxu0 %v6093
  %6095 = vmatprep.subr.mxu0 0.0
  %v6096 = vand.u32 %v5940, 4294901760
  %v6097 = vsub.f32 %v5940, %v6096
  %v6098 = vand.u32 %v6097, 4294901760
  %v6099 = vsub.f32 %v6097, %v6098
  %v6100 = vand.u32 %v6099, 4294901760
  %6101 = vmatpush1.msra.mxu0 %v6100
  %6102 = vmatprep.subr.mxu0 0.0
  %v6103 = vand.u32 %v5941, 4294901760
  %v6104 = vsub.f32 %v5941, %v6103
  %v6105 = vand.u32 %v6104, 4294901760
  %v6106 = vsub.f32 %v6104, %v6105
  %v6107 = vand.u32 %v6106, 4294901760
  %6108 = vmatpush1.msra.mxu0 %v6107
  %6109 = vmatprep.subr.mxu0 0.0
  %v6110 = vand.u32 %v5942, 4294901760
  %v6111 = vsub.f32 %v5942, %v6110
  %v6112 = vand.u32 %v6111, 4294901760
  %v6113 = vsub.f32 %v6111, %v6112
  %v6114 = vand.u32 %v6113, 4294901760
  %6115 = vmatpush1.msra.mxu0 %v6114
  %6116 = vmatprep.subr.mxu0 0.0
  %v6117 = vand.u32 %v5943, 4294901760
  %v6118 = vsub.f32 %v5943, %v6117
  %v6119 = vand.u32 %v6118, 4294901760
  %v6120 = vsub.f32 %v6118, %v6119
  %v6121 = vand.u32 %v6120, 4294901760
  %6122 = vmatpush1.msra.mxu0 %v6121
  %6123 = vmatprep.subr.mxu0 0.0
  %v6124 = vand.u32 %v5944, 4294901760
  %v6125 = vsub.f32 %v5944, %v6124
  %v6126 = vand.u32 %v6125, 4294901760
  %v6127 = vsub.f32 %v6125, %v6126
  %v6128 = vand.u32 %v6127, 4294901760
  %6129 = vmatpush1.msra.mxu0 %v6128
  %6130 = vmatprep.subr.mxu0 0.0
  %v6131 = vand.u32 %v5945, 4294901760
  %v6132 = vsub.f32 %v5945, %v6131
  %v6133 = vand.u32 %v6132, 4294901760
  %v6134 = vsub.f32 %v6132, %v6133
  %v6135 = vand.u32 %v6134, 4294901760
  %6136 = vmatpush1.msra.mxu0 %v6135
  %6137 = vmatprep.subr.mxu0 0.0
  %v6138 = vand.u32 %v5946, 4294901760
  %v6139 = vsub.f32 %v5946, %v6138
  %v6140 = vand.u32 %v6139, 4294901760
  %v6141 = vsub.f32 %v6139, %v6140
  %v6142 = vand.u32 %v6141, 4294901760
  %6143 = vmatpush1.msra.mxu0 %v6142
  %6144 = vmatprep.subr.mxu0 0.0
  %v6145 = vand.u32 %v5947, 4294901760
  %v6146 = vsub.f32 %v5947, %v6145
  %v6147 = vand.u32 %v6146, 4294901760
  %v6148 = vsub.f32 %v6146, %v6147
  %v6149 = vand.u32 %v6148, 4294901760
  %6150 = vmatpush1.msra.mxu0 %v6149
  %6151 = vmatprep.subr.mxu0 0.0
  %6152 = vmatpush1.msra.mxu0 0.0
  %6153 = vmatprep.subr.mxu0 0.0
  %6154 = vmatpush1.msra.mxu0 0.0
  %6155 = vmatprep.subr.mxu0 0.0
  %6156 = vmatpush1.msra.mxu0 0.0
  %6157 = vmatprep.subr.mxu0 0.0
  %6158 = vmatpush1.msra.mxu0 0.0
  %6159 = vmatprep.subr.mxu0 0.0
  %6160 = vmatpush1.msra.mxu0 0.0
  %6161 = vmatprep.subr.mxu0 0.0
  %6162 = vmatpush1.msra.mxu0 0.0
  %6163 = vmatprep.subr.mxu0 0.0
  %6164 = vmatpush1.msra.mxu0 0.0
  %6165 = vmatprep.subr.mxu0 0.0
  %6166 = vmatpush1.msra.mxu0 0.0
  %6167 = vmatprep.subr.mxu0 0.0
  %6168 = vmatpush1.msra.mxu0 0.0
  %6169 = vmatprep.subr.mxu0 0.0
  %6170 = vmatpush1.msra.mxu0 0.0
  %6171 = vmatprep.subr.mxu0 0.0
  %6172 = vmatpush1.msra.mxu0 0.0
  %6173 = vmatprep.subr.mxu0 0.0
  %6174 = vmatpush1.msra.mxu0 0.0
  %6175 = vmatprep.subr.mxu0 0.0
  %6176 = vmatpush1.msra.mxu0 0.0
  %6177 = vmatprep.subr.mxu0 0.0
  %6178 = vmatpush1.msra.mxu0 0.0
  %6179 = vmatprep.subr.mxu0 0.0
  %6180 = vmatpush1.msra.mxu0 0.0
  %6181 = vmatprep.subr.mxu0 0.0
  %6182 = vmatpush1.msra.mxu0 0.0
  %6183 = vmatprep.mubr.f32.mxu0 0.0
  %v6184 = vand.u32 %v5918, 4294901760
  %6185 = vmatmul.mubr.f32.gmra.mrb[0].mxu0 %v6184
  %v6186 = vpop.f32.mrb[0].mxu0
  %v6187 = vadd.f32 %v6036, %v6186
  %v6188 = vpop.f32.mrb[0].mxu0
  %6189 = vdwg.mxu0
  %6190 = vmatprep.subr.mxu0 0.0
  %v6191 = vand.u32 %v5932, 4294901760
  %v6192 = vsub.f32 %v5932, %v6191
  %6193 = vmatpush1.msra.mxu0 %v6192
  %6194 = vmatprep.subr.mxu0 0.0
  %v6195 = vand.u32 %v5933, 4294901760
  %v6196 = vsub.f32 %v5933, %v6195
  %6197 = vmatpush1.msra.mxu0 %v6196
  %6198 = vmatprep.subr.mxu0 0.0
  %v6199 = vand.u32 %v5934, 4294901760
  %v6200 = vsub.f32 %v5934, %v6199
  %6201 = vmatpush1.msra.mxu0 %v6200
  %6202 = vmatprep.subr.mxu0 0.0
  %v6203 = vand.u32 %v5935, 4294901760
  %v6204 = vsub.f32 %v5935, %v6203
  %6205 = vmatpush1.msra.mxu0 %v6204
  %6206 = vmatprep.subr.mxu0 0.0
  %v6207 = vand.u32 %v5936, 4294901760
  %v6208 = vsub.f32 %v5936, %v6207
  %6209 = vmatpush1.msra.mxu0 %v6208
  %6210 = vmatprep.subr.mxu0 0.0
  %v6211 = vand.u32 %v5937, 4294901760
  %v6212 = vsub.f32 %v5937, %v6211
  %6213 = vmatpush1.msra.mxu0 %v6212
  %6214 = vmatprep.subr.mxu0 0.0
  %v6215 = vand.u32 %v5938, 4294901760
  %v6216 = vsub.f32 %v5938, %v6215
  %6217 = vmatpush1.msra.mxu0 %v6216
  %6218 = vmatprep.subr.mxu0 0.0
  %v6219 = vand.u32 %v5939, 4294901760
  %v6220 = vsub.f32 %v5939, %v6219
  %6221 = vmatpush1.msra.mxu0 %v6220
  %6222 = vmatprep.subr.mxu0 0.0
  %v6223 = vand.u32 %v5940, 4294901760
  %v6224 = vsub.f32 %v5940, %v6223
  %6225 = vmatpush1.msra.mxu0 %v6224
  %6226 = vmatprep.subr.mxu0 0.0
  %v6227 = vand.u32 %v5941, 4294901760
  %v6228 = vsub.f32 %v5941, %v6227
  %6229 = vmatpush1.msra.mxu0 %v6228
  %6230 = vmatprep.subr.mxu0 0.0
  %v6231 = vand.u32 %v5942, 4294901760
  %v6232 = vsub.f32 %v5942, %v6231
  %6233 = vmatpush1.msra.mxu0 %v6232
  %6234 = vmatprep.subr.mxu0 0.0
  %v6235 = vand.u32 %v5943, 4294901760
  %v6236 = vsub.f32 %v5943, %v6235
  %6237 = vmatpush1.msra.mxu0 %v6236
  %6238 = vmatprep.subr.mxu0 0.0
  %v6239 = vand.u32 %v5944, 4294901760
  %v6240 = vsub.f32 %v5944, %v6239
  %6241 = vmatpush1.msra.mxu0 %v6240
  %6242 = vmatprep.subr.mxu0 0.0
  %v6243 = vand.u32 %v5945, 4294901760
  %v6244 = vsub.f32 %v5945, %v6243
  %6245 = vmatpush1.msra.mxu0 %v6244
  %6246 = vmatprep.subr.mxu0 0.0
  %v6247 = vand.u32 %v5946, 4294901760
  %v6248 = vsub.f32 %v5946, %v6247
  %6249 = vmatpush1.msra.mxu0 %v6248
  %6250 = vmatprep.subr.mxu0 0.0
  %v6251 = vand.u32 %v5947, 4294901760
  %v6252 = vsub.f32 %v5947, %v6251
  %6253 = vmatpush1.msra.mxu0 %v6252
  %6254 = vmatprep.subr.mxu0 0.0
  %6255 = vmatpush1.msra.mxu0 0.0
  %6256 = vmatprep.subr.mxu0 0.0
  %6257 = vmatpush1.msra.mxu0 0.0
  %6258 = vmatprep.subr.mxu0 0.0
  %6259 = vmatpush1.msra.mxu0 0.0
  %6260 = vmatprep.subr.mxu0 0.0
  %6261 = vmatpush1.msra.mxu0 0.0
  %6262 = vmatprep.subr.mxu0 0.0
  %6263 = vmatpush1.msra.mxu0 0.0
  %6264 = vmatprep.subr.mxu0 0.0
  %6265 = vmatpush1.msra.mxu0 0.0
  %6266 = vmatprep.subr.mxu0 0.0
  %6267 = vmatpush1.msra.mxu0 0.0
  %6268 = vmatprep.subr.mxu0 0.0
  %6269 = vmatpush1.msra.mxu0 0.0
  %6270 = vmatprep.subr.mxu0 0.0
  %6271 = vmatpush1.msra.mxu0 0.0
  %6272 = vmatprep.subr.mxu0 0.0
  %6273 = vmatpush1.msra.mxu0 0.0
  %6274 = vmatprep.subr.mxu0 0.0
  %6275 = vmatpush1.msra.mxu0 0.0
  %6276 = vmatprep.subr.mxu0 0.0
  %6277 = vmatpush1.msra.mxu0 0.0
  %6278 = vmatprep.subr.mxu0 0.0
  %6279 = vmatpush1.msra.mxu0 0.0
  %6280 = vmatprep.subr.mxu0 0.0
  %6281 = vmatpush1.msra.mxu0 0.0
  %6282 = vmatprep.subr.mxu0 0.0
  %6283 = vmatpush1.msra.mxu0 0.0
  %6284 = vmatprep.subr.mxu0 0.0
  %6285 = vmatpush1.msra.mxu0 0.0
  %6286 = vmatprep.mubr.f32.mxu0 0.0
  %v6287 = vand.u32 %v5918, 4294901760
  %v6288 = vsub.f32 %v5918, %v6287
  %6289 = vmatmul.mubr.f32.gmra.mrb[0].mxu0 %v6288
  %v6290 = vpop.f32.mrb[0].mxu0
  %v6291 = vadd.f32 %v6187, %v6290
  %v6292 = vpop.f32.mrb[0].mxu0
  %6293 = vdwg.mxu0
  %6294 = vmatprep.subr.mxu0 0.0
  %v6295 = vand.u32 %v5932, 4294901760
  %6296 = vmatpush1.msra.mxu0 %v6295
  %6297 = vmatprep.subr.mxu0 0.0
  %v6298 = vand.u32 %v5933, 4294901760
  %6299 = vmatpush1.msra.mxu0 %v6298
  %6300 = vmatprep.subr.mxu0 0.0
  %v6301 = vand.u32 %v5934, 4294901760
  %6302 = vmatpush1.msra.mxu0 %v6301
  %6303 = vmatprep.subr.mxu0 0.0
  %v6304 = vand.u32 %v5935, 4294901760
  %6305 = vmatpush1.msra.mxu0 %v6304
  %6306 = vmatprep.subr.mxu0 0.0
  %v6307 = vand.u32 %v5936, 4294901760
  %6308 = vmatpush1.msra.mxu0 %v6307
  %6309 = vmatprep.subr.mxu0 0.0
  %v6310 = vand.u32 %v5937, 4294901760
  %6311 = vmatpush1.msra.mxu0 %v6310
  %6312 = vmatprep.subr.mxu0 0.0
  %v6313 = vand.u32 %v5938, 4294901760
  %6314 = vmatpush1.msra.mxu0 %v6313
  %6315 = vmatprep.subr.mxu0 0.0
  %v6316 = vand.u32 %v5939, 4294901760
  %6317 = vmatpush1.msra.mxu0 %v6316
  %6318 = vmatprep.subr.mxu0 0.0
  %v6319 = vand.u32 %v5940, 4294901760
  %6320 = vmatpush1.msra.mxu0 %v6319
  %6321 = vmatprep.subr.mxu0 0.0
  %v6322 = vand.u32 %v5941, 4294901760
  %6323 = vmatpush1.msra.mxu0 %v6322
  %6324 = vmatprep.subr.mxu0 0.0
  %v6325 = vand.u32 %v5942, 4294901760
  %6326 = vmatpush1.msra.mxu0 %v6325
  %6327 = vmatprep.subr.mxu0 0.0
  %v6328 = vand.u32 %v5943, 4294901760
  %6329 = vmatpush1.msra.mxu0 %v6328
  %6330 = vmatprep.subr.mxu0 0.0
  %v6331 = vand.u32 %v5944, 4294901760
  %6332 = vmatpush1.msra.mxu0 %v6331
  %6333 = vmatprep.subr.mxu0 0.0
  %v6334 = vand.u32 %v5945, 4294901760
  %6335 = vmatpush1.msra.mxu0 %v6334
  %6336 = vmatprep.subr.mxu0 0.0
  %v6337 = vand.u32 %v5946, 4294901760
  %6338 = vmatpush1.msra.mxu0 %v6337
  %6339 = vmatprep.subr.mxu0 0.0
  %v6340 = vand.u32 %v5947, 4294901760
  %6341 = vmatpush1.msra.mxu0 %v6340
  %6342 = vmatprep.subr.mxu0 0.0
  %6343 = vmatpush1.msra.mxu0 0.0
  %6344 = vmatprep.subr.mxu0 0.0
  %6345 = vmatpush1.msra.mxu0 0.0
  %6346 = vmatprep.subr.mxu0 0.0
  %6347 = vmatpush1.msra.mxu0 0.0
  %6348 = vmatprep.subr.mxu0 0.0
  %6349 = vmatpush1.msra.mxu0 0.0
  %6350 = vmatprep.subr.mxu0 0.0
  %6351 = vmatpush1.msra.mxu0 0.0
  %6352 = vmatprep.subr.mxu0 0.0
  %6353 = vmatpush1.msra.mxu0 0.0
  %6354 = vmatprep.subr.mxu0 0.0
  %6355 = vmatpush1.msra.mxu0 0.0
  %6356 = vmatprep.subr.mxu0 0.0
  %6357 = vmatpush1.msra.mxu0 0.0
  %6358 = vmatprep.subr.mxu0 0.0
  %6359 = vmatpush1.msra.mxu0 0.0
  %6360 = vmatprep.subr.mxu0 0.0
  %6361 = vmatpush1.msra.mxu0 0.0
  %6362 = vmatprep.subr.mxu0 0.0
  %6363 = vmatpush1.msra.mxu0 0.0
  %6364 = vmatprep.subr.mxu0 0.0
  %6365 = vmatpush1.msra.mxu0 0.0
  %6366 = vmatprep.subr.mxu0 0.0
  %6367 = vmatpush1.msra.mxu0 0.0
  %6368 = vmatprep.subr.mxu0 0.0
  %6369 = vmatpush1.msra.mxu0 0.0
  %6370 = vmatprep.subr.mxu0 0.0
  %6371 = vmatpush1.msra.mxu0 0.0
  %6372 = vmatprep.subr.mxu0 0.0
  %6373 = vmatpush1.msra.mxu0 0.0
  %6374 = vmatprep.mubr.f32.mxu0 0.0
  %v6375 = vand.u32 %v5918, 4294901760
  %v6376 = vsub.f32 %v5918, %v6375
  %v6377 = vand.u32 %v6376, 4294901760
  %6378 = vmatmul.mubr.f32.gmra.mrb[0].mxu0 %v6377
  %v6379 = vpop.f32.mrb[0].mxu0
  %v6380 = vadd.f32 %v6291, %v6379
  %v6381 = vpop.f32.mrb[0].mxu0
  %6382 = vdwg.mxu0
  %6383 = vmatprep.subr.mxu0 0.0
  %v6384 = vand.u32 %v5932, 4294901760
  %v6385 = vsub.f32 %v5932, %v6384
  %v6386 = vand.u32 %v6385, 4294901760
  %6387 = vmatpush1.msra.mxu0 %v6386
  %6388 = vmatprep.subr.mxu0 0.0
  %v6389 = vand.u32 %v5933, 4294901760
  %v6390 = vsub.f32 %v5933, %v6389
  %v6391 = vand.u32 %v6390, 4294901760
  %6392 = vmatpush1.msra.mxu0 %v6391
  %6393 = vmatprep.subr.mxu0 0.0
  %v6394 = vand.u32 %v5934, 4294901760
  %v6395 = vsub.f32 %v5934, %v6394
  %v6396 = vand.u32 %v6395, 4294901760
  %6397 = vmatpush1.msra.mxu0 %v6396
  %6398 = vmatprep.subr.mxu0 0.0
  %v6399 = vand.u32 %v5935, 4294901760
  %v6400 = vsub.f32 %v5935, %v6399
  %v6401 = vand.u32 %v6400, 4294901760
  %6402 = vmatpush1.msra.mxu0 %v6401
  %6403 = vmatprep.subr.mxu0 0.0
  %v6404 = vand.u32 %v5936, 4294901760
  %v6405 = vsub.f32 %v5936, %v6404
  %v6406 = vand.u32 %v6405, 4294901760
  %6407 = vmatpush1.msra.mxu0 %v6406
  %6408 = vmatprep.subr.mxu0 0.0
  %v6409 = vand.u32 %v5937, 4294901760
  %v6410 = vsub.f32 %v5937, %v6409
  %v6411 = vand.u32 %v6410, 4294901760
  %6412 = vmatpush1.msra.mxu0 %v6411
  %6413 = vmatprep.subr.mxu0 0.0
  %v6414 = vand.u32 %v5938, 4294901760
  %v6415 = vsub.f32 %v5938, %v6414
  %v6416 = vand.u32 %v6415, 4294901760
  %6417 = vmatpush1.msra.mxu0 %v6416
  %6418 = vmatprep.subr.mxu0 0.0
  %v6419 = vand.u32 %v5939, 4294901760
  %v6420 = vsub.f32 %v5939, %v6419
  %v6421 = vand.u32 %v6420, 4294901760
  %6422 = vmatpush1.msra.mxu0 %v6421
  %6423 = vmatprep.subr.mxu0 0.0
  %v6424 = vand.u32 %v5940, 4294901760
  %v6425 = vsub.f32 %v5940, %v6424
  %v6426 = vand.u32 %v6425, 4294901760
  %6427 = vmatpush1.msra.mxu0 %v6426
  %6428 = vmatprep.subr.mxu0 0.0
  %v6429 = vand.u32 %v5941, 4294901760
  %v6430 = vsub.f32 %v5941, %v6429
  %v6431 = vand.u32 %v6430, 4294901760
  %6432 = vmatpush1.msra.mxu0 %v6431
  %6433 = vmatprep.subr.mxu0 0.0
  %v6434 = vand.u32 %v5942, 4294901760
  %v6435 = vsub.f32 %v5942, %v6434
  %v6436 = vand.u32 %v6435, 4294901760
  %6437 = vmatpush1.msra.mxu0 %v6436
  %6438 = vmatprep.subr.mxu0 0.0
  %v6439 = vand.u32 %v5943, 4294901760
  %v6440 = vsub.f32 %v5943, %v6439
  %v6441 = vand.u32 %v6440, 4294901760
  %6442 = vmatpush1.msra.mxu0 %v6441
  %6443 = vmatprep.subr.mxu0 0.0
  %v6444 = vand.u32 %v5944, 4294901760
  %v6445 = vsub.f32 %v5944, %v6444
  %v6446 = vand.u32 %v6445, 4294901760
  %6447 = vmatpush1.msra.mxu0 %v6446
  %6448 = vmatprep.subr.mxu0 0.0
  %v6449 = vand.u32 %v5945, 4294901760
  %v6450 = vsub.f32 %v5945, %v6449
  %v6451 = vand.u32 %v6450, 4294901760
  %6452 = vmatpush1.msra.mxu0 %v6451
  %6453 = vmatprep.subr.mxu0 0.0
  %v6454 = vand.u32 %v5946, 4294901760
  %v6455 = vsub.f32 %v5946, %v6454
  %v6456 = vand.u32 %v6455, 4294901760
  %6457 = vmatpush1.msra.mxu0 %v6456
  %6458 = vmatprep.subr.mxu0 0.0
  %v6459 = vand.u32 %v5947, 4294901760
  %v6460 = vsub.f32 %v5947, %v6459
  %v6461 = vand.u32 %v6460, 4294901760
  %6462 = vmatpush1.msra.mxu0 %v6461
  %6463 = vmatprep.subr.mxu0 0.0
  %6464 = vmatpush1.msra.mxu0 0.0
  %6465 = vmatprep.subr.mxu0 0.0
  %6466 = vmatpush1.msra.mxu0 0.0
  %6467 = vmatprep.subr.mxu0 0.0
  %6468 = vmatpush1.msra.mxu0 0.0
  %6469 = vmatprep.subr.mxu0 0.0
  %6470 = vmatpush1.msra.mxu0 0.0
  %6471 = vmatprep.subr.mxu0 0.0
  %6472 = vmatpush1.msra.mxu0 0.0
  %6473 = vmatprep.subr.mxu0 0.0
  %6474 = vmatpush1.msra.mxu0 0.0
  %6475 = vmatprep.subr.mxu0 0.0
  %6476 = vmatpush1.msra.mxu0 0.0
  %6477 = vmatprep.subr.mxu0 0.0
  %6478 = vmatpush1.msra.mxu0 0.0
  %6479 = vmatprep.subr.mxu0 0.0
  %6480 = vmatpush1.msra.mxu0 0.0
  %6481 = vmatprep.subr.mxu0 0.0
  %6482 = vmatpush1.msra.mxu0 0.0
  %6483 = vmatprep.subr.mxu0 0.0
  %6484 = vmatpush1.msra.mxu0 0.0
  %6485 = vmatprep.subr.mxu0 0.0
  %6486 = vmatpush1.msra.mxu0 0.0
  %6487 = vmatprep.subr.mxu0 0.0
  %6488 = vmatpush1.msra.mxu0 0.0
  %6489 = vmatprep.subr.mxu0 0.0
  %6490 = vmatpush1.msra.mxu0 0.0
  %6491 = vmatprep.subr.mxu0 0.0
  %6492 = vmatpush1.msra.mxu0 0.0
  %6493 = vmatprep.subr.mxu0 0.0
  %6494 = vmatpush1.msra.mxu0 0.0
  %6495 = vmatprep.mubr.f32.mxu0 0.0
  %v6496 = vand.u32 %v5918, 4294901760
  %6497 = vmatmul.mubr.f32.gmra.mrb[0].mxu0 %v6496
  %v6498 = vpop.f32.mrb[0].mxu0
  %v6499 = vadd.f32 %v6380, %v6498
  %v6500 = vpop.f32.mrb[0].mxu0
  %6501 = vdwg.mxu0
  %6502 = vmatprep.subr.mxu0 0.0
  %v6503 = vand.u32 %v5932, 4294901760
  %6504 = vmatpush1.msra.mxu0 %v6503
  %6505 = vmatprep.subr.mxu0 0.0
  %v6506 = vand.u32 %v5933, 4294901760
  %6507 = vmatpush1.msra.mxu0 %v6506
  %6508 = vmatprep.subr.mxu0 0.0
  %v6509 = vand.u32 %v5934, 4294901760
  %6510 = vmatpush1.msra.mxu0 %v6509
  %6511 = vmatprep.subr.mxu0 0.0
  %v6512 = vand.u32 %v5935, 4294901760
  %6513 = vmatpush1.msra.mxu0 %v6512
  %6514 = vmatprep.subr.mxu0 0.0
  %v6515 = vand.u32 %v5936, 4294901760
  %6516 = vmatpush1.msra.mxu0 %v6515
  %6517 = vmatprep.subr.mxu0 0.0
  %v6518 = vand.u32 %v5937, 4294901760
  %6519 = vmatpush1.msra.mxu0 %v6518
  %6520 = vmatprep.subr.mxu0 0.0
  %v6521 = vand.u32 %v5938, 4294901760
  %6522 = vmatpush1.msra.mxu0 %v6521
  %6523 = vmatprep.subr.mxu0 0.0
  %v6524 = vand.u32 %v5939, 4294901760
  %6525 = vmatpush1.msra.mxu0 %v6524
  %6526 = vmatprep.subr.mxu0 0.0
  %v6527 = vand.u32 %v5940, 4294901760
  %6528 = vmatpush1.msra.mxu0 %v6527
  %6529 = vmatprep.subr.mxu0 0.0
  %v6530 = vand.u32 %v5941, 4294901760
  %6531 = vmatpush1.msra.mxu0 %v6530
  %6532 = vmatprep.subr.mxu0 0.0
  %v6533 = vand.u32 %v5942, 4294901760
  %6534 = vmatpush1.msra.mxu0 %v6533
  %6535 = vmatprep.subr.mxu0 0.0
  %v6536 = vand.u32 %v5943, 4294901760
  %6537 = vmatpush1.msra.mxu0 %v6536
  %6538 = vmatprep.subr.mxu0 0.0
  %v6539 = vand.u32 %v5944, 4294901760
  %6540 = vmatpush1.msra.mxu0 %v6539
  %6541 = vmatprep.subr.mxu0 0.0
  %v6542 = vand.u32 %v5945, 4294901760
  %6543 = vmatpush1.msra.mxu0 %v6542
  %6544 = vmatprep.subr.mxu0 0.0
  %v6545 = vand.u32 %v5946, 4294901760
  %6546 = vmatpush1.msra.mxu0 %v6545
  %6547 = vmatprep.subr.mxu0 0.0
  %v6548 = vand.u32 %v5947, 4294901760
  %6549 = vmatpush1.msra.mxu0 %v6548
  %6550 = vmatprep.subr.mxu0 0.0
  %6551 = vmatpush1.msra.mxu0 0.0
  %6552 = vmatprep.subr.mxu0 0.0
  %6553 = vmatpush1.msra.mxu0 0.0
  %6554 = vmatprep.subr.mxu0 0.0
  %6555 = vmatpush1.msra.mxu0 0.0
  %6556 = vmatprep.subr.mxu0 0.0
  %6557 = vmatpush1.msra.mxu0 0.0
  %6558 = vmatprep.subr.mxu0 0.0
  %6559 = vmatpush1.msra.mxu0 0.0
  %6560 = vmatprep.subr.mxu0 0.0
  %6561 = vmatpush1.msra.mxu0 0.0
  %6562 = vmatprep.subr.mxu0 0.0
  %6563 = vmatpush1.msra.mxu0 0.0
  %6564 = vmatprep.subr.mxu0 0.0
  %6565 = vmatpush1.msra.mxu0 0.0
  %6566 = vmatprep.subr.mxu0 0.0
  %6567 = vmatpush1.msra.mxu0 0.0
  %6568 = vmatprep.subr.mxu0 0.0
  %6569 = vmatpush1.msra.mxu0 0.0
  %6570 = vmatprep.subr.mxu0 0.0
  %6571 = vmatpush1.msra.mxu0 0.0
  %6572 = vmatprep.subr.mxu0 0.0
  %6573 = vmatpush1.msra.mxu0 0.0
  %6574 = vmatprep.subr.mxu0 0.0
  %6575 = vmatpush1.msra.mxu0 0.0
  %6576 = vmatprep.subr.mxu0 0.0
  %6577 = vmatpush1.msra.mxu0 0.0
  %6578 = vmatprep.subr.mxu0 0.0
  %6579 = vmatpush1.msra.mxu0 0.0
  %6580 = vmatprep.subr.mxu0 0.0
  %6581 = vmatpush1.msra.mxu0 0.0
  %6582 = vmatprep.mubr.f32.mxu0 0.0
  %v6583 = vand.u32 %v5918, 4294901760
  %6584 = vmatmul.mubr.f32.gmra.mrb[0].mxu0 %v6583
  %v6585 = vpop.f32.mrb[0].mxu0
  %v6586 = vadd.f32 %v6499, %v6585
  %v6587 = vpop.f32.mrb[0].mxu0
  %6588 = vdwg.mxu0
  %v6589 = vmul.f32 %v6586, 0.001953125
  %6590 = vmatprep.subr.mxu0 0.0
  %v6591 = vand.u32 %v5932, 4294901760
  %6592 = vmatpush1.msra.mxu0 %v6591
  %6593 = vmatprep.subr.mxu0 0.0
  %v6594 = vand.u32 %v5933, 4294901760
  %6595 = vmatpush1.msra.mxu0 %v6594
  %6596 = vmatprep.subr.mxu0 0.0
  %v6597 = vand.u32 %v5934, 4294901760
  %6598 = vmatpush1.msra.mxu0 %v6597
  %6599 = vmatprep.subr.mxu0 0.0
  %v6600 = vand.u32 %v5935, 4294901760
  %6601 = vmatpush1.msra.mxu0 %v6600
  %6602 = vmatprep.subr.mxu0 0.0
  %v6603 = vand.u32 %v5936, 4294901760
  %6604 = vmatpush1.msra.mxu0 %v6603
  %6605 = vmatprep.subr.mxu0 0.0
  %v6606 = vand.u32 %v5937, 4294901760
  %6607 = vmatpush1.msra.mxu0 %v6606
  %6608 = vmatprep.subr.mxu0 0.0
  %v6609 = vand.u32 %v5938, 4294901760
  %6610 = vmatpush1.msra.mxu0 %v6609
  %6611 = vmatprep.subr.mxu0 0.0
  %v6612 = vand.u32 %v5939, 4294901760
  %6613 = vmatpush1.msra.mxu0 %v6612
  %6614 = vmatprep.subr.mxu0 0.0
  %v6615 = vand.u32 %v5940, 4294901760
  %6616 = vmatpush1.msra.mxu0 %v6615
  %6617 = vmatprep.subr.mxu0 0.0
  %v6618 = vand.u32 %v5941, 4294901760
  %6619 = vmatpush1.msra.mxu0 %v6618
  %6620 = vmatprep.subr.mxu0 0.0
  %v6621 = vand.u32 %v5942, 4294901760
  %6622 = vmatpush1.msra.mxu0 %v6621
  %6623 = vmatprep.subr.mxu0 0.0
  %v6624 = vand.u32 %v5943, 4294901760
  %6625 = vmatpush1.msra.mxu0 %v6624
  %6626 = vmatprep.subr.mxu0 0.0
  %v6627 = vand.u32 %v5944, 4294901760
  %6628 = vmatpush1.msra.mxu0 %v6627
  %6629 = vmatprep.subr.mxu0 0.0
  %v6630 = vand.u32 %v5945, 4294901760
  %6631 = vmatpush1.msra.mxu0 %v6630
  %6632 = vmatprep.subr.mxu0 0.0
  %v6633 = vand.u32 %v5946, 4294901760
  %6634 = vmatpush1.msra.mxu0 %v6633
  %6635 = vmatprep.subr.mxu0 0.0
  %v6636 = vand.u32 %v5947, 4294901760
  %6637 = vmatpush1.msra.mxu0 %v6636
  %6638 = vmatprep.subr.mxu0 0.0
  %6639 = vmatpush1.msra.mxu0 0.0
  %6640 = vmatprep.subr.mxu0 0.0
  %6641 = vmatpush1.msra.mxu0 0.0
  %6642 = vmatprep.subr.mxu0 0.0
  %6643 = vmatpush1.msra.mxu0 0.0
  %6644 = vmatprep.subr.mxu0 0.0
  %6645 = vmatpush1.msra.mxu0 0.0
  %6646 = vmatprep.subr.mxu0 0.0
  %6647 = vmatpush1.msra.mxu0 0.0
  %6648 = vmatprep.subr.mxu0 0.0
  %6649 = vmatpush1.msra.mxu0 0.0
  %6650 = vmatprep.subr.mxu0 0.0
  %6651 = vmatpush1.msra.mxu0 0.0
  %6652 = vmatprep.subr.mxu0 0.0
  %6653 = vmatpush1.msra.mxu0 0.0
  %6654 = vmatprep.subr.mxu0 0.0
  %6655 = vmatpush1.msra.mxu0 0.0
  %6656 = vmatprep.subr.mxu0 0.0
  %6657 = vmatpush1.msra.mxu0 0.0
  %6658 = vmatprep.subr.mxu0 0.0
  %6659 = vmatpush1.msra.mxu0 0.0
  %6660 = vmatprep.subr.mxu0 0.0
  %6661 = vmatpush1.msra.mxu0 0.0
  %6662 = vmatprep.subr.mxu0 0.0
  %6663 = vmatpush1.msra.mxu0 0.0
  %6664 = vmatprep.subr.mxu0 0.0
  %6665 = vmatpush1.msra.mxu0 0.0
  %6666 = vmatprep.subr.mxu0 0.0
  %6667 = vmatpush1.msra.mxu0 0.0
  %6668 = vmatprep.subr.mxu0 0.0
  %6669 = vmatpush1.msra.mxu0 0.0
  %6670 = vmatprep.mubr.f32.mxu0 0.0
  %v6671 = vand.u32 %v5931, 4294901760
  %v6672 = vsub.f32 %v5931, %v6671
  %v6673 = vand.u32 %v6672, 4294901760
  %v6674 = vsub.f32 %v6672, %v6673
  %v6675 = vand.u32 %v6674, 4294901760
  %6676 = vmatmul.mubr.f32.gmra.mrb[0].mxu0 %v6675
  %v6677 = vpop.f32.mrb[0].mxu0
  %v6678 = vadd.f32 0.0, %v6677
  %v6679 = vpop.f32.mrb[0].mxu0
  %6680 = vdwg.mxu0
  %6681 = vmatprep.subr.mxu0 0.0
  %v6682 = vand.u32 %v5932, 4294901760
  %v6683 = vsub.f32 %v5932, %v6682
  %v6684 = vand.u32 %v6683, 4294901760
  %v6685 = vsub.f32 %v6683, %v6684
  %v6686 = vand.u32 %v6685, 4294901760
  %6687 = vmatpush1.msra.mxu0 %v6686
  %6688 = vmatprep.subr.mxu0 0.0
  %v6689 = vand.u32 %v5933, 4294901760
  %v6690 = vsub.f32 %v5933, %v6689
  %v6691 = vand.u32 %v6690, 4294901760
  %v6692 = vsub.f32 %v6690, %v6691
  %v6693 = vand.u32 %v6692, 4294901760
  %6694 = vmatpush1.msra.mxu0 %v6693
  %6695 = vmatprep.subr.mxu0 0.0
  %v6696 = vand.u32 %v5934, 4294901760
  %v6697 = vsub.f32 %v5934, %v6696
  %v6698 = vand.u32 %v6697, 4294901760
  %v6699 = vsub.f32 %v6697, %v6698
  %v6700 = vand.u32 %v6699, 4294901760
  %6701 = vmatpush1.msra.mxu0 %v6700
  %6702 = vmatprep.subr.mxu0 0.0
  %v6703 = vand.u32 %v5935, 4294901760
  %v6704 = vsub.f32 %v5935, %v6703
  %v6705 = vand.u32 %v6704, 4294901760
  %v6706 = vsub.f32 %v6704, %v6705
  %v6707 = vand.u32 %v6706, 4294901760
  %6708 = vmatpush1.msra.mxu0 %v6707
  %6709 = vmatprep.subr.mxu0 0.0
  %v6710 = vand.u32 %v5936, 4294901760
  %v6711 = vsub.f32 %v5936, %v6710
  %v6712 = vand.u32 %v6711, 4294901760
  %v6713 = vsub.f32 %v6711, %v6712
  %v6714 = vand.u32 %v6713, 4294901760
  %6715 = vmatpush1.msra.mxu0 %v6714
  %6716 = vmatprep.subr.mxu0 0.0
  %v6717 = vand.u32 %v5937, 4294901760
  %v6718 = vsub.f32 %v5937, %v6717
  %v6719 = vand.u32 %v6718, 4294901760
  %v6720 = vsub.f32 %v6718, %v6719
  %v6721 = vand.u32 %v6720, 4294901760
  %6722 = vmatpush1.msra.mxu0 %v6721
  %6723 = vmatprep.subr.mxu0 0.0
  %v6724 = vand.u32 %v5938, 4294901760
  %v6725 = vsub.f32 %v5938, %v6724
  %v6726 = vand.u32 %v6725, 4294901760
  %v6727 = vsub.f32 %v6725, %v6726
  %v6728 = vand.u32 %v6727, 4294901760
  %6729 = vmatpush1.msra.mxu0 %v6728
  %6730 = vmatprep.subr.mxu0 0.0
  %v6731 = vand.u32 %v5939, 4294901760
  %v6732 = vsub.f32 %v5939, %v6731
  %v6733 = vand.u32 %v6732, 4294901760
  %v6734 = vsub.f32 %v6732, %v6733
  %v6735 = vand.u32 %v6734, 4294901760
  %6736 = vmatpush1.msra.mxu0 %v6735
  %6737 = vmatprep.subr.mxu0 0.0
  %v6738 = vand.u32 %v5940, 4294901760
  %v6739 = vsub.f32 %v5940, %v6738
  %v6740 = vand.u32 %v6739, 4294901760
  %v6741 = vsub.f32 %v6739, %v6740
  %v6742 = vand.u32 %v6741, 4294901760
  %6743 = vmatpush1.msra.mxu0 %v6742
  %6744 = vmatprep.subr.mxu0 0.0
  %v6745 = vand.u32 %v5941, 4294901760
  %v6746 = vsub.f32 %v5941, %v6745
  %v6747 = vand.u32 %v6746, 4294901760
  %v6748 = vsub.f32 %v6746, %v6747
  %v6749 = vand.u32 %v6748, 4294901760
  %6750 = vmatpush1.msra.mxu0 %v6749
  %6751 = vmatprep.subr.mxu0 0.0
  %v6752 = vand.u32 %v5942, 4294901760
  %v6753 = vsub.f32 %v5942, %v6752
  %v6754 = vand.u32 %v6753, 4294901760
  %v6755 = vsub.f32 %v6753, %v6754
  %v6756 = vand.u32 %v6755, 4294901760
  %6757 = vmatpush1.msra.mxu0 %v6756
  %6758 = vmatprep.subr.mxu0 0.0
  %v6759 = vand.u32 %v5943, 4294901760
  %v6760 = vsub.f32 %v5943, %v6759
  %v6761 = vand.u32 %v6760, 4294901760
  %v6762 = vsub.f32 %v6760, %v6761
  %v6763 = vand.u32 %v6762, 4294901760
  %6764 = vmatpush1.msra.mxu0 %v6763
  %6765 = vmatprep.subr.mxu0 0.0
  %v6766 = vand.u32 %v5944, 4294901760
  %v6767 = vsub.f32 %v5944, %v6766
  %v6768 = vand.u32 %v6767, 4294901760
  %v6769 = vsub.f32 %v6767, %v6768
  %v6770 = vand.u32 %v6769, 4294901760
  %6771 = vmatpush1.msra.mxu0 %v6770
  %6772 = vmatprep.subr.mxu0 0.0
  %v6773 = vand.u32 %v5945, 4294901760
  %v6774 = vsub.f32 %v5945, %v6773
  %v6775 = vand.u32 %v6774, 4294901760
  %v6776 = vsub.f32 %v6774, %v6775
  %v6777 = vand.u32 %v6776, 4294901760
  %6778 = vmatpush1.msra.mxu0 %v6777
  %6779 = vmatprep.subr.mxu0 0.0
  %v6780 = vand.u32 %v5946, 4294901760
  %v6781 = vsub.f32 %v5946, %v6780
  %v6782 = vand.u32 %v6781, 4294901760
  %v6783 = vsub.f32 %v6781, %v6782
  %v6784 = vand.u32 %v6783, 4294901760
  %6785 = vmatpush1.msra.mxu0 %v6784
  %6786 = vmatprep.subr.mxu0 0.0
  %v6787 = vand.u32 %v5947, 4294901760
  %v6788 = vsub.f32 %v5947, %v6787
  %v6789 = vand.u32 %v6788, 4294901760
  %v6790 = vsub.f32 %v6788, %v6789
  %v6791 = vand.u32 %v6790, 4294901760
  %6792 = vmatpush1.msra.mxu0 %v6791
  %6793 = vmatprep.subr.mxu0 0.0
  %6794 = vmatpush1.msra.mxu0 0.0
  %6795 = vmatprep.subr.mxu0 0.0
  %6796 = vmatpush1.msra.mxu0 0.0
  %6797 = vmatprep.subr.mxu0 0.0
  %6798 = vmatpush1.msra.mxu0 0.0
  %6799 = vmatprep.subr.mxu0 0.0
  %6800 = vmatpush1.msra.mxu0 0.0
  %6801 = vmatprep.subr.mxu0 0.0
  %6802 = vmatpush1.msra.mxu0 0.0
  %6803 = vmatprep.subr.mxu0 0.0
  %6804 = vmatpush1.msra.mxu0 0.0
  %6805 = vmatprep.subr.mxu0 0.0
  %6806 = vmatpush1.msra.mxu0 0.0
  %6807 = vmatprep.subr.mxu0 0.0
  %6808 = vmatpush1.msra.mxu0 0.0
  %6809 = vmatprep.subr.mxu0 0.0
  %6810 = vmatpush1.msra.mxu0 0.0
  %6811 = vmatprep.subr.mxu0 0.0
  %6812 = vmatpush1.msra.mxu0 0.0
  %6813 = vmatprep.subr.mxu0 0.0
  %6814 = vmatpush1.msra.mxu0 0.0
  %6815 = vmatprep.subr.mxu0 0.0
  %6816 = vmatpush1.msra.mxu0 0.0
  %6817 = vmatprep.subr.mxu0 0.0
  %6818 = vmatpush1.msra.mxu0 0.0
  %6819 = vmatprep.subr.mxu0 0.0
  %6820 = vmatpush1.msra.mxu0 0.0
  %6821 = vmatprep.subr.mxu0 0.0
  %6822 = vmatpush1.msra.mxu0 0.0
  %6823 = vmatprep.subr.mxu0 0.0
  %6824 = vmatpush1.msra.mxu0 0.0
  %6825 = vmatprep.mubr.f32.mxu0 0.0
  %v6826 = vand.u32 %v5931, 4294901760
  %6827 = vmatmul.mubr.f32.gmra.mrb[0].mxu0 %v6826
  %v6828 = vpop.f32.mrb[0].mxu0
  %v6829 = vadd.f32 %v6678, %v6828
  %v6830 = vpop.f32.mrb[0].mxu0
  %6831 = vdwg.mxu0
  %6832 = vmatprep.subr.mxu0 0.0
  %v6833 = vand.u32 %v5932, 4294901760
  %v6834 = vsub.f32 %v5932, %v6833
  %6835 = vmatpush1.msra.mxu0 %v6834
  %6836 = vmatprep.subr.mxu0 0.0
  %v6837 = vand.u32 %v5933, 4294901760
  %v6838 = vsub.f32 %v5933, %v6837
  %6839 = vmatpush1.msra.mxu0 %v6838
  %6840 = vmatprep.subr.mxu0 0.0
  %v6841 = vand.u32 %v5934, 4294901760
  %v6842 = vsub.f32 %v5934, %v6841
  %6843 = vmatpush1.msra.mxu0 %v6842
  %6844 = vmatprep.subr.mxu0 0.0
  %v6845 = vand.u32 %v5935, 4294901760
  %v6846 = vsub.f32 %v5935, %v6845
  %6847 = vmatpush1.msra.mxu0 %v6846
  %6848 = vmatprep.subr.mxu0 0.0
  %v6849 = vand.u32 %v5936, 4294901760
  %v6850 = vsub.f32 %v5936, %v6849
  %6851 = vmatpush1.msra.mxu0 %v6850
  %6852 = vmatprep.subr.mxu0 0.0
  %v6853 = vand.u32 %v5937, 4294901760
  %v6854 = vsub.f32 %v5937, %v6853
  %6855 = vmatpush1.msra.mxu0 %v6854
  %6856 = vmatprep.subr.mxu0 0.0
  %v6857 = vand.u32 %v5938, 4294901760
  %v6858 = vsub.f32 %v5938, %v6857
  %6859 = vmatpush1.msra.mxu0 %v6858
  %6860 = vmatprep.subr.mxu0 0.0
  %v6861 = vand.u32 %v5939, 4294901760
  %v6862 = vsub.f32 %v5939, %v6861
  %6863 = vmatpush1.msra.mxu0 %v6862
  %6864 = vmatprep.subr.mxu0 0.0
  %v6865 = vand.u32 %v5940, 4294901760
  %v6866 = vsub.f32 %v5940, %v6865
  %6867 = vmatpush1.msra.mxu0 %v6866
  %6868 = vmatprep.subr.mxu0 0.0
  %v6869 = vand.u32 %v5941, 4294901760
  %v6870 = vsub.f32 %v5941, %v6869
  %6871 = vmatpush1.msra.mxu0 %v6870
  %6872 = vmatprep.subr.mxu0 0.0
  %v6873 = vand.u32 %v5942, 4294901760
  %v6874 = vsub.f32 %v5942, %v6873
  %6875 = vmatpush1.msra.mxu0 %v6874
  %6876 = vmatprep.subr.mxu0 0.0
  %v6877 = vand.u32 %v5943, 4294901760
  %v6878 = vsub.f32 %v5943, %v6877
  %6879 = vmatpush1.msra.mxu0 %v6878
  %6880 = vmatprep.subr.mxu0 0.0
  %v6881 = vand.u32 %v5944, 4294901760
  %v6882 = vsub.f32 %v5944, %v6881
  %6883 = vmatpush1.msra.mxu0 %v6882
  %6884 = vmatprep.subr.mxu0 0.0
  %v6885 = vand.u32 %v5945, 4294901760
  %v6886 = vsub.f32 %v5945, %v6885
  %6887 = vmatpush1.msra.mxu0 %v6886
  %6888 = vmatprep.subr.mxu0 0.0
  %v6889 = vand.u32 %v5946, 4294901760
  %v6890 = vsub.f32 %v5946, %v6889
  %6891 = vmatpush1.msra.mxu0 %v6890
  %6892 = vmatprep.subr.mxu0 0.0
  %v6893 = vand.u32 %v5947, 4294901760
  %v6894 = vsub.f32 %v5947, %v6893
  %6895 = vmatpush1.msra.mxu0 %v6894
  %6896 = vmatprep.subr.mxu0 0.0
  %6897 = vmatpush1.msra.mxu0 0.0
  %6898 = vmatprep.subr.mxu0 0.0
  %6899 = vmatpush1.msra.mxu0 0.0
  %6900 = vmatprep.subr.mxu0 0.0
  %6901 = vmatpush1.msra.mxu0 0.0
  %6902 = vmatprep.subr.mxu0 0.0
  %6903 = vmatpush1.msra.mxu0 0.0
  %6904 = vmatprep.subr.mxu0 0.0
  %6905 = vmatpush1.msra.mxu0 0.0
  %6906 = vmatprep.subr.mxu0 0.0
  %6907 = vmatpush1.msra.mxu0 0.0
  %6908 = vmatprep.subr.mxu0 0.0
  %6909 = vmatpush1.msra.mxu0 0.0
  %6910 = vmatprep.subr.mxu0 0.0
  %6911 = vmatpush1.msra.mxu0 0.0
  %6912 = vmatprep.subr.mxu0 0.0
  %6913 = vmatpush1.msra.mxu0 0.0
  %6914 = vmatprep.subr.mxu0 0.0
  %6915 = vmatpush1.msra.mxu0 0.0
  %6916 = vmatprep.subr.mxu0 0.0
  %6917 = vmatpush1.msra.mxu0 0.0
  %6918 = vmatprep.subr.mxu0 0.0
  %6919 = vmatpush1.msra.mxu0 0.0
  %6920 = vmatprep.subr.mxu0 0.0
  %6921 = vmatpush1.msra.mxu0 0.0
  %6922 = vmatprep.subr.mxu0 0.0
  %6923 = vmatpush1.msra.mxu0 0.0
  %6924 = vmatprep.subr.mxu0 0.0
  %6925 = vmatpush1.msra.mxu0 0.0
  %6926 = vmatprep.subr.mxu0 0.0
  %6927 = vmatpush1.msra.mxu0 0.0
  %6928 = vmatprep.mubr.f32.mxu0 0.0
  %v6929 = vand.u32 %v5931, 4294901760
  %v6930 = vsub.f32 %v5931, %v6929
  %6931 = vmatmul.mubr.f32.gmra.mrb[0].mxu0 %v6930
  %v6932 = vpop.f32.mrb[0].mxu0
  %v6933 = vadd.f32 %v6829, %v6932
  %v6934 = vpop.f32.mrb[0].mxu0
  %6935 = vdwg.mxu0
  %6936 = vmatprep.subr.mxu0 0.0
  %v6937 = vand.u32 %v5932, 4294901760
  %6938 = vmatpush1.msra.mxu0 %v6937
  %6939 = vmatprep.subr.mxu0 0.0
  %v6940 = vand.u32 %v5933, 4294901760
  %6941 = vmatpush1.msra.mxu0 %v6940
  %6942 = vmatprep.subr.mxu0 0.0
  %v6943 = vand.u32 %v5934, 4294901760
  %6944 = vmatpush1.msra.mxu0 %v6943
  %6945 = vmatprep.subr.mxu0 0.0
  %v6946 = vand.u32 %v5935, 4294901760
  %6947 = vmatpush1.msra.mxu0 %v6946
  %6948 = vmatprep.subr.mxu0 0.0
  %v6949 = vand.u32 %v5936, 4294901760
  %6950 = vmatpush1.msra.mxu0 %v6949
  %6951 = vmatprep.subr.mxu0 0.0
  %v6952 = vand.u32 %v5937, 4294901760
  %6953 = vmatpush1.msra.mxu0 %v6952
  %6954 = vmatprep.subr.mxu0 0.0
  %v6955 = vand.u32 %v5938, 4294901760
  %6956 = vmatpush1.msra.mxu0 %v6955
  %6957 = vmatprep.subr.mxu0 0.0
  %v6958 = vand.u32 %v5939, 4294901760
  %6959 = vmatpush1.msra.mxu0 %v6958
  %6960 = vmatprep.subr.mxu0 0.0
  %v6961 = vand.u32 %v5940, 4294901760
  %6962 = vmatpush1.msra.mxu0 %v6961
  %6963 = vmatprep.subr.mxu0 0.0
  %v6964 = vand.u32 %v5941, 4294901760
  %6965 = vmatpush1.msra.mxu0 %v6964
  %6966 = vmatprep.subr.mxu0 0.0
  %v6967 = vand.u32 %v5942, 4294901760
  %6968 = vmatpush1.msra.mxu0 %v6967
  %6969 = vmatprep.subr.mxu0 0.0
  %v6970 = vand.u32 %v5943, 4294901760
  %6971 = vmatpush1.msra.mxu0 %v6970
  %6972 = vmatprep.subr.mxu0 0.0
  %v6973 = vand.u32 %v5944, 4294901760
  %6974 = vmatpush1.msra.mxu0 %v6973
  %6975 = vmatprep.subr.mxu0 0.0
  %v6976 = vand.u32 %v5945, 4294901760
  %6977 = vmatpush1.msra.mxu0 %v6976
  %6978 = vmatprep.subr.mxu0 0.0
  %v6979 = vand.u32 %v5946, 4294901760
  %6980 = vmatpush1.msra.mxu0 %v6979
  %6981 = vmatprep.subr.mxu0 0.0
  %v6982 = vand.u32 %v5947, 4294901760
  %6983 = vmatpush1.msra.mxu0 %v6982
  %6984 = vmatprep.subr.mxu0 0.0
  %6985 = vmatpush1.msra.mxu0 0.0
  %6986 = vmatprep.subr.mxu0 0.0
  %6987 = vmatpush1.msra.mxu0 0.0
  %6988 = vmatprep.subr.mxu0 0.0
  %6989 = vmatpush1.msra.mxu0 0.0
  %6990 = vmatprep.subr.mxu0 0.0
  %6991 = vmatpush1.msra.mxu0 0.0
  %6992 = vmatprep.subr.mxu0 0.0
  %6993 = vmatpush1.msra.mxu0 0.0
  %6994 = vmatprep.subr.mxu0 0.0
  %6995 = vmatpush1.msra.mxu0 0.0
  %6996 = vmatprep.subr.mxu0 0.0
  %6997 = vmatpush1.msra.mxu0 0.0
  %6998 = vmatprep.subr.mxu0 0.0
  %6999 = vmatpush1.msra.mxu0 0.0
  %7000 = vmatprep.subr.mxu0 0.0
  %7001 = vmatpush1.msra.mxu0 0.0
  %7002 = vmatprep.subr.mxu0 0.0
  %7003 = vmatpush1.msra.mxu0 0.0
  %7004 = vmatprep.subr.mxu0 0.0
  %7005 = vmatpush1.msra.mxu0 0.0
  %7006 = vmatprep.subr.mxu0 0.0
  %7007 = vmatpush1.msra.mxu0 0.0
  %7008 = vmatprep.subr.mxu0 0.0
  %7009 = vmatpush1.msra.mxu0 0.0
  %7010 = vmatprep.subr.mxu0 0.0
  %7011 = vmatpush1.msra.mxu0 0.0
  %7012 = vmatprep.subr.mxu0 0.0
  %7013 = vmatpush1.msra.mxu0 0.0
  %7014 = vmatprep.subr.mxu0 0.0
  %7015 = vmatpush1.msra.mxu0 0.0
  %7016 = vmatprep.mubr.f32.mxu0 0.0
  %v7017 = vand.u32 %v5931, 4294901760
  %v7018 = vsub.f32 %v5931, %v7017
  %v7019 = vand.u32 %v7018, 4294901760
  %7020 = vmatmul.mubr.f32.gmra.mrb[0].mxu0 %v7019
  %v7021 = vpop.f32.mrb[0].mxu0
  %v7022 = vadd.f32 %v6933, %v7021
  %v7023 = vpop.f32.mrb[0].mxu0
  %7024 = vdwg.mxu0
  %7025 = vmatprep.subr.mxu0 0.0
  %v7026 = vand.u32 %v5932, 4294901760
  %v7027 = vsub.f32 %v5932, %v7026
  %v7028 = vand.u32 %v7027, 4294901760
  %7029 = vmatpush1.msra.mxu0 %v7028
  %7030 = vmatprep.subr.mxu0 0.0
  %v7031 = vand.u32 %v5933, 4294901760
  %v7032 = vsub.f32 %v5933, %v7031
  %v7033 = vand.u32 %v7032, 4294901760
  %7034 = vmatpush1.msra.mxu0 %v7033
  %7035 = vmatprep.subr.mxu0 0.0
  %v7036 = vand.u32 %v5934, 4294901760
  %v7037 = vsub.f32 %v5934, %v7036
  %v7038 = vand.u32 %v7037, 4294901760
  %7039 = vmatpush1.msra.mxu0 %v7038
  %7040 = vmatprep.subr.mxu0 0.0
  %v7041 = vand.u32 %v5935, 4294901760
  %v7042 = vsub.f32 %v5935, %v7041
  %v7043 = vand.u32 %v7042, 4294901760
  %7044 = vmatpush1.msra.mxu0 %v7043
  %7045 = vmatprep.subr.mxu0 0.0
  %v7046 = vand.u32 %v5936, 4294901760
  %v7047 = vsub.f32 %v5936, %v7046
  %v7048 = vand.u32 %v7047, 4294901760
  %7049 = vmatpush1.msra.mxu0 %v7048
  %7050 = vmatprep.subr.mxu0 0.0
  %v7051 = vand.u32 %v5937, 4294901760
  %v7052 = vsub.f32 %v5937, %v7051
  %v7053 = vand.u32 %v7052, 4294901760
  %7054 = vmatpush1.msra.mxu0 %v7053
  %7055 = vmatprep.subr.mxu0 0.0
  %v7056 = vand.u32 %v5938, 4294901760
  %v7057 = vsub.f32 %v5938, %v7056
  %v7058 = vand.u32 %v7057, 4294901760
  %7059 = vmatpush1.msra.mxu0 %v7058
  %7060 = vmatprep.subr.mxu0 0.0
  %v7061 = vand.u32 %v5939, 4294901760
  %v7062 = vsub.f32 %v5939, %v7061
  %v7063 = vand.u32 %v7062, 4294901760
  %7064 = vmatpush1.msra.mxu0 %v7063
  %7065 = vmatprep.subr.mxu0 0.0
  %v7066 = vand.u32 %v5940, 4294901760
  %v7067 = vsub.f32 %v5940, %v7066
  %v7068 = vand.u32 %v7067, 4294901760
  %7069 = vmatpush1.msra.mxu0 %v7068
  %7070 = vmatprep.subr.mxu0 0.0
  %v7071 = vand.u32 %v5941, 4294901760
  %v7072 = vsub.f32 %v5941, %v7071
  %v7073 = vand.u32 %v7072, 4294901760
  %7074 = vmatpush1.msra.mxu0 %v7073
  %7075 = vmatprep.subr.mxu0 0.0
  %v7076 = vand.u32 %v5942, 4294901760
  %v7077 = vsub.f32 %v5942, %v7076
  %v7078 = vand.u32 %v7077, 4294901760
  %7079 = vmatpush1.msra.mxu0 %v7078
  %7080 = vmatprep.subr.mxu0 0.0
  %v7081 = vand.u32 %v5943, 4294901760
  %v7082 = vsub.f32 %v5943, %v7081
  %v7083 = vand.u32 %v7082, 4294901760
  %7084 = vmatpush1.msra.mxu0 %v7083
  %7085 = vmatprep.subr.mxu0 0.0
  %v7086 = vand.u32 %v5944, 4294901760
  %v7087 = vsub.f32 %v5944, %v7086
  %v7088 = vand.u32 %v7087, 4294901760
  %7089 = vmatpush1.msra.mxu0 %v7088
  %7090 = vmatprep.subr.mxu0 0.0
  %v7091 = vand.u32 %v5945, 4294901760
  %v7092 = vsub.f32 %v5945, %v7091
  %v7093 = vand.u32 %v7092, 4294901760
  %7094 = vmatpush1.msra.mxu0 %v7093
  %7095 = vmatprep.subr.mxu0 0.0
  %v7096 = vand.u32 %v5946, 4294901760
  %v7097 = vsub.f32 %v5946, %v7096
  %v7098 = vand.u32 %v7097, 4294901760
  %7099 = vmatpush1.msra.mxu0 %v7098
  %7100 = vmatprep.subr.mxu0 0.0
  %v7101 = vand.u32 %v5947, 4294901760
  %v7102 = vsub.f32 %v5947, %v7101
  %v7103 = vand.u32 %v7102, 4294901760
  %7104 = vmatpush1.msra.mxu0 %v7103
  %7105 = vmatprep.subr.mxu0 0.0
  %7106 = vmatpush1.msra.mxu0 0.0
  %7107 = vmatprep.subr.mxu0 0.0
  %7108 = vmatpush1.msra.mxu0 0.0
  %7109 = vmatprep.subr.mxu0 0.0
  %7110 = vmatpush1.msra.mxu0 0.0
  %7111 = vmatprep.subr.mxu0 0.0
  %7112 = vmatpush1.msra.mxu0 0.0
  %7113 = vmatprep.subr.mxu0 0.0
  %7114 = vmatpush1.msra.mxu0 0.0
  %7115 = vmatprep.subr.mxu0 0.0
  %7116 = vmatpush1.msra.mxu0 0.0
  %7117 = vmatprep.subr.mxu0 0.0
  %7118 = vmatpush1.msra.mxu0 0.0
  %7119 = vmatprep.subr.mxu0 0.0
  %7120 = vmatpush1.msra.mxu0 0.0
  %7121 = vmatprep.subr.mxu0 0.0
  %7122 = vmatpush1.msra.mxu0 0.0
  %7123 = vmatprep.subr.mxu0 0.0
  %7124 = vmatpush1.msra.mxu0 0.0
  %7125 = vmatprep.subr.mxu0 0.0
  %7126 = vmatpush1.msra.mxu0 0.0
  %7127 = vmatprep.subr.mxu0 0.0
  %7128 = vmatpush1.msra.mxu0 0.0
  %7129 = vmatprep.subr.mxu0 0.0
  %7130 = vmatpush1.msra.mxu0 0.0
  %7131 = vmatprep.subr.mxu0 0.0
  %7132 = vmatpush1.msra.mxu0 0.0
  %7133 = vmatprep.subr.mxu0 0.0
  %7134 = vmatpush1.msra.mxu0 0.0
  %7135 = vmatprep.subr.mxu0 0.0
  %7136 = vmatpush1.msra.mxu0 0.0
  %7137 = vmatprep.mubr.f32.mxu0 0.0
  %v7138 = vand.u32 %v5931, 4294901760
  %7139 = vmatmul.mubr.f32.gmra.mrb[0].mxu0 %v7138
  %v7140 = vpop.f32.mrb[0].mxu0
  %v7141 = vadd.f32 %v7022, %v7140
  %v7142 = vpop.f32.mrb[0].mxu0
  %7143 = vdwg.mxu0
  %7144 = vmatprep.subr.mxu0 0.0
  %v7145 = vand.u32 %v5932, 4294901760
  %7146 = vmatpush1.msra.mxu0 %v7145
  %7147 = vmatprep.subr.mxu0 0.0
  %v7148 = vand.u32 %v5933, 4294901760
  %7149 = vmatpush1.msra.mxu0 %v7148
  %7150 = vmatprep.subr.mxu0 0.0
  %v7151 = vand.u32 %v5934, 4294901760
  %7152 = vmatpush1.msra.mxu0 %v7151
  %7153 = vmatprep.subr.mxu0 0.0
  %v7154 = vand.u32 %v5935, 4294901760
  %7155 = vmatpush1.msra.mxu0 %v7154
  %7156 = vmatprep.subr.mxu0 0.0
  %v7157 = vand.u32 %v5936, 4294901760
  %7158 = vmatpush1.msra.mxu0 %v7157
  %7159 = vmatprep.subr.mxu0 0.0
  %v7160 = vand.u32 %v5937, 4294901760
  %7161 = vmatpush1.msra.mxu0 %v7160
  %7162 = vmatprep.subr.mxu0 0.0
  %v7163 = vand.u32 %v5938, 4294901760
  %7164 = vmatpush1.msra.mxu0 %v7163
  %7165 = vmatprep.subr.mxu0 0.0
  %v7166 = vand.u32 %v5939, 4294901760
  %7167 = vmatpush1.msra.mxu0 %v7166
  %7168 = vmatprep.subr.mxu0 0.0
  %v7169 = vand.u32 %v5940, 4294901760
  %7170 = vmatpush1.msra.mxu0 %v7169
  %7171 = vmatprep.subr.mxu0 0.0
  %v7172 = vand.u32 %v5941, 4294901760
  %7173 = vmatpush1.msra.mxu0 %v7172
  %7174 = vmatprep.subr.mxu0 0.0
  %v7175 = vand.u32 %v5942, 4294901760
  %7176 = vmatpush1.msra.mxu0 %v7175
  %7177 = vmatprep.subr.mxu0 0.0
  %v7178 = vand.u32 %v5943, 4294901760
  %7179 = vmatpush1.msra.mxu0 %v7178
  %7180 = vmatprep.subr.mxu0 0.0
  %v7181 = vand.u32 %v5944, 4294901760
  %7182 = vmatpush1.msra.mxu0 %v7181
  %7183 = vmatprep.subr.mxu0 0.0
  %v7184 = vand.u32 %v5945, 4294901760
  %7185 = vmatpush1.msra.mxu0 %v7184
  %7186 = vmatprep.subr.mxu0 0.0
  %v7187 = vand.u32 %v5946, 4294901760
  %7188 = vmatpush1.msra.mxu0 %v7187
  %7189 = vmatprep.subr.mxu0 0.0
  %v7190 = vand.u32 %v5947, 4294901760
  %7191 = vmatpush1.msra.mxu0 %v7190
  %7192 = vmatprep.subr.mxu0 0.0
  %7193 = vmatpush1.msra.mxu0 0.0
  %7194 = vmatprep.subr.mxu0 0.0
  %7195 = vmatpush1.msra.mxu0 0.0
  %7196 = vmatprep.subr.mxu0 0.0
  %7197 = vmatpush1.msra.mxu0 0.0
  %7198 = vmatprep.subr.mxu0 0.0
  %7199 = vmatpush1.msra.mxu0 0.0
  %7200 = vmatprep.subr.mxu0 0.0
  %7201 = vmatpush1.msra.mxu0 0.0
  %7202 = vmatprep.subr.mxu0 0.0
  %7203 = vmatpush1.msra.mxu0 0.0
  %7204 = vmatprep.subr.mxu0 0.0
  %7205 = vmatpush1.msra.mxu0 0.0
  %7206 = vmatprep.subr.mxu0 0.0
  %7207 = vmatpush1.msra.mxu0 0.0
  %7208 = vmatprep.subr.mxu0 0.0
  %7209 = vmatpush1.msra.mxu0 0.0
  %7210 = vmatprep.subr.mxu0 0.0
  %7211 = vmatpush1.msra.mxu0 0.0
  %7212 = vmatprep.subr.mxu0 0.0
  %7213 = vmatpush1.msra.mxu0 0.0
  %7214 = vmatprep.subr.mxu0 0.0
  %7215 = vmatpush1.msra.mxu0 0.0
  %7216 = vmatprep.subr.mxu0 0.0
  %7217 = vmatpush1.msra.mxu0 0.0
  %7218 = vmatprep.subr.mxu0 0.0
  %7219 = vmatpush1.msra.mxu0 0.0
  %7220 = vmatprep.subr.mxu0 0.0
  %7221 = vmatpush1.msra.mxu0 0.0
  %7222 = vmatprep.subr.mxu0 0.0
  %7223 = vmatpush1.msra.mxu0 0.0
  %7224 = vmatprep.mubr.f32.mxu0 0.0
  %v7225 = vand.u32 %v5931, 4294901760
  %7226 = vmatmul.mubr.f32.gmra.mrb[0].mxu0 %v7225
  %v7227 = vpop.f32.mrb[0].mxu0
  %v7228 = vadd.f32 %v7141, %v7227
  %v7229 = vpop.f32.mrb[0].mxu0
  %7230 = vdwg.mxu0
  %v7231 = vmul.f32 %v7228, 0.001953125
  %v7232 = vmul.f32 %v6589, %v6589
  %v7233 = vsub.f32 %v7231, %v7232
  %v7234 = vld [vmem:[%s5] sm:$0x1]
  %v7235 = vadd.f32 %v7233, 1e-05
  %v7236 = vrsqrt.pop %v7235
  %v7237 = vmul.f32 %v7234, %v7236
  %v7238 = vld [vmem:[%s6] sm:$0x1]
  %v7239 = vmul.f32 %v6589, %v7237
  %v7240 = vsub.f32 %v7238, %v7239
  %v7242 = vlaneseq
  %v7243 = vshrl.u32 %v7242, 7
  %v7244 = vsub.s32 0, %v7243
  %v7245 = vrot.slane %v7237, %v7244
  %v7247 = vmul.f32 %v5906, %v7245
  %v7248 = vmul.f32 %v5907, %v7245
  %v7249 = vmul.f32 %v5908, %v7245
  %v7250 = vmul.f32 %v5909, %v7245
  %v7252 = vlaneseq
  %v7253 = vshrl.u32 %v7252, 7
  %v7254 = vsub.s32 0, %v7253
  %v7255 = vrot.slane %v7240, %v7254
  %v7257 = vadd.f32 %v7247, %v7255
  %v7258 = vadd.f32 %v7248, %v7255
  %v7259 = vadd.f32 %v7249, %v7255
  %v7260 = vadd.f32 %v7250, %v7255
  %v7261 = vmax.f32 %v7257, 0.0
  %v7262 = vmax.f32 %v7258, 0.0
  %v7263 = vmax.f32 %v7259, 0.0
  %v7264 = vmax.f32 %v7260, 0.0
  %7265 = vst [vmem:[%s12] sm:$0xff] %v7261
  %7266 = vst [vmem:[%s12 + $0x8] sm:$0xff] %v7262
  %7267 = vst [vmem:[%s12 + $0x10] sm:$0xff] %v7263
  %7268 = vst [vmem:[%s12 + $0x18] sm:$0xff] %v7264
  %v7269 = vld [vmem:[%s8] sm:$0xff]
  %v7270 = vld [vmem:[%s8 + $0x8] sm:$0xff]
  %v7271 = vld [vmem:[%s8 + $0x10] sm:$0xff]
  %v7272 = vld [vmem:[%s8 + $0x18] sm:$0xff]
  %v7273 = vld [vmem:[%s8 + $0x20] sm:$0xff]
  %v7274 = vld [vmem:[%s8 + $0x28] sm:$0xff]
  %v7275 = vld [vmem:[%s8 + $0x30] sm:$0xff]
  %v7276 = vld [vmem:[%s8 + $0x38] sm:$0xff]
  %v7277 = vld [vmem:[%s8 + $0x40] sm:$0xff]
  %v7278 = vld [vmem:[%s8 + $0x48] sm:$0xff]
  %v7279 = vld [vmem:[%s8 + $0x50] sm:$0xff]
  %v7280 = vld [vmem:[%s8 + $0x58] sm:$0xff]
  %v7281 = vld [vmem:[%s8 + $0x60] sm:$0xff]
  %v7282 = vld [vmem:[%s8 + $0x68] sm:$0xff]
  %v7283 = vld [vmem:[%s8 + $0x70] sm:$0xff]
  %v7284 = vld [vmem:[%s8 + $0x78] sm:$0xff]
  %7285 = vmatprep.subr.mxu0 0.0
  %v7286 = vand.u32 %v7269, 4294901760
  %7287 = vmatpush1.msra.mxu0 %v7286
  %7288 = vmatprep.subr.mxu0 0.0
  %v7289 = vand.u32 %v7270, 4294901760
  %7290 = vmatpush1.msra.mxu0 %v7289
  %7291 = vmatprep.subr.mxu0 0.0
  %v7292 = vand.u32 %v7271, 4294901760
  %7293 = vmatpush1.msra.mxu0 %v7292
  %7294 = vmatprep.subr.mxu0 0.0
  %v7295 = vand.u32 %v7272, 4294901760
  %7296 = vmatpush1.msra.mxu0 %v7295
  %7297 = vmatprep.subr.mxu0 0.0
  %v7298 = vand.u32 %v7273, 4294901760
  %7299 = vmatpush1.msra.mxu0 %v7298
  %7300 = vmatprep.subr.mxu0 0.0
  %v7301 = vand.u32 %v7274, 4294901760
  %7302 = vmatpush1.msra.mxu0 %v7301
  %7303 = vmatprep.subr.mxu0 0.0
  %v7304 = vand.u32 %v7275, 4294901760
  %7305 = vmatpush1.msra.mxu0 %v7304
  %7306 = vmatprep.subr.mxu0 0.0
  %v7307 = vand.u32 %v7276, 4294901760
  %7308 = vmatpush1.msra.mxu0 %v7307
  %7309 = vmatprep.subr.mxu0 0.0
  %v7310 = vand.u32 %v7277, 4294901760
  %7311 = vmatpush1.msra.mxu0 %v7310
  %7312 = vmatprep.subr.mxu0 0.0
  %v7313 = vand.u32 %v7278, 4294901760
  %7314 = vmatpush1.msra.mxu0 %v7313
  %7315 = vmatprep.subr.mxu0 0.0
  %v7316 = vand.u32 %v7279, 4294901760
  %7317 = vmatpush1.msra.mxu0 %v7316
  %7318 = vmatprep.subr.mxu0 0.0
  %v7319 = vand.u32 %v7280, 4294901760
  %7320 = vmatpush1.msra.mxu0 %v7319
  %7321 = vmatprep.subr.mxu0 0.0
  %v7322 = vand.u32 %v7281, 4294901760
  %7323 = vmatpush1.msra.mxu0 %v7322
  %7324 = vmatprep.subr.mxu0 0.0
  %v7325 = vand.u32 %v7282, 4294901760
  %7326 = vmatpush1.msra.mxu0 %v7325
  %7327 = vmatprep.subr.mxu0 0.0
  %v7328 = vand.u32 %v7283, 4294901760
  %7329 = vmatpush1.msra.mxu0 %v7328
  %7330 = vmatprep.subr.mxu0 0.0
  %v7331 = vand.u32 %v7284, 4294901760
  %7332 = vmatpush1.msra.mxu0 %v7331
  %7333 = vmatprep.subr.mxu0 0.0
  %7334 = vmatpush1.msra.mxu0 0.0
  %7335 = vmatprep.subr.mxu0 0.0
  %7336 = vmatpush1.msra.mxu0 0.0
  %7337 = vmatprep.subr.mxu0 0.0
  %7338 = vmatpush1.msra.mxu0 0.0
  %7339 = vmatprep.subr.mxu0 0.0
  %7340 = vmatpush1.msra.mxu0 0.0
  %7341 = vmatprep.subr.mxu0 0.0
  %7342 = vmatpush1.msra.mxu0 0.0
  %7343 = vmatprep.subr.mxu0 0.0
  %7344 = vmatpush1.msra.mxu0 0.0
  %7345 = vmatprep.subr.mxu0 0.0
  %7346 = vmatpush1.msra.mxu0 0.0
  %7347 = vmatprep.subr.mxu0 0.0
  %7348 = vmatpush1.msra.mxu0 0.0
  %7349 = vmatprep.subr.mxu0 0.0
  %7350 = vmatpush1.msra.mxu0 0.0
  %7351 = vmatprep.subr.mxu0 0.0
  %7352 = vmatpush1.msra.mxu0 0.0
  %7353 = vmatprep.subr.mxu0 0.0
  %7354 = vmatpush1.msra.mxu0 0.0
  %7355 = vmatprep.subr.mxu0 0.0
  %7356 = vmatpush1.msra.mxu0 0.0
  %7357 = vmatprep.subr.mxu0 0.0
  %7358 = vmatpush1.msra.mxu0 0.0
  %7359 = vmatprep.subr.mxu0 0.0
  %7360 = vmatpush1.msra.mxu0 0.0
  %7361 = vmatprep.subr.mxu0 0.0
  %7362 = vmatpush1.msra.mxu0 0.0
  %7363 = vmatprep.subr.mxu0 0.0
  %7364 = vmatpush1.msra.mxu0 0.0
  %7365 = vmatprep.mubr.f32.mxu0 0.0
  %v7366 = vand.u32 %v7261, 4294901760
  %v7367 = vsub.f32 %v7261, %v7366
  %v7368 = vand.u32 %v7367, 4294901760
  %v7369 = vsub.f32 %v7367, %v7368
  %v7370 = vand.u32 %v7369, 4294901760
  %7371 = vmatmul.mubr.f32.gmra.mrb[0].mxu0 %v7370
  %v7372 = vpop.f32.mrb[0].mxu0
  %v7373 = vadd.f32 0.0, %v7372
  %v7374 = vpop.f32.mrb[0].mxu0
  %7375 = vmatprep.mubr.f32.mxu0 0.0
  %v7376 = vand.u32 %v7262, 4294901760
  %v7377 = vsub.f32 %v7262, %v7376
  %v7378 = vand.u32 %v7377, 4294901760
  %v7379 = vsub.f32 %v7377, %v7378
  %v7380 = vand.u32 %v7379, 4294901760
  %7381 = vmatmul.mubr.f32.gmra.mrb[0].mxu0 %v7380
  %v7382 = vpop.f32.mrb[0].mxu0
  %v7383 = vadd.f32 0.0, %v7382
  %v7384 = vpop.f32.mrb[0].mxu0
  %7385 = vmatprep.mubr.f32.mxu0 0.0
  %v7386 = vand.u32 %v7263, 4294901760
  %v7387 = vsub.f32 %v7263, %v7386
  %v7388 = vand.u32 %v7387, 4294901760
  %v7389 = vsub.f32 %v7387, %v7388
  %v7390 = vand.u32 %v7389, 4294901760
  %7391 = vmatmul.mubr.f32.gmra.mrb[0].mxu0 %v7390
  %v7392 = vpop.f32.mrb[0].mxu0
  %v7393 = vadd.f32 0.0, %v7392
  %v7394 = vpop.f32.mrb[0].mxu0
  %7395 = vmatprep.mubr.f32.mxu0 0.0
  %v7396 = vand.u32 %v7264, 4294901760
  %v7397 = vsub.f32 %v7264, %v7396
  %v7398 = vand.u32 %v7397, 4294901760
  %v7399 = vsub.f32 %v7397, %v7398
  %v7400 = vand.u32 %v7399, 4294901760
  %7401 = vmatmul.mubr.f32.gmra.mrb[0].mxu0 %v7400
  %v7402 = vpop.f32.mrb[0].mxu0
  %v7403 = vadd.f32 0.0, %v7402
  %v7404 = vpop.f32.mrb[0].mxu0
  %7405 = vdwg.mxu0
  %7406 = vmatprep.subr.mxu0 0.0
  %v7407 = vand.u32 %v7269, 4294901760
  %v7408 = vsub.f32 %v7269, %v7407
  %v7409 = vand.u32 %v7408, 4294901760
  %v7410 = vsub.f32 %v7408, %v7409
  %v7411 = vand.u32 %v7410, 4294901760
  %7412 = vmatpush1.msra.mxu0 %v7411
  %7413 = vmatprep.subr.mxu0 0.0
  %v7414 = vand.u32 %v7270, 4294901760
  %v7415 = vsub.f32 %v7270, %v7414
  %v7416 = vand.u32 %v7415, 4294901760
  %v7417 = vsub.f32 %v7415, %v7416
  %v7418 = vand.u32 %v7417, 4294901760
  %7419 = vmatpush1.msra.mxu0 %v7418
  %7420 = vmatprep.subr.mxu0 0.0
  %v7421 = vand.u32 %v7271, 4294901760
  %v7422 = vsub.f32 %v7271, %v7421
  %v7423 = vand.u32 %v7422, 4294901760
  %v7424 = vsub.f32 %v7422, %v7423
  %v7425 = vand.u32 %v7424, 4294901760
  %7426 = vmatpush1.msra.mxu0 %v7425
  %7427 = vmatprep.subr.mxu0 0.0
  %v7428 = vand.u32 %v7272, 4294901760
  %v7429 = vsub.f32 %v7272, %v7428
  %v7430 = vand.u32 %v7429, 4294901760
  %v7431 = vsub.f32 %v7429, %v7430
  %v7432 = vand.u32 %v7431, 4294901760
  %7433 = vmatpush1.msra.mxu0 %v7432
  %7434 = vmatprep.subr.mxu0 0.0
  %v7435 = vand.u32 %v7273, 4294901760
  %v7436 = vsub.f32 %v7273, %v7435
  %v7437 = vand.u32 %v7436, 4294901760
  %v7438 = vsub.f32 %v7436, %v7437
  %v7439 = vand.u32 %v7438, 4294901760
  %7440 = vmatpush1.msra.mxu0 %v7439
  %7441 = vmatprep.subr.mxu0 0.0
  %v7442 = vand.u32 %v7274, 4294901760
  %v7443 = vsub.f32 %v7274, %v7442
  %v7444 = vand.u32 %v7443, 4294901760
  %v7445 = vsub.f32 %v7443, %v7444
  %v7446 = vand.u32 %v7445, 4294901760
  %7447 = vmatpush1.msra.mxu0 %v7446
  %7448 = vmatprep.subr.mxu0 0.0
  %v7449 = vand.u32 %v7275, 4294901760
  %v7450 = vsub.f32 %v7275, %v7449
  %v7451 = vand.u32 %v7450, 4294901760
  %v7452 = vsub.f32 %v7450, %v7451
  %v7453 = vand.u32 %v7452, 4294901760
  %7454 = vmatpush1.msra.mxu0 %v7453
  %7455 = vmatprep.subr.mxu0 0.0
  %v7456 = vand.u32 %v7276, 4294901760
  %v7457 = vsub.f32 %v7276, %v7456
  %v7458 = vand.u32 %v7457, 4294901760
  %v7459 = vsub.f32 %v7457, %v7458
  %v7460 = vand.u32 %v7459, 4294901760
  %7461 = vmatpush1.msra.mxu0 %v7460
  %7462 = vmatprep.subr.mxu0 0.0
  %v7463 = vand.u32 %v7277, 4294901760
  %v7464 = vsub.f32 %v7277, %v7463
  %v7465 = vand.u32 %v7464, 4294901760
  %v7466 = vsub.f32 %v7464, %v7465
  %v7467 = vand.u32 %v7466, 4294901760
  %7468 = vmatpush1.msra.mxu0 %v7467
  %7469 = vmatprep.subr.mxu0 0.0
  %v7470 = vand.u32 %v7278, 4294901760
  %v7471 = vsub.f32 %v7278, %v7470
  %v7472 = vand.u32 %v7471, 4294901760
  %v7473 = vsub.f32 %v7471, %v7472
  %v7474 = vand.u32 %v7473, 4294901760
  %7475 = vmatpush1.msra.mxu0 %v7474
  %7476 = vmatprep.subr.mxu0 0.0
  %v7477 = vand.u32 %v7279, 4294901760
  %v7478 = vsub.f32 %v7279, %v7477
  %v7479 = vand.u32 %v7478, 4294901760
  %v7480 = vsub.f32 %v7478, %v7479
  %v7481 = vand.u32 %v7480, 4294901760
  %7482 = vmatpush1.msra.mxu0 %v7481
  %7483 = vmatprep.subr.mxu0 0.0
  %v7484 = vand.u32 %v7280, 4294901760
  %v7485 = vsub.f32 %v7280, %v7484
  %v7486 = vand.u32 %v7485, 4294901760
  %v7487 = vsub.f32 %v7485, %v7486
  %v7488 = vand.u32 %v7487, 4294901760
  %7489 = vmatpush1.msra.mxu0 %v7488
  %7490 = vmatprep.subr.mxu0 0.0
  %v7491 = vand.u32 %v7281, 4294901760
  %v7492 = vsub.f32 %v7281, %v7491
  %v7493 = vand.u32 %v7492, 4294901760
  %v7494 = vsub.f32 %v7492, %v7493
  %v7495 = vand.u32 %v7494, 4294901760
  %7496 = vmatpush1.msra.mxu0 %v7495
  %7497 = vmatprep.subr.mxu0 0.0
  %v7498 = vand.u32 %v7282, 4294901760
  %v7499 = vsub.f32 %v7282, %v7498
  %v7500 = vand.u32 %v7499, 4294901760
  %v7501 = vsub.f32 %v7499, %v7500
  %v7502 = vand.u32 %v7501, 4294901760
  %7503 = vmatpush1.msra.mxu0 %v7502
  %7504 = vmatprep.subr.mxu0 0.0
  %v7505 = vand.u32 %v7283, 4294901760
  %v7506 = vsub.f32 %v7283, %v7505
  %v7507 = vand.u32 %v7506, 4294901760
  %v7508 = vsub.f32 %v7506, %v7507
  %v7509 = vand.u32 %v7508, 4294901760
  %7510 = vmatpush1.msra.mxu0 %v7509
  %7511 = vmatprep.subr.mxu0 0.0
  %v7512 = vand.u32 %v7284, 4294901760
  %v7513 = vsub.f32 %v7284, %v7512
  %v7514 = vand.u32 %v7513, 4294901760
  %v7515 = vsub.f32 %v7513, %v7514
  %v7516 = vand.u32 %v7515, 4294901760
  %7517 = vmatpush1.msra.mxu0 %v7516
  %7518 = vmatprep.subr.mxu0 0.0
  %7519 = vmatpush1.msra.mxu0 0.0
  %7520 = vmatprep.subr.mxu0 0.0
  %7521 = vmatpush1.msra.mxu0 0.0
  %7522 = vmatprep.subr.mxu0 0.0
  %7523 = vmatpush1.msra.mxu0 0.0
  %7524 = vmatprep.subr.mxu0 0.0
  %7525 = vmatpush1.msra.mxu0 0.0
  %7526 = vmatprep.subr.mxu0 0.0
  %7527 = vmatpush1.msra.mxu0 0.0
  %7528 = vmatprep.subr.mxu0 0.0
  %7529 = vmatpush1.msra.mxu0 0.0
  %7530 = vmatprep.subr.mxu0 0.0
  %7531 = vmatpush1.msra.mxu0 0.0
  %7532 = vmatprep.subr.mxu0 0.0
  %7533 = vmatpush1.msra.mxu0 0.0
  %7534 = vmatprep.subr.mxu0 0.0
  %7535 = vmatpush1.msra.mxu0 0.0
  %7536 = vmatprep.subr.mxu0 0.0
  %7537 = vmatpush1.msra.mxu0 0.0
  %7538 = vmatprep.subr.mxu0 0.0
  %7539 = vmatpush1.msra.mxu0 0.0
  %7540 = vmatprep.subr.mxu0 0.0
  %7541 = vmatpush1.msra.mxu0 0.0
  %7542 = vmatprep.subr.mxu0 0.0
  %7543 = vmatpush1.msra.mxu0 0.0
  %7544 = vmatprep.subr.mxu0 0.0
  %7545 = vmatpush1.msra.mxu0 0.0
  %7546 = vmatprep.subr.mxu0 0.0
  %7547 = vmatpush1.msra.mxu0 0.0
  %7548 = vmatprep.subr.mxu0 0.0
  %7549 = vmatpush1.msra.mxu0 0.0
  %7550 = vmatprep.mubr.f32.mxu0 0.0
  %v7551 = vand.u32 %v7261, 4294901760
  %7552 = vmatmul.mubr.f32.gmra.mrb[0].mxu0 %v7551
  %v7553 = vpop.f32.mrb[0].mxu0
  %v7554 = vadd.f32 %v7373, %v7553
  %v7555 = vpop.f32.mrb[0].mxu0
  %7556 = vmatprep.mubr.f32.mxu0 0.0
  %v7557 = vand.u32 %v7262, 4294901760
  %7558 = vmatmul.mubr.f32.gmra.mrb[0].mxu0 %v7557
  %v7559 = vpop.f32.mrb[0].mxu0
  %v7560 = vadd.f32 %v7383, %v7559
  %v7561 = vpop.f32.mrb[0].mxu0
  %7562 = vmatprep.mubr.f32.mxu0 0.0
  %v7563 = vand.u32 %v7263, 4294901760
  %7564 = vmatmul.mubr.f32.gmra.mrb[0].mxu0 %v7563
  %v7565 = vpop.f32.mrb[0].mxu0
  %v7566 = vadd.f32 %v7393, %v7565
  %v7567 = vpop.f32.mrb[0].mxu0
  %7568 = vmatprep.mubr.f32.mxu0 0.0
  %v7569 = vand.u32 %v7264, 4294901760
  %7570 = vmatmul.mubr.f32.gmra.mrb[0].mxu0 %v7569
  %v7571 = vpop.f32.mrb[0].mxu0
  %v7572 = vadd.f32 %v7403, %v7571
  %v7573 = vpop.f32.mrb[0].mxu0
  %7574 = vdwg.mxu0
  %7575 = vmatprep.subr.mxu0 0.0
  %v7576 = vand.u32 %v7269, 4294901760
  %v7577 = vsub.f32 %v7269, %v7576
  %7578 = vmatpush1.msra.mxu0 %v7577
  %7579 = vmatprep.subr.mxu0 0.0
  %v7580 = vand.u32 %v7270, 4294901760
  %v7581 = vsub.f32 %v7270, %v7580
  %7582 = vmatpush1.msra.mxu0 %v7581
  %7583 = vmatprep.subr.mxu0 0.0
  %v7584 = vand.u32 %v7271, 4294901760
  %v7585 = vsub.f32 %v7271, %v7584
  %7586 = vmatpush1.msra.mxu0 %v7585
  %7587 = vmatprep.subr.mxu0 0.0
  %v7588 = vand.u32 %v7272, 4294901760
  %v7589 = vsub.f32 %v7272, %v7588
  %7590 = vmatpush1.msra.mxu0 %v7589
  %7591 = vmatprep.subr.mxu0 0.0
  %v7592 = vand.u32 %v7273, 4294901760
  %v7593 = vsub.f32 %v7273, %v7592
  %7594 = vmatpush1.msra.mxu0 %v7593
  %7595 = vmatprep.subr.mxu0 0.0
  %v7596 = vand.u32 %v7274, 4294901760
  %v7597 = vsub.f32 %v7274, %v7596
  %7598 = vmatpush1.msra.mxu0 %v7597
  %7599 = vmatprep.subr.mxu0 0.0
  %v7600 = vand.u32 %v7275, 4294901760
  %v7601 = vsub.f32 %v7275, %v7600
  %7602 = vmatpush1.msra.mxu0 %v7601
  %7603 = vmatprep.subr.mxu0 0.0
  %v7604 = vand.u32 %v7276, 4294901760
  %v7605 = vsub.f32 %v7276, %v7604
  %7606 = vmatpush1.msra.mxu0 %v7605
  %7607 = vmatprep.subr.mxu0 0.0
  %v7608 = vand.u32 %v7277, 4294901760
  %v7609 = vsub.f32 %v7277, %v7608
  %7610 = vmatpush1.msra.mxu0 %v7609
  %7611 = vmatprep.subr.mxu0 0.0
  %v7612 = vand.u32 %v7278, 4294901760
  %v7613 = vsub.f32 %v7278, %v7612
  %7614 = vmatpush1.msra.mxu0 %v7613
  %7615 = vmatprep.subr.mxu0 0.0
  %v7616 = vand.u32 %v7279, 4294901760
  %v7617 = vsub.f32 %v7279, %v7616
  %7618 = vmatpush1.msra.mxu0 %v7617
  %7619 = vmatprep.subr.mxu0 0.0
  %v7620 = vand.u32 %v7280, 4294901760
  %v7621 = vsub.f32 %v7280, %v7620
  %7622 = vmatpush1.msra.mxu0 %v7621
  %7623 = vmatprep.subr.mxu0 0.0
  %v7624 = vand.u32 %v7281, 4294901760
  %v7625 = vsub.f32 %v7281, %v7624
  %7626 = vmatpush1.msra.mxu0 %v7625
  %7627 = vmatprep.subr.mxu0 0.0
  %v7628 = vand.u32 %v7282, 4294901760
  %v7629 = vsub.f32 %v7282, %v7628
  %7630 = vmatpush1.msra.mxu0 %v7629
  %7631 = vmatprep.subr.mxu0 0.0
  %v7632 = vand.u32 %v7283, 4294901760
  %v7633 = vsub.f32 %v7283, %v7632
  %7634 = vmatpush1.msra.mxu0 %v7633
  %7635 = vmatprep.subr.mxu0 0.0
  %v7636 = vand.u32 %v7284, 4294901760
  %v7637 = vsub.f32 %v7284, %v7636
  %7638 = vmatpush1.msra.mxu0 %v7637
  %7639 = vmatprep.subr.mxu0 0.0
  %7640 = vmatpush1.msra.mxu0 0.0
  %7641 = vmatprep.subr.mxu0 0.0
  %7642 = vmatpush1.msra.mxu0 0.0
  %7643 = vmatprep.subr.mxu0 0.0
  %7644 = vmatpush1.msra.mxu0 0.0
  %7645 = vmatprep.subr.mxu0 0.0
  %7646 = vmatpush1.msra.mxu0 0.0
  %7647 = vmatprep.subr.mxu0 0.0
  %7648 = vmatpush1.msra.mxu0 0.0
  %7649 = vmatprep.subr.mxu0 0.0
  %7650 = vmatpush1.msra.mxu0 0.0
  %7651 = vmatprep.subr.mxu0 0.0
  %7652 = vmatpush1.msra.mxu0 0.0
  %7653 = vmatprep.subr.mxu0 0.0
  %7654 = vmatpush1.msra.mxu0 0.0
  %7655 = vmatprep.subr.mxu0 0.0
  %7656 = vmatpush1.msra.mxu0 0.0
  %7657 = vmatprep.subr.mxu0 0.0
  %7658 = vmatpush1.msra.mxu0 0.0
  %7659 = vmatprep.subr.mxu0 0.0
  %7660 = vmatpush1.msra.mxu0 0.0
  %7661 = vmatprep.subr.mxu0 0.0
  %7662 = vmatpush1.msra.mxu0 0.0
  %7663 = vmatprep.subr.mxu0 0.0
  %7664 = vmatpush1.msra.mxu0 0.0
  %7665 = vmatprep.subr.mxu0 0.0
  %7666 = vmatpush1.msra.mxu0 0.0
  %7667 = vmatprep.subr.mxu0 0.0
  %7668 = vmatpush1.msra.mxu0 0.0
  %7669 = vmatprep.subr.mxu0 0.0
  %7670 = vmatpush1.msra.mxu0 0.0
  %7671 = vmatprep.mubr.f32.mxu0 0.0
  %v7672 = vand.u32 %v7261, 4294901760
  %v7673 = vsub.f32 %v7261, %v7672
  %7674 = vmatmul.mubr.f32.gmra.mrb[0].mxu0 %v7673
  %v7675 = vpop.f32.mrb[0].mxu0
  %v7676 = vadd.f32 %v7554, %v7675
  %v7677 = vpop.f32.mrb[0].mxu0
  %7678 = vmatprep.mubr.f32.mxu0 0.0
  %v7679 = vand.u32 %v7262, 4294901760
  %v7680 = vsub.f32 %v7262, %v7679
  %7681 = vmatmul.mubr.f32.gmra.mrb[0].mxu0 %v7680
  %v7682 = vpop.f32.mrb[0].mxu0
  %v7683 = vadd.f32 %v7560, %v7682
  %v7684 = vpop.f32.mrb[0].mxu0
  %7685 = vmatprep.mubr.f32.mxu0 0.0
  %v7686 = vand.u32 %v7263, 4294901760
  %v7687 = vsub.f32 %v7263, %v7686
  %7688 = vmatmul.mubr.f32.gmra.mrb[0].mxu0 %v7687
  %v7689 = vpop.f32.mrb[0].mxu0
  %v7690 = vadd.f32 %v7566, %v7689
  %v7691 = vpop.f32.mrb[0].mxu0
  %7692 = vmatprep.mubr.f32.mxu0 0.0
  %v7693 = vand.u32 %v7264, 4294901760
  %v7694 = vsub.f32 %v7264, %v7693
  %7695 = vmatmul.mubr.f32.gmra.mrb[0].mxu0 %v7694
  %v7696 = vpop.f32.mrb[0].mxu0
  %v7697 = vadd.f32 %v7572, %v7696
  %v7698 = vpop.f32.mrb[0].mxu0
  %7699 = vdwg.mxu0
  %7700 = vmatprep.subr.mxu0 0.0
  %v7701 = vand.u32 %v7269, 4294901760
  %7702 = vmatpush1.msra.mxu0 %v7701
  %7703 = vmatprep.subr.mxu0 0.0
  %v7704 = vand.u32 %v7270, 4294901760
  %7705 = vmatpush1.msra.mxu0 %v7704
  %7706 = vmatprep.subr.mxu0 0.0
  %v7707 = vand.u32 %v7271, 4294901760
  %7708 = vmatpush1.msra.mxu0 %v7707
  %7709 = vmatprep.subr.mxu0 0.0
  %v7710 = vand.u32 %v7272, 4294901760
  %7711 = vmatpush1.msra.mxu0 %v7710
  %7712 = vmatprep.subr.mxu0 0.0
  %v7713 = vand.u32 %v7273, 4294901760
  %7714 = vmatpush1.msra.mxu0 %v7713
  %7715 = vmatprep.subr.mxu0 0.0
  %v7716 = vand.u32 %v7274, 4294901760
  %7717 = vmatpush1.msra.mxu0 %v7716
  %7718 = vmatprep.subr.mxu0 0.0
  %v7719 = vand.u32 %v7275, 4294901760
  %7720 = vmatpush1.msra.mxu0 %v7719
  %7721 = vmatprep.subr.mxu0 0.0
  %v7722 = vand.u32 %v7276, 4294901760
  %7723 = vmatpush1.msra.mxu0 %v7722
  %7724 = vmatprep.subr.mxu0 0.0
  %v7725 = vand.u32 %v7277, 4294901760
  %7726 = vmatpush1.msra.mxu0 %v7725
  %7727 = vmatprep.subr.mxu0 0.0
  %v7728 = vand.u32 %v7278, 4294901760
  %7729 = vmatpush1.msra.mxu0 %v7728
  %7730 = vmatprep.subr.mxu0 0.0
  %v7731 = vand.u32 %v7279, 4294901760
  %7732 = vmatpush1.msra.mxu0 %v7731
  %7733 = vmatprep.subr.mxu0 0.0
  %v7734 = vand.u32 %v7280, 4294901760
  %7735 = vmatpush1.msra.mxu0 %v7734
  %7736 = vmatprep.subr.mxu0 0.0
  %v7737 = vand.u32 %v7281, 4294901760
  %7738 = vmatpush1.msra.mxu0 %v7737
  %7739 = vmatprep.subr.mxu0 0.0
  %v7740 = vand.u32 %v7282, 4294901760
  %7741 = vmatpush1.msra.mxu0 %v7740
  %7742 = vmatprep.subr.mxu0 0.0
  %v7743 = vand.u32 %v7283, 4294901760
  %7744 = vmatpush1.msra.mxu0 %v7743
  %7745 = vmatprep.subr.mxu0 0.0
  %v7746 = vand.u32 %v7284, 4294901760
  %7747 = vmatpush1.msra.mxu0 %v7746
  %7748 = vmatprep.subr.mxu0 0.0
  %7749 = vmatpush1.msra.mxu0 0.0
  %7750 = vmatprep.subr.mxu0 0.0
  %7751 = vmatpush1.msra.mxu0 0.0
  %7752 = vmatprep.subr.mxu0 0.0
  %7753 = vmatpush1.msra.mxu0 0.0
  %7754 = vmatprep.subr.mxu0 0.0
  %7755 = vmatpush1.msra.mxu0 0.0
  %7756 = vmatprep.subr.mxu0 0.0
  %7757 = vmatpush1.msra.mxu0 0.0
  %7758 = vmatprep.subr.mxu0 0.0
  %7759 = vmatpush1.msra.mxu0 0.0
  %7760 = vmatprep.subr.mxu0 0.0
  %7761 = vmatpush1.msra.mxu0 0.0
  %7762 = vmatprep.subr.mxu0 0.0
  %7763 = vmatpush1.msra.mxu0 0.0
  %7764 = vmatprep.subr.mxu0 0.0
  %7765 = vmatpush1.msra.mxu0 0.0
  %7766 = vmatprep.subr.mxu0 0.0
  %7767 = vmatpush1.msra.mxu0 0.0
  %7768 = vmatprep.subr.mxu0 0.0
  %7769 = vmatpush1.msra.mxu0 0.0
  %7770 = vmatprep.subr.mxu0 0.0
  %7771 = vmatpush1.msra.mxu0 0.0
  %7772 = vmatprep.subr.mxu0 0.0
  %7773 = vmatpush1.msra.mxu0 0.0
  %7774 = vmatprep.subr.mxu0 0.0
  %7775 = vmatpush1.msra.mxu0 0.0
  %7776 = vmatprep.subr.mxu0 0.0
  %7777 = vmatpush1.msra.mxu0 0.0
  %7778 = vmatprep.subr.mxu0 0.0
  %7779 = vmatpush1.msra.mxu0 0.0
  %7780 = vmatprep.mubr.f32.mxu0 0.0
  %v7781 = vand.u32 %v7261, 4294901760
  %v7782 = vsub.f32 %v7261, %v7781
  %v7783 = vand.u32 %v7782, 4294901760
  %7784 = vmatmul.mubr.f32.gmra.mrb[0].mxu0 %v7783
  %v7785 = vpop.f32.mrb[0].mxu0
  %v7786 = vadd.f32 %v7676, %v7785
  %v7787 = vpop.f32.mrb[0].mxu0
  %7788 = vmatprep.mubr.f32.mxu0 0.0
  %v7789 = vand.u32 %v7262, 4294901760
  %v7790 = vsub.f32 %v7262, %v7789
  %v7791 = vand.u32 %v7790, 4294901760
  %7792 = vmatmul.mubr.f32.gmra.mrb[0].mxu0 %v7791
  %v7793 = vpop.f32.mrb[0].mxu0
  %v7794 = vadd.f32 %v7683, %v7793
  %v7795 = vpop.f32.mrb[0].mxu0
  %7796 = vmatprep.mubr.f32.mxu0 0.0
  %v7797 = vand.u32 %v7263, 4294901760
  %v7798 = vsub.f32 %v7263, %v7797
  %v7799 = vand.u32 %v7798, 4294901760
  %7800 = vmatmul.mubr.f32.gmra.mrb[0].mxu0 %v7799
  %v7801 = vpop.f32.mrb[0].mxu0
  %v7802 = vadd.f32 %v7690, %v7801
  %v7803 = vpop.f32.mrb[0].mxu0
  %7804 = vmatprep.mubr.f32.mxu0 0.0
  %v7805 = vand.u32 %v7264, 4294901760
  %v7806 = vsub.f32 %v7264, %v7805
  %v7807 = vand.u32 %v7806, 4294901760
  %7808 = vmatmul.mubr.f32.gmra.mrb[0].mxu0 %v7807
  %v7809 = vpop.f32.mrb[0].mxu0
  %v7810 = vadd.f32 %v7697, %v7809
  %v7811 = vpop.f32.mrb[0].mxu0
  %7812 = vdwg.mxu0
  %7813 = vmatprep.subr.mxu0 0.0
  %v7814 = vand.u32 %v7269, 4294901760
  %v7815 = vsub.f32 %v7269, %v7814
  %v7816 = vand.u32 %v7815, 4294901760
  %7817 = vmatpush1.msra.mxu0 %v7816
  %7818 = vmatprep.subr.mxu0 0.0
  %v7819 = vand.u32 %v7270, 4294901760
  %v7820 = vsub.f32 %v7270, %v7819
  %v7821 = vand.u32 %v7820, 4294901760
  %7822 = vmatpush1.msra.mxu0 %v7821
  %7823 = vmatprep.subr.mxu0 0.0
  %v7824 = vand.u32 %v7271, 4294901760
  %v7825 = vsub.f32 %v7271, %v7824
  %v7826 = vand.u32 %v7825, 4294901760
  %7827 = vmatpush1.msra.mxu0 %v7826
  %7828 = vmatprep.subr.mxu0 0.0
  %v7829 = vand.u32 %v7272, 4294901760
  %v7830 = vsub.f32 %v7272, %v7829
  %v7831 = vand.u32 %v7830, 4294901760
  %7832 = vmatpush1.msra.mxu0 %v7831
  %7833 = vmatprep.subr.mxu0 0.0
  %v7834 = vand.u32 %v7273, 4294901760
  %v7835 = vsub.f32 %v7273, %v7834
  %v7836 = vand.u32 %v7835, 4294901760
  %7837 = vmatpush1.msra.mxu0 %v7836
  %7838 = vmatprep.subr.mxu0 0.0
  %v7839 = vand.u32 %v7274, 4294901760
  %v7840 = vsub.f32 %v7274, %v7839
  %v7841 = vand.u32 %v7840, 4294901760
  %7842 = vmatpush1.msra.mxu0 %v7841
  %7843 = vmatprep.subr.mxu0 0.0
  %v7844 = vand.u32 %v7275, 4294901760
  %v7845 = vsub.f32 %v7275, %v7844
  %v7846 = vand.u32 %v7845, 4294901760
  %7847 = vmatpush1.msra.mxu0 %v7846
  %7848 = vmatprep.subr.mxu0 0.0
  %v7849 = vand.u32 %v7276, 4294901760
  %v7850 = vsub.f32 %v7276, %v7849
  %v7851 = vand.u32 %v7850, 4294901760
  %7852 = vmatpush1.msra.mxu0 %v7851
  %7853 = vmatprep.subr.mxu0 0.0
  %v7854 = vand.u32 %v7277, 4294901760
  %v7855 = vsub.f32 %v7277, %v7854
  %v7856 = vand.u32 %v7855, 4294901760
  %7857 = vmatpush1.msra.mxu0 %v7856
  %7858 = vmatprep.subr.mxu0 0.0
  %v7859 = vand.u32 %v7278, 4294901760
  %v7860 = vsub.f32 %v7278, %v7859
  %v7861 = vand.u32 %v7860, 4294901760
  %7862 = vmatpush1.msra.mxu0 %v7861
  %7863 = vmatprep.subr.mxu0 0.0
  %v7864 = vand.u32 %v7279, 4294901760
  %v7865 = vsub.f32 %v7279, %v7864
  %v7866 = vand.u32 %v7865, 4294901760
  %7867 = vmatpush1.msra.mxu0 %v7866
  %7868 = vmatprep.subr.mxu0 0.0
  %v7869 = vand.u32 %v7280, 4294901760
  %v7870 = vsub.f32 %v7280, %v7869
  %v7871 = vand.u32 %v7870, 4294901760
  %7872 = vmatpush1.msra.mxu0 %v7871
  %7873 = vmatprep.subr.mxu0 0.0
  %v7874 = vand.u32 %v7281, 4294901760
  %v7875 = vsub.f32 %v7281, %v7874
  %v7876 = vand.u32 %v7875, 4294901760
  %7877 = vmatpush1.msra.mxu0 %v7876
  %7878 = vmatprep.subr.mxu0 0.0
  %v7879 = vand.u32 %v7282, 4294901760
  %v7880 = vsub.f32 %v7282, %v7879
  %v7881 = vand.u32 %v7880, 4294901760
  %7882 = vmatpush1.msra.mxu0 %v7881
  %7883 = vmatprep.subr.mxu0 0.0
  %v7884 = vand.u32 %v7283, 4294901760
  %v7885 = vsub.f32 %v7283, %v7884
  %v7886 = vand.u32 %v7885, 4294901760
  %7887 = vmatpush1.msra.mxu0 %v7886
  %7888 = vmatprep.subr.mxu0 0.0
  %v7889 = vand.u32 %v7284, 4294901760
  %v7890 = vsub.f32 %v7284, %v7889
  %v7891 = vand.u32 %v7890, 4294901760
  %7892 = vmatpush1.msra.mxu0 %v7891
  %7893 = vmatprep.subr.mxu0 0.0
  %7894 = vmatpush1.msra.mxu0 0.0
  %7895 = vmatprep.subr.mxu0 0.0
  %7896 = vmatpush1.msra.mxu0 0.0
  %7897 = vmatprep.subr.mxu0 0.0
  %7898 = vmatpush1.msra.mxu0 0.0
  %7899 = vmatprep.subr.mxu0 0.0
  %7900 = vmatpush1.msra.mxu0 0.0
  %7901 = vmatprep.subr.mxu0 0.0
  %7902 = vmatpush1.msra.mxu0 0.0
  %7903 = vmatprep.subr.mxu0 0.0
  %7904 = vmatpush1.msra.mxu0 0.0
  %7905 = vmatprep.subr.mxu0 0.0
  %7906 = vmatpush1.msra.mxu0 0.0
  %7907 = vmatprep.subr.mxu0 0.0
  %7908 = vmatpush1.msra.mxu0 0.0
  %7909 = vmatprep.subr.mxu0 0.0
  %7910 = vmatpush1.msra.mxu0 0.0
  %7911 = vmatprep.subr.mxu0 0.0
  %7912 = vmatpush1.msra.mxu0 0.0
  %7913 = vmatprep.subr.mxu0 0.0
  %7914 = vmatpush1.msra.mxu0 0.0
  %7915 = vmatprep.subr.mxu0 0.0
  %7916 = vmatpush1.msra.mxu0 0.0
  %7917 = vmatprep.subr.mxu0 0.0
  %7918 = vmatpush1.msra.mxu0 0.0
  %7919 = vmatprep.subr.mxu0 0.0
  %7920 = vmatpush1.msra.mxu0 0.0
  %7921 = vmatprep.subr.mxu0 0.0
  %7922 = vmatpush1.msra.mxu0 0.0
  %7923 = vmatprep.subr.mxu0 0.0
  %7924 = vmatpush1.msra.mxu0 0.0
  %7925 = vmatprep.mubr.f32.mxu0 0.0
  %v7926 = vand.u32 %v7261, 4294901760
  %7927 = vmatmul.mubr.f32.gmra.mrb[0].mxu0 %v7926
  %v7928 = vpop.f32.mrb[0].mxu0
  %v7929 = vadd.f32 %v7786, %v7928
  %v7930 = vpop.f32.mrb[0].mxu0
  %7931 = vmatprep.mubr.f32.mxu0 0.0
  %v7932 = vand.u32 %v7262, 4294901760
  %7933 = vmatmul.mubr.f32.gmra.mrb[0].mxu0 %v7932
  %v7934 = vpop.f32.mrb[0].mxu0
  %v7935 = vadd.f32 %v7794, %v7934
  %v7936 = vpop.f32.mrb[0].mxu0
  %7937 = vmatprep.mubr.f32.mxu0 0.0
  %v7938 = vand.u32 %v7263, 4294901760
  %7939 = vmatmul.mubr.f32.gmra.mrb[0].mxu0 %v7938
  %v7940 = vpop.f32.mrb[0].mxu0
  %v7941 = vadd.f32 %v7802, %v7940
  %v7942 = vpop.f32.mrb[0].mxu0
  %7943 = vmatprep.mubr.f32.mxu0 0.0
  %v7944 = vand.u32 %v7264, 4294901760
  %7945 = vmatmul.mubr.f32.gmra.mrb[0].mxu0 %v7944
  %v7946 = vpop.f32.mrb[0].mxu0
  %v7947 = vadd.f32 %v7810, %v7946
  %v7948 = vpop.f32.mrb[0].mxu0
  %7949 = vdwg.mxu0
  %7950 = vmatprep.subr.mxu0 0.0
  %v7951 = vand.u32 %v7269, 4294901760
  %7952 = vmatpush1.msra.mxu0 %v7951
  %7953 = vmatprep.subr.mxu0 0.0
  %v7954 = vand.u32 %v7270, 4294901760
  %7955 = vmatpush1.msra.mxu0 %v7954
  %7956 = vmatprep.subr.mxu0 0.0
  %v7957 = vand.u32 %v7271, 4294901760
  %7958 = vmatpush1.msra.mxu0 %v7957
  %7959 = vmatprep.subr.mxu0 0.0
  %v7960 = vand.u32 %v7272, 4294901760
  %7961 = vmatpush1.msra.mxu0 %v7960
  %7962 = vmatprep.subr.mxu0 0.0
  %v7963 = vand.u32 %v7273, 4294901760
  %7964 = vmatpush1.msra.mxu0 %v7963
  %7965 = vmatprep.subr.mxu0 0.0
  %v7966 = vand.u32 %v7274, 4294901760
  %7967 = vmatpush1.msra.mxu0 %v7966
  %7968 = vmatprep.subr.mxu0 0.0
  %v7969 = vand.u32 %v7275, 4294901760
  %7970 = vmatpush1.msra.mxu0 %v7969
  %7971 = vmatprep.subr.mxu0 0.0
  %v7972 = vand.u32 %v7276, 4294901760
  %7973 = vmatpush1.msra.mxu0 %v7972
  %7974 = vmatprep.subr.mxu0 0.0
  %v7975 = vand.u32 %v7277, 4294901760
  %7976 = vmatpush1.msra.mxu0 %v7975
  %7977 = vmatprep.subr.mxu0 0.0
  %v7978 = vand.u32 %v7278, 4294901760
  %7979 = vmatpush1.msra.mxu0 %v7978
  %7980 = vmatprep.subr.mxu0 0.0
  %v7981 = vand.u32 %v7279, 4294901760
  %7982 = vmatpush1.msra.mxu0 %v7981
  %7983 = vmatprep.subr.mxu0 0.0
  %v7984 = vand.u32 %v7280, 4294901760
  %7985 = vmatpush1.msra.mxu0 %v7984
  %7986 = vmatprep.subr.mxu0 0.0
  %v7987 = vand.u32 %v7281, 4294901760
  %7988 = vmatpush1.msra.mxu0 %v7987
  %7989 = vmatprep.subr.mxu0 0.0
  %v7990 = vand.u32 %v7282, 4294901760
  %7991 = vmatpush1.msra.mxu0 %v7990
  %7992 = vmatprep.subr.mxu0 0.0
  %v7993 = vand.u32 %v7283, 4294901760
  %7994 = vmatpush1.msra.mxu0 %v7993
  %7995 = vmatprep.subr.mxu0 0.0
  %v7996 = vand.u32 %v7284, 4294901760
  %7997 = vmatpush1.msra.mxu0 %v7996
  %7998 = vmatprep.subr.mxu0 0.0
  %7999 = vmatpush1.msra.mxu0 0.0
  %8000 = vmatprep.subr.mxu0 0.0
  %8001 = vmatpush1.msra.mxu0 0.0
  %8002 = vmatprep.subr.mxu0 0.0
  %8003 = vmatpush1.msra.mxu0 0.0
  %8004 = vmatprep.subr.mxu0 0.0
  %8005 = vmatpush1.msra.mxu0 0.0
  %8006 = vmatprep.subr.mxu0 0.0
  %8007 = vmatpush1.msra.mxu0 0.0
  %8008 = vmatprep.subr.mxu0 0.0
  %8009 = vmatpush1.msra.mxu0 0.0
  %8010 = vmatprep.subr.mxu0 0.0
  %8011 = vmatpush1.msra.mxu0 0.0
  %8012 = vmatprep.subr.mxu0 0.0
  %8013 = vmatpush1.msra.mxu0 0.0
  %8014 = vmatprep.subr.mxu0 0.0
  %8015 = vmatpush1.msra.mxu0 0.0
  %8016 = vmatprep.subr.mxu0 0.0
  %8017 = vmatpush1.msra.mxu0 0.0
  %8018 = vmatprep.subr.mxu0 0.0
  %8019 = vmatpush1.msra.mxu0 0.0
  %8020 = vmatprep.subr.mxu0 0.0
  %8021 = vmatpush1.msra.mxu0 0.0
  %8022 = vmatprep.subr.mxu0 0.0
  %8023 = vmatpush1.msra.mxu0 0.0
  %8024 = vmatprep.subr.mxu0 0.0
  %8025 = vmatpush1.msra.mxu0 0.0
  %8026 = vmatprep.subr.mxu0 0.0
  %8027 = vmatpush1.msra.mxu0 0.0
  %8028 = vmatprep.subr.mxu0 0.0
  %8029 = vmatpush1.msra.mxu0 0.0
  %8030 = vmatprep.mubr.f32.mxu0 0.0
  %v8031 = vand.u32 %v7261, 4294901760
  %8032 = vmatmul.mubr.f32.gmra.mrb[0].mxu0 %v8031
  %v8033 = vpop.f32.mrb[0].mxu0
  %v8034 = vadd.f32 %v7929, %v8033
  %v8035 = vpop.f32.mrb[0].mxu0
  %8036 = vmatprep.mubr.f32.mxu0 0.0
  %v8037 = vand.u32 %v7262, 4294901760
  %8038 = vmatmul.mubr.f32.gmra.mrb[0].mxu0 %v8037
  %v8039 = vpop.f32.mrb[0].mxu0
  %v8040 = vadd.f32 %v7935, %v8039
  %v8041 = vpop.f32.mrb[0].mxu0
  %8042 = vmatprep.mubr.f32.mxu0 0.0
  %v8043 = vand.u32 %v7263, 4294901760
  %8044 = vmatmul.mubr.f32.gmra.mrb[0].mxu0 %v8043
  %v8045 = vpop.f32.mrb[0].mxu0
  %v8046 = vadd.f32 %v7941, %v8045
  %v8047 = vpop.f32.mrb[0].mxu0
  %8048 = vmatprep.mubr.f32.mxu0 0.0
  %v8049 = vand.u32 %v7264, 4294901760
  %8050 = vmatmul.mubr.f32.gmra.mrb[0].mxu0 %v8049
  %v8051 = vpop.f32.mrb[0].mxu0
  %v8052 = vadd.f32 %v7947, %v8051
  %v8053 = vpop.f32.mrb[0].mxu0
  %8054 = vdwg.mxu0
  %v8055 = vld [vmem:[%s9] sm:$0xff]
  %v8056 = vld [vmem:[%s9 + $0x8] sm:$0xff]
  %v8057 = vld [vmem:[%s9 + $0x10] sm:$0xff]
  %v8058 = vld [vmem:[%s9 + $0x18] sm:$0xff]
  %v8059 = vld [vmem:[%s9 + $0x20] sm:$0xff]
  %v8060 = vld [vmem:[%s9 + $0x28] sm:$0xff]
  %v8061 = vld [vmem:[%s9 + $0x30] sm:$0xff]
  %v8062 = vld [vmem:[%s9 + $0x38] sm:$0xff]
  %v8063 = vld [vmem:[%s9 + $0x40] sm:$0xff]
  %v8064 = vld [vmem:[%s9 + $0x48] sm:$0xff]
  %v8065 = vld [vmem:[%s9 + $0x50] sm:$0xff]
  %v8066 = vld [vmem:[%s9 + $0x58] sm:$0xff]
  %v8067 = vld [vmem:[%s9 + $0x60] sm:$0xff]
  %v8068 = vld [vmem:[%s9 + $0x68] sm:$0xff]
  %v8069 = vld [vmem:[%s9 + $0x70] sm:$0xff]
  %v8070 = vld [vmem:[%s9 + $0x78] sm:$0xff]
  %8071 = vmatprep.subr.mxu0 0.0
  %v8072 = vand.u32 %v8055, 4294901760
  %8073 = vmatpush1.msra.mxu0 %v8072
  %8074 = vmatprep.subr.mxu0 0.0
  %v8075 = vand.u32 %v8056, 4294901760
  %8076 = vmatpush1.msra.mxu0 %v8075
  %8077 = vmatprep.subr.mxu0 0.0
  %v8078 = vand.u32 %v8057, 4294901760
  %8079 = vmatpush1.msra.mxu0 %v8078
  %8080 = vmatprep.subr.mxu0 0.0
  %v8081 = vand.u32 %v8058, 4294901760
  %8082 = vmatpush1.msra.mxu0 %v8081
  %8083 = vmatprep.subr.mxu0 0.0
  %v8084 = vand.u32 %v8059, 4294901760
  %8085 = vmatpush1.msra.mxu0 %v8084
  %8086 = vmatprep.subr.mxu0 0.0
  %v8087 = vand.u32 %v8060, 4294901760
  %8088 = vmatpush1.msra.mxu0 %v8087
  %8089 = vmatprep.subr.mxu0 0.0
  %v8090 = vand.u32 %v8061, 4294901760
  %8091 = vmatpush1.msra.mxu0 %v8090
  %8092 = vmatprep.subr.mxu0 0.0
  %v8093 = vand.u32 %v8062, 4294901760
  %8094 = vmatpush1.msra.mxu0 %v8093
  %8095 = vmatprep.subr.mxu0 0.0
  %v8096 = vand.u32 %v8063, 4294901760
  %8097 = vmatpush1.msra.mxu0 %v8096
  %8098 = vmatprep.subr.mxu0 0.0
  %v8099 = vand.u32 %v8064, 4294901760
  %8100 = vmatpush1.msra.mxu0 %v8099
  %8101 = vmatprep.subr.mxu0 0.0
  %v8102 = vand.u32 %v8065, 4294901760
  %8103 = vmatpush1.msra.mxu0 %v8102
  %8104 = vmatprep.subr.mxu0 0.0
  %v8105 = vand.u32 %v8066, 4294901760
  %8106 = vmatpush1.msra.mxu0 %v8105
  %8107 = vmatprep.subr.mxu0 0.0
  %v8108 = vand.u32 %v8067, 4294901760
  %8109 = vmatpush1.msra.mxu0 %v8108
  %8110 = vmatprep.subr.mxu0 0.0
  %v8111 = vand.u32 %v8068, 4294901760
  %8112 = vmatpush1.msra.mxu0 %v8111
  %8113 = vmatprep.subr.mxu0 0.0
  %v8114 = vand.u32 %v8069, 4294901760
  %8115 = vmatpush1.msra.mxu0 %v8114
  %8116 = vmatprep.subr.mxu0 0.0
  %v8117 = vand.u32 %v8070, 4294901760
  %8118 = vmatpush1.msra.mxu0 %v8117
  %8119 = vmatprep.subr.mxu0 0.0
  %8120 = vmatpush1.msra.mxu0 0.0
  %8121 = vmatprep.subr.mxu0 0.0
  %8122 = vmatpush1.msra.mxu0 0.0
  %8123 = vmatprep.subr.mxu0 0.0
  %8124 = vmatpush1.msra.mxu0 0.0
  %8125 = vmatprep.subr.mxu0 0.0
  %8126 = vmatpush1.msra.mxu0 0.0
  %8127 = vmatprep.subr.mxu0 0.0
  %8128 = vmatpush1.msra.mxu0 0.0
  %8129 = vmatprep.subr.mxu0 0.0
  %8130 = vmatpush1.msra.mxu0 0.0
  %8131 = vmatprep.subr.mxu0 0.0
  %8132 = vmatpush1.msra.mxu0 0.0
  %8133 = vmatprep.subr.mxu0 0.0
  %8134 = vmatpush1.msra.mxu0 0.0
  %8135 = vmatprep.subr.mxu0 0.0
  %8136 = vmatpush1.msra.mxu0 0.0
  %8137 = vmatprep.subr.mxu0 0.0
  %8138 = vmatpush1.msra.mxu0 0.0
  %8139 = vmatprep.subr.mxu0 0.0
  %8140 = vmatpush1.msra.mxu0 0.0
  %8141 = vmatprep.subr.mxu0 0.0
  %8142 = vmatpush1.msra.mxu0 0.0
  %8143 = vmatprep.subr.mxu0 0.0
  %8144 = vmatpush1.msra.mxu0 0.0
  %8145 = vmatprep.subr.mxu0 0.0
  %8146 = vmatpush1.msra.mxu0 0.0
  %8147 = vmatprep.subr.mxu0 0.0
  %8148 = vmatpush1.msra.mxu0 0.0
  %8149 = vmatprep.subr.mxu0 0.0
  %8150 = vmatpush1.msra.mxu0 0.0
  %8151 = vmatprep.mubr.f32.mxu0 0.0
  %v8152 = vand.u32 %v7261, 4294901760
  %v8153 = vsub.f32 %v7261, %v8152
  %v8154 = vand.u32 %v8153, 4294901760
  %v8155 = vsub.f32 %v8153, %v8154
  %v8156 = vand.u32 %v8155, 4294901760
  %8157 = vmatmul.mubr.f32.gmra.mrb[0].mxu0 %v8156
  %v8158 = vpop.f32.mrb[0].mxu0
  %v8159 = vadd.f32 0.0, %v8158
  %v8160 = vpop.f32.mrb[0].mxu0
  %8161 = vmatprep.mubr.f32.mxu0 0.0
  %v8162 = vand.u32 %v7262, 4294901760
  %v8163 = vsub.f32 %v7262, %v8162
  %v8164 = vand.u32 %v8163, 4294901760
  %v8165 = vsub.f32 %v8163, %v8164
  %v8166 = vand.u32 %v8165, 4294901760
  %8167 = vmatmul.mubr.f32.gmra.mrb[0].mxu0 %v8166
  %v8168 = vpop.f32.mrb[0].mxu0
  %v8169 = vadd.f32 0.0, %v8168
  %v8170 = vpop.f32.mrb[0].mxu0
  %8171 = vmatprep.mubr.f32.mxu0 0.0
  %v8172 = vand.u32 %v7263, 4294901760
  %v8173 = vsub.f32 %v7263, %v8172
  %v8174 = vand.u32 %v8173, 4294901760
  %v8175 = vsub.f32 %v8173, %v8174
  %v8176 = vand.u32 %v8175, 4294901760
  %8177 = vmatmul.mubr.f32.gmra.mrb[0].mxu0 %v8176
  %v8178 = vpop.f32.mrb[0].mxu0
  %v8179 = vadd.f32 0.0, %v8178
  %v8180 = vpop.f32.mrb[0].mxu0
  %8181 = vmatprep.mubr.f32.mxu0 0.0
  %v8182 = vand.u32 %v7264, 4294901760
  %v8183 = vsub.f32 %v7264, %v8182
  %v8184 = vand.u32 %v8183, 4294901760
  %v8185 = vsub.f32 %v8183, %v8184
  %v8186 = vand.u32 %v8185, 4294901760
  %8187 = vmatmul.mubr.f32.gmra.mrb[0].mxu0 %v8186
  %v8188 = vpop.f32.mrb[0].mxu0
  %v8189 = vadd.f32 0.0, %v8188
  %v8190 = vpop.f32.mrb[0].mxu0
  %8191 = vdwg.mxu0
  %8192 = vmatprep.subr.mxu0 0.0
  %v8193 = vand.u32 %v8055, 4294901760
  %v8194 = vsub.f32 %v8055, %v8193
  %v8195 = vand.u32 %v8194, 4294901760
  %v8196 = vsub.f32 %v8194, %v8195
  %v8197 = vand.u32 %v8196, 4294901760
  %8198 = vmatpush1.msra.mxu0 %v8197
  %8199 = vmatprep.subr.mxu0 0.0
  %v8200 = vand.u32 %v8056, 4294901760
  %v8201 = vsub.f32 %v8056, %v8200
  %v8202 = vand.u32 %v8201, 4294901760
  %v8203 = vsub.f32 %v8201, %v8202
  %v8204 = vand.u32 %v8203, 4294901760
  %8205 = vmatpush1.msra.mxu0 %v8204
  %8206 = vmatprep.subr.mxu0 0.0
  %v8207 = vand.u32 %v8057, 4294901760
  %v8208 = vsub.f32 %v8057, %v8207
  %v8209 = vand.u32 %v8208, 4294901760
  %v8210 = vsub.f32 %v8208, %v8209
  %v8211 = vand.u32 %v8210, 4294901760
  %8212 = vmatpush1.msra.mxu0 %v8211
  %8213 = vmatprep.subr.mxu0 0.0
  %v8214 = vand.u32 %v8058, 4294901760
  %v8215 = vsub.f32 %v8058, %v8214
  %v8216 = vand.u32 %v8215, 4294901760
  %v8217 = vsub.f32 %v8215, %v8216
  %v8218 = vand.u32 %v8217, 4294901760
  %8219 = vmatpush1.msra.mxu0 %v8218
  %8220 = vmatprep.subr.mxu0 0.0
  %v8221 = vand.u32 %v8059, 4294901760
  %v8222 = vsub.f32 %v8059, %v8221
  %v8223 = vand.u32 %v8222, 4294901760
  %v8224 = vsub.f32 %v8222, %v8223
  %v8225 = vand.u32 %v8224, 4294901760
  %8226 = vmatpush1.msra.mxu0 %v8225
  %8227 = vmatprep.subr.mxu0 0.0
  %v8228 = vand.u32 %v8060, 4294901760
  %v8229 = vsub.f32 %v8060, %v8228
  %v8230 = vand.u32 %v8229, 4294901760
  %v8231 = vsub.f32 %v8229, %v8230
  %v8232 = vand.u32 %v8231, 4294901760
  %8233 = vmatpush1.msra.mxu0 %v8232
  %8234 = vmatprep.subr.mxu0 0.0
  %v8235 = vand.u32 %v8061, 4294901760
  %v8236 = vsub.f32 %v8061, %v8235
  %v8237 = vand.u32 %v8236, 4294901760
  %v8238 = vsub.f32 %v8236, %v8237
  %v8239 = vand.u32 %v8238, 4294901760
  %8240 = vmatpush1.msra.mxu0 %v8239
  %8241 = vmatprep.subr.mxu0 0.0
  %v8242 = vand.u32 %v8062, 4294901760
  %v8243 = vsub.f32 %v8062, %v8242
  %v8244 = vand.u32 %v8243, 4294901760
  %v8245 = vsub.f32 %v8243, %v8244
  %v8246 = vand.u32 %v8245, 4294901760
  %8247 = vmatpush1.msra.mxu0 %v8246
  %8248 = vmatprep.subr.mxu0 0.0
  %v8249 = vand.u32 %v8063, 4294901760
  %v8250 = vsub.f32 %v8063, %v8249
  %v8251 = vand.u32 %v8250, 4294901760
  %v8252 = vsub.f32 %v8250, %v8251
  %v8253 = vand.u32 %v8252, 4294901760
  %8254 = vmatpush1.msra.mxu0 %v8253
  %8255 = vmatprep.subr.mxu0 0.0
  %v8256 = vand.u32 %v8064, 4294901760
  %v8257 = vsub.f32 %v8064, %v8256
  %v8258 = vand.u32 %v8257, 4294901760
  %v8259 = vsub.f32 %v8257, %v8258
  %v8260 = vand.u32 %v8259, 4294901760
  %8261 = vmatpush1.msra.mxu0 %v8260
  %8262 = vmatprep.subr.mxu0 0.0
  %v8263 = vand.u32 %v8065, 4294901760
  %v8264 = vsub.f32 %v8065, %v8263
  %v8265 = vand.u32 %v8264, 4294901760
  %v8266 = vsub.f32 %v8264, %v8265
  %v8267 = vand.u32 %v8266, 4294901760
  %8268 = vmatpush1.msra.mxu0 %v8267
  %8269 = vmatprep.subr.mxu0 0.0
  %v8270 = vand.u32 %v8066, 4294901760
  %v8271 = vsub.f32 %v8066, %v8270
  %v8272 = vand.u32 %v8271, 4294901760
  %v8273 = vsub.f32 %v8271, %v8272
  %v8274 = vand.u32 %v8273, 4294901760
  %8275 = vmatpush1.msra.mxu0 %v8274
  %8276 = vmatprep.subr.mxu0 0.0
  %v8277 = vand.u32 %v8067, 4294901760
  %v8278 = vsub.f32 %v8067, %v8277
  %v8279 = vand.u32 %v8278, 4294901760
  %v8280 = vsub.f32 %v8278, %v8279
  %v8281 = vand.u32 %v8280, 4294901760
  %8282 = vmatpush1.msra.mxu0 %v8281
  %8283 = vmatprep.subr.mxu0 0.0
  %v8284 = vand.u32 %v8068, 4294901760
  %v8285 = vsub.f32 %v8068, %v8284
  %v8286 = vand.u32 %v8285, 4294901760
  %v8287 = vsub.f32 %v8285, %v8286
  %v8288 = vand.u32 %v8287, 4294901760
  %8289 = vmatpush1.msra.mxu0 %v8288
  %8290 = vmatprep.subr.mxu0 0.0
  %v8291 = vand.u32 %v8069, 4294901760
  %v8292 = vsub.f32 %v8069, %v8291
  %v8293 = vand.u32 %v8292, 4294901760
  %v8294 = vsub.f32 %v8292, %v8293
  %v8295 = vand.u32 %v8294, 4294901760
  %8296 = vmatpush1.msra.mxu0 %v8295
  %8297 = vmatprep.subr.mxu0 0.0
  %v8298 = vand.u32 %v8070, 4294901760
  %v8299 = vsub.f32 %v8070, %v8298
  %v8300 = vand.u32 %v8299, 4294901760
  %v8301 = vsub.f32 %v8299, %v8300
  %v8302 = vand.u32 %v8301, 4294901760
  %8303 = vmatpush1.msra.mxu0 %v8302
  %8304 = vmatprep.subr.mxu0 0.0
  %8305 = vmatpush1.msra.mxu0 0.0
  %8306 = vmatprep.subr.mxu0 0.0
  %8307 = vmatpush1.msra.mxu0 0.0
  %8308 = vmatprep.subr.mxu0 0.0
  %8309 = vmatpush1.msra.mxu0 0.0
  %8310 = vmatprep.subr.mxu0 0.0
  %8311 = vmatpush1.msra.mxu0 0.0
  %8312 = vmatprep.subr.mxu0 0.0
  %8313 = vmatpush1.msra.mxu0 0.0
  %8314 = vmatprep.subr.mxu0 0.0
  %8315 = vmatpush1.msra.mxu0 0.0
  %8316 = vmatprep.subr.mxu0 0.0
  %8317 = vmatpush1.msra.mxu0 0.0
  %8318 = vmatprep.subr.mxu0 0.0
  %8319 = vmatpush1.msra.mxu0 0.0
  %8320 = vmatprep.subr.mxu0 0.0
  %8321 = vmatpush1.msra.mxu0 0.0
  %8322 = vmatprep.subr.mxu0 0.0
  %8323 = vmatpush1.msra.mxu0 0.0
  %8324 = vmatprep.subr.mxu0 0.0
  %8325 = vmatpush1.msra.mxu0 0.0
  %8326 = vmatprep.subr.mxu0 0.0
  %8327 = vmatpush1.msra.mxu0 0.0
  %8328 = vmatprep.subr.mxu0 0.0
  %8329 = vmatpush1.msra.mxu0 0.0
  %8330 = vmatprep.subr.mxu0 0.0
  %8331 = vmatpush1.msra.mxu0 0.0
  %8332 = vmatprep.subr.mxu0 0.0
  %8333 = vmatpush1.msra.mxu0 0.0
  %8334 = vmatprep.subr.mxu0 0.0
  %8335 = vmatpush1.msra.mxu0 0.0
  %8336 = vmatprep.mubr.f32.mxu0 0.0
  %v8337 = vand.u32 %v7261, 4294901760
  %8338 = vmatmul.mubr.f32.gmra.mrb[0].mxu0 %v8337
  %v8339 = vpop.f32.mrb[0].mxu0
  %v8340 = vadd.f32 %v8159, %v8339
  %v8341 = vpop.f32.mrb[0].mxu0
  %8342 = vmatprep.mubr.f32.mxu0 0.0
  %v8343 = vand.u32 %v7262, 4294901760
  %8344 = vmatmul.mubr.f32.gmra.mrb[0].mxu0 %v8343
  %v8345 = vpop.f32.mrb[0].mxu0
  %v8346 = vadd.f32 %v8169, %v8345
  %v8347 = vpop.f32.mrb[0].mxu0
  %8348 = vmatprep.mubr.f32.mxu0 0.0
  %v8349 = vand.u32 %v7263, 4294901760
  %8350 = vmatmul.mubr.f32.gmra.mrb[0].mxu0 %v8349
  %v8351 = vpop.f32.mrb[0].mxu0
  %v8352 = vadd.f32 %v8179, %v8351
  %v8353 = vpop.f32.mrb[0].mxu0
  %8354 = vmatprep.mubr.f32.mxu0 0.0
  %v8355 = vand.u32 %v7264, 4294901760
  %8356 = vmatmul.mubr.f32.gmra.mrb[0].mxu0 %v8355
  %v8357 = vpop.f32.mrb[0].mxu0
  %v8358 = vadd.f32 %v8189, %v8357
  %v8359 = vpop.f32.mrb[0].mxu0
  %8360 = vdwg.mxu0
  %8361 = vmatprep.subr.mxu0 0.0
  %v8362 = vand.u32 %v8055, 4294901760
  %v8363 = vsub.f32 %v8055, %v8362
  %8364 = vmatpush1.msra.mxu0 %v8363
  %8365 = vmatprep.subr.mxu0 0.0
  %v8366 = vand.u32 %v8056, 4294901760
  %v8367 = vsub.f32 %v8056, %v8366
  %8368 = vmatpush1.msra.mxu0 %v8367
  %8369 = vmatprep.subr.mxu0 0.0
  %v8370 = vand.u32 %v8057, 4294901760
  %v8371 = vsub.f32 %v8057, %v8370
  %8372 = vmatpush1.msra.mxu0 %v8371
  %8373 = vmatprep.subr.mxu0 0.0
  %v8374 = vand.u32 %v8058, 4294901760
  %v8375 = vsub.f32 %v8058, %v8374
  %8376 = vmatpush1.msra.mxu0 %v8375
  %8377 = vmatprep.subr.mxu0 0.0
  %v8378 = vand.u32 %v8059, 4294901760
  %v8379 = vsub.f32 %v8059, %v8378
  %8380 = vmatpush1.msra.mxu0 %v8379
  %8381 = vmatprep.subr.mxu0 0.0
  %v8382 = vand.u32 %v8060, 4294901760
  %v8383 = vsub.f32 %v8060, %v8382
  %8384 = vmatpush1.msra.mxu0 %v8383
  %8385 = vmatprep.subr.mxu0 0.0
  %v8386 = vand.u32 %v8061, 4294901760
  %v8387 = vsub.f32 %v8061, %v8386
  %8388 = vmatpush1.msra.mxu0 %v8387
  %8389 = vmatprep.subr.mxu0 0.0
  %v8390 = vand.u32 %v8062, 4294901760
  %v8391 = vsub.f32 %v8062, %v8390
  %8392 = vmatpush1.msra.mxu0 %v8391
  %8393 = vmatprep.subr.mxu0 0.0
  %v8394 = vand.u32 %v8063, 4294901760
  %v8395 = vsub.f32 %v8063, %v8394
  %8396 = vmatpush1.msra.mxu0 %v8395
  %8397 = vmatprep.subr.mxu0 0.0
  %v8398 = vand.u32 %v8064, 4294901760
  %v8399 = vsub.f32 %v8064, %v8398
  %8400 = vmatpush1.msra.mxu0 %v8399
  %8401 = vmatprep.subr.mxu0 0.0
  %v8402 = vand.u32 %v8065, 4294901760
  %v8403 = vsub.f32 %v8065, %v8402
  %8404 = vmatpush1.msra.mxu0 %v8403
  %8405 = vmatprep.subr.mxu0 0.0
  %v8406 = vand.u32 %v8066, 4294901760
  %v8407 = vsub.f32 %v8066, %v8406
  %8408 = vmatpush1.msra.mxu0 %v8407
  %8409 = vmatprep.subr.mxu0 0.0
  %v8410 = vand.u32 %v8067, 4294901760
  %v8411 = vsub.f32 %v8067, %v8410
  %8412 = vmatpush1.msra.mxu0 %v8411
  %8413 = vmatprep.subr.mxu0 0.0
  %v8414 = vand.u32 %v8068, 4294901760
  %v8415 = vsub.f32 %v8068, %v8414
  %8416 = vmatpush1.msra.mxu0 %v8415
  %8417 = vmatprep.subr.mxu0 0.0
  %v8418 = vand.u32 %v8069, 4294901760
  %v8419 = vsub.f32 %v8069, %v8418
  %8420 = vmatpush1.msra.mxu0 %v8419
  %8421 = vmatprep.subr.mxu0 0.0
  %v8422 = vand.u32 %v8070, 4294901760
  %v8423 = vsub.f32 %v8070, %v8422
  %8424 = vmatpush1.msra.mxu0 %v8423
  %8425 = vmatprep.subr.mxu0 0.0
  %8426 = vmatpush1.msra.mxu0 0.0
  %8427 = vmatprep.subr.mxu0 0.0
  %8428 = vmatpush1.msra.mxu0 0.0
  %8429 = vmatprep.subr.mxu0 0.0
  %8430 = vmatpush1.msra.mxu0 0.0
  %8431 = vmatprep.subr.mxu0 0.0
  %8432 = vmatpush1.msra.mxu0 0.0
  %8433 = vmatprep.subr.mxu0 0.0
  %8434 = vmatpush1.msra.mxu0 0.0
  %8435 = vmatprep.subr.mxu0 0.0
  %8436 = vmatpush1.msra.mxu0 0.0
  %8437 = vmatprep.subr.mxu0 0.0
  %8438 = vmatpush1.msra.mxu0 0.0
  %8439 = vmatprep.subr.mxu0 0.0
  %8440 = vmatpush1.msra.mxu0 0.0
  %8441 = vmatprep.subr.mxu0 0.0
  %8442 = vmatpush1.msra.mxu0 0.0
  %8443 = vmatprep.subr.mxu0 0.0
  %8444 = vmatpush1.msra.mxu0 0.0
  %8445 = vmatprep.subr.mxu0 0.0
  %8446 = vmatpush1.msra.mxu0 0.0
  %8447 = vmatprep.subr.mxu0 0.0
  %8448 = vmatpush1.msra.mxu0 0.0
  %8449 = vmatprep.subr.mxu0 0.0
  %8450 = vmatpush1.msra.mxu0 0.0
  %8451 = vmatprep.subr.mxu0 0.0
  %8452 = vmatpush1.msra.mxu0 0.0
  %8453 = vmatprep.subr.mxu0 0.0
  %8454 = vmatpush1.msra.mxu0 0.0
  %8455 = vmatprep.subr.mxu0 0.0
  %8456 = vmatpush1.msra.mxu0 0.0
  %8457 = vmatprep.mubr.f32.mxu0 0.0
  %v8458 = vand.u32 %v7261, 4294901760
  %v8459 = vsub.f32 %v7261, %v8458
  %8460 = vmatmul.mubr.f32.gmra.mrb[0].mxu0 %v8459
  %v8461 = vpop.f32.mrb[0].mxu0
  %v8462 = vadd.f32 %v8340, %v8461
  %v8463 = vpop.f32.mrb[0].mxu0
  %8464 = vmatprep.mubr.f32.mxu0 0.0
  %v8465 = vand.u32 %v7262, 4294901760
  %v8466 = vsub.f32 %v7262, %v8465
  %8467 = vmatmul.mubr.f32.gmra.mrb[0].mxu0 %v8466
  %v8468 = vpop.f32.mrb[0].mxu0
  %v8469 = vadd.f32 %v8346, %v8468
  %v8470 = vpop.f32.mrb[0].mxu0
  %8471 = vmatprep.mubr.f32.mxu0 0.0
  %v8472 = vand.u32 %v7263, 4294901760
  %v8473 = vsub.f32 %v7263, %v8472
  %8474 = vmatmul.mubr.f32.gmra.mrb[0].mxu0 %v8473
  %v8475 = vpop.f32.mrb[0].mxu0
  %v8476 = vadd.f32 %v8352, %v8475
  %v8477 = vpop.f32.mrb[0].mxu0
  %8478 = vmatprep.mubr.f32.mxu0 0.0
  %v8479 = vand.u32 %v7264, 4294901760
  %v8480 = vsub.f32 %v7264, %v8479
  %8481 = vmatmul.mubr.f32.gmra.mrb[0].mxu0 %v8480
  %v8482 = vpop.f32.mrb[0].mxu0
  %v8483 = vadd.f32 %v8358, %v8482
  %v8484 = vpop.f32.mrb[0].mxu0
  %8485 = vdwg.mxu0
  %8486 = vmatprep.subr.mxu0 0.0
  %v8487 = vand.u32 %v8055, 4294901760
  %8488 = vmatpush1.msra.mxu0 %v8487
  %8489 = vmatprep.subr.mxu0 0.0
  %v8490 = vand.u32 %v8056, 4294901760
  %8491 = vmatpush1.msra.mxu0 %v8490
  %8492 = vmatprep.subr.mxu0 0.0
  %v8493 = vand.u32 %v8057, 4294901760
  %8494 = vmatpush1.msra.mxu0 %v8493
  %8495 = vmatprep.subr.mxu0 0.0
  %v8496 = vand.u32 %v8058, 4294901760
  %8497 = vmatpush1.msra.mxu0 %v8496
  %8498 = vmatprep.subr.mxu0 0.0
  %v8499 = vand.u32 %v8059, 4294901760
  %8500 = vmatpush1.msra.mxu0 %v8499
  %8501 = vmatprep.subr.mxu0 0.0
  %v8502 = vand.u32 %v8060, 4294901760
  %8503 = vmatpush1.msra.mxu0 %v8502
  %8504 = vmatprep.subr.mxu0 0.0
  %v8505 = vand.u32 %v8061, 4294901760
  %8506 = vmatpush1.msra.mxu0 %v8505
  %8507 = vmatprep.subr.mxu0 0.0
  %v8508 = vand.u32 %v8062, 4294901760
  %8509 = vmatpush1.msra.mxu0 %v8508
  %8510 = vmatprep.subr.mxu0 0.0
  %v8511 = vand.u32 %v8063, 4294901760
  %8512 = vmatpush1.msra.mxu0 %v8511
  %8513 = vmatprep.subr.mxu0 0.0
  %v8514 = vand.u32 %v8064, 4294901760
  %8515 = vmatpush1.msra.mxu0 %v8514
  %8516 = vmatprep.subr.mxu0 0.0
  %v8517 = vand.u32 %v8065, 4294901760
  %8518 = vmatpush1.msra.mxu0 %v8517
  %8519 = vmatprep.subr.mxu0 0.0
  %v8520 = vand.u32 %v8066, 4294901760
  %8521 = vmatpush1.msra.mxu0 %v8520
  %8522 = vmatprep.subr.mxu0 0.0
  %v8523 = vand.u32 %v8067, 4294901760
  %8524 = vmatpush1.msra.mxu0 %v8523
  %8525 = vmatprep.subr.mxu0 0.0
  %v8526 = vand.u32 %v8068, 4294901760
  %8527 = vmatpush1.msra.mxu0 %v8526
  %8528 = vmatprep.subr.mxu0 0.0
  %v8529 = vand.u32 %v8069, 4294901760
  %8530 = vmatpush1.msra.mxu0 %v8529
  %8531 = vmatprep.subr.mxu0 0.0
  %v8532 = vand.u32 %v8070, 4294901760
  %8533 = vmatpush1.msra.mxu0 %v8532
  %8534 = vmatprep.subr.mxu0 0.0
  %8535 = vmatpush1.msra.mxu0 0.0
  %8536 = vmatprep.subr.mxu0 0.0
  %8537 = vmatpush1.msra.mxu0 0.0
  %8538 = vmatprep.subr.mxu0 0.0
  %8539 = vmatpush1.msra.mxu0 0.0
  %8540 = vmatprep.subr.mxu0 0.0
  %8541 = vmatpush1.msra.mxu0 0.0
  %8542 = vmatprep.subr.mxu0 0.0
  %8543 = vmatpush1.msra.mxu0 0.0
  %8544 = vmatprep.subr.mxu0 0.0
  %8545 = vmatpush1.msra.mxu0 0.0
  %8546 = vmatprep.subr.mxu0 0.0
  %8547 = vmatpush1.msra.mxu0 0.0
  %8548 = vmatprep.subr.mxu0 0.0
  %8549 = vmatpush1.msra.mxu0 0.0
  %8550 = vmatprep.subr.mxu0 0.0
  %8551 = vmatpush1.msra.mxu0 0.0
  %8552 = vmatprep.subr.mxu0 0.0
  %8553 = vmatpush1.msra.mxu0 0.0
  %8554 = vmatprep.subr.mxu0 0.0
  %8555 = vmatpush1.msra.mxu0 0.0
  %8556 = vmatprep.subr.mxu0 0.0
  %8557 = vmatpush1.msra.mxu0 0.0
  %8558 = vmatprep.subr.mxu0 0.0
  %8559 = vmatpush1.msra.mxu0 0.0
  %8560 = vmatprep.subr.mxu0 0.0
  %8561 = vmatpush1.msra.mxu0 0.0
  %8562 = vmatprep.subr.mxu0 0.0
  %8563 = vmatpush1.msra.mxu0 0.0
  %8564 = vmatprep.subr.mxu0 0.0
  %8565 = vmatpush1.msra.mxu0 0.0
  %8566 = vmatprep.mubr.f32.mxu0 0.0
  %v8567 = vand.u32 %v7261, 4294901760
  %v8568 = vsub.f32 %v7261, %v8567
  %v8569 = vand.u32 %v8568, 4294901760
  %8570 = vmatmul.mubr.f32.gmra.mrb[0].mxu0 %v8569
  %v8571 = vpop.f32.mrb[0].mxu0
  %v8572 = vadd.f32 %v8462, %v8571
  %v8573 = vpop.f32.mrb[0].mxu0
  %8574 = vmatprep.mubr.f32.mxu0 0.0
  %v8575 = vand.u32 %v7262, 4294901760
  %v8576 = vsub.f32 %v7262, %v8575
  %v8577 = vand.u32 %v8576, 4294901760
  %8578 = vmatmul.mubr.f32.gmra.mrb[0].mxu0 %v8577
  %v8579 = vpop.f32.mrb[0].mxu0
  %v8580 = vadd.f32 %v8469, %v8579
  %v8581 = vpop.f32.mrb[0].mxu0
  %8582 = vmatprep.mubr.f32.mxu0 0.0
  %v8583 = vand.u32 %v7263, 4294901760
  %v8584 = vsub.f32 %v7263, %v8583
  %v8585 = vand.u32 %v8584, 4294901760
  %8586 = vmatmul.mubr.f32.gmra.mrb[0].mxu0 %v8585
  %v8587 = vpop.f32.mrb[0].mxu0
  %v8588 = vadd.f32 %v8476, %v8587
  %v8589 = vpop.f32.mrb[0].mxu0
  %8590 = vmatprep.mubr.f32.mxu0 0.0
  %v8591 = vand.u32 %v7264, 4294901760
  %v8592 = vsub.f32 %v7264, %v8591
  %v8593 = vand.u32 %v8592, 4294901760
  %8594 = vmatmul.mubr.f32.gmra.mrb[0].mxu0 %v8593
  %v8595 = vpop.f32.mrb[0].mxu0
  %v8596 = vadd.f32 %v8483, %v8595
  %v8597 = vpop.f32.mrb[0].mxu0
  %8598 = vdwg.mxu0
  %8599 = vmatprep.subr.mxu0 0.0
  %v8600 = vand.u32 %v8055, 4294901760
  %v8601 = vsub.f32 %v8055, %v8600
  %v8602 = vand.u32 %v8601, 4294901760
  %8603 = vmatpush1.msra.mxu0 %v8602
  %8604 = vmatprep.subr.mxu0 0.0
  %v8605 = vand.u32 %v8056, 4294901760
  %v8606 = vsub.f32 %v8056, %v8605
  %v8607 = vand.u32 %v8606, 4294901760
  %8608 = vmatpush1.msra.mxu0 %v8607
  %8609 = vmatprep.subr.mxu0 0.0
  %v8610 = vand.u32 %v8057, 4294901760
  %v8611 = vsub.f32 %v8057, %v8610
  %v8612 = vand.u32 %v8611, 4294901760
  %8613 = vmatpush1.msra.mxu0 %v8612
  %8614 = vmatprep.subr.mxu0 0.0
  %v8615 = vand.u32 %v8058, 4294901760
  %v8616 = vsub.f32 %v8058, %v8615
  %v8617 = vand.u32 %v8616, 4294901760
  %8618 = vmatpush1.msra.mxu0 %v8617
  %8619 = vmatprep.subr.mxu0 0.0
  %v8620 = vand.u32 %v8059, 4294901760
  %v8621 = vsub.f32 %v8059, %v8620
  %v8622 = vand.u32 %v8621, 4294901760
  %8623 = vmatpush1.msra.mxu0 %v8622
  %8624 = vmatprep.subr.mxu0 0.0
  %v8625 = vand.u32 %v8060, 4294901760
  %v8626 = vsub.f32 %v8060, %v8625
  %v8627 = vand.u32 %v8626, 4294901760
  %8628 = vmatpush1.msra.mxu0 %v8627
  %8629 = vmatprep.subr.mxu0 0.0
  %v8630 = vand.u32 %v8061, 4294901760
  %v8631 = vsub.f32 %v8061, %v8630
  %v8632 = vand.u32 %v8631, 4294901760
  %8633 = vmatpush1.msra.mxu0 %v8632
  %8634 = vmatprep.subr.mxu0 0.0
  %v8635 = vand.u32 %v8062, 4294901760
  %v8636 = vsub.f32 %v8062, %v8635
  %v8637 = vand.u32 %v8636, 4294901760
  %8638 = vmatpush1.msra.mxu0 %v8637
  %8639 = vmatprep.subr.mxu0 0.0
  %v8640 = vand.u32 %v8063, 4294901760
  %v8641 = vsub.f32 %v8063, %v8640
  %v8642 = vand.u32 %v8641, 4294901760
  %8643 = vmatpush1.msra.mxu0 %v8642
  %8644 = vmatprep.subr.mxu0 0.0
  %v8645 = vand.u32 %v8064, 4294901760
  %v8646 = vsub.f32 %v8064, %v8645
  %v8647 = vand.u32 %v8646, 4294901760
  %8648 = vmatpush1.msra.mxu0 %v8647
  %8649 = vmatprep.subr.mxu0 0.0
  %v8650 = vand.u32 %v8065, 4294901760
  %v8651 = vsub.f32 %v8065, %v8650
  %v8652 = vand.u32 %v8651, 4294901760
  %8653 = vmatpush1.msra.mxu0 %v8652
  %8654 = vmatprep.subr.mxu0 0.0
  %v8655 = vand.u32 %v8066, 4294901760
  %v8656 = vsub.f32 %v8066, %v8655
  %v8657 = vand.u32 %v8656, 4294901760
  %8658 = vmatpush1.msra.mxu0 %v8657
  %8659 = vmatprep.subr.mxu0 0.0
  %v8660 = vand.u32 %v8067, 4294901760
  %v8661 = vsub.f32 %v8067, %v8660
  %v8662 = vand.u32 %v8661, 4294901760
  %8663 = vmatpush1.msra.mxu0 %v8662
  %8664 = vmatprep.subr.mxu0 0.0
  %v8665 = vand.u32 %v8068, 4294901760
  %v8666 = vsub.f32 %v8068, %v8665
  %v8667 = vand.u32 %v8666, 4294901760
  %8668 = vmatpush1.msra.mxu0 %v8667
  %8669 = vmatprep.subr.mxu0 0.0
  %v8670 = vand.u32 %v8069, 4294901760
  %v8671 = vsub.f32 %v8069, %v8670
  %v8672 = vand.u32 %v8671, 4294901760
  %8673 = vmatpush1.msra.mxu0 %v8672
  %8674 = vmatprep.subr.mxu0 0.0
  %v8675 = vand.u32 %v8070, 4294901760
  %v8676 = vsub.f32 %v8070, %v8675
  %v8677 = vand.u32 %v8676, 4294901760
  %8678 = vmatpush1.msra.mxu0 %v8677
  %8679 = vmatprep.subr.mxu0 0.0
  %8680 = vmatpush1.msra.mxu0 0.0
  %8681 = vmatprep.subr.mxu0 0.0
  %8682 = vmatpush1.msra.mxu0 0.0
  %8683 = vmatprep.subr.mxu0 0.0
  %8684 = vmatpush1.msra.mxu0 0.0
  %8685 = vmatprep.subr.mxu0 0.0
  %8686 = vmatpush1.msra.mxu0 0.0
  %8687 = vmatprep.subr.mxu0 0.0
  %8688 = vmatpush1.msra.mxu0 0.0
  %8689 = vmatprep.subr.mxu0 0.0
  %8690 = vmatpush1.msra.mxu0 0.0
  %8691 = vmatprep.subr.mxu0 0.0
  %8692 = vmatpush1.msra.mxu0 0.0
  %8693 = vmatprep.subr.mxu0 0.0
  %8694 = vmatpush1.msra.mxu0 0.0
  %8695 = vmatprep.subr.mxu0 0.0
  %8696 = vmatpush1.msra.mxu0 0.0
  %8697 = vmatprep.subr.mxu0 0.0
  %8698 = vmatpush1.msra.mxu0 0.0
  %8699 = vmatprep.subr.mxu0 0.0
  %8700 = vmatpush1.msra.mxu0 0.0
  %8701 = vmatprep.subr.mxu0 0.0
  %8702 = vmatpush1.msra.mxu0 0.0
  %8703 = vmatprep.subr.mxu0 0.0
  %8704 = vmatpush1.msra.mxu0 0.0
  %8705 = vmatprep.subr.mxu0 0.0
  %8706 = vmatpush1.msra.mxu0 0.0
  %8707 = vmatprep.subr.mxu0 0.0
  %8708 = vmatpush1.msra.mxu0 0.0
  %8709 = vmatprep.subr.mxu0 0.0
  %8710 = vmatpush1.msra.mxu0 0.0
  %8711 = vmatprep.mubr.f32.mxu0 0.0
  %v8712 = vand.u32 %v7261, 4294901760
  %8713 = vmatmul.mubr.f32.gmra.mrb[0].mxu0 %v8712
  %v8714 = vpop.f32.mrb[0].mxu0
  %v8715 = vadd.f32 %v8572, %v8714
  %v8716 = vpop.f32.mrb[0].mxu0
  %8717 = vmatprep.mubr.f32.mxu0 0.0
  %v8718 = vand.u32 %v7262, 4294901760
  %8719 = vmatmul.mubr.f32.gmra.mrb[0].mxu0 %v8718
  %v8720 = vpop.f32.mrb[0].mxu0
  %v8721 = vadd.f32 %v8580, %v8720
  %v8722 = vpop.f32.mrb[0].mxu0
  %8723 = vmatprep.mubr.f32.mxu0 0.0
  %v8724 = vand.u32 %v7263, 4294901760
  %8725 = vmatmul.mubr.f32.gmra.mrb[0].mxu0 %v8724
  %v8726 = vpop.f32.mrb[0].mxu0
  %v8727 = vadd.f32 %v8588, %v8726
  %v8728 = vpop.f32.mrb[0].mxu0
  %8729 = vmatprep.mubr.f32.mxu0 0.0
  %v8730 = vand.u32 %v7264, 4294901760
  %8731 = vmatmul.mubr.f32.gmra.mrb[0].mxu0 %v8730
  %v8732 = vpop.f32.mrb[0].mxu0
  %v8733 = vadd.f32 %v8596, %v8732
  %v8734 = vpop.f32.mrb[0].mxu0
  %8735 = vdwg.mxu0
  %8736 = vmatprep.subr.mxu0 0.0
  %v8737 = vand.u32 %v8055, 4294901760
  %8738 = vmatpush1.msra.mxu0 %v8737
  %8739 = vmatprep.subr.mxu0 0.0
  %v8740 = vand.u32 %v8056, 4294901760
  %8741 = vmatpush1.msra.mxu0 %v8740
  %8742 = vmatprep.subr.mxu0 0.0
  %v8743 = vand.u32 %v8057, 4294901760
  %8744 = vmatpush1.msra.mxu0 %v8743
  %8745 = vmatprep.subr.mxu0 0.0
  %v8746 = vand.u32 %v8058, 4294901760
  %8747 = vmatpush1.msra.mxu0 %v8746
  %8748 = vmatprep.subr.mxu0 0.0
  %v8749 = vand.u32 %v8059, 4294901760
  %8750 = vmatpush1.msra.mxu0 %v8749
  %8751 = vmatprep.subr.mxu0 0.0
  %v8752 = vand.u32 %v8060, 4294901760
  %8753 = vmatpush1.msra.mxu0 %v8752
  %8754 = vmatprep.subr.mxu0 0.0
  %v8755 = vand.u32 %v8061, 4294901760
  %8756 = vmatpush1.msra.mxu0 %v8755
  %8757 = vmatprep.subr.mxu0 0.0
  %v8758 = vand.u32 %v8062, 4294901760
  %8759 = vmatpush1.msra.mxu0 %v8758
  %8760 = vmatprep.subr.mxu0 0.0
  %v8761 = vand.u32 %v8063, 4294901760
  %8762 = vmatpush1.msra.mxu0 %v8761
  %8763 = vmatprep.subr.mxu0 0.0
  %v8764 = vand.u32 %v8064, 4294901760
  %8765 = vmatpush1.msra.mxu0 %v8764
  %8766 = vmatprep.subr.mxu0 0.0
  %v8767 = vand.u32 %v8065, 4294901760
  %8768 = vmatpush1.msra.mxu0 %v8767
  %8769 = vmatprep.subr.mxu0 0.0
  %v8770 = vand.u32 %v8066, 4294901760
  %8771 = vmatpush1.msra.mxu0 %v8770
  %8772 = vmatprep.subr.mxu0 0.0
  %v8773 = vand.u32 %v8067, 4294901760
  %8774 = vmatpush1.msra.mxu0 %v8773
  %8775 = vmatprep.subr.mxu0 0.0
  %v8776 = vand.u32 %v8068, 4294901760
  %8777 = vmatpush1.msra.mxu0 %v8776
  %8778 = vmatprep.subr.mxu0 0.0
  %v8779 = vand.u32 %v8069, 4294901760
  %8780 = vmatpush1.msra.mxu0 %v8779
  %8781 = vmatprep.subr.mxu0 0.0
  %v8782 = vand.u32 %v8070, 4294901760
  %8783 = vmatpush1.msra.mxu0 %v8782
  %8784 = vmatprep.subr.mxu0 0.0
  %8785 = vmatpush1.msra.mxu0 0.0
  %8786 = vmatprep.subr.mxu0 0.0
  %8787 = vmatpush1.msra.mxu0 0.0
  %8788 = vmatprep.subr.mxu0 0.0
  %8789 = vmatpush1.msra.mxu0 0.0
  %8790 = vmatprep.subr.mxu0 0.0
  %8791 = vmatpush1.msra.mxu0 0.0
  %8792 = vmatprep.subr.mxu0 0.0
  %8793 = vmatpush1.msra.mxu0 0.0
  %8794 = vmatprep.subr.mxu0 0.0
  %8795 = vmatpush1.msra.mxu0 0.0
  %8796 = vmatprep.subr.mxu0 0.0
  %8797 = vmatpush1.msra.mxu0 0.0
  %8798 = vmatprep.subr.mxu0 0.0
  %8799 = vmatpush1.msra.mxu0 0.0
  %8800 = vmatprep.subr.mxu0 0.0
  %8801 = vmatpush1.msra.mxu0 0.0
  %8802 = vmatprep.subr.mxu0 0.0
  %8803 = vmatpush1.msra.mxu0 0.0
  %8804 = vmatprep.subr.mxu0 0.0
  %8805 = vmatpush1.msra.mxu0 0.0
  %8806 = vmatprep.subr.mxu0 0.0
  %8807 = vmatpush1.msra.mxu0 0.0
  %8808 = vmatprep.subr.mxu0 0.0
  %8809 = vmatpush1.msra.mxu0 0.0
  %8810 = vmatprep.subr.mxu0 0.0
  %8811 = vmatpush1.msra.mxu0 0.0
  %8812 = vmatprep.subr.mxu0 0.0
  %8813 = vmatpush1.msra.mxu0 0.0
  %8814 = vmatprep.subr.mxu0 0.0
  %8815 = vmatpush1.msra.mxu0 0.0
  %8816 = vmatprep.mubr.f32.mxu0 0.0
  %v8817 = vand.u32 %v7261, 4294901760
  %8818 = vmatmul.mubr.f32.gmra.mrb[0].mxu0 %v8817
  %v8819 = vpop.f32.mrb[0].mxu0
  %v8820 = vadd.f32 %v8715, %v8819
  %v8821 = vpop.f32.mrb[0].mxu0
  %8822 = vmatprep.mubr.f32.mxu0 0.0
  %v8823 = vand.u32 %v7262, 4294901760
  %8824 = vmatmul.mubr.f32.gmra.mrb[0].mxu0 %v8823
  %v8825 = vpop.f32.mrb[0].mxu0
  %v8826 = vadd.f32 %v8721, %v8825
  %v8827 = vpop.f32.mrb[0].mxu0
  %8828 = vmatprep.mubr.f32.mxu0 0.0
  %v8829 = vand.u32 %v7263, 4294901760
  %8830 = vmatmul.mubr.f32.gmra.mrb[0].mxu0 %v8829
  %v8831 = vpop.f32.mrb[0].mxu0
  %v8832 = vadd.f32 %v8727, %v8831
  %v8833 = vpop.f32.mrb[0].mxu0
  %8834 = vmatprep.mubr.f32.mxu0 0.0
  %v8835 = vand.u32 %v7264, 4294901760
  %8836 = vmatmul.mubr.f32.gmra.mrb[0].mxu0 %v8835
  %v8837 = vpop.f32.mrb[0].mxu0
  %v8838 = vadd.f32 %v8733, %v8837
  %v8839 = vpop.f32.mrb[0].mxu0
  %8840 = vdwg.mxu0
  %v8841 = vmax.f32 %v8034, %v8820
  %v8842 = vmax.f32 %v8040, %v8826
  %v8843 = vmax.f32 %v8046, %v8832
  %v8844 = vmax.f32 %v8052, %v8838
  %v8845 = vld [vmem:[%s10] sm:$0xff]
  %v8846 = vld [vmem:[%s10 + $0x8] sm:$0xff]
  %vm8847 = vcmask 261120
  %v8849 = vsel %vm8847, %v8845, 0
  %v8852 = vsel %vm8847, %v8846, 0
  %8854 = vmatprep.subr.mxu0 0.0
  %v8855 = vand.u32 %v8841, 4294901760
  %8856 = vmatpush1.msra.mxu0 %v8855
  %8857 = vmatprep.subr.mxu0 0.0
  %v8858 = vand.u32 %v8842, 4294901760
  %8859 = vmatpush1.msra.mxu0 %v8858
  %8860 = vmatprep.subr.mxu0 0.0
  %v8861 = vand.u32 %v8843, 4294901760
  %8862 = vmatpush1.msra.mxu0 %v8861
  %8863 = vmatprep.subr.mxu0 0.0
  %v8864 = vand.u32 %v8844, 4294901760
  %8865 = vmatpush1.msra.mxu0 %v8864
  %8866 = vmatprep.subr.mxu0 0.0
  %8867 = vmatpush1.msra.mxu0 0.0
  %8868 = vmatprep.subr.mxu0 0.0
  %8869 = vmatpush1.msra.mxu0 0.0
  %8870 = vmatprep.subr.mxu0 0.0
  %8871 = vmatpush1.msra.mxu0 0.0
  %8872 = vmatprep.subr.mxu0 0.0
  %8873 = vmatpush1.msra.mxu0 0.0
  %8874 = vmatprep.subr.mxu0 0.0
  %8875 = vmatpush1.msra.mxu0 0.0
  %8876 = vmatprep.subr.mxu0 0.0
  %8877 = vmatpush1.msra.mxu0 0.0
  %8878 = vmatprep.subr.mxu0 0.0
  %8879 = vmatpush1.msra.mxu0 0.0
  %8880 = vmatprep.subr.mxu0 0.0
  %8881 = vmatpush1.msra.mxu0 0.0
  %8882 = vmatprep.subr.mxu0 0.0
  %8883 = vmatpush1.msra.mxu0 0.0
  %8884 = vmatprep.subr.mxu0 0.0
  %8885 = vmatpush1.msra.mxu0 0.0
  %8886 = vmatprep.subr.mxu0 0.0
  %8887 = vmatpush1.msra.mxu0 0.0
  %8888 = vmatprep.subr.mxu0 0.0
  %8889 = vmatpush1.msra.mxu0 0.0
  %8890 = vmatprep.subr.mxu0 0.0
  %8891 = vmatpush1.msra.mxu0 0.0
  %8892 = vmatprep.subr.mxu0 0.0
  %8893 = vmatpush1.msra.mxu0 0.0
  %8894 = vmatprep.subr.mxu0 0.0
  %8895 = vmatpush1.msra.mxu0 0.0
  %8896 = vmatprep.subr.mxu0 0.0
  %8897 = vmatpush1.msra.mxu0 0.0
  %8898 = vmatprep.subr.mxu0 0.0
  %8899 = vmatpush1.msra.mxu0 0.0
  %8900 = vmatprep.subr.mxu0 0.0
  %8901 = vmatpush1.msra.mxu0 0.0
  %8902 = vmatprep.subr.mxu0 0.0
  %8903 = vmatpush1.msra.mxu0 0.0
  %8904 = vmatprep.subr.mxu0 0.0
  %8905 = vmatpush1.msra.mxu0 0.0
  %8906 = vmatprep.subr.mxu0 0.0
  %8907 = vmatpush1.msra.mxu0 0.0
  %8908 = vmatprep.subr.mxu0 0.0
  %8909 = vmatpush1.msra.mxu0 0.0
  %8910 = vmatprep.subr.mxu0 0.0
  %8911 = vmatpush1.msra.mxu0 0.0
  %8912 = vmatprep.subr.mxu0 0.0
  %8913 = vmatpush1.msra.mxu0 0.0
  %8914 = vmatprep.subr.mxu0 0.0
  %8915 = vmatpush1.msra.mxu0 0.0
  %8916 = vmatprep.subr.mxu0 0.0
  %8917 = vmatpush1.msra.mxu0 0.0
  %8918 = vmatprep.subr.mxu0 0.0
  %8919 = vmatpush1.msra.mxu0 0.0
  %8920 = vmatprep.subr.mxu0 0.0
  %8921 = vmatpush1.msra.mxu0 0.0
  %8922 = vmatprep.mubr.f32.mxu0 0.0
  %v8923 = vand.u32 %v8849, 4294901760
  %v8924 = vsub.f32 %v8849, %v8923
  %v8925 = vand.u32 %v8924, 4294901760
  %v8926 = vsub.f32 %v8924, %v8925
  %v8927 = vand.u32 %v8926, 4294901760
  %8928 = vmatmul.mubr.f32.gmra.mrb[0].mxu0 %v8927
  %v8929 = vpop.f32.mrb[0].mxu0
  %v8930 = vadd.f32 0.0, %v8929
  %v8931 = vpop.f32.mrb[0].mxu0
  %8932 = vmatprep.mubr.f32.mxu0 0.0
  %v8933 = vand.u32 %v8852, 4294901760
  %v8934 = vsub.f32 %v8852, %v8933
  %v8935 = vand.u32 %v8934, 4294901760
  %v8936 = vsub.f32 %v8934, %v8935
  %v8937 = vand.u32 %v8936, 4294901760
  %8938 = vmatmul.mubr.f32.gmra.mrb[0].mxu0 %v8937
  %v8939 = vpop.f32.mrb[0].mxu0
  %v8940 = vadd.f32 0.0, %v8939
  %v8941 = vpop.f32.mrb[0].mxu0
  %8942 = vdwg.mxu0
  %8943 = vmatprep.subr.mxu0 0.0
  %v8944 = vand.u32 %v8841, 4294901760
  %v8945 = vsub.f32 %v8841, %v8944
  %v8946 = vand.u32 %v8945, 4294901760
  %v8947 = vsub.f32 %v8945, %v8946
  %v8948 = vand.u32 %v8947, 4294901760
  %8949 = vmatpush1.msra.mxu0 %v8948
  %8950 = vmatprep.subr.mxu0 0.0
  %v8951 = vand.u32 %v8842, 4294901760
  %v8952 = vsub.f32 %v8842, %v8951
  %v8953 = vand.u32 %v8952, 4294901760
  %v8954 = vsub.f32 %v8952, %v8953
  %v8955 = vand.u32 %v8954, 4294901760
  %8956 = vmatpush1.msra.mxu0 %v8955
  %8957 = vmatprep.subr.mxu0 0.0
  %v8958 = vand.u32 %v8843, 4294901760
  %v8959 = vsub.f32 %v8843, %v8958
  %v8960 = vand.u32 %v8959, 4294901760
  %v8961 = vsub.f32 %v8959, %v8960
  %v8962 = vand.u32 %v8961, 4294901760
  %8963 = vmatpush1.msra.mxu0 %v8962
  %8964 = vmatprep.subr.mxu0 0.0
  %v8965 = vand.u32 %v8844, 4294901760
  %v8966 = vsub.f32 %v8844, %v8965
  %v8967 = vand.u32 %v8966, 4294901760
  %v8968 = vsub.f32 %v8966, %v8967
  %v8969 = vand.u32 %v8968, 4294901760
  %8970 = vmatpush1.msra.mxu0 %v8969
  %8971 = vmatprep.subr.mxu0 0.0
  %8972 = vmatpush1.msra.mxu0 0.0
  %8973 = vmatprep.subr.mxu0 0.0
  %8974 = vmatpush1.msra.mxu0 0.0
  %8975 = vmatprep.subr.mxu0 0.0
  %8976 = vmatpush1.msra.mxu0 0.0
  %8977 = vmatprep.subr.mxu0 0.0
  %8978 = vmatpush1.msra.mxu0 0.0
  %8979 = vmatprep.subr.mxu0 0.0
  %8980 = vmatpush1.msra.mxu0 0.0
  %8981 = vmatprep.subr.mxu0 0.0
  %8982 = vmatpush1.msra.mxu0 0.0
  %8983 = vmatprep.subr.mxu0 0.0
  %8984 = vmatpush1.msra.mxu0 0.0
  %8985 = vmatprep.subr.mxu0 0.0
  %8986 = vmatpush1.msra.mxu0 0.0
  %8987 = vmatprep.subr.mxu0 0.0
  %8988 = vmatpush1.msra.mxu0 0.0
  %8989 = vmatprep.subr.mxu0 0.0
  %8990 = vmatpush1.msra.mxu0 0.0
  %8991 = vmatprep.subr.mxu0 0.0
  %8992 = vmatpush1.msra.mxu0 0.0
  %8993 = vmatprep.subr.mxu0 0.0
  %8994 = vmatpush1.msra.mxu0 0.0
  %8995 = vmatprep.subr.mxu0 0.0
  %8996 = vmatpush1.msra.mxu0 0.0
  %8997 = vmatprep.subr.mxu0 0.0
  %8998 = vmatpush1.msra.mxu0 0.0
  %8999 = vmatprep.subr.mxu0 0.0
  %9000 = vmatpush1.msra.mxu0 0.0
  %9001 = vmatprep.subr.mxu0 0.0
  %9002 = vmatpush1.msra.mxu0 0.0
  %9003 = vmatprep.subr.mxu0 0.0
  %9004 = vmatpush1.msra.mxu0 0.0
  %9005 = vmatprep.subr.mxu0 0.0
  %9006 = vmatpush1.msra.mxu0 0.0
  %9007 = vmatprep.subr.mxu0 0.0
  %9008 = vmatpush1.msra.mxu0 0.0
  %9009 = vmatprep.subr.mxu0 0.0
  %9010 = vmatpush1.msra.mxu0 0.0
  %9011 = vmatprep.subr.mxu0 0.0
  %9012 = vmatpush1.msra.mxu0 0.0
  %9013 = vmatprep.subr.mxu0 0.0
  %9014 = vmatpush1.msra.mxu0 0.0
  %9015 = vmatprep.subr.mxu0 0.0
  %9016 = vmatpush1.msra.mxu0 0.0
  %9017 = vmatprep.subr.mxu0 0.0
  %9018 = vmatpush1.msra.mxu0 0.0
  %9019 = vmatprep.subr.mxu0 0.0
  %9020 = vmatpush1.msra.mxu0 0.0
  %9021 = vmatprep.subr.mxu0 0.0
  %9022 = vmatpush1.msra.mxu0 0.0
  %9023 = vmatprep.subr.mxu0 0.0
  %9024 = vmatpush1.msra.mxu0 0.0
  %9025 = vmatprep.subr.mxu0 0.0
  %9026 = vmatpush1.msra.mxu0 0.0
  %9027 = vmatprep.mubr.f32.mxu0 0.0
  %v9028 = vand.u32 %v8849, 4294901760
  %9029 = vmatmul.mubr.f32.gmra.mrb[0].mxu0 %v9028
  %v9030 = vpop.f32.mrb[0].mxu0
  %v9031 = vadd.f32 %v8930, %v9030
  %v9032 = vpop.f32.mrb[0].mxu0
  %9033 = vmatprep.mubr.f32.mxu0 0.0
  %v9034 = vand.u32 %v8852, 4294901760
  %9035 = vmatmul.mubr.f32.gmra.mrb[0].mxu0 %v9034
  %v9036 = vpop.f32.mrb[0].mxu0
  %v9037 = vadd.f32 %v8940, %v9036
  %v9038 = vpop.f32.mrb[0].mxu0
  %9039 = vdwg.mxu0
  %9040 = vmatprep.subr.mxu0 0.0
  %v9041 = vand.u32 %v8841, 4294901760
  %v9042 = vsub.f32 %v8841, %v9041
  %9043 = vmatpush1.msra.mxu0 %v9042
  %9044 = vmatprep.subr.mxu0 0.0
  %v9045 = vand.u32 %v8842, 4294901760
  %v9046 = vsub.f32 %v8842, %v9045
  %9047 = vmatpush1.msra.mxu0 %v9046
  %9048 = vmatprep.subr.mxu0 0.0
  %v9049 = vand.u32 %v8843, 4294901760
  %v9050 = vsub.f32 %v8843, %v9049
  %9051 = vmatpush1.msra.mxu0 %v9050
  %9052 = vmatprep.subr.mxu0 0.0
  %v9053 = vand.u32 %v8844, 4294901760
  %v9054 = vsub.f32 %v8844, %v9053
  %9055 = vmatpush1.msra.mxu0 %v9054
  %9056 = vmatprep.subr.mxu0 0.0
  %9057 = vmatpush1.msra.mxu0 0.0
  %9058 = vmatprep.subr.mxu0 0.0
  %9059 = vmatpush1.msra.mxu0 0.0
  %9060 = vmatprep.subr.mxu0 0.0
  %9061 = vmatpush1.msra.mxu0 0.0
  %9062 = vmatprep.subr.mxu0 0.0
  %9063 = vmatpush1.msra.mxu0 0.0
  %9064 = vmatprep.subr.mxu0 0.0
  %9065 = vmatpush1.msra.mxu0 0.0
  %9066 = vmatprep.subr.mxu0 0.0
  %9067 = vmatpush1.msra.mxu0 0.0
  %9068 = vmatprep.subr.mxu0 0.0
  %9069 = vmatpush1.msra.mxu0 0.0
  %9070 = vmatprep.subr.mxu0 0.0
  %9071 = vmatpush1.msra.mxu0 0.0
  %9072 = vmatprep.subr.mxu0 0.0
  %9073 = vmatpush1.msra.mxu0 0.0
  %9074 = vmatprep.subr.mxu0 0.0
  %9075 = vmatpush1.msra.mxu0 0.0
  %9076 = vmatprep.subr.mxu0 0.0
  %9077 = vmatpush1.msra.mxu0 0.0
  %9078 = vmatprep.subr.mxu0 0.0
  %9079 = vmatpush1.msra.mxu0 0.0
  %9080 = vmatprep.subr.mxu0 0.0
  %9081 = vmatpush1.msra.mxu0 0.0
  %9082 = vmatprep.subr.mxu0 0.0
  %9083 = vmatpush1.msra.mxu0 0.0
  %9084 = vmatprep.subr.mxu0 0.0
  %9085 = vmatpush1.msra.mxu0 0.0
  %9086 = vmatprep.subr.mxu0 0.0
  %9087 = vmatpush1.msra.mxu0 0.0
  %9088 = vmatprep.subr.mxu0 0.0
  %9089 = vmatpush1.msra.mxu0 0.0
  %9090 = vmatprep.subr.mxu0 0.0
  %9091 = vmatpush1.msra.mxu0 0.0
  %9092 = vmatprep.subr.mxu0 0.0
  %9093 = vmatpush1.msra.mxu0 0.0
  %9094 = vmatprep.subr.mxu0 0.0
  %9095 = vmatpush1.msra.mxu0 0.0
  %9096 = vmatprep.subr.mxu0 0.0
  %9097 = vmatpush1.msra.mxu0 0.0
  %9098 = vmatprep.subr.mxu0 0.0
  %9099 = vmatpush1.msra.mxu0 0.0
  %9100 = vmatprep.subr.mxu0 0.0
  %9101 = vmatpush1.msra.mxu0 0.0
  %9102 = vmatprep.subr.mxu0 0.0
  %9103 = vmatpush1.msra.mxu0 0.0
  %9104 = vmatprep.subr.mxu0 0.0
  %9105 = vmatpush1.msra.mxu0 0.0
  %9106 = vmatprep.subr.mxu0 0.0
  %9107 = vmatpush1.msra.mxu0 0.0
  %9108 = vmatprep.subr.mxu0 0.0
  %9109 = vmatpush1.msra.mxu0 0.0
  %9110 = vmatprep.subr.mxu0 0.0
  %9111 = vmatpush1.msra.mxu0 0.0
  %9112 = vmatprep.mubr.f32.mxu0 0.0
  %v9113 = vand.u32 %v8849, 4294901760
  %v9114 = vsub.f32 %v8849, %v9113
  %9115 = vmatmul.mubr.f32.gmra.mrb[0].mxu0 %v9114
  %v9116 = vpop.f32.mrb[0].mxu0
  %v9117 = vadd.f32 %v9031, %v9116
  %v9118 = vpop.f32.mrb[0].mxu0
  %9119 = vmatprep.mubr.f32.mxu0 0.0
  %v9120 = vand.u32 %v8852, 4294901760
  %v9121 = vsub.f32 %v8852, %v9120
  %9122 = vmatmul.mubr.f32.gmra.mrb[0].mxu0 %v9121
  %v9123 = vpop.f32.mrb[0].mxu0
  %v9124 = vadd.f32 %v9037, %v9123
  %v9125 = vpop.f32.mrb[0].mxu0
  %9126 = vdwg.mxu0
  %9127 = vmatprep.subr.mxu0 0.0
  %v9128 = vand.u32 %v8841, 4294901760
  %9129 = vmatpush1.msra.mxu0 %v9128
  %9130 = vmatprep.subr.mxu0 0.0
  %v9131 = vand.u32 %v8842, 4294901760
  %9132 = vmatpush1.msra.mxu0 %v9131
  %9133 = vmatprep.subr.mxu0 0.0
  %v9134 = vand.u32 %v8843, 4294901760
  %9135 = vmatpush1.msra.mxu0 %v9134
  %9136 = vmatprep.subr.mxu0 0.0
  %v9137 = vand.u32 %v8844, 4294901760
  %9138 = vmatpush1.msra.mxu0 %v9137
  %9139 = vmatprep.subr.mxu0 0.0
  %9140 = vmatpush1.msra.mxu0 0.0
  %9141 = vmatprep.subr.mxu0 0.0
  %9142 = vmatpush1.msra.mxu0 0.0
  %9143 = vmatprep.subr.mxu0 0.0
  %9144 = vmatpush1.msra.mxu0 0.0
  %9145 = vmatprep.subr.mxu0 0.0
  %9146 = vmatpush1.msra.mxu0 0.0
  %9147 = vmatprep.subr.mxu0 0.0
  %9148 = vmatpush1.msra.mxu0 0.0
  %9149 = vmatprep.subr.mxu0 0.0
  %9150 = vmatpush1.msra.mxu0 0.0
  %9151 = vmatprep.subr.mxu0 0.0
  %9152 = vmatpush1.msra.mxu0 0.0
  %9153 = vmatprep.subr.mxu0 0.0
  %9154 = vmatpush1.msra.mxu0 0.0
  %9155 = vmatprep.subr.mxu0 0.0
  %9156 = vmatpush1.msra.mxu0 0.0
  %9157 = vmatprep.subr.mxu0 0.0
  %9158 = vmatpush1.msra.mxu0 0.0
  %9159 = vmatprep.subr.mxu0 0.0
  %9160 = vmatpush1.msra.mxu0 0.0
  %9161 = vmatprep.subr.mxu0 0.0
  %9162 = vmatpush1.msra.mxu0 0.0
  %9163 = vmatprep.subr.mxu0 0.0
  %9164 = vmatpush1.msra.mxu0 0.0
  %9165 = vmatprep.subr.mxu0 0.0
  %9166 = vmatpush1.msra.mxu0 0.0
  %9167 = vmatprep.subr.mxu0 0.0
  %9168 = vmatpush1.msra.mxu0 0.0
  %9169 = vmatprep.subr.mxu0 0.0
  %9170 = vmatpush1.msra.mxu0 0.0
  %9171 = vmatprep.subr.mxu0 0.0
  %9172 = vmatpush1.msra.mxu0 0.0
  %9173 = vmatprep.subr.mxu0 0.0
  %9174 = vmatpush1.msra.mxu0 0.0
  %9175 = vmatprep.subr.mxu0 0.0
  %9176 = vmatpush1.msra.mxu0 0.0
  %9177 = vmatprep.subr.mxu0 0.0
  %9178 = vmatpush1.msra.mxu0 0.0
  %9179 = vmatprep.subr.mxu0 0.0
  %9180 = vmatpush1.msra.mxu0 0.0
  %9181 = vmatprep.subr.mxu0 0.0
  %9182 = vmatpush1.msra.mxu0 0.0
  %9183 = vmatprep.subr.mxu0 0.0
  %9184 = vmatpush1.msra.mxu0 0.0
  %9185 = vmatprep.subr.mxu0 0.0
  %9186 = vmatpush1.msra.mxu0 0.0
  %9187 = vmatprep.subr.mxu0 0.0
  %9188 = vmatpush1.msra.mxu0 0.0
  %9189 = vmatprep.subr.mxu0 0.0
  %9190 = vmatpush1.msra.mxu0 0.0
  %9191 = vmatprep.subr.mxu0 0.0
  %9192 = vmatpush1.msra.mxu0 0.0
  %9193 = vmatprep.subr.mxu0 0.0
  %9194 = vmatpush1.msra.mxu0 0.0
  %9195 = vmatprep.mubr.f32.mxu0 0.0
  %v9196 = vand.u32 %v8849, 4294901760
  %v9197 = vsub.f32 %v8849, %v9196
  %v9198 = vand.u32 %v9197, 4294901760
  %9199 = vmatmul.mubr.f32.gmra.mrb[0].mxu0 %v9198
  %v9200 = vpop.f32.mrb[0].mxu0
  %v9201 = vadd.f32 %v9117, %v9200
  %v9202 = vpop.f32.mrb[0].mxu0
  %9203 = vmatprep.mubr.f32.mxu0 0.0
  %v9204 = vand.u32 %v8852, 4294901760
  %v9205 = vsub.f32 %v8852, %v9204
  %v9206 = vand.u32 %v9205, 4294901760
  %9207 = vmatmul.mubr.f32.gmra.mrb[0].mxu0 %v9206
  %v9208 = vpop.f32.mrb[0].mxu0
  %v9209 = vadd.f32 %v9124, %v9208
  %v9210 = vpop.f32.mrb[0].mxu0
  %9211 = vdwg.mxu0
  %9212 = vmatprep.subr.mxu0 0.0
  %v9213 = vand.u32 %v8841, 4294901760
  %v9214 = vsub.f32 %v8841, %v9213
  %v9215 = vand.u32 %v9214, 4294901760
  %9216 = vmatpush1.msra.mxu0 %v9215
  %9217 = vmatprep.subr.mxu0 0.0
  %v9218 = vand.u32 %v8842, 4294901760
  %v9219 = vsub.f32 %v8842, %v9218
  %v9220 = vand.u32 %v9219, 4294901760
  %9221 = vmatpush1.msra.mxu0 %v9220
  %9222 = vmatprep.subr.mxu0 0.0
  %v9223 = vand.u32 %v8843, 4294901760
  %v9224 = vsub.f32 %v8843, %v9223
  %v9225 = vand.u32 %v9224, 4294901760
  %9226 = vmatpush1.msra.mxu0 %v9225
  %9227 = vmatprep.subr.mxu0 0.0
  %v9228 = vand.u32 %v8844, 4294901760
  %v9229 = vsub.f32 %v8844, %v9228
  %v9230 = vand.u32 %v9229, 4294901760
  %9231 = vmatpush1.msra.mxu0 %v9230
  %9232 = vmatprep.subr.mxu0 0.0
  %9233 = vmatpush1.msra.mxu0 0.0
  %9234 = vmatprep.subr.mxu0 0.0
  %9235 = vmatpush1.msra.mxu0 0.0
  %9236 = vmatprep.subr.mxu0 0.0
  %9237 = vmatpush1.msra.mxu0 0.0
  %9238 = vmatprep.subr.mxu0 0.0
  %9239 = vmatpush1.msra.mxu0 0.0
  %9240 = vmatprep.subr.mxu0 0.0
  %9241 = vmatpush1.msra.mxu0 0.0
  %9242 = vmatprep.subr.mxu0 0.0
  %9243 = vmatpush1.msra.mxu0 0.0
  %9244 = vmatprep.subr.mxu0 0.0
  %9245 = vmatpush1.msra.mxu0 0.0
  %9246 = vmatprep.subr.mxu0 0.0
  %9247 = vmatpush1.msra.mxu0 0.0
  %9248 = vmatprep.subr.mxu0 0.0
  %9249 = vmatpush1.msra.mxu0 0.0
  %9250 = vmatprep.subr.mxu0 0.0
  %9251 = vmatpush1.msra.mxu0 0.0
  %9252 = vmatprep.subr.mxu0 0.0
  %9253 = vmatpush1.msra.mxu0 0.0
  %9254 = vmatprep.subr.mxu0 0.0
  %9255 = vmatpush1.msra.mxu0 0.0
  %9256 = vmatprep.subr.mxu0 0.0
  %9257 = vmatpush1.msra.mxu0 0.0
  %9258 = vmatprep.subr.mxu0 0.0
  %9259 = vmatpush1.msra.mxu0 0.0
  %9260 = vmatprep.subr.mxu0 0.0
  %9261 = vmatpush1.msra.mxu0 0.0
  %9262 = vmatprep.subr.mxu0 0.0
  %9263 = vmatpush1.msra.mxu0 0.0
  %9264 = vmatprep.subr.mxu0 0.0
  %9265 = vmatpush1.msra.mxu0 0.0
  %9266 = vmatprep.subr.mxu0 0.0
  %9267 = vmatpush1.msra.mxu0 0.0
  %9268 = vmatprep.subr.mxu0 0.0
  %9269 = vmatpush1.msra.mxu0 0.0
  %9270 = vmatprep.subr.mxu0 0.0
  %9271 = vmatpush1.msra.mxu0 0.0
  %9272 = vmatprep.subr.mxu0 0.0
  %9273 = vmatpush1.msra.mxu0 0.0
  %9274 = vmatprep.subr.mxu0 0.0
  %9275 = vmatpush1.msra.mxu0 0.0
  %9276 = vmatprep.subr.mxu0 0.0
  %9277 = vmatpush1.msra.mxu0 0.0
  %9278 = vmatprep.subr.mxu0 0.0
  %9279 = vmatpush1.msra.mxu0 0.0
  %9280 = vmatprep.subr.mxu0 0.0
  %9281 = vmatpush1.msra.mxu0 0.0
  %9282 = vmatprep.subr.mxu0 0.0
  %9283 = vmatpush1.msra.mxu0 0.0
  %9284 = vmatprep.subr.mxu0 0.0
  %9285 = vmatpush1.msra.mxu0 0.0
  %9286 = vmatprep.subr.mxu0 0.0
  %9287 = vmatpush1.msra.mxu0 0.0
  %9288 = vmatprep.mubr.f32.mxu0 0.0
  %v9289 = vand.u32 %v8849, 4294901760
  %9290 = vmatmul.mubr.f32.gmra.mrb[0].mxu0 %v9289
  %v9291 = vpop.f32.mrb[0].mxu0
  %v9292 = vadd.f32 %v9201, %v9291
  %v9293 = vpop.f32.mrb[0].mxu0
  %9294 = vmatprep.mubr.f32.mxu0 0.0
  %v9295 = vand.u32 %v8852, 4294901760
  %9296 = vmatmul.mubr.f32.gmra.mrb[0].mxu0 %v9295
  %v9297 = vpop.f32.mrb[0].mxu0
  %v9298 = vadd.f32 %v9209, %v9297
  %v9299 = vpop.f32.mrb[0].mxu0
  %9300 = vdwg.mxu0
  %9301 = vmatprep.subr.mxu0 0.0
  %v9302 = vand.u32 %v8841, 4294901760
  %9303 = vmatpush1.msra.mxu0 %v9302
  %9304 = vmatprep.subr.mxu0 0.0
  %v9305 = vand.u32 %v8842, 4294901760
  %9306 = vmatpush1.msra.mxu0 %v9305
  %9307 = vmatprep.subr.mxu0 0.0
  %v9308 = vand.u32 %v8843, 4294901760
  %9309 = vmatpush1.msra.mxu0 %v9308
  %9310 = vmatprep.subr.mxu0 0.0
  %v9311 = vand.u32 %v8844, 4294901760
  %9312 = vmatpush1.msra.mxu0 %v9311
  %9313 = vmatprep.subr.mxu0 0.0
  %9314 = vmatpush1.msra.mxu0 0.0
  %9315 = vmatprep.subr.mxu0 0.0
  %9316 = vmatpush1.msra.mxu0 0.0
  %9317 = vmatprep.subr.mxu0 0.0
  %9318 = vmatpush1.msra.mxu0 0.0
  %9319 = vmatprep.subr.mxu0 0.0
  %9320 = vmatpush1.msra.mxu0 0.0
  %9321 = vmatprep.subr.mxu0 0.0
  %9322 = vmatpush1.msra.mxu0 0.0
  %9323 = vmatprep.subr.mxu0 0.0
  %9324 = vmatpush1.msra.mxu0 0.0
  %9325 = vmatprep.subr.mxu0 0.0
  %9326 = vmatpush1.msra.mxu0 0.0
  %9327 = vmatprep.subr.mxu0 0.0
  %9328 = vmatpush1.msra.mxu0 0.0
  %9329 = vmatprep.subr.mxu0 0.0
  %9330 = vmatpush1.msra.mxu0 0.0
  %9331 = vmatprep.subr.mxu0 0.0
  %9332 = vmatpush1.msra.mxu0 0.0
  %9333 = vmatprep.subr.mxu0 0.0
  %9334 = vmatpush1.msra.mxu0 0.0
  %9335 = vmatprep.subr.mxu0 0.0
  %9336 = vmatpush1.msra.mxu0 0.0
  %9337 = vmatprep.subr.mxu0 0.0
  %9338 = vmatpush1.msra.mxu0 0.0
  %9339 = vmatprep.subr.mxu0 0.0
  %9340 = vmatpush1.msra.mxu0 0.0
  %9341 = vmatprep.subr.mxu0 0.0
  %9342 = vmatpush1.msra.mxu0 0.0
  %9343 = vmatprep.subr.mxu0 0.0
  %9344 = vmatpush1.msra.mxu0 0.0
  %9345 = vmatprep.subr.mxu0 0.0
  %9346 = vmatpush1.msra.mxu0 0.0
  %9347 = vmatprep.subr.mxu0 0.0
  %9348 = vmatpush1.msra.mxu0 0.0
  %9349 = vmatprep.subr.mxu0 0.0
  %9350 = vmatpush1.msra.mxu0 0.0
  %9351 = vmatprep.subr.mxu0 0.0
  %9352 = vmatpush1.msra.mxu0 0.0
  %9353 = vmatprep.subr.mxu0 0.0
  %9354 = vmatpush1.msra.mxu0 0.0
  %9355 = vmatprep.subr.mxu0 0.0
  %9356 = vmatpush1.msra.mxu0 0.0
  %9357 = vmatprep.subr.mxu0 0.0
  %9358 = vmatpush1.msra.mxu0 0.0
  %9359 = vmatprep.subr.mxu0 0.0
  %9360 = vmatpush1.msra.mxu0 0.0
  %9361 = vmatprep.subr.mxu0 0.0
  %9362 = vmatpush1.msra.mxu0 0.0
  %9363 = vmatprep.subr.mxu0 0.0
  %9364 = vmatpush1.msra.mxu0 0.0
  %9365 = vmatprep.subr.mxu0 0.0
  %9366 = vmatpush1.msra.mxu0 0.0
  %9367 = vmatprep.subr.mxu0 0.0
  %9368 = vmatpush1.msra.mxu0 0.0
  %9369 = vmatprep.mubr.f32.mxu0 0.0
  %v9370 = vand.u32 %v8849, 4294901760
  %9371 = vmatmul.mubr.f32.gmra.mrb[0].mxu0 %v9370
  %v9372 = vpop.f32.mrb[0].mxu0
  %v9373 = vadd.f32 %v9292, %v9372
  %v9374 = vpop.f32.mrb[0].mxu0
  %9375 = vmatprep.mubr.f32.mxu0 0.0
  %v9376 = vand.u32 %v8852, 4294901760
  %9377 = vmatmul.mubr.f32.gmra.mrb[0].mxu0 %v9376
  %v9378 = vpop.f32.mrb[0].mxu0
  %v9379 = vadd.f32 %v9298, %v9378
  %v9380 = vpop.f32.mrb[0].mxu0
  %9381 = vdwg.mxu0
  %v9382 = vld [vmem:[%s11] sm:$0xff]
  %v9383 = vld [vmem:[%s11 + $0x8] sm:$0xff]
  %v9385 = vsel %vm8847, %v9382, 0
  %v9388 = vsel %vm8847, %v9383, 0
  %9390 = vmatprep.subr.mxu0 0.0
  %v9391 = vand.u32 %v8841, 4294901760
  %9392 = vmatpush1.msra.mxu0 %v9391
  %9393 = vmatprep.subr.mxu0 0.0
  %v9394 = vand.u32 %v8842, 4294901760
  %9395 = vmatpush1.msra.mxu0 %v9394
  %9396 = vmatprep.subr.mxu0 0.0
  %v9397 = vand.u32 %v8843, 4294901760
  %9398 = vmatpush1.msra.mxu0 %v9397
  %9399 = vmatprep.subr.mxu0 0.0
  %v9400 = vand.u32 %v8844, 4294901760
  %9401 = vmatpush1.msra.mxu0 %v9400
  %9402 = vmatprep.subr.mxu0 0.0
  %9403 = vmatpush1.msra.mxu0 0.0
  %9404 = vmatprep.subr.mxu0 0.0
  %9405 = vmatpush1.msra.mxu0 0.0
  %9406 = vmatprep.subr.mxu0 0.0
  %9407 = vmatpush1.msra.mxu0 0.0
  %9408 = vmatprep.subr.mxu0 0.0
  %9409 = vmatpush1.msra.mxu0 0.0
  %9410 = vmatprep.subr.mxu0 0.0
  %9411 = vmatpush1.msra.mxu0 0.0
  %9412 = vmatprep.subr.mxu0 0.0
  %9413 = vmatpush1.msra.mxu0 0.0
  %9414 = vmatprep.subr.mxu0 0.0
  %9415 = vmatpush1.msra.mxu0 0.0
  %9416 = vmatprep.subr.mxu0 0.0
  %9417 = vmatpush1.msra.mxu0 0.0
  %9418 = vmatprep.subr.mxu0 0.0
  %9419 = vmatpush1.msra.mxu0 0.0
  %9420 = vmatprep.subr.mxu0 0.0
  %9421 = vmatpush1.msra.mxu0 0.0
  %9422 = vmatprep.subr.mxu0 0.0
  %9423 = vmatpush1.msra.mxu0 0.0
  %9424 = vmatprep.subr.mxu0 0.0
  %9425 = vmatpush1.msra.mxu0 0.0
  %9426 = vmatprep.subr.mxu0 0.0
  %9427 = vmatpush1.msra.mxu0 0.0
  %9428 = vmatprep.subr.mxu0 0.0
  %9429 = vmatpush1.msra.mxu0 0.0
  %9430 = vmatprep.subr.mxu0 0.0
  %9431 = vmatpush1.msra.mxu0 0.0
  %9432 = vmatprep.subr.mxu0 0.0
  %9433 = vmatpush1.msra.mxu0 0.0
  %9434 = vmatprep.subr.mxu0 0.0
  %9435 = vmatpush1.msra.mxu0 0.0
  %9436 = vmatprep.subr.mxu0 0.0
  %9437 = vmatpush1.msra.mxu0 0.0
  %9438 = vmatprep.subr.mxu0 0.0
  %9439 = vmatpush1.msra.mxu0 0.0
  %9440 = vmatprep.subr.mxu0 0.0
  %9441 = vmatpush1.msra.mxu0 0.0
  %9442 = vmatprep.subr.mxu0 0.0
  %9443 = vmatpush1.msra.mxu0 0.0
  %9444 = vmatprep.subr.mxu0 0.0
  %9445 = vmatpush1.msra.mxu0 0.0
  %9446 = vmatprep.subr.mxu0 0.0
  %9447 = vmatpush1.msra.mxu0 0.0
  %9448 = vmatprep.subr.mxu0 0.0
  %9449 = vmatpush1.msra.mxu0 0.0
  %9450 = vmatprep.subr.mxu0 0.0
  %9451 = vmatpush1.msra.mxu0 0.0
  %9452 = vmatprep.subr.mxu0 0.0
  %9453 = vmatpush1.msra.mxu0 0.0
  %9454 = vmatprep.subr.mxu0 0.0
  %9455 = vmatpush1.msra.mxu0 0.0
  %9456 = vmatprep.subr.mxu0 0.0
  %9457 = vmatpush1.msra.mxu0 0.0
  %9458 = vmatprep.mubr.f32.mxu0 0.0
  %v9459 = vand.u32 %v9385, 4294901760
  %v9460 = vsub.f32 %v9385, %v9459
  %v9461 = vand.u32 %v9460, 4294901760
  %v9462 = vsub.f32 %v9460, %v9461
  %v9463 = vand.u32 %v9462, 4294901760
  %9464 = vmatmul.mubr.f32.gmra.mrb[0].mxu0 %v9463
  %v9465 = vpop.f32.mrb[0].mxu0
  %v9466 = vadd.f32 0.0, %v9465
  %v9467 = vpop.f32.mrb[0].mxu0
  %9468 = vmatprep.mubr.f32.mxu0 0.0
  %v9469 = vand.u32 %v9388, 4294901760
  %v9470 = vsub.f32 %v9388, %v9469
  %v9471 = vand.u32 %v9470, 4294901760
  %v9472 = vsub.f32 %v9470, %v9471
  %v9473 = vand.u32 %v9472, 4294901760
  %9474 = vmatmul.mubr.f32.gmra.mrb[0].mxu0 %v9473
  %v9475 = vpop.f32.mrb[0].mxu0
  %v9476 = vadd.f32 0.0, %v9475
  %v9477 = vpop.f32.mrb[0].mxu0
  %9478 = vdwg.mxu0
  %9479 = vmatprep.subr.mxu0 0.0
  %v9480 = vand.u32 %v8841, 4294901760
  %v9481 = vsub.f32 %v8841, %v9480
  %v9482 = vand.u32 %v9481, 4294901760
  %v9483 = vsub.f32 %v9481, %v9482
  %v9484 = vand.u32 %v9483, 4294901760
  %9485 = vmatpush1.msra.mxu0 %v9484
  %9486 = vmatprep.subr.mxu0 0.0
  %v9487 = vand.u32 %v8842, 4294901760
  %v9488 = vsub.f32 %v8842, %v9487
  %v9489 = vand.u32 %v9488, 4294901760
  %v9490 = vsub.f32 %v9488, %v9489
  %v9491 = vand.u32 %v9490, 4294901760
  %9492 = vmatpush1.msra.mxu0 %v9491
  %9493 = vmatprep.subr.mxu0 0.0
  %v9494 = vand.u32 %v8843, 4294901760
  %v9495 = vsub.f32 %v8843, %v9494
  %v9496 = vand.u32 %v9495, 4294901760
  %v9497 = vsub.f32 %v9495, %v9496
  %v9498 = vand.u32 %v9497, 4294901760
  %9499 = vmatpush1.msra.mxu0 %v9498
  %9500 = vmatprep.subr.mxu0 0.0
  %v9501 = vand.u32 %v8844, 4294901760
  %v9502 = vsub.f32 %v8844, %v9501
  %v9503 = vand.u32 %v9502, 4294901760
  %v9504 = vsub.f32 %v9502, %v9503
  %v9505 = vand.u32 %v9504, 4294901760
  %9506 = vmatpush1.msra.mxu0 %v9505
  %9507 = vmatprep.subr.mxu0 0.0
  %9508 = vmatpush1.msra.mxu0 0.0
  %9509 = vmatprep.subr.mxu0 0.0
  %9510 = vmatpush1.msra.mxu0 0.0
  %9511 = vmatprep.subr.mxu0 0.0
  %9512 = vmatpush1.msra.mxu0 0.0
  %9513 = vmatprep.subr.mxu0 0.0
  %9514 = vmatpush1.msra.mxu0 0.0
  %9515 = vmatprep.subr.mxu0 0.0
  %9516 = vmatpush1.msra.mxu0 0.0
  %9517 = vmatprep.subr.mxu0 0.0
  %9518 = vmatpush1.msra.mxu0 0.0
  %9519 = vmatprep.subr.mxu0 0.0
  %9520 = vmatpush1.msra.mxu0 0.0
  %9521 = vmatprep.subr.mxu0 0.0
  %9522 = vmatpush1.msra.mxu0 0.0
  %9523 = vmatprep.subr.mxu0 0.0
  %9524 = vmatpush1.msra.mxu0 0.0
  %9525 = vmatprep.subr.mxu0 0.0
  %9526 = vmatpush1.msra.mxu0 0.0
  %9527 = vmatprep.subr.mxu0 0.0
  %9528 = vmatpush1.msra.mxu0 0.0
  %9529 = vmatprep.subr.mxu0 0.0
  %9530 = vmatpush1.msra.mxu0 0.0
  %9531 = vmatprep.subr.mxu0 0.0
  %9532 = vmatpush1.msra.mxu0 0.0
  %9533 = vmatprep.subr.mxu0 0.0
  %9534 = vmatpush1.msra.mxu0 0.0
  %9535 = vmatprep.subr.mxu0 0.0
  %9536 = vmatpush1.msra.mxu0 0.0
  %9537 = vmatprep.subr.mxu0 0.0
  %9538 = vmatpush1.msra.mxu0 0.0
  %9539 = vmatprep.subr.mxu0 0.0
  %9540 = vmatpush1.msra.mxu0 0.0
  %9541 = vmatprep.subr.mxu0 0.0
  %9542 = vmatpush1.msra.mxu0 0.0
  %9543 = vmatprep.subr.mxu0 0.0
  %9544 = vmatpush1.msra.mxu0 0.0
  %9545 = vmatprep.subr.mxu0 0.0
  %9546 = vmatpush1.msra.mxu0 0.0
  %9547 = vmatprep.subr.mxu0 0.0
  %9548 = vmatpush1.msra.mxu0 0.0
  %9549 = vmatprep.subr.mxu0 0.0
  %9550 = vmatpush1.msra.mxu0 0.0
  %9551 = vmatprep.subr.mxu0 0.0
  %9552 = vmatpush1.msra.mxu0 0.0
  %9553 = vmatprep.subr.mxu0 0.0
  %9554 = vmatpush1.msra.mxu0 0.0
  %9555 = vmatprep.subr.mxu0 0.0
  %9556 = vmatpush1.msra.mxu0 0.0
  %9557 = vmatprep.subr.mxu0 0.0
  %9558 = vmatpush1.msra.mxu0 0.0
  %9559 = vmatprep.subr.mxu0 0.0
  %9560 = vmatpush1.msra.mxu0 0.0
  %9561 = vmatprep.subr.mxu0 0.0
  %9562 = vmatpush1.msra.mxu0 0.0
  %9563 = vmatprep.mubr.f32.mxu0 0.0
  %v9564 = vand.u32 %v9385, 4294901760
  %9565 = vmatmul.mubr.f32.gmra.mrb[0].mxu0 %v9564
  %v9566 = vpop.f32.mrb[0].mxu0
  %v9567 = vadd.f32 %v9466, %v9566
  %v9568 = vpop.f32.mrb[0].mxu0
  %9569 = vmatprep.mubr.f32.mxu0 0.0
  %v9570 = vand.u32 %v9388, 4294901760
  %9571 = vmatmul.mubr.f32.gmra.mrb[0].mxu0 %v9570
  %v9572 = vpop.f32.mrb[0].mxu0
  %v9573 = vadd.f32 %v9476, %v9572
  %v9574 = vpop.f32.mrb[0].mxu0
  %9575 = vdwg.mxu0
  %9576 = vmatprep.subr.mxu0 0.0
  %v9577 = vand.u32 %v8841, 4294901760
  %v9578 = vsub.f32 %v8841, %v9577
  %9579 = vmatpush1.msra.mxu0 %v9578
  %9580 = vmatprep.subr.mxu0 0.0
  %v9581 = vand.u32 %v8842, 4294901760
  %v9582 = vsub.f32 %v8842, %v9581
  %9583 = vmatpush1.msra.mxu0 %v9582
  %9584 = vmatprep.subr.mxu0 0.0
  %v9585 = vand.u32 %v8843, 4294901760
  %v9586 = vsub.f32 %v8843, %v9585
  %9587 = vmatpush1.msra.mxu0 %v9586
  %9588 = vmatprep.subr.mxu0 0.0
  %v9589 = vand.u32 %v8844, 4294901760
  %v9590 = vsub.f32 %v8844, %v9589
  %9591 = vmatpush1.msra.mxu0 %v9590
  %9592 = vmatprep.subr.mxu0 0.0
  %9593 = vmatpush1.msra.mxu0 0.0
  %9594 = vmatprep.subr.mxu0 0.0
  %9595 = vmatpush1.msra.mxu0 0.0
  %9596 = vmatprep.subr.mxu0 0.0
  %9597 = vmatpush1.msra.mxu0 0.0
  %9598 = vmatprep.subr.mxu0 0.0
  %9599 = vmatpush1.msra.mxu0 0.0
  %9600 = vmatprep.subr.mxu0 0.0
  %9601 = vmatpush1.msra.mxu0 0.0
  %9602 = vmatprep.subr.mxu0 0.0
  %9603 = vmatpush1.msra.mxu0 0.0
  %9604 = vmatprep.subr.mxu0 0.0
  %9605 = vmatpush1.msra.mxu0 0.0
  %9606 = vmatprep.subr.mxu0 0.0
  %9607 = vmatpush1.msra.mxu0 0.0
  %9608 = vmatprep.subr.mxu0 0.0
  %9609 = vmatpush1.msra.mxu0 0.0
  %9610 = vmatprep.subr.mxu0 0.0
  %9611 = vmatpush1.msra.mxu0 0.0
  %9612 = vmatprep.subr.mxu0 0.0
  %9613 = vmatpush1.msra.mxu0 0.0
  %9614 = vmatprep.subr.mxu0 0.0
  %9615 = vmatpush1.msra.mxu0 0.0
  %9616 = vmatprep.subr.mxu0 0.0
  %9617 = vmatpush1.msra.mxu0 0.0
  %9618 = vmatprep.subr.mxu0 0.0
  %9619 = vmatpush1.msra.mxu0 0.0
  %9620 = vmatprep.subr.mxu0 0.0
  %9621 = vmatpush1.msra.mxu0 0.0
  %9622 = vmatprep.subr.mxu0 0.0
  %9623 = vmatpush1.msra.mxu0 0.0
  %9624 = vmatprep.subr.mxu0 0.0
  %9625 = vmatpush1.msra.mxu0 0.0
  %9626 = vmatprep.subr.mxu0 0.0
  %9627 = vmatpush1.msra.mxu0 0.0
  %9628 = vmatprep.subr.mxu0 0.0
  %9629 = vmatpush1.msra.mxu0 0.0
  %9630 = vmatprep.subr.mxu0 0.0
  %9631 = vmatpush1.msra.mxu0 0.0
  %9632 = vmatprep.subr.mxu0 0.0
  %9633 = vmatpush1.msra.mxu0 0.0
  %9634 = vmatprep.subr.mxu0 0.0
  %9635 = vmatpush1.msra.mxu0 0.0
  %9636 = vmatprep.subr.mxu0 0.0
  %9637 = vmatpush1.msra.mxu0 0.0
  %9638 = vmatprep.subr.mxu0 0.0
  %9639 = vmatpush1.msra.mxu0 0.0
  %9640 = vmatprep.subr.mxu0 0.0
  %9641 = vmatpush1.msra.mxu0 0.0
  %9642 = vmatprep.subr.mxu0 0.0
  %9643 = vmatpush1.msra.mxu0 0.0
  %9644 = vmatprep.subr.mxu0 0.0
  %9645 = vmatpush1.msra.mxu0 0.0
  %9646 = vmatprep.subr.mxu0 0.0
  %9647 = vmatpush1.msra.mxu0 0.0
  %9648 = vmatprep.mubr.f32.mxu0 0.0
  %v9649 = vand.u32 %v9385, 4294901760
  %v9650 = vsub.f32 %v9385, %v9649
  %9651 = vmatmul.mubr.f32.gmra.mrb[0].mxu0 %v9650
  %v9652 = vpop.f32.mrb[0].mxu0
  %v9653 = vadd.f32 %v9567, %v9652
  %v9654 = vpop.f32.mrb[0].mxu0
  %9655 = vmatprep.mubr.f32.mxu0 0.0
  %v9656 = vand.u32 %v9388, 4294901760
  %v9657 = vsub.f32 %v9388, %v9656
  %9658 = vmatmul.mubr.f32.gmra.mrb[0].mxu0 %v9657
  %v9659 = vpop.f32.mrb[0].mxu0
  %v9660 = vadd.f32 %v9573, %v9659
  %v9661 = vpop.f32.mrb[0].mxu0
  %9662 = vdwg.mxu0
  %9663 = vmatprep.subr.mxu0 0.0
  %v9664 = vand.u32 %v8841, 4294901760
  %9665 = vmatpush1.msra.mxu0 %v9664
  %9666 = vmatprep.subr.mxu0 0.0
  %v9667 = vand.u32 %v8842, 4294901760
  %9668 = vmatpush1.msra.mxu0 %v9667
  %9669 = vmatprep.subr.mxu0 0.0
  %v9670 = vand.u32 %v8843, 4294901760
  %9671 = vmatpush1.msra.mxu0 %v9670
  %9672 = vmatprep.subr.mxu0 0.0
  %v9673 = vand.u32 %v8844, 4294901760
  %9674 = vmatpush1.msra.mxu0 %v9673
  %9675 = vmatprep.subr.mxu0 0.0
  %9676 = vmatpush1.msra.mxu0 0.0
  %9677 = vmatprep.subr.mxu0 0.0
  %9678 = vmatpush1.msra.mxu0 0.0
  %9679 = vmatprep.subr.mxu0 0.0
  %9680 = vmatpush1.msra.mxu0 0.0
  %9681 = vmatprep.subr.mxu0 0.0
  %9682 = vmatpush1.msra.mxu0 0.0
  %9683 = vmatprep.subr.mxu0 0.0
  %9684 = vmatpush1.msra.mxu0 0.0
  %9685 = vmatprep.subr.mxu0 0.0
  %9686 = vmatpush1.msra.mxu0 0.0
  %9687 = vmatprep.subr.mxu0 0.0
  %9688 = vmatpush1.msra.mxu0 0.0
  %9689 = vmatprep.subr.mxu0 0.0
  %9690 = vmatpush1.msra.mxu0 0.0
  %9691 = vmatprep.subr.mxu0 0.0
  %9692 = vmatpush1.msra.mxu0 0.0
  %9693 = vmatprep.subr.mxu0 0.0
  %9694 = vmatpush1.msra.mxu0 0.0
  %9695 = vmatprep.subr.mxu0 0.0
  %9696 = vmatpush1.msra.mxu0 0.0
  %9697 = vmatprep.subr.mxu0 0.0
  %9698 = vmatpush1.msra.mxu0 0.0
  %9699 = vmatprep.subr.mxu0 0.0
  %9700 = vmatpush1.msra.mxu0 0.0
  %9701 = vmatprep.subr.mxu0 0.0
  %9702 = vmatpush1.msra.mxu0 0.0
  %9703 = vmatprep.subr.mxu0 0.0
  %9704 = vmatpush1.msra.mxu0 0.0
  %9705 = vmatprep.subr.mxu0 0.0
  %9706 = vmatpush1.msra.mxu0 0.0
  %9707 = vmatprep.subr.mxu0 0.0
  %9708 = vmatpush1.msra.mxu0 0.0
  %9709 = vmatprep.subr.mxu0 0.0
  %9710 = vmatpush1.msra.mxu0 0.0
  %9711 = vmatprep.subr.mxu0 0.0
  %9712 = vmatpush1.msra.mxu0 0.0
  %9713 = vmatprep.subr.mxu0 0.0
  %9714 = vmatpush1.msra.mxu0 0.0
  %9715 = vmatprep.subr.mxu0 0.0
  %9716 = vmatpush1.msra.mxu0 0.0
  %9717 = vmatprep.subr.mxu0 0.0
  %9718 = vmatpush1.msra.mxu0 0.0
  %9719 = vmatprep.subr.mxu0 0.0
  %9720 = vmatpush1.msra.mxu0 0.0
  %9721 = vmatprep.subr.mxu0 0.0
  %9722 = vmatpush1.msra.mxu0 0.0
  %9723 = vmatprep.subr.mxu0 0.0
  %9724 = vmatpush1.msra.mxu0 0.0
  %9725 = vmatprep.subr.mxu0 0.0
  %9726 = vmatpush1.msra.mxu0 0.0
  %9727 = vmatprep.subr.mxu0 0.0
  %9728 = vmatpush1.msra.mxu0 0.0
  %9729 = vmatprep.subr.mxu0 0.0
  %9730 = vmatpush1.msra.mxu0 0.0
  %9731 = vmatprep.mubr.f32.mxu0 0.0
  %v9732 = vand.u32 %v9385, 4294901760
  %v9733 = vsub.f32 %v9385, %v9732
  %v9734 = vand.u32 %v9733, 4294901760
  %9735 = vmatmul.mubr.f32.gmra.mrb[0].mxu0 %v9734
  %v9736 = vpop.f32.mrb[0].mxu0
  %v9737 = vadd.f32 %v9653, %v9736
  %v9738 = vpop.f32.mrb[0].mxu0
  %9739 = vmatprep.mubr.f32.mxu0 0.0
  %v9740 = vand.u32 %v9388, 4294901760
  %v9741 = vsub.f32 %v9388, %v9740
  %v9742 = vand.u32 %v9741, 4294901760
  %9743 = vmatmul.mubr.f32.gmra.mrb[0].mxu0 %v9742
  %v9744 = vpop.f32.mrb[0].mxu0
  %v9745 = vadd.f32 %v9660, %v9744
  %v9746 = vpop.f32.mrb[0].mxu0
  %9747 = vdwg.mxu0
  %9748 = vmatprep.subr.mxu0 0.0
  %v9749 = vand.u32 %v8841, 4294901760
  %v9750 = vsub.f32 %v8841, %v9749
  %v9751 = vand.u32 %v9750, 4294901760
  %9752 = vmatpush1.msra.mxu0 %v9751
  %9753 = vmatprep.subr.mxu0 0.0
  %v9754 = vand.u32 %v8842, 4294901760
  %v9755 = vsub.f32 %v8842, %v9754
  %v9756 = vand.u32 %v9755, 4294901760
  %9757 = vmatpush1.msra.mxu0 %v9756
  %9758 = vmatprep.subr.mxu0 0.0
  %v9759 = vand.u32 %v8843, 4294901760
  %v9760 = vsub.f32 %v8843, %v9759
  %v9761 = vand.u32 %v9760, 4294901760
  %9762 = vmatpush1.msra.mxu0 %v9761
  %9763 = vmatprep.subr.mxu0 0.0
  %v9764 = vand.u32 %v8844, 4294901760
  %v9765 = vsub.f32 %v8844, %v9764
  %v9766 = vand.u32 %v9765, 4294901760
  %9767 = vmatpush1.msra.mxu0 %v9766
  %9768 = vmatprep.subr.mxu0 0.0
  %9769 = vmatpush1.msra.mxu0 0.0
  %9770 = vmatprep.subr.mxu0 0.0
  %9771 = vmatpush1.msra.mxu0 0.0
  %9772 = vmatprep.subr.mxu0 0.0
  %9773 = vmatpush1.msra.mxu0 0.0
  %9774 = vmatprep.subr.mxu0 0.0
  %9775 = vmatpush1.msra.mxu0 0.0
  %9776 = vmatprep.subr.mxu0 0.0
  %9777 = vmatpush1.msra.mxu0 0.0
  %9778 = vmatprep.subr.mxu0 0.0
  %9779 = vmatpush1.msra.mxu0 0.0
  %9780 = vmatprep.subr.mxu0 0.0
  %9781 = vmatpush1.msra.mxu0 0.0
  %9782 = vmatprep.subr.mxu0 0.0
  %9783 = vmatpush1.msra.mxu0 0.0
  %9784 = vmatprep.subr.mxu0 0.0
  %9785 = vmatpush1.msra.mxu0 0.0
  %9786 = vmatprep.subr.mxu0 0.0
  %9787 = vmatpush1.msra.mxu0 0.0
  %9788 = vmatprep.subr.mxu0 0.0
  %9789 = vmatpush1.msra.mxu0 0.0
  %9790 = vmatprep.subr.mxu0 0.0
  %9791 = vmatpush1.msra.mxu0 0.0
  %9792 = vmatprep.subr.mxu0 0.0
  %9793 = vmatpush1.msra.mxu0 0.0
  %9794 = vmatprep.subr.mxu0 0.0
  %9795 = vmatpush1.msra.mxu0 0.0
  %9796 = vmatprep.subr.mxu0 0.0
  %9797 = vmatpush1.msra.mxu0 0.0
  %9798 = vmatprep.subr.mxu0 0.0
  %9799 = vmatpush1.msra.mxu0 0.0
  %9800 = vmatprep.subr.mxu0 0.0
  %9801 = vmatpush1.msra.mxu0 0.0
  %9802 = vmatprep.subr.mxu0 0.0
  %9803 = vmatpush1.msra.mxu0 0.0
  %9804 = vmatprep.subr.mxu0 0.0
  %9805 = vmatpush1.msra.mxu0 0.0
  %9806 = vmatprep.subr.mxu0 0.0
  %9807 = vmatpush1.msra.mxu0 0.0
  %9808 = vmatprep.subr.mxu0 0.0
  %9809 = vmatpush1.msra.mxu0 0.0
  %9810 = vmatprep.subr.mxu0 0.0
  %9811 = vmatpush1.msra.mxu0 0.0
  %9812 = vmatprep.subr.mxu0 0.0
  %9813 = vmatpush1.msra.mxu0 0.0
  %9814 = vmatprep.subr.mxu0 0.0
  %9815 = vmatpush1.msra.mxu0 0.0
  %9816 = vmatprep.subr.mxu0 0.0
  %9817 = vmatpush1.msra.mxu0 0.0
  %9818 = vmatprep.subr.mxu0 0.0
  %9819 = vmatpush1.msra.mxu0 0.0
  %9820 = vmatprep.subr.mxu0 0.0
  %9821 = vmatpush1.msra.mxu0 0.0
  %9822 = vmatprep.subr.mxu0 0.0
  %9823 = vmatpush1.msra.mxu0 0.0
  %9824 = vmatprep.mubr.f32.mxu0 0.0
  %v9825 = vand.u32 %v9385, 4294901760
  %9826 = vmatmul.mubr.f32.gmra.mrb[0].mxu0 %v9825
  %v9827 = vpop.f32.mrb[0].mxu0
  %v9828 = vadd.f32 %v9737, %v9827
  %v9829 = vpop.f32.mrb[0].mxu0
  %9830 = vmatprep.mubr.f32.mxu0 0.0
  %v9831 = vand.u32 %v9388, 4294901760
  %9832 = vmatmul.mubr.f32.gmra.mrb[0].mxu0 %v9831
  %v9833 = vpop.f32.mrb[0].mxu0
  %v9834 = vadd.f32 %v9745, %v9833
  %v9835 = vpop.f32.mrb[0].mxu0
  %9836 = vdwg.mxu0
  %9837 = vmatprep.subr.mxu0 0.0
  %v9838 = vand.u32 %v8841, 4294901760
  %9839 = vmatpush1.msra.mxu0 %v9838
  %9840 = vmatprep.subr.mxu0 0.0
  %v9841 = vand.u32 %v8842, 4294901760
  %9842 = vmatpush1.msra.mxu0 %v9841
  %9843 = vmatprep.subr.mxu0 0.0
  %v9844 = vand.u32 %v8843, 4294901760
  %9845 = vmatpush1.msra.mxu0 %v9844
  %9846 = vmatprep.subr.mxu0 0.0
  %v9847 = vand.u32 %v8844, 4294901760
  %9848 = vmatpush1.msra.mxu0 %v9847
  %9849 = vmatprep.subr.mxu0 0.0
  %9850 = vmatpush1.msra.mxu0 0.0
  %9851 = vmatprep.subr.mxu0 0.0
  %9852 = vmatpush1.msra.mxu0 0.0
  %9853 = vmatprep.subr.mxu0 0.0
  %9854 = vmatpush1.msra.mxu0 0.0
  %9855 = vmatprep.subr.mxu0 0.0
  %9856 = vmatpush1.msra.mxu0 0.0
  %9857 = vmatprep.subr.mxu0 0.0
  %9858 = vmatpush1.msra.mxu0 0.0
  %9859 = vmatprep.subr.mxu0 0.0
  %9860 = vmatpush1.msra.mxu0 0.0
  %9861 = vmatprep.subr.mxu0 0.0
  %9862 = vmatpush1.msra.mxu0 0.0
  %9863 = vmatprep.subr.mxu0 0.0
  %9864 = vmatpush1.msra.mxu0 0.0
  %9865 = vmatprep.subr.mxu0 0.0
  %9866 = vmatpush1.msra.mxu0 0.0
  %9867 = vmatprep.subr.mxu0 0.0
  %9868 = vmatpush1.msra.mxu0 0.0
  %9869 = vmatprep.subr.mxu0 0.0
  %9870 = vmatpush1.msra.mxu0 0.0
  %9871 = vmatprep.subr.mxu0 0.0
  %9872 = vmatpush1.msra.mxu0 0.0
  %9873 = vmatprep.subr.mxu0 0.0
  %9874 = vmatpush1.msra.mxu0 0.0
  %9875 = vmatprep.subr.mxu0 0.0
  %9876 = vmatpush1.msra.mxu0 0.0
  %9877 = vmatprep.subr.mxu0 0.0
  %9878 = vmatpush1.msra.mxu0 0.0
  %9879 = vmatprep.subr.mxu0 0.0
  %9880 = vmatpush1.msra.mxu0 0.0
  %9881 = vmatprep.subr.mxu0 0.0
  %9882 = vmatpush1.msra.mxu0 0.0
  %9883 = vmatprep.subr.mxu0 0.0
  %9884 = vmatpush1.msra.mxu0 0.0
  %9885 = vmatprep.subr.mxu0 0.0
  %9886 = vmatpush1.msra.mxu0 0.0
  %9887 = vmatprep.subr.mxu0 0.0
  %9888 = vmatpush1.msra.mxu0 0.0
  %9889 = vmatprep.subr.mxu0 0.0
  %9890 = vmatpush1.msra.mxu0 0.0
  %9891 = vmatprep.subr.mxu0 0.0
  %9892 = vmatpush1.msra.mxu0 0.0
  %9893 = vmatprep.subr.mxu0 0.0
  %9894 = vmatpush1.msra.mxu0 0.0
  %9895 = vmatprep.subr.mxu0 0.0
  %9896 = vmatpush1.msra.mxu0 0.0
  %9897 = vmatprep.subr.mxu0 0.0
  %9898 = vmatpush1.msra.mxu0 0.0
  %9899 = vmatprep.subr.mxu0 0.0
  %9900 = vmatpush1.msra.mxu0 0.0
  %9901 = vmatprep.subr.mxu0 0.0
  %9902 = vmatpush1.msra.mxu0 0.0
  %9903 = vmatprep.subr.mxu0 0.0
  %9904 = vmatpush1.msra.mxu0 0.0
  %9905 = vmatprep.mubr.f32.mxu0 0.0
  %v9906 = vand.u32 %v9385, 4294901760
  %9907 = vmatmul.mubr.f32.gmra.mrb[0].mxu0 %v9906
  %v9908 = vpop.f32.mrb[0].mxu0
  %v9909 = vadd.f32 %v9828, %v9908
  %v9910 = vpop.f32.mrb[0].mxu0
  %9911 = vmatprep.mubr.f32.mxu0 0.0
  %v9912 = vand.u32 %v9388, 4294901760
  %9913 = vmatmul.mubr.f32.gmra.mrb[0].mxu0 %v9912
  %v9914 = vpop.f32.mrb[0].mxu0
  %v9915 = vadd.f32 %v9834, %v9914
  %v9916 = vpop.f32.mrb[0].mxu0
  %9917 = vdwg.mxu0
  %v9918 = vmax.f32 %v9373, %v9909
  %v9919 = vmax.f32 %v9379, %v9915
  %9920 = vst.msk [vmem:[%s13] sm:$0xff] %vm52, %v9918
  %9921 = vst.msk [vmem:[%s13 + $0x8] sm:$0xff] %vm52, %v9919
  // Predicated region
  $region50: #{down_transition_forward.1} parent=0 // pred_check
    _
  $region51: #{down_transition_forward.1} parent=0 // pred_check_branch
    %9923 = sbr.rel (0) target = $region53
  $region52: #{down_transition_forward.1} parent=0 // pred_region
    _
  $region53: #{down_transition_forward.1} parent=0 // pred_fallthru
    _
  // Predicated region
  $region54: #{down_transition_forward.1} parent=0 // pred_check
    _
  $region55: #{down_transition_forward.1} parent=0 // pred_check_branch
    %9925 = sbr.rel (0) target = $region57
  $region56: #{down_transition_forward.1} parent=0 // pred_region
    _
  $region57: #{down_transition_forward.1} parent=0 // pred_fallthru
    _
  // Predicated region
  $region58: #{down_transition_forward.1} parent=0 // pred_check
    _
  $region59: #{down_transition_forward.1} parent=0 // pred_check_branch
    %9927 = sbr.rel (0) target = $region61
  $region60: #{down_transition_forward.1} parent=0 // pred_region
    _
  $region61: #{down_transition_forward.1} parent=0 // pred_fallthru
    _
  // Predicated region
  $region62: #{down_transition_forward.1} parent=0 // pred_check
    _
  $region63: #{down_transition_forward.1} parent=0 // pred_check_branch
    %9929 = sbr.rel (0) target = $region65
  $region64: #{down_transition_forward.1} parent=0 // pred_region
    _
  $region65: #{down_transition_forward.1} parent=0 // pred_fallthru
    _

</llo_original>
